<compile_context>
chip_gen: v5e
topology: v5e:2x2
jax: 0.10.0
libtpu: 0.0.40
codegen_flags: <defaults>
</compile_context>

<pallas_src>
import functools
import math

import numpy as np
import jax
import jax.numpy as jnp
from jax import lax
from jax.experimental import pallas as pl
from jax.experimental.pallas import tpu as pltpu  # noqa: F401  (TPU backend assumed)

# ---------------- config (small, consistent with the module's forward) ----------------
DTYPE = jnp.float32
BATCH = 2
IMG = 16                 # input_resolution
PATCH = 8                # vision_patch_size
GRID = IMG // PATCH
NUM_PATCHES = GRID * GRID            # 4
SEQ_V = 1 + NUM_PATCHES              # CLS + patches = 5
VISION_WIDTH = 32
VISION_HEADS = 4
VISION_LAYERS = 2
EMBED_DIM = 16

TEXT_WIDTH = 32
TEXT_HEADS = 4
TEXT_LAYERS = 2
VOCAB = 64
CONTEXT_LENGTH = 12
N_CTX = 4                # synthetic small context length (module default is 16)
CLASSNAMES = ["normal", "abnormal"]

SOT_TOK = 1
EOT_TOK = VOCAB - 1      # max id -> argmax picks EOT position, like CLIP
DOT_TOK = 3
X_TOK = 4


# ---------------- in-kernel helpers (pure jnp on values, all float32) ----------------
def _layernorm(x, g, b):
    mu = jnp.mean(x, axis=-1, keepdims=True)
    var = jnp.mean((x - mu) ** 2, axis=-1, keepdims=True)
    return (x - mu) * lax.rsqrt(var + 1e-5) * g + b


def _l2_normalize(x):
    n2 = jnp.sum(x * x, axis=-1, keepdims=True)
    return x * lax.rsqrt(jnp.maximum(n2, 1e-30))   # tiny floor avoids NaN on all-zero rows


def _transformer_stack(x, qkv_w, out_w, fc1_w, fc2_w, vecs, attn_bias, *, num_layers, heads):
    """Residual-attention-block stack on a flattened (num_seqs*seq_len, D) slab.

    Cross-sequence attention is prevented by `attn_bias` (block-diagonal, plus
    causal masking for the text encoder), so all batch items / prompts run in
    one set of matmuls.  QKV is one fused matmul; out-projection is one matmul
    against the un-split (D, D) weight.
    """
    BS, D = x.shape
    hd = D // heads
    scale = 1.0 / math.sqrt(hd)

    for l in range(num_layers):
        v_l = vecs[l]                                  # (8, 4D) packed small vectors
        qkv_b = v_l[0:1, :3 * D]
        out_b = v_l[1:2, :D]
        ln1_g, ln1_b = v_l[2:3, :D], v_l[3:4, :D]
        ln2_g, ln2_b = v_l[4:5, :D], v_l[5:6, :D]
        fc1_b = v_l[6:7, :4 * D]
        fc2_b = v_l[7:8, :D]

        # --- attention: x = x + out_proj(mha(ln_1(x))) ---
        y = _layernorm(x, ln1_g, ln1_b)
        qkv = jnp.dot(y, qkv_w[l], preferred_element_type=jnp.float32) + qkv_b   # (BS, 3D)
        head_outs = []
        for h in range(heads):
            q = qkv[:, h * hd:(h + 1) * hd]
            k = qkv[:, D + h * hd:D + (h + 1) * hd]
            v = qkv[:, 2 * D + h * hd:2 * D + (h + 1) * hd]
            s = lax.dot_general(q, k, (((1,), (1,)), ((), ())),
                                preferred_element_type=jnp.float32) * scale + attn_bias
            s = s - jnp.max(s, axis=-1, keepdims=True)
            p = jnp.exp(s)
            p = p * pl.reciprocal(jnp.sum(p, axis=-1, keepdims=True), approx=True)
            head_outs.append(jnp.dot(p, v, preferred_element_type=jnp.float32))  # (BS, hd)
        o = jnp.concatenate(head_outs, axis=-1)                                  # (BS, D)
        x = x + jnp.dot(o, out_w[l], preferred_element_type=jnp.float32) + out_b

        # --- mlp: x = x + c_proj(QuickGELU(c_fc(ln_2(x)))) ---
        y = _layernorm(x, ln2_g, ln2_b)
        hmid = jnp.dot(y, fc1_w[l], preferred_element_type=jnp.float32) + fc1_b
        hmid = hmid * jax.nn.sigmoid(1.702 * hmid)
        x = x + jnp.dot(hmid, fc2_w[l], preferred_element_type=jnp.float32) + fc2_b
    return x


# ---------------- the single fused Pallas kernel ----------------
def fused_clip_kernel(
        # vision inputs
        patches_ref, mgate_ref, base_ref, conv_w_ref,
        v_qkv_w_ref, v_out_w_ref, v_fc1_w_ref, v_fc2_w_ref, v_vecs_ref, v_glob_ref,
        v_bias_ref, cls_sel_ref, v_proj_ref,
        # text inputs
        x0_text_ref, t_qkv_w_ref, t_out_w_ref, t_fc1_w_ref, t_fc2_w_ref, t_vecs_ref, t_glob_ref,
        t_bias_ref, eot_sel_ref, t_proj_ref,
        # outputs
        img_out_ref, txt_out_ref,
        *, v_layers, v_heads, t_layers, t_heads):
    # ---------------- vision encoder ----------------
    # patch-embedding conv (stride = patch) lowered to one matmul; CLS rows of
    # `patches` are zero, `base` carries class_embedding / mask_embedding*(1-mask),
    # `mgate` carries the ceil(avg-pooled mask) gate.
    pe = jnp.dot(patches_ref[...], conv_w_ref[...], preferred_element_type=jnp.float32)  # (B*S, W)
    x = pe * mgate_ref[...] + base_ref[...]

    vg = v_glob_ref[...]                                  # rows: ln_pre_g, ln_pre_b, ln_post_g, ln_post_b
    x = _layernorm(x, vg[0:1], vg[1:2])
    x = _transformer_stack(x, v_qkv_w_ref[...], v_out_w_ref[...], v_fc1_w_ref[...],
                           v_fc2_w_ref[...], v_vecs_ref[...], v_bias_ref[...],
                           num_layers=v_layers, heads=v_heads)
    cls = jnp.dot(cls_sel_ref[...], x, preferred_element_type=jnp.float32)                # (B, W)
    cls = _layernorm(cls, vg[2:3], vg[3:4])
    img = jnp.dot(cls, v_proj_ref[...], preferred_element_type=jnp.float32)               # (B, E)
    img_out_ref[...] = _l2_normalize(img).astype(img_out_ref.dtype)

    # ---------------- text encoder ----------------
    xt = x0_text_ref[...]                                 # prompts + positional embedding, flattened
    tg = t_glob_ref[...]                                  # rows: ln_final_g, ln_final_b
    xt = _transformer_stack(xt, t_qkv_w_ref[...], t_out_w_ref[...], t_fc1_w_ref[...],
                            t_fc2_w_ref[...], t_vecs_ref[...], t_bias_ref[...],
                            num_layers=t_layers, heads=t_heads)
    xt = _layernorm(xt, tg[0:1], tg[1:2])
    xe = jnp.dot(eot_sel_ref[...], xt, preferred_element_type=jnp.float32)                # (NSEQ, W)
    txt = jnp.dot(xe, t_proj_ref[...], preferred_element_type=jnp.float32)                # (NSEQ, E)
    txt_out_ref[...] = _l2_normalize(txt).astype(txt_out_ref.dtype)


# ---------------- parameter packing (outside the kernel, runs once per call) ----------------
def _pack_layer_params(layers, D):
    """Stack per-layer weights along a leading layer axis; keep natural (D,*) lane
    layouts (no per-head splitting) and pack all small vectors into one (L,8,4D) slab."""
    stk = lambda key: jnp.stack([ly[key] for ly in layers], axis=0).astype(DTYPE)
    qkv_w = stk("qkv_w")                 # (L, D, 3D)
    out_w = stk("out_w")                 # (L, D, D)
    fc1_w = stk("fc1_w")                 # (L, D, 4D)
    fc2_w = stk("fc2_w")                 # (L, 4D, D)
    width = 4 * D                        # 128 lanes -> exactly one vreg-wide row

    def row(key):
        v = stk(key)                     # (L, n)
        return jnp.pad(v, ((0, 0), (0, width - v.shape[-1])))

    vecs = jnp.stack([row("qkv_b"), row("out_b"),
                      row("ln1_g"), row("ln1_b"),
                      row("ln2_g"), row("ln2_b"),
                      row("fc1_b"), row("fc2_b")], axis=1)   # (L, 8, 4D)
    return qkv_w, out_w, fc1_w, fc2_w, vecs


def _block_bias(num_seqs, seq_len, causal):
    """Additive attention bias: block-diagonal over sequences (+ causal within a sequence)."""
    n = num_seqs * seq_len
    i = np.arange(n)
    same = (i[:, None] // seq_len) == (i[None, :] // seq_len)
    if causal:
        same = same & (i[None, :] <= i[:, None])
    return jnp.asarray(np.where(same, 0.0, -1e30).astype(np.float32))


# ---------------- module forward pieces (JAX glue) ----------------
def image_mask_learner_forward(mp, image_mask):
    # ImageMaskLearner.forward: AvgPool2d(patch) -> reshape -> ceil
    B = image_mask.shape[0]
    m = image_mask[:, 0]                                            # squeeze(1): (B, H, W)
    m = m.reshape(B, GRID, PATCH, GRID, PATCH).mean(axis=(2, 4))    # avg pool
    m = m.reshape(B, -1)[:, :, None]                                # (B, num_patches, 1)
    m = jnp.ceil(m)
    memb = mp["mask_embedding"]                                     # (1, num_patches, width)
    return m.astype(DTYPE), memb.astype(DTYPE)


def _tokenize_word(w):
    return 5 + (sum(ord(c) for c in w) % (VOCAB - 7))      # synthetic deterministic tokenizer


def prompt_learner_forward(pp, tp, position_names):
    """Builds prompts for ALL position names at once -> one batched text-encoder pass."""
    n_cls = len(CLASSNAMES)
    name_tokens = [[_tokenize_word(w) for w in name.replace("_", " ").split()]
                   for name in CLASSNAMES]
    name_lens = [len(t) for t in name_tokens]
    all_prompts, all_tok = [], []
    for position_name in position_names:
        pos_tokens = [_tokenize_word(w) for w in position_name.split()] if position_name else []
        pos_len = len(pos_tokens)
        tok = np.zeros((n_cls, CONTEXT_LENGTH), dtype=np.int32)
        for i, nt in enumerate(name_tokens):
            seq = [SOT_TOK] + pos_tokens + [X_TOK] * N_CTX + nt + [DOT_TOK, EOT_TOK]
            tok[i, :len(seq)] = seq
        tokenized = jnp.asarray(tok)
        embedding = tp["token_embedding"][tokenized].astype(DTYPE)  # (n_cls, ctx_len, D)
        prefix = embedding[:, : 1 + pos_len]
        suffix = embedding[:, 1 + pos_len + N_CTX:]
        ctx = jnp.broadcast_to(pp["ctx"][None].astype(DTYPE), (n_cls, N_CTX, TEXT_WIDTH))
        half = N_CTX // 2
        prompts = []
        for i in range(n_cls):                                  # class_token_position == 'middle'
            nl = name_lens[i]
            prompts.append(jnp.concatenate(
                [prefix[i:i + 1],
                 ctx[i:i + 1, :half],
                 suffix[i:i + 1, :nl],
                 ctx[i:i + 1, half:],
                 suffix[i:i + 1, nl:]],
                axis=1))
        all_prompts.append(jnp.concatenate(prompts, axis=0))
        all_tok.append(tokenized)
    prompts = jnp.concatenate(all_prompts, axis=0).astype(DTYPE)   # (n_pos*n_cls, CTX, D)
    tokenized = jnp.concatenate(all_tok, axis=0)                   # (n_pos*n_cls, CTX)
    return prompts, tokenized


def extract_anomaly_feature_forward(params, image, pos_embedding=False,
                                    image_mask=None, position_name=("",)):
    n_pos = len(position_name)
    B = image.shape[0]
    assert n_pos == B, "one position name per batch image is assumed"
    W = VISION_WIDTH

    vp, tp, pp = params["vision"], params["text"], params["prompt"]

    # ---- ImageMaskLearner (pure data movement) ----
    if image_mask is not None:
        mask, mask_embedding = image_mask_learner_forward(params["mask_learner"], image_mask)
        mrows = mask                                                 # (B, P, 1)
        brows = (mask_embedding[0][None] * (1.0 - mrows)).astype(DTYPE)
    else:
        mrows = jnp.ones((B, NUM_PATCHES, 1), DTYPE)
        brows = jnp.zeros((B, NUM_PATCHES, W), DTYPE)

    # ---- vision-input assembly (patch extraction etc., pure data movement) ----
    C = image.shape[1]
    CPP = C * PATCH * PATCH
    patches = image.astype(DTYPE).reshape(B, C, GRID, PATCH, GRID, PATCH)
    patches = patches.transpose(0, 2, 4, 1, 3, 5).reshape(B, NUM_PATCHES, CPP)
    patches_aug = jnp.concatenate([jnp.zeros((B, 1, CPP), DTYPE), patches], axis=1)
    patches_flat = patches_aug.reshape(B * SEQ_V, CPP)

    cls_row = jnp.broadcast_to(vp["class_embedding"][None, None, :], (B, 1, W)).astype(DTYPE)
    mgate = jnp.concatenate([jnp.zeros((B, 1, 1), DTYPE), mrows], axis=1).reshape(B * SEQ_V, 1)
    base = jnp.concatenate([cls_row, brows], axis=1).reshape(B * SEQ_V, W)

    # TODO(synk): bicubic-interpolated positional-embedding path (pos_embedding=True) not
    # implemented; ExtractAnomalyFeature.forward calls the image encoder with pos_embedding=False.

    v_qkv_w, v_out_w, v_fc1_w, v_fc2_w, v_vecs = _pack_layer_params(vp["layers"], W)
    v_glob = jnp.stack([vp["ln_pre_g"], vp["ln_pre_b"],
                        vp["ln_post_g"], vp["ln_post_b"]], axis=0).astype(DTYPE)   # (4, W)
    v_bias = _block_bias(B, SEQ_V, causal=False)
    cls_sel = jax.nn.one_hot(np.arange(B) * SEQ_V, B * SEQ_V, dtype=DTYPE)          # (B, B*S)

    # ---- prompt assembly + text-input packing (pure data movement) ----
    prompts, tokenized = prompt_learner_forward(pp, tp, position_name)
    NSEQ = prompts.shape[0]
    x0_text = (prompts + tp["positional_embedding"][None].astype(DTYPE)
               ).reshape(NSEQ * CONTEXT_LENGTH, TEXT_WIDTH)
    t_qkv_w, t_out_w, t_fc1_w, t_fc2_w, t_vecs = _pack_layer_params(tp["layers"], TEXT_WIDTH)
    t_glob = jnp.stack([tp["ln_final_g"], tp["ln_final_b"]], axis=0).astype(DTYPE)  # (2, W)
    t_bias = _block_bias(NSEQ, CONTEXT_LENGTH, causal=True)
    eot_idx = jnp.argmax(tokenized, axis=-1).astype(jnp.int32)                      # (NSEQ,)
    eot_sel = jax.nn.one_hot(jnp.arange(NSEQ) * CONTEXT_LENGTH + eot_idx,
                             NSEQ * CONTEXT_LENGTH, dtype=DTYPE)                    # (NSEQ, NSEQ*CTX)

    inputs = [
        patches_flat, mgate, base, vp["conv1_w"].astype(DTYPE),
        v_qkv_w, v_out_w, v_fc1_w, v_fc2_w, v_vecs, v_glob,
        v_bias, cls_sel, vp["proj"].astype(DTYPE),
        x0_text, t_qkv_w, t_out_w, t_fc1_w, t_fc2_w, t_vecs, t_glob,
        t_bias, eot_sel, tp["text_projection"].astype(DTYPE),
    ]

    kern = functools.partial(fused_clip_kernel,
                             v_layers=len(vp["layers"]), v_heads=VISION_HEADS,
                             t_layers=len(tp["layers"]), t_heads=TEXT_HEADS)

    # Single launch, no grid: every operand is a whole-array VMEM ref (well under 1 MiB
    # total), so there is no per-step pipeline overhead or weight double-buffering.
    image_features, text_features = pl.pallas_call(
        kern,
        out_shape=(jax.ShapeDtypeStruct((B, EMBED_DIM), DTYPE),
                   jax.ShapeDtypeStruct((NSEQ, EMBED_DIM), DTYPE)),
    )(*inputs)

    # combine: [image_feature_i ; text_feature_abnormal_i]  (pure data movement)
    text_features = text_features.reshape(n_pos, len(CLASSNAMES), EMBED_DIM)
    out = jnp.concatenate([image_features[:n_pos], text_features[:, 1, :]], axis=-1)
    return out                                                 # (n_pos, 2*embed_dim)


# ---------------- deterministic parameter init ----------------
def init_params(seed=0):
    base = jax.random.PRNGKey(seed)
    ctr = [0]

    def nrm(shape, std=0.02):
        ctr[0] += 1
        return jax.random.normal(jax.random.fold_in(base, ctr[0]), shape, jnp.float32) * std

    def make_layer(D):
        return dict(
            ln1_g=jnp.ones((D,), jnp.float32), ln1_b=jnp.zeros((D,), jnp.float32),
            qkv_w=nrm((D, 3 * D)), qkv_b=jnp.zeros((3 * D,), jnp.float32),
            out_w=nrm((D, D)), out_b=jnp.zeros((D,), jnp.float32),
            ln2_g=jnp.ones((D,), jnp.float32), ln2_b=jnp.zeros((D,), jnp.float32),
            fc1_w=nrm((D, 4 * D)), fc1_b=jnp.zeros((4 * D,), jnp.float32),
            fc2_w=nrm((4 * D, D)), fc2_b=jnp.zeros((D,), jnp.float32),
        )

    vision = dict(
        conv1_w=nrm((3 * PATCH * PATCH, VISION_WIDTH)),
        class_embedding=nrm((VISION_WIDTH,)),
        positional_embedding=nrm((NUM_PATCHES + 1, VISION_WIDTH)),   # unused (pos_embedding=False)
        ln_pre_g=jnp.ones((VISION_WIDTH,), jnp.float32), ln_pre_b=jnp.zeros((VISION_WIDTH,), jnp.float32),
        layers=[make_layer(VISION_WIDTH) for _ in range(VISION_LAYERS)],
        ln_post_g=jnp.ones((VISION_WIDTH,), jnp.float32), ln_post_b=jnp.zeros((VISION_WIDTH,), jnp.float32),
        proj=nrm((VISION_WIDTH, EMBED_DIM)),
    )
    text = dict(
        token_embedding=nrm((VOCAB, TEXT_WIDTH)),
        positional_embedding=nrm((CONTEXT_LENGTH, TEXT_WIDTH)),
        layers=[make_layer(TEXT_WIDTH) for _ in range(TEXT_LAYERS)],
        ln_final_g=jnp.ones((TEXT_WIDTH,), jnp.float32), ln_final_b=jnp.zeros((TEXT_WIDTH,), jnp.float32),
        text_projection=nrm((TEXT_WIDTH, EMBED_DIM)),
    )
    mask_learner = dict(mask_embedding=nrm((1, NUM_PATCHES, VISION_WIDTH)) * 10.0)  # init *= 10
    prompt = dict(ctx=nrm((N_CTX, TEXT_WIDTH)))
    return dict(vision=vision, text=text, mask_learner=mask_learner, prompt=prompt)


# ---------------- main ----------------
if __name__ == "__main__":
    params = init_params(0)

    key = jax.random.PRNGKey(0)
    k_img, k_mask = jax.random.split(key)
    image = jax.random.normal(k_img, (BATCH, 3, IMG, IMG), jnp.float32)             # NCHW
    image_mask = (jax.random.uniform(k_mask, (BATCH, 1, IMG, IMG)) > 0.5).astype(jnp.float32)
    position_names = ["top", "bottom"]                                              # one per batch item

    out = extract_anomaly_feature_forward(params, image, pos_embedding=False,
                                          image_mask=image_mask, position_name=position_names)
    out = jax.block_until_ready(out)

    assert out.shape == (len(position_names), 2 * EMBED_DIM), out.shape
    assert bool(jnp.all(jnp.isfinite(out)))
    print("KERNEL_OK")
</pallas_src>

<mosaic_0001>
module attributes {stable_mosaic.version = 11 : i64} {
  func.func @fused_clip_kernel(%arg0: memref<10x192xf32, #tpu.memory_space<vmem>>, %arg1: memref<10x1xf32, #tpu.memory_space<vmem>>, %arg2: memref<10x32xf32, #tpu.memory_space<vmem>>, %arg3: memref<192x32xf32, #tpu.memory_space<vmem>>, %arg4: memref<2x32x96xf32, #tpu.memory_space<vmem>>, %arg5: memref<2x32x32xf32, #tpu.memory_space<vmem>>, %arg6: memref<2x32x128xf32, #tpu.memory_space<vmem>>, %arg7: memref<2x128x32xf32, #tpu.memory_space<vmem>>, %arg8: memref<2x8x128xf32, #tpu.memory_space<vmem>>, %arg9: memref<4x32xf32, #tpu.memory_space<vmem>>, %arg10: memref<10x10xf32, #tpu.memory_space<vmem>>, %arg11: memref<2x10xf32, #tpu.memory_space<vmem>>, %arg12: memref<32x16xf32, #tpu.memory_space<vmem>>, %arg13: memref<48x32xf32, #tpu.memory_space<vmem>>, %arg14: memref<2x32x96xf32, #tpu.memory_space<vmem>>, %arg15: memref<2x32x32xf32, #tpu.memory_space<vmem>>, %arg16: memref<2x32x128xf32, #tpu.memory_space<vmem>>, %arg17: memref<2x128x32xf32, #tpu.memory_space<vmem>>, %arg18: memref<2x8x128xf32, #tpu.memory_space<vmem>>, %arg19: memref<2x32xf32, #tpu.memory_space<vmem>>, %arg20: memref<48x48xf32, #tpu.memory_space<vmem>>, %arg21: memref<4x48xf32, #tpu.memory_space<vmem>>, %arg22: memref<32x16xf32, #tpu.memory_space<vmem>>, %arg23: memref<2x16xf32, #tpu.memory_space<vmem>>, %arg24: memref<4x16xf32, #tpu.memory_space<vmem>>) attributes {dimension_semantics = [], scalar_prefetch = 0 : i64, scratch_operands = 0 : i64, tpu.core_type = #tpu.core_type<tc>} {
    %c0 = arith.constant 0 : index
    %c0_0 = arith.constant 0 : index
    %0 = vector.load %arg0[%c0, %c0_0] : memref<10x192xf32, #tpu.memory_space<vmem>>, vector<10x192xf32>
    %c0_1 = arith.constant 0 : index
    %c0_2 = arith.constant 0 : index
    %1 = vector.load %arg3[%c0_1, %c0_2] : memref<192x32xf32, #tpu.memory_space<vmem>>, vector<192x32xf32>
    %cst = arith.constant dense<0.000000e+00> : vector<10x32xf32>
    %2 = tpu.matmul %0, %1, %cst {dimension_numbers = #tpu.dot_dimension_numbers<[1], [0], [0], [1], [0, 0, 1, 1], [], []>} : vector<10x192xf32>, vector<192x32xf32>, vector<10x32xf32> -> vector<10x32xf32>
    %c0_3 = arith.constant 0 : index
    %c0_4 = arith.constant 0 : index
    %3 = vector.load %arg1[%c0_3, %c0_4] : memref<10x1xf32, #tpu.memory_space<vmem>>, vector<10x1xf32>
    %4 = vector.broadcast %3 : vector<10x1xf32> to vector<10x32xf32>
    %5 = arith.mulf %2, %4 : vector<10x32xf32>
    %c0_5 = arith.constant 0 : index
    %c0_6 = arith.constant 0 : index
    %6 = vector.load %arg2[%c0_5, %c0_6] : memref<10x32xf32, #tpu.memory_space<vmem>>, vector<10x32xf32>
    %7 = arith.addf %5, %6 : vector<10x32xf32>
    %c0_7 = arith.constant 0 : index
    %c0_8 = arith.constant 0 : index
    %8 = vector.load %arg9[%c0_7, %c0_8] : memref<4x32xf32, #tpu.memory_space<vmem>>, vector<4x32xf32>
    %9 = vector.extract_strided_slice %8 {offsets = [0, 0], sizes = [1, 32], strides = [1, 1]} : vector<4x32xf32> to vector<1x32xf32>
    %10 = vector.extract_strided_slice %8 {offsets = [1, 0], sizes = [1, 32], strides = [1, 1]} : vector<4x32xf32> to vector<1x32xf32>
    %cst_9 = arith.constant dense<0.000000e+00> : vector<10xf32>
    %11 = vector.multi_reduction <add>, %7, %cst_9 [1] : vector<10x32xf32> to vector<10xf32>
    %12 = vector.shape_cast %11 : vector<10xf32> to vector<10x1xf32>
    %cst_10 = arith.constant 3.200000e+01 : f32
    %13 = vector.broadcast %cst_10 : f32 to vector<10x1xf32>
    %14 = arith.divf %12, %13 : vector<10x1xf32>
    %15 = vector.broadcast %14 : vector<10x1xf32> to vector<10x32xf32>
    %16 = arith.subf %7, %15 : vector<10x32xf32>
    %17 = arith.mulf %16, %16 : vector<10x32xf32>
    %cst_11 = arith.constant dense<0.000000e+00> : vector<10xf32>
    %18 = vector.multi_reduction <add>, %17, %cst_11 [1] : vector<10x32xf32> to vector<10xf32>
    %19 = vector.shape_cast %18 : vector<10xf32> to vector<10x1xf32>
    %cst_12 = arith.constant 3.200000e+01 : f32
    %20 = vector.broadcast %cst_12 : f32 to vector<10x1xf32>
    %21 = arith.divf %19, %20 : vector<10x1xf32>
    %22 = vector.broadcast %14 : vector<10x1xf32> to vector<10x32xf32>
    %23 = arith.subf %7, %22 : vector<10x32xf32>
    %cst_13 = arith.constant 9.99999974E-6 : f32
    %24 = vector.broadcast %cst_13 : f32 to vector<10x1xf32>
    %25 = arith.addf %21, %24 : vector<10x1xf32>
    %26 = math.rsqrt %25 : vector<10x1xf32>
    %27 = vector.broadcast %26 : vector<10x1xf32> to vector<10x32xf32>
    %28 = arith.mulf %23, %27 : vector<10x32xf32>
    %29 = vector.broadcast %9 : vector<1x32xf32> to vector<10x32xf32>
    %30 = arith.mulf %28, %29 : vector<10x32xf32>
    %31 = vector.broadcast %10 : vector<1x32xf32> to vector<10x32xf32>
    %32 = arith.addf %30, %31 : vector<10x32xf32>
    %c0_14 = arith.constant 0 : index
    %c0_15 = arith.constant 0 : index
    %c0_16 = arith.constant 0 : index
    %33 = vector.load %arg4[%c0_14, %c0_15, %c0_16] : memref<2x32x96xf32, #tpu.memory_space<vmem>>, vector<2x32x96xf32>
    %c0_17 = arith.constant 0 : index
    %c0_18 = arith.constant 0 : index
    %c0_19 = arith.constant 0 : index
    %34 = vector.load %arg5[%c0_17, %c0_18, %c0_19] : memref<2x32x32xf32, #tpu.memory_space<vmem>>, vector<2x32x32xf32>
    %c0_20 = arith.constant 0 : index
    %c0_21 = arith.constant 0 : index
    %c0_22 = arith.constant 0 : index
    %35 = vector.load %arg6[%c0_20, %c0_21, %c0_22] : memref<2x32x128xf32, #tpu.memory_space<vmem>>, vector<2x32x128xf32>
    %c0_23 = arith.constant 0 : index
    %c0_24 = arith.constant 0 : index
    %c0_25 = arith.constant 0 : index
    %36 = vector.load %arg7[%c0_23, %c0_24, %c0_25] : memref<2x128x32xf32, #tpu.memory_space<vmem>>, vector<2x128x32xf32>
    %c0_26 = arith.constant 0 : index
    %c0_27 = arith.constant 0 : index
    %c0_28 = arith.constant 0 : index
    %37 = vector.load %arg8[%c0_26, %c0_27, %c0_28] : memref<2x8x128xf32, #tpu.memory_space<vmem>>, vector<2x8x128xf32>
    %c0_29 = arith.constant 0 : index
    %c0_30 = arith.constant 0 : index
    %38 = vector.load %arg10[%c0_29, %c0_30] : memref<10x10xf32, #tpu.memory_space<vmem>>, vector<10x10xf32>
    %39 = vector.extract_strided_slice %37 {offsets = [0, 0, 0], sizes = [1, 8, 128], strides = [1, 1, 1]} : vector<2x8x128xf32> to vector<1x8x128xf32>
    %40 = vector.shape_cast %39 : vector<1x8x128xf32> to vector<8x128xf32>
    %41 = vector.extract_strided_slice %40 {offsets = [0, 0], sizes = [1, 96], strides = [1, 1]} : vector<8x128xf32> to vector<1x96xf32>
    %42 = vector.extract_strided_slice %40 {offsets = [1, 0], sizes = [1, 32], strides = [1, 1]} : vector<8x128xf32> to vector<1x32xf32>
    %43 = vector.extract_strided_slice %40 {offsets = [2, 0], sizes = [1, 32], strides = [1, 1]} : vector<8x128xf32> to vector<1x32xf32>
    %44 = vector.extract_strided_slice %40 {offsets = [3, 0], sizes = [1, 32], strides = [1, 1]} : vector<8x128xf32> to vector<1x32xf32>
    %45 = vector.extract_strided_slice %40 {offsets = [4, 0], sizes = [1, 32], strides = [1, 1]} : vector<8x128xf32> to vector<1x32xf32>
    %46 = vector.extract_strided_slice %40 {offsets = [5, 0], sizes = [1, 32], strides = [1, 1]} : vector<8x128xf32> to vector<1x32xf32>
    %47 = vector.extract_strided_slice %40 {offsets = [6, 0], sizes = [1, 128], strides = [1, 1]} : vector<8x128xf32> to vector<1x128xf32>
    %48 = vector.extract_strided_slice %40 {offsets = [7, 0], sizes = [1, 32], strides = [1, 1]} : vector<8x128xf32> to vector<1x32xf32>
    %cst_31 = arith.constant dense<0.000000e+00> : vector<10xf32>
    %49 = vector.multi_reduction <add>, %32, %cst_31 [1] : vector<10x32xf32> to vector<10xf32>
    %50 = vector.shape_cast %49 : vector<10xf32> to vector<10x1xf32>
    %cst_32 = arith.constant 3.200000e+01 : f32
    %51 = vector.broadcast %cst_32 : f32 to vector<10x1xf32>
    %52 = arith.divf %50, %51 : vector<10x1xf32>
    %53 = vector.broadcast %52 : vector<10x1xf32> to vector<10x32xf32>
    %54 = arith.subf %32, %53 : vector<10x32xf32>
    %55 = arith.mulf %54, %54 : vector<10x32xf32>
    %cst_33 = arith.constant dense<0.000000e+00> : vector<10xf32>
    %56 = vector.multi_reduction <add>, %55, %cst_33 [1] : vector<10x32xf32> to vector<10xf32>
    %57 = vector.shape_cast %56 : vector<10xf32> to vector<10x1xf32>
    %cst_34 = arith.constant 3.200000e+01 : f32
    %58 = vector.broadcast %cst_34 : f32 to vector<10x1xf32>
    %59 = arith.divf %57, %58 : vector<10x1xf32>
    %60 = vector.broadcast %52 : vector<10x1xf32> to vector<10x32xf32>
    %61 = arith.subf %32, %60 : vector<10x32xf32>
    %cst_35 = arith.constant 9.99999974E-6 : f32
    %62 = vector.broadcast %cst_35 : f32 to vector<10x1xf32>
    %63 = arith.addf %59, %62 : vector<10x1xf32>
    %64 = math.rsqrt %63 : vector<10x1xf32>
    %65 = vector.broadcast %64 : vector<10x1xf32> to vector<10x32xf32>
    %66 = arith.mulf %61, %65 : vector<10x32xf32>
    %67 = vector.broadcast %43 : vector<1x32xf32> to vector<10x32xf32>
    %68 = arith.mulf %66, %67 : vector<10x32xf32>
    %69 = vector.broadcast %44 : vector<1x32xf32> to vector<10x32xf32>
    %70 = arith.addf %68, %69 : vector<10x32xf32>
    %71 = vector.extract_strided_slice %33 {offsets = [0, 0, 0], sizes = [1, 32, 96], strides = [1, 1, 1]} : vector<2x32x96xf32> to vector<1x32x96xf32>
    %72 = vector.shape_cast %71 : vector<1x32x96xf32> to vector<32x96xf32>
    %cst_36 = arith.constant dense<0.000000e+00> : vector<10x96xf32>
    %73 = tpu.matmul %70, %72, %cst_36 {dimension_numbers = #tpu.dot_dimension_numbers<[1], [0], [0], [1], [0, 0, 1, 1], [], []>} : vector<10x32xf32>, vector<32x96xf32>, vector<10x96xf32> -> vector<10x96xf32>
    %74 = vector.broadcast %41 : vector<1x96xf32> to vector<10x96xf32>
    %75 = arith.addf %73, %74 : vector<10x96xf32>
    %76 = vector.extract_strided_slice %75 {offsets = [0, 0], sizes = [10, 8], strides = [1, 1]} : vector<10x96xf32> to vector<10x8xf32>
    %77 = vector.extract_strided_slice %75 {offsets = [0, 32], sizes = [10, 8], strides = [1, 1]} : vector<10x96xf32> to vector<10x8xf32>
    %78 = vector.extract_strided_slice %75 {offsets = [0, 64], sizes = [10, 8], strides = [1, 1]} : vector<10x96xf32> to vector<10x8xf32>
    %cst_37 = arith.constant dense<0.000000e+00> : vector<10x10xf32>
    %79 = tpu.matmul %76, %77, %cst_37 {dimension_numbers = #tpu.dot_dimension_numbers<[1], [1], [0], [0], [0, 0, 1, 0], [], []>} : vector<10x8xf32>, vector<10x8xf32>, vector<10x10xf32> -> vector<10x10xf32>
    %cst_38 = arith.constant 0.353553385 : f32
    %80 = vector.broadcast %cst_38 : f32 to vector<10x10xf32>
    %81 = arith.mulf %79, %80 : vector<10x10xf32>
    %82 = arith.addf %81, %38 : vector<10x10xf32>
    %cst_39 = arith.constant dense<0xFF800000> : vector<10xf32>
    %83 = vector.multi_reduction <maximumf>, %82, %cst_39 [1] : vector<10x10xf32> to vector<10xf32>
    %84 = vector.shape_cast %83 : vector<10xf32> to vector<10x1xf32>
    %85 = vector.broadcast %84 : vector<10x1xf32> to vector<10x10xf32>
    %86 = arith.subf %82, %85 : vector<10x10xf32>
    %87 = math.exp %86 : vector<10x10xf32>
    %cst_40 = arith.constant dense<0.000000e+00> : vector<10xf32>
    %88 = vector.multi_reduction <add>, %87, %cst_40 [1] : vector<10x10xf32> to vector<10xf32>
    %89 = vector.shape_cast %88 : vector<10xf32> to vector<10x1xf32>
    %90 = tpu.reciprocal %89 {approx = true} : vector<10x1xf32> -> vector<10x1xf32>
    %91 = vector.broadcast %90 : vector<10x1xf32> to vector<10x10xf32>
    %92 = arith.mulf %87, %91 : vector<10x10xf32>
    %cst_41 = arith.constant dense<0.000000e+00> : vector<10x8xf32>
    %93 = tpu.matmul %92, %78, %cst_41 {dimension_numbers = #tpu.dot_dimension_numbers<[1], [0], [0], [1], [0, 0, 1, 1], [], []>} : vector<10x10xf32>, vector<10x8xf32>, vector<10x8xf32> -> vector<10x8xf32>
    %94 = vector.extract_strided_slice %75 {offsets = [0, 8], sizes = [10, 8], strides = [1, 1]} : vector<10x96xf32> to vector<10x8xf32>
    %95 = vector.extract_strided_slice %75 {offsets = [0, 40], sizes = [10, 8], strides = [1, 1]} : vector<10x96xf32> to vector<10x8xf32>
    %96 = vector.extract_strided_slice %75 {offsets = [0, 72], sizes = [10, 8], strides = [1, 1]} : vector<10x96xf32> to vector<10x8xf32>
    %cst_42 = arith.constant dense<0.000000e+00> : vector<10x10xf32>
    %97 = tpu.matmul %94, %95, %cst_42 {dimension_numbers = #tpu.dot_dimension_numbers<[1], [1], [0], [0], [0, 0, 1, 0], [], []>} : vector<10x8xf32>, vector<10x8xf32>, vector<10x10xf32> -> vector<10x10xf32>
    %cst_43 = arith.constant 0.353553385 : f32
    %98 = vector.broadcast %cst_43 : f32 to vector<10x10xf32>
    %99 = arith.mulf %97, %98 : vector<10x10xf32>
    %100 = arith.addf %99, %38 : vector<10x10xf32>
    %cst_44 = arith.constant dense<0xFF800000> : vector<10xf32>
    %101 = vector.multi_reduction <maximumf>, %100, %cst_44 [1] : vector<10x10xf32> to vector<10xf32>
    %102 = vector.shape_cast %101 : vector<10xf32> to vector<10x1xf32>
    %103 = vector.broadcast %102 : vector<10x1xf32> to vector<10x10xf32>
    %104 = arith.subf %100, %103 : vector<10x10xf32>
    %105 = math.exp %104 : vector<10x10xf32>
    %cst_45 = arith.constant dense<0.000000e+00> : vector<10xf32>
    %106 = vector.multi_reduction <add>, %105, %cst_45 [1] : vector<10x10xf32> to vector<10xf32>
    %107 = vector.shape_cast %106 : vector<10xf32> to vector<10x1xf32>
    %108 = tpu.reciprocal %107 {approx = true} : vector<10x1xf32> -> vector<10x1xf32>
    %109 = vector.broadcast %108 : vector<10x1xf32> to vector<10x10xf32>
    %110 = arith.mulf %105, %109 : vector<10x10xf32>
    %cst_46 = arith.constant dense<0.000000e+00> : vector<10x8xf32>
    %111 = tpu.matmul %110, %96, %cst_46 {dimension_numbers = #tpu.dot_dimension_numbers<[1], [0], [0], [1], [0, 0, 1, 1], [], []>} : vector<10x10xf32>, vector<10x8xf32>, vector<10x8xf32> -> vector<10x8xf32>
    %112 = vector.extract_strided_slice %75 {offsets = [0, 16], sizes = [10, 8], strides = [1, 1]} : vector<10x96xf32> to vector<10x8xf32>
    %113 = vector.extract_strided_slice %75 {offsets = [0, 48], sizes = [10, 8], strides = [1, 1]} : vector<10x96xf32> to vector<10x8xf32>
    %114 = vector.extract_strided_slice %75 {offsets = [0, 80], sizes = [10, 8], strides = [1, 1]} : vector<10x96xf32> to vector<10x8xf32>
    %cst_47 = arith.constant dense<0.000000e+00> : vector<10x10xf32>
    %115 = tpu.matmul %112, %113, %cst_47 {dimension_numbers = #tpu.dot_dimension_numbers<[1], [1], [0], [0], [0, 0, 1, 0], [], []>} : vector<10x8xf32>, vector<10x8xf32>, vector<10x10xf32> -> vector<10x10xf32>
    %cst_48 = arith.constant 0.353553385 : f32
    %116 = vector.broadcast %cst_48 : f32 to vector<10x10xf32>
    %117 = arith.mulf %115, %116 : vector<10x10xf32>
    %118 = arith.addf %117, %38 : vector<10x10xf32>
    %cst_49 = arith.constant dense<0xFF800000> : vector<10xf32>
    %119 = vector.multi_reduction <maximumf>, %118, %cst_49 [1] : vector<10x10xf32> to vector<10xf32>
    %120 = vector.shape_cast %119 : vector<10xf32> to vector<10x1xf32>
    %121 = vector.broadcast %120 : vector<10x1xf32> to vector<10x10xf32>
    %122 = arith.subf %118, %121 : vector<10x10xf32>
    %123 = math.exp %122 : vector<10x10xf32>
    %cst_50 = arith.constant dense<0.000000e+00> : vector<10xf32>
    %124 = vector.multi_reduction <add>, %123, %cst_50 [1] : vector<10x10xf32> to vector<10xf32>
    %125 = vector.shape_cast %124 : vector<10xf32> to vector<10x1xf32>
    %126 = tpu.reciprocal %125 {approx = true} : vector<10x1xf32> -> vector<10x1xf32>
    %127 = vector.broadcast %126 : vector<10x1xf32> to vector<10x10xf32>
    %128 = arith.mulf %123, %127 : vector<10x10xf32>
    %cst_51 = arith.constant dense<0.000000e+00> : vector<10x8xf32>
    %129 = tpu.matmul %128, %114, %cst_51 {dimension_numbers = #tpu.dot_dimension_numbers<[1], [0], [0], [1], [0, 0, 1, 1], [], []>} : vector<10x10xf32>, vector<10x8xf32>, vector<10x8xf32> -> vector<10x8xf32>
    %130 = vector.extract_strided_slice %75 {offsets = [0, 24], sizes = [10, 8], strides = [1, 1]} : vector<10x96xf32> to vector<10x8xf32>
    %131 = vector.extract_strided_slice %75 {offsets = [0, 56], sizes = [10, 8], strides = [1, 1]} : vector<10x96xf32> to vector<10x8xf32>
    %132 = vector.extract_strided_slice %75 {offsets = [0, 88], sizes = [10, 8], strides = [1, 1]} : vector<10x96xf32> to vector<10x8xf32>
    %cst_52 = arith.constant dense<0.000000e+00> : vector<10x10xf32>
    %133 = tpu.matmul %130, %131, %cst_52 {dimension_numbers = #tpu.dot_dimension_numbers<[1], [1], [0], [0], [0, 0, 1, 0], [], []>} : vector<10x8xf32>, vector<10x8xf32>, vector<10x10xf32> -> vector<10x10xf32>
    %cst_53 = arith.constant 0.353553385 : f32
    %134 = vector.broadcast %cst_53 : f32 to vector<10x10xf32>
    %135 = arith.mulf %133, %134 : vector<10x10xf32>
    %136 = arith.addf %135, %38 : vector<10x10xf32>
    %cst_54 = arith.constant dense<0xFF800000> : vector<10xf32>
    %137 = vector.multi_reduction <maximumf>, %136, %cst_54 [1] : vector<10x10xf32> to vector<10xf32>
    %138 = vector.shape_cast %137 : vector<10xf32> to vector<10x1xf32>
    %139 = vector.broadcast %138 : vector<10x1xf32> to vector<10x10xf32>
    %140 = arith.subf %136, %139 : vector<10x10xf32>
    %141 = math.exp %140 : vector<10x10xf32>
    %cst_55 = arith.constant dense<0.000000e+00> : vector<10xf32>
    %142 = vector.multi_reduction <add>, %141, %cst_55 [1] : vector<10x10xf32> to vector<10xf32>
    %143 = vector.shape_cast %142 : vector<10xf32> to vector<10x1xf32>
    %144 = tpu.reciprocal %143 {approx = true} : vector<10x1xf32> -> vector<10x1xf32>
    %145 = vector.broadcast %144 : vector<10x1xf32> to vector<10x10xf32>
    %146 = arith.mulf %141, %145 : vector<10x10xf32>
    %cst_56 = arith.constant dense<0.000000e+00> : vector<10x8xf32>
    %147 = tpu.matmul %146, %132, %cst_56 {dimension_numbers = #tpu.dot_dimension_numbers<[1], [0], [0], [1], [0, 0, 1, 1], [], []>} : vector<10x10xf32>, vector<10x8xf32>, vector<10x8xf32> -> vector<10x8xf32>
    %148 = tpu.concatenate %93, %111, %129, %147 in 1 : vector<10x8xf32>, vector<10x8xf32>, vector<10x8xf32>, vector<10x8xf32> -> vector<10x32xf32>
    %149 = vector.extract_strided_slice %34 {offsets = [0, 0, 0], sizes = [1, 32, 32], strides = [1, 1, 1]} : vector<2x32x32xf32> to vector<1x32x32xf32>
    %150 = vector.shape_cast %149 : vector<1x32x32xf32> to vector<32x32xf32>
    %cst_57 = arith.constant dense<0.000000e+00> : vector<10x32xf32>
    %151 = tpu.matmul %148, %150, %cst_57 {dimension_numbers = #tpu.dot_dimension_numbers<[1], [0], [0], [1], [0, 0, 1, 1], [], []>} : vector<10x32xf32>, vector<32x32xf32>, vector<10x32xf32> -> vector<10x32xf32>
    %152 = arith.addf %32, %151 : vector<10x32xf32>
    %153 = vector.broadcast %42 : vector<1x32xf32> to vector<10x32xf32>
    %154 = arith.addf %152, %153 : vector<10x32xf32>
    %cst_58 = arith.constant dense<0.000000e+00> : vector<10xf32>
    %155 = vector.multi_reduction <add>, %154, %cst_58 [1] : vector<10x32xf32> to vector<10xf32>
    %156 = vector.shape_cast %155 : vector<10xf32> to vector<10x1xf32>
    %cst_59 = arith.constant 3.200000e+01 : f32
    %157 = vector.broadcast %cst_59 : f32 to vector<10x1xf32>
    %158 = arith.divf %156, %157 : vector<10x1xf32>
    %159 = vector.broadcast %158 : vector<10x1xf32> to vector<10x32xf32>
    %160 = arith.subf %154, %159 : vector<10x32xf32>
    %161 = arith.mulf %160, %160 : vector<10x32xf32>
    %cst_60 = arith.constant dense<0.000000e+00> : vector<10xf32>
    %162 = vector.multi_reduction <add>, %161, %cst_60 [1] : vector<10x32xf32> to vector<10xf32>
    %163 = vector.shape_cast %162 : vector<10xf32> to vector<10x1xf32>
    %cst_61 = arith.constant 3.200000e+01 : f32
    %164 = vector.broadcast %cst_61 : f32 to vector<10x1xf32>
    %165 = arith.divf %163, %164 : vector<10x1xf32>
    %166 = vector.broadcast %158 : vector<10x1xf32> to vector<10x32xf32>
    %167 = arith.subf %154, %166 : vector<10x32xf32>
    %cst_62 = arith.constant 9.99999974E-6 : f32
    %168 = vector.broadcast %cst_62 : f32 to vector<10x1xf32>
    %169 = arith.addf %165, %168 : vector<10x1xf32>
    %170 = math.rsqrt %169 : vector<10x1xf32>
    %171 = vector.broadcast %170 : vector<10x1xf32> to vector<10x32xf32>
    %172 = arith.mulf %167, %171 : vector<10x32xf32>
    %173 = vector.broadcast %45 : vector<1x32xf32> to vector<10x32xf32>
    %174 = arith.mulf %172, %173 : vector<10x32xf32>
    %175 = vector.broadcast %46 : vector<1x32xf32> to vector<10x32xf32>
    %176 = arith.addf %174, %175 : vector<10x32xf32>
    %177 = vector.extract_strided_slice %35 {offsets = [0, 0, 0], sizes = [1, 32, 128], strides = [1, 1, 1]} : vector<2x32x128xf32> to vector<1x32x128xf32>
    %178 = vector.shape_cast %177 : vector<1x32x128xf32> to vector<32x128xf32>
    %cst_63 = arith.constant dense<0.000000e+00> : vector<10x128xf32>
    %179 = tpu.matmul %176, %178, %cst_63 {dimension_numbers = #tpu.dot_dimension_numbers<[1], [0], [0], [1], [0, 0, 1, 1], [], []>} : vector<10x32xf32>, vector<32x128xf32>, vector<10x128xf32> -> vector<10x128xf32>
    %180 = vector.broadcast %47 : vector<1x128xf32> to vector<10x128xf32>
    %181 = arith.addf %179, %180 : vector<10x128xf32>
    %cst_64 = arith.constant 1.702000e+00 : f32
    %182 = vector.broadcast %cst_64 : f32 to vector<10x128xf32>
    %183 = arith.mulf %182, %181 : vector<10x128xf32>
    %184 = arith.negf %183 : vector<10x128xf32>
    %185 = math.exp %184 : vector<10x128xf32>
    %cst_65 = arith.constant 1.000000e+00 : f32
    %186 = vector.broadcast %cst_65 : f32 to vector<10x128xf32>
    %187 = arith.addf %186, %185 : vector<10x128xf32>
    %188 = arith.divf %186, %187 : vector<10x128xf32>
    %189 = arith.mulf %181, %188 : vector<10x128xf32>
    %190 = vector.extract_strided_slice %36 {offsets = [0, 0, 0], sizes = [1, 128, 32], strides = [1, 1, 1]} : vector<2x128x32xf32> to vector<1x128x32xf32>
    %191 = vector.shape_cast %190 : vector<1x128x32xf32> to vector<128x32xf32>
    %cst_66 = arith.constant dense<0.000000e+00> : vector<10x32xf32>
    %192 = tpu.matmul %189, %191, %cst_66 {dimension_numbers = #tpu.dot_dimension_numbers<[1], [0], [0], [1], [0, 0, 1, 1], [], []>} : vector<10x128xf32>, vector<128x32xf32>, vector<10x32xf32> -> vector<10x32xf32>
    %193 = arith.addf %154, %192 : vector<10x32xf32>
    %194 = vector.broadcast %48 : vector<1x32xf32> to vector<10x32xf32>
    %195 = arith.addf %193, %194 : vector<10x32xf32>
    %196 = vector.extract_strided_slice %37 {offsets = [1, 0, 0], sizes = [1, 8, 128], strides = [1, 1, 1]} : vector<2x8x128xf32> to vector<1x8x128xf32>
    %197 = vector.shape_cast %196 : vector<1x8x128xf32> to vector<8x128xf32>
    %198 = vector.extract_strided_slice %197 {offsets = [0, 0], sizes = [1, 96], strides = [1, 1]} : vector<8x128xf32> to vector<1x96xf32>
    %199 = vector.extract_strided_slice %197 {offsets = [1, 0], sizes = [1, 32], strides = [1, 1]} : vector<8x128xf32> to vector<1x32xf32>
    %200 = vector.extract_strided_slice %197 {offsets = [2, 0], sizes = [1, 32], strides = [1, 1]} : vector<8x128xf32> to vector<1x32xf32>
    %201 = vector.extract_strided_slice %197 {offsets = [3, 0], sizes = [1, 32], strides = [1, 1]} : vector<8x128xf32> to vector<1x32xf32>
    %202 = vector.extract_strided_slice %197 {offsets = [4, 0], sizes = [1, 32], strides = [1, 1]} : vector<8x128xf32> to vector<1x32xf32>
    %203 = vector.extract_strided_slice %197 {offsets = [5, 0], sizes = [1, 32], strides = [1, 1]} : vector<8x128xf32> to vector<1x32xf32>
    %204 = vector.extract_strided_slice %197 {offsets = [6, 0], sizes = [1, 128], strides = [1, 1]} : vector<8x128xf32> to vector<1x128xf32>
    %205 = vector.extract_strided_slice %197 {offsets = [7, 0], sizes = [1, 32], strides = [1, 1]} : vector<8x128xf32> to vector<1x32xf32>
    %cst_67 = arith.constant dense<0.000000e+00> : vector<10xf32>
    %206 = vector.multi_reduction <add>, %195, %cst_67 [1] : vector<10x32xf32> to vector<10xf32>
    %207 = vector.shape_cast %206 : vector<10xf32> to vector<10x1xf32>
    %cst_68 = arith.constant 3.200000e+01 : f32
    %208 = vector.broadcast %cst_68 : f32 to vector<10x1xf32>
    %209 = arith.divf %207, %208 : vector<10x1xf32>
    %210 = vector.broadcast %209 : vector<10x1xf32> to vector<10x32xf32>
    %211 = arith.subf %195, %210 : vector<10x32xf32>
    %212 = arith.mulf %211, %211 : vector<10x32xf32>
    %cst_69 = arith.constant dense<0.000000e+00> : vector<10xf32>
    %213 = vector.multi_reduction <add>, %212, %cst_69 [1] : vector<10x32xf32> to vector<10xf32>
    %214 = vector.shape_cast %213 : vector<10xf32> to vector<10x1xf32>
    %cst_70 = arith.constant 3.200000e+01 : f32
    %215 = vector.broadcast %cst_70 : f32 to vector<10x1xf32>
    %216 = arith.divf %214, %215 : vector<10x1xf32>
    %217 = vector.broadcast %209 : vector<10x1xf32> to vector<10x32xf32>
    %218 = arith.subf %195, %217 : vector<10x32xf32>
    %cst_71 = arith.constant 9.99999974E-6 : f32
    %219 = vector.broadcast %cst_71 : f32 to vector<10x1xf32>
    %220 = arith.addf %216, %219 : vector<10x1xf32>
    %221 = math.rsqrt %220 : vector<10x1xf32>
    %222 = vector.broadcast %221 : vector<10x1xf32> to vector<10x32xf32>
    %223 = arith.mulf %218, %222 : vector<10x32xf32>
    %224 = vector.broadcast %200 : vector<1x32xf32> to vector<10x32xf32>
    %225 = arith.mulf %223, %224 : vector<10x32xf32>
    %226 = vector.broadcast %201 : vector<1x32xf32> to vector<10x32xf32>
    %227 = arith.addf %225, %226 : vector<10x32xf32>
    %228 = vector.extract_strided_slice %33 {offsets = [1, 0, 0], sizes = [1, 32, 96], strides = [1, 1, 1]} : vector<2x32x96xf32> to vector<1x32x96xf32>
    %229 = vector.shape_cast %228 : vector<1x32x96xf32> to vector<32x96xf32>
    %cst_72 = arith.constant dense<0.000000e+00> : vector<10x96xf32>
    %230 = tpu.matmul %227, %229, %cst_72 {dimension_numbers = #tpu.dot_dimension_numbers<[1], [0], [0], [1], [0, 0, 1, 1], [], []>} : vector<10x32xf32>, vector<32x96xf32>, vector<10x96xf32> -> vector<10x96xf32>
    %231 = vector.broadcast %198 : vector<1x96xf32> to vector<10x96xf32>
    %232 = arith.addf %230, %231 : vector<10x96xf32>
    %233 = vector.extract_strided_slice %232 {offsets = [0, 0], sizes = [10, 8], strides = [1, 1]} : vector<10x96xf32> to vector<10x8xf32>
    %234 = vector.extract_strided_slice %232 {offsets = [0, 32], sizes = [10, 8], strides = [1, 1]} : vector<10x96xf32> to vector<10x8xf32>
    %235 = vector.extract_strided_slice %232 {offsets = [0, 64], sizes = [10, 8], strides = [1, 1]} : vector<10x96xf32> to vector<10x8xf32>
    %cst_73 = arith.constant dense<0.000000e+00> : vector<10x10xf32>
    %236 = tpu.matmul %233, %234, %cst_73 {dimension_numbers = #tpu.dot_dimension_numbers<[1], [1], [0], [0], [0, 0, 1, 0], [], []>} : vector<10x8xf32>, vector<10x8xf32>, vector<10x10xf32> -> vector<10x10xf32>
    %cst_74 = arith.constant 0.353553385 : f32
    %237 = vector.broadcast %cst_74 : f32 to vector<10x10xf32>
    %238 = arith.mulf %236, %237 : vector<10x10xf32>
    %239 = arith.addf %238, %38 : vector<10x10xf32>
    %cst_75 = arith.constant dense<0xFF800000> : vector<10xf32>
    %240 = vector.multi_reduction <maximumf>, %239, %cst_75 [1] : vector<10x10xf32> to vector<10xf32>
    %241 = vector.shape_cast %240 : vector<10xf32> to vector<10x1xf32>
    %242 = vector.broadcast %241 : vector<10x1xf32> to vector<10x10xf32>
    %243 = arith.subf %239, %242 : vector<10x10xf32>
    %244 = math.exp %243 : vector<10x10xf32>
    %cst_76 = arith.constant dense<0.000000e+00> : vector<10xf32>
    %245 = vector.multi_reduction <add>, %244, %cst_76 [1] : vector<10x10xf32> to vector<10xf32>
    %246 = vector.shape_cast %245 : vector<10xf32> to vector<10x1xf32>
    %247 = tpu.reciprocal %246 {approx = true} : vector<10x1xf32> -> vector<10x1xf32>
    %248 = vector.broadcast %247 : vector<10x1xf32> to vector<10x10xf32>
    %249 = arith.mulf %244, %248 : vector<10x10xf32>
    %cst_77 = arith.constant dense<0.000000e+00> : vector<10x8xf32>
    %250 = tpu.matmul %249, %235, %cst_77 {dimension_numbers = #tpu.dot_dimension_numbers<[1], [0], [0], [1], [0, 0, 1, 1], [], []>} : vector<10x10xf32>, vector<10x8xf32>, vector<10x8xf32> -> vector<10x8xf32>
    %251 = vector.extract_strided_slice %232 {offsets = [0, 8], sizes = [10, 8], strides = [1, 1]} : vector<10x96xf32> to vector<10x8xf32>
    %252 = vector.extract_strided_slice %232 {offsets = [0, 40], sizes = [10, 8], strides = [1, 1]} : vector<10x96xf32> to vector<10x8xf32>
    %253 = vector.extract_strided_slice %232 {offsets = [0, 72], sizes = [10, 8], strides = [1, 1]} : vector<10x96xf32> to vector<10x8xf32>
    %cst_78 = arith.constant dense<0.000000e+00> : vector<10x10xf32>
    %254 = tpu.matmul %251, %252, %cst_78 {dimension_numbers = #tpu.dot_dimension_numbers<[1], [1], [0], [0], [0, 0, 1, 0], [], []>} : vector<10x8xf32>, vector<10x8xf32>, vector<10x10xf32> -> vector<10x10xf32>
    %cst_79 = arith.constant 0.353553385 : f32
    %255 = vector.broadcast %cst_79 : f32 to vector<10x10xf32>
    %256 = arith.mulf %254, %255 : vector<10x10xf32>
    %257 = arith.addf %256, %38 : vector<10x10xf32>
    %cst_80 = arith.constant dense<0xFF800000> : vector<10xf32>
    %258 = vector.multi_reduction <maximumf>, %257, %cst_80 [1] : vector<10x10xf32> to vector<10xf32>
    %259 = vector.shape_cast %258 : vector<10xf32> to vector<10x1xf32>
    %260 = vector.broadcast %259 : vector<10x1xf32> to vector<10x10xf32>
    %261 = arith.subf %257, %260 : vector<10x10xf32>
    %262 = math.exp %261 : vector<10x10xf32>
    %cst_81 = arith.constant dense<0.000000e+00> : vector<10xf32>
    %263 = vector.multi_reduction <add>, %262, %cst_81 [1] : vector<10x10xf32> to vector<10xf32>
    %264 = vector.shape_cast %263 : vector<10xf32> to vector<10x1xf32>
    %265 = tpu.reciprocal %264 {approx = true} : vector<10x1xf32> -> vector<10x1xf32>
    %266 = vector.broadcast %265 : vector<10x1xf32> to vector<10x10xf32>
    %267 = arith.mulf %262, %266 : vector<10x10xf32>
    %cst_82 = arith.constant dense<0.000000e+00> : vector<10x8xf32>
    %268 = tpu.matmul %267, %253, %cst_82 {dimension_numbers = #tpu.dot_dimension_numbers<[1], [0], [0], [1], [0, 0, 1, 1], [], []>} : vector<10x10xf32>, vector<10x8xf32>, vector<10x8xf32> -> vector<10x8xf32>
    %269 = vector.extract_strided_slice %232 {offsets = [0, 16], sizes = [10, 8], strides = [1, 1]} : vector<10x96xf32> to vector<10x8xf32>
    %270 = vector.extract_strided_slice %232 {offsets = [0, 48], sizes = [10, 8], strides = [1, 1]} : vector<10x96xf32> to vector<10x8xf32>
    %271 = vector.extract_strided_slice %232 {offsets = [0, 80], sizes = [10, 8], strides = [1, 1]} : vector<10x96xf32> to vector<10x8xf32>
    %cst_83 = arith.constant dense<0.000000e+00> : vector<10x10xf32>
    %272 = tpu.matmul %269, %270, %cst_83 {dimension_numbers = #tpu.dot_dimension_numbers<[1], [1], [0], [0], [0, 0, 1, 0], [], []>} : vector<10x8xf32>, vector<10x8xf32>, vector<10x10xf32> -> vector<10x10xf32>
    %cst_84 = arith.constant 0.353553385 : f32
    %273 = vector.broadcast %cst_84 : f32 to vector<10x10xf32>
    %274 = arith.mulf %272, %273 : vector<10x10xf32>
    %275 = arith.addf %274, %38 : vector<10x10xf32>
    %cst_85 = arith.constant dense<0xFF800000> : vector<10xf32>
    %276 = vector.multi_reduction <maximumf>, %275, %cst_85 [1] : vector<10x10xf32> to vector<10xf32>
    %277 = vector.shape_cast %276 : vector<10xf32> to vector<10x1xf32>
    %278 = vector.broadcast %277 : vector<10x1xf32> to vector<10x10xf32>
    %279 = arith.subf %275, %278 : vector<10x10xf32>
    %280 = math.exp %279 : vector<10x10xf32>
    %cst_86 = arith.constant dense<0.000000e+00> : vector<10xf32>
    %281 = vector.multi_reduction <add>, %280, %cst_86 [1] : vector<10x10xf32> to vector<10xf32>
    %282 = vector.shape_cast %281 : vector<10xf32> to vector<10x1xf32>
    %283 = tpu.reciprocal %282 {approx = true} : vector<10x1xf32> -> vector<10x1xf32>
    %284 = vector.broadcast %283 : vector<10x1xf32> to vector<10x10xf32>
    %285 = arith.mulf %280, %284 : vector<10x10xf32>
    %cst_87 = arith.constant dense<0.000000e+00> : vector<10x8xf32>
    %286 = tpu.matmul %285, %271, %cst_87 {dimension_numbers = #tpu.dot_dimension_numbers<[1], [0], [0], [1], [0, 0, 1, 1], [], []>} : vector<10x10xf32>, vector<10x8xf32>, vector<10x8xf32> -> vector<10x8xf32>
    %287 = vector.extract_strided_slice %232 {offsets = [0, 24], sizes = [10, 8], strides = [1, 1]} : vector<10x96xf32> to vector<10x8xf32>
    %288 = vector.extract_strided_slice %232 {offsets = [0, 56], sizes = [10, 8], strides = [1, 1]} : vector<10x96xf32> to vector<10x8xf32>
    %289 = vector.extract_strided_slice %232 {offsets = [0, 88], sizes = [10, 8], strides = [1, 1]} : vector<10x96xf32> to vector<10x8xf32>
    %cst_88 = arith.constant dense<0.000000e+00> : vector<10x10xf32>
    %290 = tpu.matmul %287, %288, %cst_88 {dimension_numbers = #tpu.dot_dimension_numbers<[1], [1], [0], [0], [0, 0, 1, 0], [], []>} : vector<10x8xf32>, vector<10x8xf32>, vector<10x10xf32> -> vector<10x10xf32>
    %cst_89 = arith.constant 0.353553385 : f32
    %291 = vector.broadcast %cst_89 : f32 to vector<10x10xf32>
    %292 = arith.mulf %290, %291 : vector<10x10xf32>
    %293 = arith.addf %292, %38 : vector<10x10xf32>
    %cst_90 = arith.constant dense<0xFF800000> : vector<10xf32>
    %294 = vector.multi_reduction <maximumf>, %293, %cst_90 [1] : vector<10x10xf32> to vector<10xf32>
    %295 = vector.shape_cast %294 : vector<10xf32> to vector<10x1xf32>
    %296 = vector.broadcast %295 : vector<10x1xf32> to vector<10x10xf32>
    %297 = arith.subf %293, %296 : vector<10x10xf32>
    %298 = math.exp %297 : vector<10x10xf32>
    %cst_91 = arith.constant dense<0.000000e+00> : vector<10xf32>
    %299 = vector.multi_reduction <add>, %298, %cst_91 [1] : vector<10x10xf32> to vector<10xf32>
    %300 = vector.shape_cast %299 : vector<10xf32> to vector<10x1xf32>
    %301 = tpu.reciprocal %300 {approx = true} : vector<10x1xf32> -> vector<10x1xf32>
    %302 = vector.broadcast %301 : vector<10x1xf32> to vector<10x10xf32>
    %303 = arith.mulf %298, %302 : vector<10x10xf32>
    %cst_92 = arith.constant dense<0.000000e+00> : vector<10x8xf32>
    %304 = tpu.matmul %303, %289, %cst_92 {dimension_numbers = #tpu.dot_dimension_numbers<[1], [0], [0], [1], [0, 0, 1, 1], [], []>} : vector<10x10xf32>, vector<10x8xf32>, vector<10x8xf32> -> vector<10x8xf32>
    %305 = tpu.concatenate %250, %268, %286, %304 in 1 : vector<10x8xf32>, vector<10x8xf32>, vector<10x8xf32>, vector<10x8xf32> -> vector<10x32xf32>
    %306 = vector.extract_strided_slice %34 {offsets = [1, 0, 0], sizes = [1, 32, 32], strides = [1, 1, 1]} : vector<2x32x32xf32> to vector<1x32x32xf32>
    %307 = vector.shape_cast %306 : vector<1x32x32xf32> to vector<32x32xf32>
    %cst_93 = arith.constant dense<0.000000e+00> : vector<10x32xf32>
    %308 = tpu.matmul %305, %307, %cst_93 {dimension_numbers = #tpu.dot_dimension_numbers<[1], [0], [0], [1], [0, 0, 1, 1], [], []>} : vector<10x32xf32>, vector<32x32xf32>, vector<10x32xf32> -> vector<10x32xf32>
    %309 = arith.addf %195, %308 : vector<10x32xf32>
    %310 = vector.broadcast %199 : vector<1x32xf32> to vector<10x32xf32>
    %311 = arith.addf %309, %310 : vector<10x32xf32>
    %cst_94 = arith.constant dense<0.000000e+00> : vector<10xf32>
    %312 = vector.multi_reduction <add>, %311, %cst_94 [1] : vector<10x32xf32> to vector<10xf32>
    %313 = vector.shape_cast %312 : vector<10xf32> to vector<10x1xf32>
    %cst_95 = arith.constant 3.200000e+01 : f32
    %314 = vector.broadcast %cst_95 : f32 to vector<10x1xf32>
    %315 = arith.divf %313, %314 : vector<10x1xf32>
    %316 = vector.broadcast %315 : vector<10x1xf32> to vector<10x32xf32>
    %317 = arith.subf %311, %316 : vector<10x32xf32>
    %318 = arith.mulf %317, %317 : vector<10x32xf32>
    %cst_96 = arith.constant dense<0.000000e+00> : vector<10xf32>
    %319 = vector.multi_reduction <add>, %318, %cst_96 [1] : vector<10x32xf32> to vector<10xf32>
    %320 = vector.shape_cast %319 : vector<10xf32> to vector<10x1xf32>
    %cst_97 = arith.constant 3.200000e+01 : f32
    %321 = vector.broadcast %cst_97 : f32 to vector<10x1xf32>
    %322 = arith.divf %320, %321 : vector<10x1xf32>
    %323 = vector.broadcast %315 : vector<10x1xf32> to vector<10x32xf32>
    %324 = arith.subf %311, %323 : vector<10x32xf32>
    %cst_98 = arith.constant 9.99999974E-6 : f32
    %325 = vector.broadcast %cst_98 : f32 to vector<10x1xf32>
    %326 = arith.addf %322, %325 : vector<10x1xf32>
    %327 = math.rsqrt %326 : vector<10x1xf32>
    %328 = vector.broadcast %327 : vector<10x1xf32> to vector<10x32xf32>
    %329 = arith.mulf %324, %328 : vector<10x32xf32>
    %330 = vector.broadcast %202 : vector<1x32xf32> to vector<10x32xf32>
    %331 = arith.mulf %329, %330 : vector<10x32xf32>
    %332 = vector.broadcast %203 : vector<1x32xf32> to vector<10x32xf32>
    %333 = arith.addf %331, %332 : vector<10x32xf32>
    %334 = vector.extract_strided_slice %35 {offsets = [1, 0, 0], sizes = [1, 32, 128], strides = [1, 1, 1]} : vector<2x32x128xf32> to vector<1x32x128xf32>
    %335 = vector.shape_cast %334 : vector<1x32x128xf32> to vector<32x128xf32>
    %cst_99 = arith.constant dense<0.000000e+00> : vector<10x128xf32>
    %336 = tpu.matmul %333, %335, %cst_99 {dimension_numbers = #tpu.dot_dimension_numbers<[1], [0], [0], [1], [0, 0, 1, 1], [], []>} : vector<10x32xf32>, vector<32x128xf32>, vector<10x128xf32> -> vector<10x128xf32>
    %337 = vector.broadcast %204 : vector<1x128xf32> to vector<10x128xf32>
    %338 = arith.addf %336, %337 : vector<10x128xf32>
    %cst_100 = arith.constant 1.702000e+00 : f32
    %339 = vector.broadcast %cst_100 : f32 to vector<10x128xf32>
    %340 = arith.mulf %339, %338 : vector<10x128xf32>
    %341 = arith.negf %340 : vector<10x128xf32>
    %342 = math.exp %341 : vector<10x128xf32>
    %cst_101 = arith.constant 1.000000e+00 : f32
    %343 = vector.broadcast %cst_101 : f32 to vector<10x128xf32>
    %344 = arith.addf %343, %342 : vector<10x128xf32>
    %345 = arith.divf %343, %344 : vector<10x128xf32>
    %346 = arith.mulf %338, %345 : vector<10x128xf32>
    %347 = vector.extract_strided_slice %36 {offsets = [1, 0, 0], sizes = [1, 128, 32], strides = [1, 1, 1]} : vector<2x128x32xf32> to vector<1x128x32xf32>
    %348 = vector.shape_cast %347 : vector<1x128x32xf32> to vector<128x32xf32>
    %cst_102 = arith.constant dense<0.000000e+00> : vector<10x32xf32>
    %349 = tpu.matmul %346, %348, %cst_102 {dimension_numbers = #tpu.dot_dimension_numbers<[1], [0], [0], [1], [0, 0, 1, 1], [], []>} : vector<10x128xf32>, vector<128x32xf32>, vector<10x32xf32> -> vector<10x32xf32>
    %350 = arith.addf %311, %349 : vector<10x32xf32>
    %351 = vector.broadcast %205 : vector<1x32xf32> to vector<10x32xf32>
    %352 = arith.addf %350, %351 : vector<10x32xf32>
    %c0_103 = arith.constant 0 : index
    %c0_104 = arith.constant 0 : index
    %353 = vector.load %arg11[%c0_103, %c0_104] : memref<2x10xf32, #tpu.memory_space<vmem>>, vector<2x10xf32>
    %cst_105 = arith.constant dense<0.000000e+00> : vector<2x32xf32>
    %354 = tpu.matmul %353, %352, %cst_105 {dimension_numbers = #tpu.dot_dimension_numbers<[1], [0], [0], [1], [0, 0, 1, 1], [], []>} : vector<2x10xf32>, vector<10x32xf32>, vector<2x32xf32> -> vector<2x32xf32>
    %355 = vector.extract_strided_slice %8 {offsets = [2, 0], sizes = [1, 32], strides = [1, 1]} : vector<4x32xf32> to vector<1x32xf32>
    %356 = vector.extract_strided_slice %8 {offsets = [3, 0], sizes = [1, 32], strides = [1, 1]} : vector<4x32xf32> to vector<1x32xf32>
    %cst_106 = arith.constant dense<0.000000e+00> : vector<2xf32>
    %357 = vector.multi_reduction <add>, %354, %cst_106 [1] : vector<2x32xf32> to vector<2xf32>
    %358 = vector.shape_cast %357 : vector<2xf32> to vector<2x1xf32>
    %cst_107 = arith.constant 3.200000e+01 : f32
    %359 = vector.broadcast %cst_107 : f32 to vector<2x1xf32>
    %360 = arith.divf %358, %359 : vector<2x1xf32>
    %361 = vector.broadcast %360 : vector<2x1xf32> to vector<2x32xf32>
    %362 = arith.subf %354, %361 : vector<2x32xf32>
    %363 = arith.mulf %362, %362 : vector<2x32xf32>
    %cst_108 = arith.constant dense<0.000000e+00> : vector<2xf32>
    %364 = vector.multi_reduction <add>, %363, %cst_108 [1] : vector<2x32xf32> to vector<2xf32>
    %365 = vector.shape_cast %364 : vector<2xf32> to vector<2x1xf32>
    %cst_109 = arith.constant 3.200000e+01 : f32
    %366 = vector.broadcast %cst_109 : f32 to vector<2x1xf32>
    %367 = arith.divf %365, %366 : vector<2x1xf32>
    %368 = vector.broadcast %360 : vector<2x1xf32> to vector<2x32xf32>
    %369 = arith.subf %354, %368 : vector<2x32xf32>
    %cst_110 = arith.constant 9.99999974E-6 : f32
    %370 = vector.broadcast %cst_110 : f32 to vector<2x1xf32>
    %371 = arith.addf %367, %370 : vector<2x1xf32>
    %372 = math.rsqrt %371 : vector<2x1xf32>
    %373 = vector.broadcast %372 : vector<2x1xf32> to vector<2x32xf32>
    %374 = arith.mulf %369, %373 : vector<2x32xf32>
    %375 = vector.broadcast %355 : vector<1x32xf32> to vector<2x32xf32>
    %376 = arith.mulf %374, %375 : vector<2x32xf32>
    %377 = vector.broadcast %356 : vector<1x32xf32> to vector<2x32xf32>
    %378 = arith.addf %376, %377 : vector<2x32xf32>
    %c0_111 = arith.constant 0 : index
    %c0_112 = arith.constant 0 : index
    %379 = vector.load %arg12[%c0_111, %c0_112] : memref<32x16xf32, #tpu.memory_space<vmem>>, vector<32x16xf32>
    %cst_113 = arith.constant dense<0.000000e+00> : vector<2x16xf32>
    %380 = tpu.matmul %378, %379, %cst_113 {dimension_numbers = #tpu.dot_dimension_numbers<[1], [0], [0], [1], [0, 0, 1, 1], [], []>} : vector<2x32xf32>, vector<32x16xf32>, vector<2x16xf32> -> vector<2x16xf32>
    %381 = arith.mulf %380, %380 : vector<2x16xf32>
    %cst_114 = arith.constant dense<0.000000e+00> : vector<2xf32>
    %382 = vector.multi_reduction <add>, %381, %cst_114 [1] : vector<2x16xf32> to vector<2xf32>
    %383 = vector.shape_cast %382 : vector<2xf32> to vector<2x1xf32>
    %cst_115 = arith.constant 1.000000e-30 : f32
    %384 = vector.broadcast %cst_115 : f32 to vector<2x1xf32>
    %385 = arith.maximumf %383, %384 : vector<2x1xf32>
    %386 = math.rsqrt %385 : vector<2x1xf32>
    %387 = vector.broadcast %386 : vector<2x1xf32> to vector<2x16xf32>
    %388 = arith.mulf %380, %387 : vector<2x16xf32>
    %c0_116 = arith.constant 0 : index
    %c0_117 = arith.constant 0 : index
    %389 = vector.load %arg23[%c0_116, %c0_117] : memref<2x16xf32, #tpu.memory_space<vmem>>, vector<2x16xf32>
    tpu.vector_store %arg23[%c0_116, %c0_117], %388 {strides = array<i32>} : memref<2x16xf32, #tpu.memory_space<vmem>>, vector<2x16xf32>,
    %c0_118 = arith.constant 0 : index
    %c0_119 = arith.constant 0 : index
    %390 = vector.load %arg13[%c0_118, %c0_119] : memref<48x32xf32, #tpu.memory_space<vmem>>, vector<48x32xf32>
    %c0_120 = arith.constant 0 : index
    %c0_121 = arith.constant 0 : index
    %391 = vector.load %arg19[%c0_120, %c0_121] : memref<2x32xf32, #tpu.memory_space<vmem>>, vector<2x32xf32>
    %c0_122 = arith.constant 0 : index
    %c0_123 = arith.constant 0 : index
    %c0_124 = arith.constant 0 : index
    %392 = vector.load %arg14[%c0_122, %c0_123, %c0_124] : memref<2x32x96xf32, #tpu.memory_space<vmem>>, vector<2x32x96xf32>
    %c0_125 = arith.constant 0 : index
    %c0_126 = arith.constant 0 : index
    %c0_127 = arith.constant 0 : index
    %393 = vector.load %arg15[%c0_125, %c0_126, %c0_127] : memref<2x32x32xf32, #tpu.memory_space<vmem>>, vector<2x32x32xf32>
    %c0_128 = arith.constant 0 : index
    %c0_129 = arith.constant 0 : index
    %c0_130 = arith.constant 0 : index
    %394 = vector.load %arg16[%c0_128, %c0_129, %c0_130] : memref<2x32x128xf32, #tpu.memory_space<vmem>>, vector<2x32x128xf32>
    %c0_131 = arith.constant 0 : index
    %c0_132 = arith.constant 0 : index
    %c0_133 = arith.constant 0 : index
    %395 = vector.load %arg17[%c0_131, %c0_132, %c0_133] : memref<2x128x32xf32, #tpu.memory_space<vmem>>, vector<2x128x32xf32>
    %c0_134 = arith.constant 0 : index
    %c0_135 = arith.constant 0 : index
    %c0_136 = arith.constant 0 : index
    %396 = vector.load %arg18[%c0_134, %c0_135, %c0_136] : memref<2x8x128xf32, #tpu.memory_space<vmem>>, vector<2x8x128xf32>
    %c0_137 = arith.constant 0 : index
    %c0_138 = arith.constant 0 : index
    %397 = vector.load %arg20[%c0_137, %c0_138] : memref<48x48xf32, #tpu.memory_space<vmem>>, vector<48x48xf32>
    %398 = vector.extract_strided_slice %396 {offsets = [0, 0, 0], sizes = [1, 8, 128], strides = [1, 1, 1]} : vector<2x8x128xf32> to vector<1x8x128xf32>
    %399 = vector.shape_cast %398 : vector<1x8x128xf32> to vector<8x128xf32>
    %400 = vector.extract_strided_slice %399 {offsets = [0, 0], sizes = [1, 96], strides = [1, 1]} : vector<8x128xf32> to vector<1x96xf32>
    %401 = vector.extract_strided_slice %399 {offsets = [1, 0], sizes = [1, 32], strides = [1, 1]} : vector<8x128xf32> to vector<1x32xf32>
    %402 = vector.extract_strided_slice %399 {offsets = [2, 0], sizes = [1, 32], strides = [1, 1]} : vector<8x128xf32> to vector<1x32xf32>
    %403 = vector.extract_strided_slice %399 {offsets = [3, 0], sizes = [1, 32], strides = [1, 1]} : vector<8x128xf32> to vector<1x32xf32>
    %404 = vector.extract_strided_slice %399 {offsets = [4, 0], sizes = [1, 32], strides = [1, 1]} : vector<8x128xf32> to vector<1x32xf32>
    %405 = vector.extract_strided_slice %399 {offsets = [5, 0], sizes = [1, 32], strides = [1, 1]} : vector<8x128xf32> to vector<1x32xf32>
    %406 = vector.extract_strided_slice %399 {offsets = [6, 0], sizes = [1, 128], strides = [1, 1]} : vector<8x128xf32> to vector<1x128xf32>
    %407 = vector.extract_strided_slice %399 {offsets = [7, 0], sizes = [1, 32], strides = [1, 1]} : vector<8x128xf32> to vector<1x32xf32>
    %cst_139 = arith.constant dense<0.000000e+00> : vector<48xf32>
    %408 = vector.multi_reduction <add>, %390, %cst_139 [1] : vector<48x32xf32> to vector<48xf32>
    %409 = vector.shape_cast %408 : vector<48xf32> to vector<48x1xf32>
    %cst_140 = arith.constant 3.200000e+01 : f32
    %410 = vector.broadcast %cst_140 : f32 to vector<48x1xf32>
    %411 = arith.divf %409, %410 : vector<48x1xf32>
    %412 = vector.broadcast %411 : vector<48x1xf32> to vector<48x32xf32>
    %413 = arith.subf %390, %412 : vector<48x32xf32>
    %414 = arith.mulf %413, %413 : vector<48x32xf32>
    %cst_141 = arith.constant dense<0.000000e+00> : vector<48xf32>
    %415 = vector.multi_reduction <add>, %414, %cst_141 [1] : vector<48x32xf32> to vector<48xf32>
    %416 = vector.shape_cast %415 : vector<48xf32> to vector<48x1xf32>
    %cst_142 = arith.constant 3.200000e+01 : f32
    %417 = vector.broadcast %cst_142 : f32 to vector<48x1xf32>
    %418 = arith.divf %416, %417 : vector<48x1xf32>
    %419 = vector.broadcast %411 : vector<48x1xf32> to vector<48x32xf32>
    %420 = arith.subf %390, %419 : vector<48x32xf32>
    %cst_143 = arith.constant 9.99999974E-6 : f32
    %421 = vector.broadcast %cst_143 : f32 to vector<48x1xf32>
    %422 = arith.addf %418, %421 : vector<48x1xf32>
    %423 = math.rsqrt %422 : vector<48x1xf32>
    %424 = vector.broadcast %423 : vector<48x1xf32> to vector<48x32xf32>
    %425 = arith.mulf %420, %424 : vector<48x32xf32>
    %426 = vector.broadcast %402 : vector<1x32xf32> to vector<48x32xf32>
    %427 = arith.mulf %425, %426 : vector<48x32xf32>
    %428 = vector.broadcast %403 : vector<1x32xf32> to vector<48x32xf32>
    %429 = arith.addf %427, %428 : vector<48x32xf32>
    %430 = vector.extract_strided_slice %392 {offsets = [0, 0, 0], sizes = [1, 32, 96], strides = [1, 1, 1]} : vector<2x32x96xf32> to vector<1x32x96xf32>
    %431 = vector.shape_cast %430 : vector<1x32x96xf32> to vector<32x96xf32>
    %cst_144 = arith.constant dense<0.000000e+00> : vector<48x96xf32>
    %432 = tpu.matmul %429, %431, %cst_144 {dimension_numbers = #tpu.dot_dimension_numbers<[1], [0], [0], [1], [0, 0, 1, 1], [], []>} : vector<48x32xf32>, vector<32x96xf32>, vector<48x96xf32> -> vector<48x96xf32>
    %433 = vector.broadcast %400 : vector<1x96xf32> to vector<48x96xf32>
    %434 = arith.addf %432, %433 : vector<48x96xf32>
    %435 = vector.extract_strided_slice %434 {offsets = [0, 0], sizes = [48, 8], strides = [1, 1]} : vector<48x96xf32> to vector<48x8xf32>
    %436 = vector.extract_strided_slice %434 {offsets = [0, 32], sizes = [48, 8], strides = [1, 1]} : vector<48x96xf32> to vector<48x8xf32>
    %437 = vector.extract_strided_slice %434 {offsets = [0, 64], sizes = [48, 8], strides = [1, 1]} : vector<48x96xf32> to vector<48x8xf32>
    %cst_145 = arith.constant dense<0.000000e+00> : vector<48x48xf32>
    %438 = tpu.matmul %435, %436, %cst_145 {dimension_numbers = #tpu.dot_dimension_numbers<[1], [1], [0], [0], [0, 0, 1, 0], [], []>} : vector<48x8xf32>, vector<48x8xf32>, vector<48x48xf32> -> vector<48x48xf32>
    %cst_146 = arith.constant 0.353553385 : f32
    %439 = vector.broadcast %cst_146 : f32 to vector<48x48xf32>
    %440 = arith.mulf %438, %439 : vector<48x48xf32>
    %441 = arith.addf %440, %397 : vector<48x48xf32>
    %cst_147 = arith.constant dense<0xFF800000> : vector<48xf32>
    %442 = vector.multi_reduction <maximumf>, %441, %cst_147 [1] : vector<48x48xf32> to vector<48xf32>
    %443 = vector.shape_cast %442 : vector<48xf32> to vector<48x1xf32>
    %444 = vector.broadcast %443 : vector<48x1xf32> to vector<48x48xf32>
    %445 = arith.subf %441, %444 : vector<48x48xf32>
    %446 = math.exp %445 : vector<48x48xf32>
    %cst_148 = arith.constant dense<0.000000e+00> : vector<48xf32>
    %447 = vector.multi_reduction <add>, %446, %cst_148 [1] : vector<48x48xf32> to vector<48xf32>
    %448 = vector.shape_cast %447 : vector<48xf32> to vector<48x1xf32>
    %449 = tpu.reciprocal %448 {approx = true} : vector<48x1xf32> -> vector<48x1xf32>
    %450 = vector.broadcast %449 : vector<48x1xf32> to vector<48x48xf32>
    %451 = arith.mulf %446, %450 : vector<48x48xf32>
    %cst_149 = arith.constant dense<0.000000e+00> : vector<48x8xf32>
    %452 = tpu.matmul %451, %437, %cst_149 {dimension_numbers = #tpu.dot_dimension_numbers<[1], [0], [0], [1], [0, 0, 1, 1], [], []>} : vector<48x48xf32>, vector<48x8xf32>, vector<48x8xf32> -> vector<48x8xf32>
    %453 = vector.extract_strided_slice %434 {offsets = [0, 8], sizes = [48, 8], strides = [1, 1]} : vector<48x96xf32> to vector<48x8xf32>
    %454 = vector.extract_strided_slice %434 {offsets = [0, 40], sizes = [48, 8], strides = [1, 1]} : vector<48x96xf32> to vector<48x8xf32>
    %455 = vector.extract_strided_slice %434 {offsets = [0, 72], sizes = [48, 8], strides = [1, 1]} : vector<48x96xf32> to vector<48x8xf32>
    %cst_150 = arith.constant dense<0.000000e+00> : vector<48x48xf32>
    %456 = tpu.matmul %453, %454, %cst_150 {dimension_numbers = #tpu.dot_dimension_numbers<[1], [1], [0], [0], [0, 0, 1, 0], [], []>} : vector<48x8xf32>, vector<48x8xf32>, vector<48x48xf32> -> vector<48x48xf32>
    %cst_151 = arith.constant 0.353553385 : f32
    %457 = vector.broadcast %cst_151 : f32 to vector<48x48xf32>
    %458 = arith.mulf %456, %457 : vector<48x48xf32>
    %459 = arith.addf %458, %397 : vector<48x48xf32>
    %cst_152 = arith.constant dense<0xFF800000> : vector<48xf32>
    %460 = vector.multi_reduction <maximumf>, %459, %cst_152 [1] : vector<48x48xf32> to vector<48xf32>
    %461 = vector.shape_cast %460 : vector<48xf32> to vector<48x1xf32>
    %462 = vector.broadcast %461 : vector<48x1xf32> to vector<48x48xf32>
    %463 = arith.subf %459, %462 : vector<48x48xf32>
    %464 = math.exp %463 : vector<48x48xf32>
    %cst_153 = arith.constant dense<0.000000e+00> : vector<48xf32>
    %465 = vector.multi_reduction <add>, %464, %cst_153 [1] : vector<48x48xf32> to vector<48xf32>
    %466 = vector.shape_cast %465 : vector<48xf32> to vector<48x1xf32>
    %467 = tpu.reciprocal %466 {approx = true} : vector<48x1xf32> -> vector<48x1xf32>
    %468 = vector.broadcast %467 : vector<48x1xf32> to vector<48x48xf32>
    %469 = arith.mulf %464, %468 : vector<48x48xf32>
    %cst_154 = arith.constant dense<0.000000e+00> : vector<48x8xf32>
    %470 = tpu.matmul %469, %455, %cst_154 {dimension_numbers = #tpu.dot_dimension_numbers<[1], [0], [0], [1], [0, 0, 1, 1], [], []>} : vector<48x48xf32>, vector<48x8xf32>, vector<48x8xf32> -> vector<48x8xf32>
    %471 = vector.extract_strided_slice %434 {offsets = [0, 16], sizes = [48, 8], strides = [1, 1]} : vector<48x96xf32> to vector<48x8xf32>
    %472 = vector.extract_strided_slice %434 {offsets = [0, 48], sizes = [48, 8], strides = [1, 1]} : vector<48x96xf32> to vector<48x8xf32>
    %473 = vector.extract_strided_slice %434 {offsets = [0, 80], sizes = [48, 8], strides = [1, 1]} : vector<48x96xf32> to vector<48x8xf32>
    %cst_155 = arith.constant dense<0.000000e+00> : vector<48x48xf32>
    %474 = tpu.matmul %471, %472, %cst_155 {dimension_numbers = #tpu.dot_dimension_numbers<[1], [1], [0], [0], [0, 0, 1, 0], [], []>} : vector<48x8xf32>, vector<48x8xf32>, vector<48x48xf32> -> vector<48x48xf32>
    %cst_156 = arith.constant 0.353553385 : f32
    %475 = vector.broadcast %cst_156 : f32 to vector<48x48xf32>
    %476 = arith.mulf %474, %475 : vector<48x48xf32>
    %477 = arith.addf %476, %397 : vector<48x48xf32>
    %cst_157 = arith.constant dense<0xFF800000> : vector<48xf32>
    %478 = vector.multi_reduction <maximumf>, %477, %cst_157 [1] : vector<48x48xf32> to vector<48xf32>
    %479 = vector.shape_cast %478 : vector<48xf32> to vector<48x1xf32>
    %480 = vector.broadcast %479 : vector<48x1xf32> to vector<48x48xf32>
    %481 = arith.subf %477, %480 : vector<48x48xf32>
    %482 = math.exp %481 : vector<48x48xf32>
    %cst_158 = arith.constant dense<0.000000e+00> : vector<48xf32>
    %483 = vector.multi_reduction <add>, %482, %cst_158 [1] : vector<48x48xf32> to vector<48xf32>
    %484 = vector.shape_cast %483 : vector<48xf32> to vector<48x1xf32>
    %485 = tpu.reciprocal %484 {approx = true} : vector<48x1xf32> -> vector<48x1xf32>
    %486 = vector.broadcast %485 : vector<48x1xf32> to vector<48x48xf32>
    %487 = arith.mulf %482, %486 : vector<48x48xf32>
    %cst_159 = arith.constant dense<0.000000e+00> : vector<48x8xf32>
    %488 = tpu.matmul %487, %473, %cst_159 {dimension_numbers = #tpu.dot_dimension_numbers<[1], [0], [0], [1], [0, 0, 1, 1], [], []>} : vector<48x48xf32>, vector<48x8xf32>, vector<48x8xf32> -> vector<48x8xf32>
    %489 = vector.extract_strided_slice %434 {offsets = [0, 24], sizes = [48, 8], strides = [1, 1]} : vector<48x96xf32> to vector<48x8xf32>
    %490 = vector.extract_strided_slice %434 {offsets = [0, 56], sizes = [48, 8], strides = [1, 1]} : vector<48x96xf32> to vector<48x8xf32>
    %491 = vector.extract_strided_slice %434 {offsets = [0, 88], sizes = [48, 8], strides = [1, 1]} : vector<48x96xf32> to vector<48x8xf32>
    %cst_160 = arith.constant dense<0.000000e+00> : vector<48x48xf32>
    %492 = tpu.matmul %489, %490, %cst_160 {dimension_numbers = #tpu.dot_dimension_numbers<[1], [1], [0], [0], [0, 0, 1, 0], [], []>} : vector<48x8xf32>, vector<48x8xf32>, vector<48x48xf32> -> vector<48x48xf32>
    %cst_161 = arith.constant 0.353553385 : f32
    %493 = vector.broadcast %cst_161 : f32 to vector<48x48xf32>
    %494 = arith.mulf %492, %493 : vector<48x48xf32>
    %495 = arith.addf %494, %397 : vector<48x48xf32>
    %cst_162 = arith.constant dense<0xFF800000> : vector<48xf32>
    %496 = vector.multi_reduction <maximumf>, %495, %cst_162 [1] : vector<48x48xf32> to vector<48xf32>
    %497 = vector.shape_cast %496 : vector<48xf32> to vector<48x1xf32>
    %498 = vector.broadcast %497 : vector<48x1xf32> to vector<48x48xf32>
    %499 = arith.subf %495, %498 : vector<48x48xf32>
    %500 = math.exp %499 : vector<48x48xf32>
    %cst_163 = arith.constant dense<0.000000e+00> : vector<48xf32>
    %501 = vector.multi_reduction <add>, %500, %cst_163 [1] : vector<48x48xf32> to vector<48xf32>
    %502 = vector.shape_cast %501 : vector<48xf32> to vector<48x1xf32>
    %503 = tpu.reciprocal %502 {approx = true} : vector<48x1xf32> -> vector<48x1xf32>
    %504 = vector.broadcast %503 : vector<48x1xf32> to vector<48x48xf32>
    %505 = arith.mulf %500, %504 : vector<48x48xf32>
    %cst_164 = arith.constant dense<0.000000e+00> : vector<48x8xf32>
    %506 = tpu.matmul %505, %491, %cst_164 {dimension_numbers = #tpu.dot_dimension_numbers<[1], [0], [0], [1], [0, 0, 1, 1], [], []>} : vector<48x48xf32>, vector<48x8xf32>, vector<48x8xf32> -> vector<48x8xf32>
    %507 = tpu.concatenate %452, %470, %488, %506 in 1 : vector<48x8xf32>, vector<48x8xf32>, vector<48x8xf32>, vector<48x8xf32> -> vector<48x32xf32>
    %508 = vector.extract_strided_slice %393 {offsets = [0, 0, 0], sizes = [1, 32, 32], strides = [1, 1, 1]} : vector<2x32x32xf32> to vector<1x32x32xf32>
    %509 = vector.shape_cast %508 : vector<1x32x32xf32> to vector<32x32xf32>
    %cst_165 = arith.constant dense<0.000000e+00> : vector<48x32xf32>
    %510 = tpu.matmul %507, %509, %cst_165 {dimension_numbers = #tpu.dot_dimension_numbers<[1], [0], [0], [1], [0, 0, 1, 1], [], []>} : vector<48x32xf32>, vector<32x32xf32>, vector<48x32xf32> -> vector<48x32xf32>
    %511 = arith.addf %390, %510 : vector<48x32xf32>
    %512 = vector.broadcast %401 : vector<1x32xf32> to vector<48x32xf32>
    %513 = arith.addf %511, %512 : vector<48x32xf32>
    %cst_166 = arith.constant dense<0.000000e+00> : vector<48xf32>
    %514 = vector.multi_reduction <add>, %513, %cst_166 [1] : vector<48x32xf32> to vector<48xf32>
    %515 = vector.shape_cast %514 : vector<48xf32> to vector<48x1xf32>
    %cst_167 = arith.constant 3.200000e+01 : f32
    %516 = vector.broadcast %cst_167 : f32 to vector<48x1xf32>
    %517 = arith.divf %515, %516 : vector<48x1xf32>
    %518 = vector.broadcast %517 : vector<48x1xf32> to vector<48x32xf32>
    %519 = arith.subf %513, %518 : vector<48x32xf32>
    %520 = arith.mulf %519, %519 : vector<48x32xf32>
    %cst_168 = arith.constant dense<0.000000e+00> : vector<48xf32>
    %521 = vector.multi_reduction <add>, %520, %cst_168 [1] : vector<48x32xf32> to vector<48xf32>
    %522 = vector.shape_cast %521 : vector<48xf32> to vector<48x1xf32>
    %cst_169 = arith.constant 3.200000e+01 : f32
    %523 = vector.broadcast %cst_169 : f32 to vector<48x1xf32>
    %524 = arith.divf %522, %523 : vector<48x1xf32>
    %525 = vector.broadcast %517 : vector<48x1xf32> to vector<48x32xf32>
    %526 = arith.subf %513, %525 : vector<48x32xf32>
    %cst_170 = arith.constant 9.99999974E-6 : f32
    %527 = vector.broadcast %cst_170 : f32 to vector<48x1xf32>
    %528 = arith.addf %524, %527 : vector<48x1xf32>
    %529 = math.rsqrt %528 : vector<48x1xf32>
    %530 = vector.broadcast %529 : vector<48x1xf32> to vector<48x32xf32>
    %531 = arith.mulf %526, %530 : vector<48x32xf32>
    %532 = vector.broadcast %404 : vector<1x32xf32> to vector<48x32xf32>
    %533 = arith.mulf %531, %532 : vector<48x32xf32>
    %534 = vector.broadcast %405 : vector<1x32xf32> to vector<48x32xf32>
    %535 = arith.addf %533, %534 : vector<48x32xf32>
    %536 = vector.extract_strided_slice %394 {offsets = [0, 0, 0], sizes = [1, 32, 128], strides = [1, 1, 1]} : vector<2x32x128xf32> to vector<1x32x128xf32>
    %537 = vector.shape_cast %536 : vector<1x32x128xf32> to vector<32x128xf32>
    %cst_171 = arith.constant dense<0.000000e+00> : vector<48x128xf32>
    %538 = tpu.matmul %535, %537, %cst_171 {dimension_numbers = #tpu.dot_dimension_numbers<[1], [0], [0], [1], [0, 0, 1, 1], [], []>} : vector<48x32xf32>, vector<32x128xf32>, vector<48x128xf32> -> vector<48x128xf32>
    %539 = vector.broadcast %406 : vector<1x128xf32> to vector<48x128xf32>
    %540 = arith.addf %538, %539 : vector<48x128xf32>
    %cst_172 = arith.constant 1.702000e+00 : f32
    %541 = vector.broadcast %cst_172 : f32 to vector<48x128xf32>
    %542 = arith.mulf %541, %540 : vector<48x128xf32>
    %543 = arith.negf %542 : vector<48x128xf32>
    %544 = math.exp %543 : vector<48x128xf32>
    %cst_173 = arith.constant 1.000000e+00 : f32
    %545 = vector.broadcast %cst_173 : f32 to vector<48x128xf32>
    %546 = arith.addf %545, %544 : vector<48x128xf32>
    %547 = arith.divf %545, %546 : vector<48x128xf32>
    %548 = arith.mulf %540, %547 : vector<48x128xf32>
    %549 = vector.extract_strided_slice %395 {offsets = [0, 0, 0], sizes = [1, 128, 32], strides = [1, 1, 1]} : vector<2x128x32xf32> to vector<1x128x32xf32>
    %550 = vector.shape_cast %549 : vector<1x128x32xf32> to vector<128x32xf32>
    %cst_174 = arith.constant dense<0.000000e+00> : vector<48x32xf32>
    %551 = tpu.matmul %548, %550, %cst_174 {dimension_numbers = #tpu.dot_dimension_numbers<[1], [0], [0], [1], [0, 0, 1, 1], [], []>} : vector<48x128xf32>, vector<128x32xf32>, vector<48x32xf32> -> vector<48x32xf32>
    %552 = arith.addf %513, %551 : vector<48x32xf32>
    %553 = vector.broadcast %407 : vector<1x32xf32> to vector<48x32xf32>
    %554 = arith.addf %552, %553 : vector<48x32xf32>
    %555 = vector.extract_strided_slice %396 {offsets = [1, 0, 0], sizes = [1, 8, 128], strides = [1, 1, 1]} : vector<2x8x128xf32> to vector<1x8x128xf32>
    %556 = vector.shape_cast %555 : vector<1x8x128xf32> to vector<8x128xf32>
    %557 = vector.extract_strided_slice %556 {offsets = [0, 0], sizes = [1, 96], strides = [1, 1]} : vector<8x128xf32> to vector<1x96xf32>
    %558 = vector.extract_strided_slice %556 {offsets = [1, 0], sizes = [1, 32], strides = [1, 1]} : vector<8x128xf32> to vector<1x32xf32>
    %559 = vector.extract_strided_slice %556 {offsets = [2, 0], sizes = [1, 32], strides = [1, 1]} : vector<8x128xf32> to vector<1x32xf32>
    %560 = vector.extract_strided_slice %556 {offsets = [3, 0], sizes = [1, 32], strides = [1, 1]} : vector<8x128xf32> to vector<1x32xf32>
    %561 = vector.extract_strided_slice %556 {offsets = [4, 0], sizes = [1, 32], strides = [1, 1]} : vector<8x128xf32> to vector<1x32xf32>
    %562 = vector.extract_strided_slice %556 {offsets = [5, 0], sizes = [1, 32], strides = [1, 1]} : vector<8x128xf32> to vector<1x32xf32>
    %563 = vector.extract_strided_slice %556 {offsets = [6, 0], sizes = [1, 128], strides = [1, 1]} : vector<8x128xf32> to vector<1x128xf32>
    %564 = vector.extract_strided_slice %556 {offsets = [7, 0], sizes = [1, 32], strides = [1, 1]} : vector<8x128xf32> to vector<1x32xf32>
    %cst_175 = arith.constant dense<0.000000e+00> : vector<48xf32>
    %565 = vector.multi_reduction <add>, %554, %cst_175 [1] : vector<48x32xf32> to vector<48xf32>
    %566 = vector.shape_cast %565 : vector<48xf32> to vector<48x1xf32>
    %cst_176 = arith.constant 3.200000e+01 : f32
    %567 = vector.broadcast %cst_176 : f32 to vector<48x1xf32>
    %568 = arith.divf %566, %567 : vector<48x1xf32>
    %569 = vector.broadcast %568 : vector<48x1xf32> to vector<48x32xf32>
    %570 = arith.subf %554, %569 : vector<48x32xf32>
    %571 = arith.mulf %570, %570 : vector<48x32xf32>
    %cst_177 = arith.constant dense<0.000000e+00> : vector<48xf32>
    %572 = vector.multi_reduction <add>, %571, %cst_177 [1] : vector<48x32xf32> to vector<48xf32>
    %573 = vector.shape_cast %572 : vector<48xf32> to vector<48x1xf32>
    %cst_178 = arith.constant 3.200000e+01 : f32
    %574 = vector.broadcast %cst_178 : f32 to vector<48x1xf32>
    %575 = arith.divf %573, %574 : vector<48x1xf32>
    %576 = vector.broadcast %568 : vector<48x1xf32> to vector<48x32xf32>
    %577 = arith.subf %554, %576 : vector<48x32xf32>
    %cst_179 = arith.constant 9.99999974E-6 : f32
    %578 = vector.broadcast %cst_179 : f32 to vector<48x1xf32>
    %579 = arith.addf %575, %578 : vector<48x1xf32>
    %580 = math.rsqrt %579 : vector<48x1xf32>
    %581 = vector.broadcast %580 : vector<48x1xf32> to vector<48x32xf32>
    %582 = arith.mulf %577, %581 : vector<48x32xf32>
    %583 = vector.broadcast %559 : vector<1x32xf32> to vector<48x32xf32>
    %584 = arith.mulf %582, %583 : vector<48x32xf32>
    %585 = vector.broadcast %560 : vector<1x32xf32> to vector<48x32xf32>
    %586 = arith.addf %584, %585 : vector<48x32xf32>
    %587 = vector.extract_strided_slice %392 {offsets = [1, 0, 0], sizes = [1, 32, 96], strides = [1, 1, 1]} : vector<2x32x96xf32> to vector<1x32x96xf32>
    %588 = vector.shape_cast %587 : vector<1x32x96xf32> to vector<32x96xf32>
    %cst_180 = arith.constant dense<0.000000e+00> : vector<48x96xf32>
    %589 = tpu.matmul %586, %588, %cst_180 {dimension_numbers = #tpu.dot_dimension_numbers<[1], [0], [0], [1], [0, 0, 1, 1], [], []>} : vector<48x32xf32>, vector<32x96xf32>, vector<48x96xf32> -> vector<48x96xf32>
    %590 = vector.broadcast %557 : vector<1x96xf32> to vector<48x96xf32>
    %591 = arith.addf %589, %590 : vector<48x96xf32>
    %592 = vector.extract_strided_slice %591 {offsets = [0, 0], sizes = [48, 8], strides = [1, 1]} : vector<48x96xf32> to vector<48x8xf32>
    %593 = vector.extract_strided_slice %591 {offsets = [0, 32], sizes = [48, 8], strides = [1, 1]} : vector<48x96xf32> to vector<48x8xf32>
    %594 = vector.extract_strided_slice %591 {offsets = [0, 64], sizes = [48, 8], strides = [1, 1]} : vector<48x96xf32> to vector<48x8xf32>
    %cst_181 = arith.constant dense<0.000000e+00> : vector<48x48xf32>
    %595 = tpu.matmul %592, %593, %cst_181 {dimension_numbers = #tpu.dot_dimension_numbers<[1], [1], [0], [0], [0, 0, 1, 0], [], []>} : vector<48x8xf32>, vector<48x8xf32>, vector<48x48xf32> -> vector<48x48xf32>
    %cst_182 = arith.constant 0.353553385 : f32
    %596 = vector.broadcast %cst_182 : f32 to vector<48x48xf32>
    %597 = arith.mulf %595, %596 : vector<48x48xf32>
    %598 = arith.addf %597, %397 : vector<48x48xf32>
    %cst_183 = arith.constant dense<0xFF800000> : vector<48xf32>
    %599 = vector.multi_reduction <maximumf>, %598, %cst_183 [1] : vector<48x48xf32> to vector<48xf32>
    %600 = vector.shape_cast %599 : vector<48xf32> to vector<48x1xf32>
    %601 = vector.broadcast %600 : vector<48x1xf32> to vector<48x48xf32>
    %602 = arith.subf %598, %601 : vector<48x48xf32>
    %603 = math.exp %602 : vector<48x48xf32>
    %cst_184 = arith.constant dense<0.000000e+00> : vector<48xf32>
    %604 = vector.multi_reduction <add>, %603, %cst_184 [1] : vector<48x48xf32> to vector<48xf32>
    %605 = vector.shape_cast %604 : vector<48xf32> to vector<48x1xf32>
    %606 = tpu.reciprocal %605 {approx = true} : vector<48x1xf32> -> vector<48x1xf32>
    %607 = vector.broadcast %606 : vector<48x1xf32> to vector<48x48xf32>
    %608 = arith.mulf %603, %607 : vector<48x48xf32>
    %cst_185 = arith.constant dense<0.000000e+00> : vector<48x8xf32>
    %609 = tpu.matmul %608, %594, %cst_185 {dimension_numbers = #tpu.dot_dimension_numbers<[1], [0], [0], [1], [0, 0, 1, 1], [], []>} : vector<48x48xf32>, vector<48x8xf32>, vector<48x8xf32> -> vector<48x8xf32>
    %610 = vector.extract_strided_slice %591 {offsets = [0, 8], sizes = [48, 8], strides = [1, 1]} : vector<48x96xf32> to vector<48x8xf32>
    %611 = vector.extract_strided_slice %591 {offsets = [0, 40], sizes = [48, 8], strides = [1, 1]} : vector<48x96xf32> to vector<48x8xf32>
    %612 = vector.extract_strided_slice %591 {offsets = [0, 72], sizes = [48, 8], strides = [1, 1]} : vector<48x96xf32> to vector<48x8xf32>
    %cst_186 = arith.constant dense<0.000000e+00> : vector<48x48xf32>
    %613 = tpu.matmul %610, %611, %cst_186 {dimension_numbers = #tpu.dot_dimension_numbers<[1], [1], [0], [0], [0, 0, 1, 0], [], []>} : vector<48x8xf32>, vector<48x8xf32>, vector<48x48xf32> -> vector<48x48xf32>
    %cst_187 = arith.constant 0.353553385 : f32
    %614 = vector.broadcast %cst_187 : f32 to vector<48x48xf32>
    %615 = arith.mulf %613, %614 : vector<48x48xf32>
    %616 = arith.addf %615, %397 : vector<48x48xf32>
    %cst_188 = arith.constant dense<0xFF800000> : vector<48xf32>
    %617 = vector.multi_reduction <maximumf>, %616, %cst_188 [1] : vector<48x48xf32> to vector<48xf32>
    %618 = vector.shape_cast %617 : vector<48xf32> to vector<48x1xf32>
    %619 = vector.broadcast %618 : vector<48x1xf32> to vector<48x48xf32>
    %620 = arith.subf %616, %619 : vector<48x48xf32>
    %621 = math.exp %620 : vector<48x48xf32>
    %cst_189 = arith.constant dense<0.000000e+00> : vector<48xf32>
    %622 = vector.multi_reduction <add>, %621, %cst_189 [1] : vector<48x48xf32> to vector<48xf32>
    %623 = vector.shape_cast %622 : vector<48xf32> to vector<48x1xf32>
    %624 = tpu.reciprocal %623 {approx = true} : vector<48x1xf32> -> vector<48x1xf32>
    %625 = vector.broadcast %624 : vector<48x1xf32> to vector<48x48xf32>
    %626 = arith.mulf %621, %625 : vector<48x48xf32>
    %cst_190 = arith.constant dense<0.000000e+00> : vector<48x8xf32>
    %627 = tpu.matmul %626, %612, %cst_190 {dimension_numbers = #tpu.dot_dimension_numbers<[1], [0], [0], [1], [0, 0, 1, 1], [], []>} : vector<48x48xf32>, vector<48x8xf32>, vector<48x8xf32> -> vector<48x8xf32>
    %628 = vector.extract_strided_slice %591 {offsets = [0, 16], sizes = [48, 8], strides = [1, 1]} : vector<48x96xf32> to vector<48x8xf32>
    %629 = vector.extract_strided_slice %591 {offsets = [0, 48], sizes = [48, 8], strides = [1, 1]} : vector<48x96xf32> to vector<48x8xf32>
    %630 = vector.extract_strided_slice %591 {offsets = [0, 80], sizes = [48, 8], strides = [1, 1]} : vector<48x96xf32> to vector<48x8xf32>
    %cst_191 = arith.constant dense<0.000000e+00> : vector<48x48xf32>
    %631 = tpu.matmul %628, %629, %cst_191 {dimension_numbers = #tpu.dot_dimension_numbers<[1], [1], [0], [0], [0, 0, 1, 0], [], []>} : vector<48x8xf32>, vector<48x8xf32>, vector<48x48xf32> -> vector<48x48xf32>
    %cst_192 = arith.constant 0.353553385 : f32
    %632 = vector.broadcast %cst_192 : f32 to vector<48x48xf32>
    %633 = arith.mulf %631, %632 : vector<48x48xf32>
    %634 = arith.addf %633, %397 : vector<48x48xf32>
    %cst_193 = arith.constant dense<0xFF800000> : vector<48xf32>
    %635 = vector.multi_reduction <maximumf>, %634, %cst_193 [1] : vector<48x48xf32> to vector<48xf32>
    %636 = vector.shape_cast %635 : vector<48xf32> to vector<48x1xf32>
    %637 = vector.broadcast %636 : vector<48x1xf32> to vector<48x48xf32>
    %638 = arith.subf %634, %637 : vector<48x48xf32>
    %639 = math.exp %638 : vector<48x48xf32>
    %cst_194 = arith.constant dense<0.000000e+00> : vector<48xf32>
    %640 = vector.multi_reduction <add>, %639, %cst_194 [1] : vector<48x48xf32> to vector<48xf32>
    %641 = vector.shape_cast %640 : vector<48xf32> to vector<48x1xf32>
    %642 = tpu.reciprocal %641 {approx = true} : vector<48x1xf32> -> vector<48x1xf32>
    %643 = vector.broadcast %642 : vector<48x1xf32> to vector<48x48xf32>
    %644 = arith.mulf %639, %643 : vector<48x48xf32>
    %cst_195 = arith.constant dense<0.000000e+00> : vector<48x8xf32>
    %645 = tpu.matmul %644, %630, %cst_195 {dimension_numbers = #tpu.dot_dimension_numbers<[1], [0], [0], [1], [0, 0, 1, 1], [], []>} : vector<48x48xf32>, vector<48x8xf32>, vector<48x8xf32> -> vector<48x8xf32>
    %646 = vector.extract_strided_slice %591 {offsets = [0, 24], sizes = [48, 8], strides = [1, 1]} : vector<48x96xf32> to vector<48x8xf32>
    %647 = vector.extract_strided_slice %591 {offsets = [0, 56], sizes = [48, 8], strides = [1, 1]} : vector<48x96xf32> to vector<48x8xf32>
    %648 = vector.extract_strided_slice %591 {offsets = [0, 88], sizes = [48, 8], strides = [1, 1]} : vector<48x96xf32> to vector<48x8xf32>
    %cst_196 = arith.constant dense<0.000000e+00> : vector<48x48xf32>
    %649 = tpu.matmul %646, %647, %cst_196 {dimension_numbers = #tpu.dot_dimension_numbers<[1], [1], [0], [0], [0, 0, 1, 0], [], []>} : vector<48x8xf32>, vector<48x8xf32>, vector<48x48xf32> -> vector<48x48xf32>
    %cst_197 = arith.constant 0.353553385 : f32
    %650 = vector.broadcast %cst_197 : f32 to vector<48x48xf32>
    %651 = arith.mulf %649, %650 : vector<48x48xf32>
    %652 = arith.addf %651, %397 : vector<48x48xf32>
    %cst_198 = arith.constant dense<0xFF800000> : vector<48xf32>
    %653 = vector.multi_reduction <maximumf>, %652, %cst_198 [1] : vector<48x48xf32> to vector<48xf32>
    %654 = vector.shape_cast %653 : vector<48xf32> to vector<48x1xf32>
    %655 = vector.broadcast %654 : vector<48x1xf32> to vector<48x48xf32>
    %656 = arith.subf %652, %655 : vector<48x48xf32>
    %657 = math.exp %656 : vector<48x48xf32>
    %cst_199 = arith.constant dense<0.000000e+00> : vector<48xf32>
    %658 = vector.multi_reduction <add>, %657, %cst_199 [1] : vector<48x48xf32> to vector<48xf32>
    %659 = vector.shape_cast %658 : vector<48xf32> to vector<48x1xf32>
    %660 = tpu.reciprocal %659 {approx = true} : vector<48x1xf32> -> vector<48x1xf32>
    %661 = vector.broadcast %660 : vector<48x1xf32> to vector<48x48xf32>
    %662 = arith.mulf %657, %661 : vector<48x48xf32>
    %cst_200 = arith.constant dense<0.000000e+00> : vector<48x8xf32>
    %663 = tpu.matmul %662, %648, %cst_200 {dimension_numbers = #tpu.dot_dimension_numbers<[1], [0], [0], [1], [0, 0, 1, 1], [], []>} : vector<48x48xf32>, vector<48x8xf32>, vector<48x8xf32> -> vector<48x8xf32>
    %664 = tpu.concatenate %609, %627, %645, %663 in 1 : vector<48x8xf32>, vector<48x8xf32>, vector<48x8xf32>, vector<48x8xf32> -> vector<48x32xf32>
    %665 = vector.extract_strided_slice %393 {offsets = [1, 0, 0], sizes = [1, 32, 32], strides = [1, 1, 1]} : vector<2x32x32xf32> to vector<1x32x32xf32>
    %666 = vector.shape_cast %665 : vector<1x32x32xf32> to vector<32x32xf32>
    %cst_201 = arith.constant dense<0.000000e+00> : vector<48x32xf32>
    %667 = tpu.matmul %664, %666, %cst_201 {dimension_numbers = #tpu.dot_dimension_numbers<[1], [0], [0], [1], [0, 0, 1, 1], [], []>} : vector<48x32xf32>, vector<32x32xf32>, vector<48x32xf32> -> vector<48x32xf32>
    %668 = arith.addf %554, %667 : vector<48x32xf32>
    %669 = vector.broadcast %558 : vector<1x32xf32> to vector<48x32xf32>
    %670 = arith.addf %668, %669 : vector<48x32xf32>
    %cst_202 = arith.constant dense<0.000000e+00> : vector<48xf32>
    %671 = vector.multi_reduction <add>, %670, %cst_202 [1] : vector<48x32xf32> to vector<48xf32>
    %672 = vector.shape_cast %671 : vector<48xf32> to vector<48x1xf32>
    %cst_203 = arith.constant 3.200000e+01 : f32
    %673 = vector.broadcast %cst_203 : f32 to vector<48x1xf32>
    %674 = arith.divf %672, %673 : vector<48x1xf32>
    %675 = vector.broadcast %674 : vector<48x1xf32> to vector<48x32xf32>
    %676 = arith.subf %670, %675 : vector<48x32xf32>
    %677 = arith.mulf %676, %676 : vector<48x32xf32>
    %cst_204 = arith.constant dense<0.000000e+00> : vector<48xf32>
    %678 = vector.multi_reduction <add>, %677, %cst_204 [1] : vector<48x32xf32> to vector<48xf32>
    %679 = vector.shape_cast %678 : vector<48xf32> to vector<48x1xf32>
    %cst_205 = arith.constant 3.200000e+01 : f32
    %680 = vector.broadcast %cst_205 : f32 to vector<48x1xf32>
    %681 = arith.divf %679, %680 : vector<48x1xf32>
    %682 = vector.broadcast %674 : vector<48x1xf32> to vector<48x32xf32>
    %683 = arith.subf %670, %682 : vector<48x32xf32>
    %cst_206 = arith.constant 9.99999974E-6 : f32
    %684 = vector.broadcast %cst_206 : f32 to vector<48x1xf32>
    %685 = arith.addf %681, %684 : vector<48x1xf32>
    %686 = math.rsqrt %685 : vector<48x1xf32>
    %687 = vector.broadcast %686 : vector<48x1xf32> to vector<48x32xf32>
    %688 = arith.mulf %683, %687 : vector<48x32xf32>
    %689 = vector.broadcast %561 : vector<1x32xf32> to vector<48x32xf32>
    %690 = arith.mulf %688, %689 : vector<48x32xf32>
    %691 = vector.broadcast %562 : vector<1x32xf32> to vector<48x32xf32>
    %692 = arith.addf %690, %691 : vector<48x32xf32>
    %693 = vector.extract_strided_slice %394 {offsets = [1, 0, 0], sizes = [1, 32, 128], strides = [1, 1, 1]} : vector<2x32x128xf32> to vector<1x32x128xf32>
    %694 = vector.shape_cast %693 : vector<1x32x128xf32> to vector<32x128xf32>
    %cst_207 = arith.constant dense<0.000000e+00> : vector<48x128xf32>
    %695 = tpu.matmul %692, %694, %cst_207 {dimension_numbers = #tpu.dot_dimension_numbers<[1], [0], [0], [1], [0, 0, 1, 1], [], []>} : vector<48x32xf32>, vector<32x128xf32>, vector<48x128xf32> -> vector<48x128xf32>
    %696 = vector.broadcast %563 : vector<1x128xf32> to vector<48x128xf32>
    %697 = arith.addf %695, %696 : vector<48x128xf32>
    %cst_208 = arith.constant 1.702000e+00 : f32
    %698 = vector.broadcast %cst_208 : f32 to vector<48x128xf32>
    %699 = arith.mulf %698, %697 : vector<48x128xf32>
    %700 = arith.negf %699 : vector<48x128xf32>
    %701 = math.exp %700 : vector<48x128xf32>
    %cst_209 = arith.constant 1.000000e+00 : f32
    %702 = vector.broadcast %cst_209 : f32 to vector<48x128xf32>
    %703 = arith.addf %702, %701 : vector<48x128xf32>
    %704 = arith.divf %702, %703 : vector<48x128xf32>
    %705 = arith.mulf %697, %704 : vector<48x128xf32>
    %706 = vector.extract_strided_slice %395 {offsets = [1, 0, 0], sizes = [1, 128, 32], strides = [1, 1, 1]} : vector<2x128x32xf32> to vector<1x128x32xf32>
    %707 = vector.shape_cast %706 : vector<1x128x32xf32> to vector<128x32xf32>
    %cst_210 = arith.constant dense<0.000000e+00> : vector<48x32xf32>
    %708 = tpu.matmul %705, %707, %cst_210 {dimension_numbers = #tpu.dot_dimension_numbers<[1], [0], [0], [1], [0, 0, 1, 1], [], []>} : vector<48x128xf32>, vector<128x32xf32>, vector<48x32xf32> -> vector<48x32xf32>
    %709 = arith.addf %670, %708 : vector<48x32xf32>
    %710 = vector.broadcast %564 : vector<1x32xf32> to vector<48x32xf32>
    %711 = arith.addf %709, %710 : vector<48x32xf32>
    %712 = vector.extract_strided_slice %391 {offsets = [0, 0], sizes = [1, 32], strides = [1, 1]} : vector<2x32xf32> to vector<1x32xf32>
    %713 = vector.extract_strided_slice %391 {offsets = [1, 0], sizes = [1, 32], strides = [1, 1]} : vector<2x32xf32> to vector<1x32xf32>
    %cst_211 = arith.constant dense<0.000000e+00> : vector<48xf32>
    %714 = vector.multi_reduction <add>, %711, %cst_211 [1] : vector<48x32xf32> to vector<48xf32>
    %715 = vector.shape_cast %714 : vector<48xf32> to vector<48x1xf32>
    %cst_212 = arith.constant 3.200000e+01 : f32
    %716 = vector.broadcast %cst_212 : f32 to vector<48x1xf32>
    %717 = arith.divf %715, %716 : vector<48x1xf32>
    %718 = vector.broadcast %717 : vector<48x1xf32> to vector<48x32xf32>
    %719 = arith.subf %711, %718 : vector<48x32xf32>
    %720 = arith.mulf %719, %719 : vector<48x32xf32>
    %cst_213 = arith.constant dense<0.000000e+00> : vector<48xf32>
    %721 = vector.multi_reduction <add>, %720, %cst_213 [1] : vector<48x32xf32> to vector<48xf32>
    %722 = vector.shape_cast %721 : vector<48xf32> to vector<48x1xf32>
    %cst_214 = arith.constant 3.200000e+01 : f32
    %723 = vector.broadcast %cst_214 : f32 to vector<48x1xf32>
    %724 = arith.divf %722, %723 : vector<48x1xf32>
    %725 = vector.broadcast %717 : vector<48x1xf32> to vector<48x32xf32>
    %726 = arith.subf %711, %725 : vector<48x32xf32>
    %cst_215 = arith.constant 9.99999974E-6 : f32
    %727 = vector.broadcast %cst_215 : f32 to vector<48x1xf32>
    %728 = arith.addf %724, %727 : vector<48x1xf32>
    %729 = math.rsqrt %728 : vector<48x1xf32>
    %730 = vector.broadcast %729 : vector<48x1xf32> to vector<48x32xf32>
    %731 = arith.mulf %726, %730 : vector<48x32xf32>
    %732 = vector.broadcast %712 : vector<1x32xf32> to vector<48x32xf32>
    %733 = arith.mulf %731, %732 : vector<48x32xf32>
    %734 = vector.broadcast %713 : vector<1x32xf32> to vector<48x32xf32>
    %735 = arith.addf %733, %734 : vector<48x32xf32>
    %c0_216 = arith.constant 0 : index
    %c0_217 = arith.constant 0 : index
    %736 = vector.load %arg21[%c0_216, %c0_217] : memref<4x48xf32, #tpu.memory_space<vmem>>, vector<4x48xf32>
    %cst_218 = arith.constant dense<0.000000e+00> : vector<4x32xf32>
    %737 = tpu.matmul %736, %735, %cst_218 {dimension_numbers = #tpu.dot_dimension_numbers<[1], [0], [0], [1], [0, 0, 1, 1], [], []>} : vector<4x48xf32>, vector<48x32xf32>, vector<4x32xf32> -> vector<4x32xf32>
    %c0_219 = arith.constant 0 : index
    %c0_220 = arith.constant 0 : index
    %738 = vector.load %arg22[%c0_219, %c0_220] : memref<32x16xf32, #tpu.memory_space<vmem>>, vector<32x16xf32>
    %cst_221 = arith.constant dense<0.000000e+00> : vector<4x16xf32>
    %739 = tpu.matmul %737, %738, %cst_221 {dimension_numbers = #tpu.dot_dimension_numbers<[1], [0], [0], [1], [0, 0, 1, 1], [], []>} : vector<4x32xf32>, vector<32x16xf32>, vector<4x16xf32> -> vector<4x16xf32>
    %740 = arith.mulf %739, %739 : vector<4x16xf32>
    %cst_222 = arith.constant dense<0.000000e+00> : vector<4xf32>
    %741 = vector.multi_reduction <add>, %740, %cst_222 [1] : vector<4x16xf32> to vector<4xf32>
    %742 = vector.shape_cast %741 : vector<4xf32> to vector<4x1xf32>
    %cst_223 = arith.constant 1.000000e-30 : f32
    %743 = vector.broadcast %cst_223 : f32 to vector<4x1xf32>
    %744 = arith.maximumf %742, %743 : vector<4x1xf32>
    %745 = math.rsqrt %744 : vector<4x1xf32>
    %746 = vector.broadcast %745 : vector<4x1xf32> to vector<4x16xf32>
    %747 = arith.mulf %739, %746 : vector<4x16xf32>
    %c0_224 = arith.constant 0 : index
    %c0_225 = arith.constant 0 : index
    %748 = vector.load %arg24[%c0_224, %c0_225] : memref<4x16xf32, #tpu.memory_space<vmem>>, vector<4x16xf32>
    tpu.vector_store %arg24[%c0_224, %c0_225], %747 {strides = array<i32>} : memref<4x16xf32, #tpu.memory_space<vmem>>, vector<4x16xf32>,
    return
  }
}

</mosaic_0001>

<llo_original>
// kernel: tpu_custom_call.1
$region0: #{tpu_custom_call.1}
  #allocation0 [shape = 'u32[]', space=smem, size = 0x4, offset = 0x4, fixed_abs, tag = 'smem constant byte address 0x4 - core index']
  #allocation1 [shape = 'u32[72,128]{1,0:T(1,128)}', space=vmem, size = 0x9000, scoped, tag = 'internal scratch']
  %s0 = inlined_call_operand.vmem [shape: f32[10,192], index: 0, kind: input, shape index: {}]
  %s1 = inlined_call_operand.vmem [shape: f32[10,1], index: 1, kind: input, shape index: {}]
  %s2 = inlined_call_operand.vmem [shape: f32[10,32], index: 2, kind: input, shape index: {}]
  %s3 = inlined_call_operand.vmem [shape: f32[192,32], index: 3, kind: input, shape index: {}]
  %s4 = inlined_call_operand.vmem [shape: f32[2,32,96], index: 4, kind: input, shape index: {}]
  %s5 = inlined_call_operand.vmem [shape: f32[2,32,32], index: 5, kind: input, shape index: {}]
  %s6 = inlined_call_operand.vmem [shape: f32[2,32,128], index: 6, kind: input, shape index: {}]
  %s7 = inlined_call_operand.vmem [shape: f32[2,128,32], index: 7, kind: input, shape index: {}]
  %s8 = inlined_call_operand.vmem [shape: f32[2,8,128], index: 8, kind: input, shape index: {}]
  %s9 = inlined_call_operand.vmem [shape: f32[4,32], index: 9, kind: input, shape index: {}]
  %s10 = inlined_call_operand.vmem [shape: f32[10,10], index: 10, kind: input, shape index: {}]
  %s11 = inlined_call_operand.vmem [shape: f32[2,10], index: 11, kind: input, shape index: {}]
  %s12 = inlined_call_operand.vmem [shape: f32[32,16], index: 12, kind: input, shape index: {}]
  %s13 = inlined_call_operand.vmem [shape: f32[48,32], index: 13, kind: input, shape index: {}]
  %s14 = inlined_call_operand.vmem [shape: f32[2,32,96], index: 14, kind: input, shape index: {}]
  %s15 = inlined_call_operand.vmem [shape: f32[2,32,32], index: 15, kind: input, shape index: {}]
  %s16 = inlined_call_operand.vmem [shape: f32[2,32,128], index: 16, kind: input, shape index: {}]
  %s17 = inlined_call_operand.vmem [shape: f32[2,128,32], index: 17, kind: input, shape index: {}]
  %s18 = inlined_call_operand.vmem [shape: f32[2,8,128], index: 18, kind: input, shape index: {}]
  %s19 = inlined_call_operand.vmem [shape: f32[2,32], index: 19, kind: input, shape index: {}]
  %s20 = inlined_call_operand.vmem [shape: f32[48,48], index: 20, kind: input, shape index: {}]
  %s21 = inlined_call_operand.vmem [shape: f32[4,48], index: 21, kind: input, shape index: {}]
  %s22 = inlined_call_operand.vmem [shape: f32[32,16], index: 22, kind: input, shape index: {}]
  %s23 = inlined_call_operand.hbm [shape: f32[2,16], index: 23, kind: output, shape index: {0}]
  %s24 = inlined_call_operand.hbm [shape: f32[4,16], index: 24, kind: output, shape index: {1}]
  %25 = xla_tuple %s23, %s24
  %s26 = sld [smem:[#allocation0]]
  $region110: #{tpu_custom_call.1} parent=0
    _
  %s28 = ssub.s32 1, %s26
  %s29 = scalar_select 0, %s28, %s26
  $region1: #{tpu_custom_call.1} parent=0
    #allocation2 [shape = 'u8[1024]{0}', space=vmem, size = 0x400, scoped, tag = 'output window, operand 0, single buffered']
    #allocation3 [shape = 's32[1]{0}', space=sflag, size = 0x4, scoped, tag = 'scoped memory for tpu_custom_call.1']
    #allocation4 [shape = 'u8[2048]{0}', space=vmem, size = 0x800, scoped, tag = 'output window, operand 1, single buffered']
    #allocation5 [shape = 's32[1]{0}', space=sflag, size = 0x4, scoped, tag = 'scoped memory for tpu_custom_call.1']
    %30 = vsyncpa [#allocation3], 0
    %31 = vsyncpa [#allocation5], 0
    // Predicated region
    $region2: #{tpu_custom_call.1} parent=1 // pred_check
      _
    $region3: #{tpu_custom_call.1} parent=1 // pred_check_branch
      %33 = sbr.rel (0) target = $region5
    $region4: #{tpu_custom_call.1} parent=1 // pred_region
      _
    $region5: #{tpu_custom_call.1} parent=1 // pred_fallthru
      _
    // Predicated region
    $region6: #{tpu_custom_call.1} parent=1 // pred_check
      _
    $region7: #{tpu_custom_call.1} parent=1 // pred_check_branch
      %35 = sbr.rel (0) target = $region9
    $region8: #{tpu_custom_call.1} parent=1 // pred_region
      _
    $region9: #{tpu_custom_call.1} parent=1 // pred_fallthru
      _
    // Predicated region
    $region10: #{tpu_custom_call.1} parent=1 // pred_check
      _
    $region11: #{tpu_custom_call.1} parent=1 // pred_check_branch
      %37 = sbr.rel (0) target = $region13
    $region12: #{tpu_custom_call.1} parent=1 // pred_region
      _
    $region13: #{tpu_custom_call.1} parent=1 // pred_fallthru
      _
    // Predicated region
    $region14: #{tpu_custom_call.1} parent=1 // pred_check
      _
    $region15: #{tpu_custom_call.1} parent=1 // pred_check_branch
      %39 = sbr.rel (0) target = $region17
    $region16: #{tpu_custom_call.1} parent=1 // pred_region
      _
    $region17: #{tpu_custom_call.1} parent=1 // pred_fallthru
      _
    // Predicated region
    $region18: #{tpu_custom_call.1} parent=1 // pred_check
      _
    $region19: #{tpu_custom_call.1} parent=1 // pred_check_branch
      %41 = sbr.rel (0) target = $region21
    $region20: #{tpu_custom_call.1} parent=1 // pred_region
      _
    $region21: #{tpu_custom_call.1} parent=1 // pred_fallthru
      _
    // Predicated region
    $region22: #{tpu_custom_call.1} parent=1 // pred_check
      _
    $region23: #{tpu_custom_call.1} parent=1 // pred_check_branch
      %43 = sbr.rel (0) target = $region25
    $region24: #{tpu_custom_call.1} parent=1 // pred_region
      _
    $region25: #{tpu_custom_call.1} parent=1 // pred_fallthru
      _
    // Predicated region
    $region26: #{tpu_custom_call.1} parent=1 // pred_check
      _
    $region27: #{tpu_custom_call.1} parent=1 // pred_check_branch
      %45 = sbr.rel (0) target = $region29
    $region28: #{tpu_custom_call.1} parent=1 // pred_region
      _
    $region29: #{tpu_custom_call.1} parent=1 // pred_fallthru
      _
    // Predicated region
    $region30: #{tpu_custom_call.1} parent=1 // pred_check
      _
    $region31: #{tpu_custom_call.1} parent=1 // pred_check_branch
      %47 = sbr.rel (0) target = $region33
    $region32: #{tpu_custom_call.1} parent=1 // pred_region
      _
    $region33: #{tpu_custom_call.1} parent=1 // pred_fallthru
      _
    // Predicated region
    $region34: #{tpu_custom_call.1} parent=1 // pred_check
      _
    $region35: #{tpu_custom_call.1} parent=1 // pred_check_branch
      %49 = sbr.rel (0) target = $region37
    $region36: #{tpu_custom_call.1} parent=1 // pred_region
      _
    $region37: #{tpu_custom_call.1} parent=1 // pred_fallthru
      _
    // Predicated region
    $region38: #{tpu_custom_call.1} parent=1 // pred_check
      _
    $region39: #{tpu_custom_call.1} parent=1 // pred_check_branch
      %51 = sbr.rel (0) target = $region41
    $region40: #{tpu_custom_call.1} parent=1 // pred_region
      _
    $region41: #{tpu_custom_call.1} parent=1 // pred_fallthru
      _
    // Predicated region
    $region42: #{tpu_custom_call.1} parent=1 // pred_check
      _
    $region43: #{tpu_custom_call.1} parent=1 // pred_check_branch
      %53 = sbr.rel (0) target = $region45
    $region44: #{tpu_custom_call.1} parent=1 // pred_region
      _
    $region45: #{tpu_custom_call.1} parent=1 // pred_fallthru
      _
    // Predicated region
    $region46: #{tpu_custom_call.1} parent=1 // pred_check
      _
    $region47: #{tpu_custom_call.1} parent=1 // pred_check_branch
      %55 = sbr.rel (0) target = $region49
    $region48: #{tpu_custom_call.1} parent=1 // pred_region
      _
    $region49: #{tpu_custom_call.1} parent=1 // pred_fallthru
      _
    // Predicated region
    $region50: #{tpu_custom_call.1} parent=1 // pred_check
      _
    $region51: #{tpu_custom_call.1} parent=1 // pred_check_branch
      %57 = sbr.rel (0) target = $region53
    $region52: #{tpu_custom_call.1} parent=1 // pred_region
      _
    $region53: #{tpu_custom_call.1} parent=1 // pred_fallthru
      _
    // Predicated region
    $region54: #{tpu_custom_call.1} parent=1 // pred_check
      _
    $region55: #{tpu_custom_call.1} parent=1 // pred_check_branch
      %59 = sbr.rel (0) target = $region57
    $region56: #{tpu_custom_call.1} parent=1 // pred_region
      _
    $region57: #{tpu_custom_call.1} parent=1 // pred_fallthru
      _
    // Predicated region
    $region58: #{tpu_custom_call.1} parent=1 // pred_check
      _
    $region59: #{tpu_custom_call.1} parent=1 // pred_check_branch
      %61 = sbr.rel (0) target = $region61
    $region60: #{tpu_custom_call.1} parent=1 // pred_region
      _
    $region61: #{tpu_custom_call.1} parent=1 // pred_fallthru
      _
    // Predicated region
    $region62: #{tpu_custom_call.1} parent=1 // pred_check
      _
    $region63: #{tpu_custom_call.1} parent=1 // pred_check_branch
      %63 = sbr.rel (0) target = $region65
    $region64: #{tpu_custom_call.1} parent=1 // pred_region
      _
    $region65: #{tpu_custom_call.1} parent=1 // pred_fallthru
      _
    // Predicated region
    $region66: #{tpu_custom_call.1} parent=1 // pred_check
      _
    $region67: #{tpu_custom_call.1} parent=1 // pred_check_branch
      %65 = sbr.rel (0) target = $region69
    $region68: #{tpu_custom_call.1} parent=1 // pred_region
      _
    $region69: #{tpu_custom_call.1} parent=1 // pred_fallthru
      _
    // Predicated region
    $region70: #{tpu_custom_call.1} parent=1 // pred_check
      _
    $region71: #{tpu_custom_call.1} parent=1 // pred_check_branch
      %67 = sbr.rel (0) target = $region73
    $region72: #{tpu_custom_call.1} parent=1 // pred_region
      _
    $region73: #{tpu_custom_call.1} parent=1 // pred_fallthru
      _
    // Predicated region
    $region74: #{tpu_custom_call.1} parent=1 // pred_check
      _
    $region75: #{tpu_custom_call.1} parent=1 // pred_check_branch
      %69 = sbr.rel (0) target = $region77
    $region76: #{tpu_custom_call.1} parent=1 // pred_region
      _
    $region77: #{tpu_custom_call.1} parent=1 // pred_fallthru
      _
    // Predicated region
    $region78: #{tpu_custom_call.1} parent=1 // pred_check
      _
    $region79: #{tpu_custom_call.1} parent=1 // pred_check_branch
      %71 = sbr.rel (0) target = $region81
    $region80: #{tpu_custom_call.1} parent=1 // pred_region
      _
    $region81: #{tpu_custom_call.1} parent=1 // pred_fallthru
      _
    // Predicated region
    $region82: #{tpu_custom_call.1} parent=1 // pred_check
      _
    $region83: #{tpu_custom_call.1} parent=1 // pred_check_branch
      %73 = sbr.rel (0) target = $region85
    $region84: #{tpu_custom_call.1} parent=1 // pred_region
      _
    $region85: #{tpu_custom_call.1} parent=1 // pred_fallthru
      _
    // Predicated region
    $region86: #{tpu_custom_call.1} parent=1 // pred_check
      _
    $region87: #{tpu_custom_call.1} parent=1 // pred_check_branch
      %75 = sbr.rel (0) target = $region89
    $region88: #{tpu_custom_call.1} parent=1 // pred_region
      _
    $region89: #{tpu_custom_call.1} parent=1 // pred_fallthru
      _
    // Predicated region
    $region90: #{tpu_custom_call.1} parent=1 // pred_check
      _
    $region91: #{tpu_custom_call.1} parent=1 // pred_check_branch
      %77 = sbr.rel (0) target = $region93
    $region92: #{tpu_custom_call.1} parent=1 // pred_region
      _
    $region93: #{tpu_custom_call.1} parent=1 // pred_fallthru
      _
    %v78 = vld [vmem:[%s0] sm:$0xff]
    %v79 = vld [vmem:[%s0 + $0x8] sm:$0xff]
    %v80 = vld [vmem:[%s0 + $0x10] sm:$0x3]
    %v81 = vld [vmem:[%s0 + $0x18] sm:$0x3]
    %v82 = vld [vmem:[%s3] sm:$0xff]
    %v83 = vld [vmem:[%s3 + $0x8] sm:$0xff]
    %v84 = vld [vmem:[%s3 + $0x10] sm:$0xff]
    %v85 = vld [vmem:[%s3 + $0x18] sm:$0xff]
    %v86 = vld [vmem:[%s3 + $0x20] sm:$0xff]
    %v87 = vld [vmem:[%s3 + $0x28] sm:$0xff]
    %v88 = vld [vmem:[%s3 + $0x30] sm:$0xff]
    %v89 = vld [vmem:[%s3 + $0x38] sm:$0xff]
    %v90 = vld [vmem:[%s3 + $0x40] sm:$0xff]
    %v91 = vld [vmem:[%s3 + $0x48] sm:$0xff]
    %v92 = vld [vmem:[%s3 + $0x50] sm:$0xff]
    %v93 = vld [vmem:[%s3 + $0x58] sm:$0xff]
    %v94 = vld [vmem:[%s3 + $0x60] sm:$0xff]
    %v95 = vld [vmem:[%s3 + $0x68] sm:$0xff]
    %v96 = vld [vmem:[%s3 + $0x70] sm:$0xff]
    %v97 = vld [vmem:[%s3 + $0x78] sm:$0xff]
    %v98 = vld [vmem:[%s3 + $0x80] sm:$0xff]
    %v99 = vld [vmem:[%s3 + $0x88] sm:$0xff]
    %v100 = vld [vmem:[%s3 + $0x90] sm:$0xff]
    %v101 = vld [vmem:[%s3 + $0x98] sm:$0xff]
    %v102 = vld [vmem:[%s3 + $0xa0] sm:$0xff]
    %v103 = vld [vmem:[%s3 + $0xa8] sm:$0xff]
    %v104 = vld [vmem:[%s3 + $0xb0] sm:$0xff]
    %v105 = vld [vmem:[%s3 + $0xb8] sm:$0xff]
    %vm106 = vcmask 523264
    %v108 = vsel %vm106, %v79, 0
    %v111 = vsel %vm106, %v81, 0
    %113 = vmatpush.msra.mxu0 %v97
    %114 = vmatpush.msra.mxu0 %v96
    %115 = vmatpush.msra.mxu0 %v95
    %116 = vmatpush.msra.mxu0 %v94
    %117 = vmatpush.msra.mxu0 %v93
    %118 = vmatpush.msra.mxu0 %v92
    %119 = vmatpush.msra.mxu0 %v91
    %120 = vmatpush.msra.mxu0 %v90
    %121 = vmatpush.msra.mxu0 %v89
    %122 = vmatpush.msra.mxu0 %v88
    %123 = vmatpush.msra.mxu0 %v87
    %124 = vmatpush.msra.mxu0 %v86
    %125 = vmatpush.msra.mxu0 %v85
    %126 = vmatpush.msra.mxu0 %v84
    %127 = vmatpush.msra.mxu0 %v83
    %128 = vmatpush.msra.mxu0 %v82
    %129 = vmatmul.f32.gmra.mxu0 %v78
    %v130 = vpop.f32.mrf.mxu0
    %v131 = vadd.f32 0.0, %v130
    %132 = vmatmul.f32.gmra.mxu0 %v80
    %v133 = vpop.f32.mrf.mxu0
    %v134 = vadd.f32 0.0, %v133
    %135 = vdwg.mxu0
    %136 = vmatpush.msra.mxu0 0.0
    %137 = vmatpush.msra.mxu0 0.0
    %138 = vmatpush.msra.mxu0 0.0
    %139 = vmatpush.msra.mxu0 0.0
    %140 = vmatpush.msra.mxu0 0.0
    %141 = vmatpush.msra.mxu0 0.0
    %142 = vmatpush.msra.mxu0 0.0
    %143 = vmatpush.msra.mxu0 0.0
    %144 = vmatpush.msra.mxu0 %v105
    %145 = vmatpush.msra.mxu0 %v104
    %146 = vmatpush.msra.mxu0 %v103
    %147 = vmatpush.msra.mxu0 %v102
    %148 = vmatpush.msra.mxu0 %v101
    %149 = vmatpush.msra.mxu0 %v100
    %150 = vmatpush.msra.mxu0 %v99
    %151 = vmatpush.msra.mxu0 %v98
    %152 = vmatmul.f32.gmra.mxu0 %v108
    %v153 = vpop.f32.mrf.mxu0
    %v154 = vadd.f32 %v131, %v153
    %155 = vmatmul.f32.gmra.mxu0 %v111
    %v156 = vpop.f32.mrf.mxu0
    %v157 = vadd.f32 %v134, %v156
    %158 = vdwg.mxu0
    %v159 = vld [vmem:[%s1] sm:$0xff]
    %v160 = vld [vmem:[%s1 + $0x8] sm:$0x3]
    %162 = vset.pattern.permute.xlu0 0
    %163 = vperm.xlu0 %162, %v159
    %v164 = vpop.permute.xlu0 %163
    %167 = vset.pattern.permute.xlu0 0
    %168 = vperm.xlu0 %167, %v160
    %v169 = vpop.permute.xlu0 %168
    %v171 = vmul.f32 %v154, %v164
    %v172 = vmul.f32 %v157, %v169
    %v173 = vld [vmem:[%s2] sm:$0xff]
    %v174 = vld [vmem:[%s2 + $0x8] sm:$0x3]
    %v175 = vadd.f32 %v171, %v173
    %v176 = vadd.f32 %v172, %v174
    %v177 = vld [vmem:[%s9] sm:$0xf]
    %vm178 = vcmask 261120
    %v179 = vsel %vm178, %v175, 0.0
    %180 = vadd.xlane.f32.xlu0 %v179
    %v181 = vpop.xlane.xlu0 %180
    %vm182 = vcmask 254976
    %v183 = vsel %vm182, %v176, 0.0
    %184 = vadd.xlane.f32.xlu0 %v183
    %v185 = vpop.xlane.xlu0 %184
    %v186 = vrcp.pop 32.0
    %v187 = vmul.f32 32.0, %v186
    %v188 = vsub.f32 1.0, %v187
    %v189 = vmul.f32 %v186, %v188
    %v190 = vadd.f32 %v186, %v189
    %vm191 = vweird.f32 %v186
    %v192 = vsel %vm191, %v186, %v190
    %v193 = vmul.f32 %v181, %v192
    %v194 = vmul.f32 %v185, %v192
    %v195 = vsub.f32 %v175, %v193
    %v196 = vsub.f32 %v176, %v194
    %v197 = vmul.f32 %v195, %v195
    %v198 = vmul.f32 %v196, %v196
    %v199 = vsel %vm178, %v197, 0.0
    %200 = vadd.xlane.f32.xlu0 %v199
    %v201 = vpop.xlane.xlu0 %200
    %v202 = vsel %vm182, %v198, 0.0
    %203 = vadd.xlane.f32.xlu0 %v202
    %v204 = vpop.xlane.xlu0 %203
    %v205 = vmul.f32 %v201, %v192
    %v206 = vmul.f32 %v204, %v192
    %v207 = vadd.f32 %v205, 1e-05
    %v208 = vadd.f32 %v206, 1e-05
    %v209 = vrsqrt.pop %v207
    %v210 = vmul.f32 %v209, %v207
    %v211 = vmul.f32 %v210, %v209
    %v212 = vmul.f32 0.5, %v211
    %v213 = vsub.f32 1.5, %v212
    %v214 = vmul.f32 %v209, %v213
    %vm215 = vweird.f32 %v207
    %vm216 = vweird.f32 %v209
    %vm217 = vmor %vm215, %vm216
    %v218 = vsel %vm217, %v209, %v214
    %v219 = vrsqrt.pop %v208
    %v220 = vmul.f32 %v219, %v208
    %v221 = vmul.f32 %v220, %v219
    %v222 = vmul.f32 0.5, %v221
    %v223 = vsub.f32 1.5, %v222
    %v224 = vmul.f32 %v219, %v223
    %vm225 = vweird.f32 %v208
    %vm226 = vweird.f32 %v219
    %vm227 = vmor %vm225, %vm226
    %v228 = vsel %vm227, %v219, %v224
    %v229 = vmul.f32 %v195, %v218
    %v230 = vmul.f32 %v196, %v228
    %v231 = vperm.slane %v177, 0
    %v232 = vmul.f32 %v229, %v231
    %v233 = vmul.f32 %v230, %v231
    %v234 = vperm.slane %v177, 1
    %v235 = vadd.f32 %v232, %v234
    %v236 = vadd.f32 %v233, %v234
    %v237 = vld [vmem:[%s4] sm:$0xff]
    %v238 = vld [vmem:[%s4 + $0x8] sm:$0xff]
    %v239 = vld [vmem:[%s4 + $0x10] sm:$0xff]
    %v240 = vld [vmem:[%s4 + $0x18] sm:$0xff]
    %v241 = vld [vmem:[%s4 + $0x20] sm:$0xff]
    %v242 = vld [vmem:[%s4 + $0x28] sm:$0xff]
    %v243 = vld [vmem:[%s4 + $0x30] sm:$0xff]
    %v244 = vld [vmem:[%s4 + $0x38] sm:$0xff]
    %v245 = vld [vmem:[%s5] sm:$0xff]
    %v246 = vld [vmem:[%s5 + $0x8] sm:$0xff]
    %v247 = vld [vmem:[%s5 + $0x10] sm:$0xff]
    %v248 = vld [vmem:[%s5 + $0x18] sm:$0xff]
    %v249 = vld [vmem:[%s5 + $0x20] sm:$0xff]
    %v250 = vld [vmem:[%s5 + $0x28] sm:$0xff]
    %v251 = vld [vmem:[%s5 + $0x30] sm:$0xff]
    %v252 = vld [vmem:[%s5 + $0x38] sm:$0xff]
    %v253 = vld [vmem:[%s6] sm:$0xff]
    %v254 = vld [vmem:[%s6 + $0x8] sm:$0xff]
    %v255 = vld [vmem:[%s6 + $0x10] sm:$0xff]
    %v256 = vld [vmem:[%s6 + $0x18] sm:$0xff]
    %v257 = vld [vmem:[%s6 + $0x20] sm:$0xff]
    %v258 = vld [vmem:[%s6 + $0x28] sm:$0xff]
    %v259 = vld [vmem:[%s6 + $0x30] sm:$0xff]
    %v260 = vld [vmem:[%s6 + $0x38] sm:$0xff]
    %v261 = vld [vmem:[%s7] sm:$0xff]
    %v262 = vld [vmem:[%s7 + $0x8] sm:$0xff]
    %v263 = vld [vmem:[%s7 + $0x10] sm:$0xff]
    %v264 = vld [vmem:[%s7 + $0x18] sm:$0xff]
    %v265 = vld [vmem:[%s7 + $0x20] sm:$0xff]
    %v266 = vld [vmem:[%s7 + $0x28] sm:$0xff]
    %v267 = vld [vmem:[%s7 + $0x30] sm:$0xff]
    %v268 = vld [vmem:[%s7 + $0x38] sm:$0xff]
    %v269 = vld [vmem:[%s7 + $0x40] sm:$0xff]
    %v270 = vld [vmem:[%s7 + $0x48] sm:$0xff]
    %v271 = vld [vmem:[%s7 + $0x50] sm:$0xff]
    %v272 = vld [vmem:[%s7 + $0x58] sm:$0xff]
    %v273 = vld [vmem:[%s7 + $0x60] sm:$0xff]
    %v274 = vld [vmem:[%s7 + $0x68] sm:$0xff]
    %v275 = vld [vmem:[%s7 + $0x70] sm:$0xff]
    %v276 = vld [vmem:[%s7 + $0x78] sm:$0xff]
    %v277 = vld [vmem:[%s7 + $0x80] sm:$0xff]
    %v278 = vld [vmem:[%s7 + $0x88] sm:$0xff]
    %v279 = vld [vmem:[%s7 + $0x90] sm:$0xff]
    %v280 = vld [vmem:[%s7 + $0x98] sm:$0xff]
    %v281 = vld [vmem:[%s7 + $0xa0] sm:$0xff]
    %v282 = vld [vmem:[%s7 + $0xa8] sm:$0xff]
    %v283 = vld [vmem:[%s7 + $0xb0] sm:$0xff]
    %v284 = vld [vmem:[%s7 + $0xb8] sm:$0xff]
    %v285 = vld [vmem:[%s7 + $0xc0] sm:$0xff]
    %v286 = vld [vmem:[%s7 + $0xc8] sm:$0xff]
    %v287 = vld [vmem:[%s7 + $0xd0] sm:$0xff]
    %v288 = vld [vmem:[%s7 + $0xd8] sm:$0xff]
    %v289 = vld [vmem:[%s7 + $0xe0] sm:$0xff]
    %v290 = vld [vmem:[%s7 + $0xe8] sm:$0xff]
    %v291 = vld [vmem:[%s7 + $0xf0] sm:$0xff]
    %v292 = vld [vmem:[%s7 + $0xf8] sm:$0xff]
    %v293 = vld [vmem:[%s8] sm:$0xff]
    %v294 = vld [vmem:[%s8 + $0x8] sm:$0xff]
    %v295 = vld [vmem:[%s10] sm:$0xff]
    %v296 = vld [vmem:[%s10 + $0x8] sm:$0x3]
    %v297 = vsel %vm178, %v235, 0.0
    %298 = vadd.xlane.f32.xlu0 %v297
    %v299 = vpop.xlane.xlu0 %298
    %v300 = vsel %vm182, %v236, 0.0
    %301 = vadd.xlane.f32.xlu0 %v300
    %v302 = vpop.xlane.xlu0 %301
    %v303 = vmul.f32 %v299, %v192
    %v304 = vmul.f32 %v302, %v192
    %v305 = vsub.f32 %v235, %v303
    %v306 = vsub.f32 %v236, %v304
    %v307 = vmul.f32 %v305, %v305
    %v308 = vmul.f32 %v306, %v306
    %v309 = vsel %vm178, %v307, 0.0
    %310 = vadd.xlane.f32.xlu0 %v309
    %v311 = vpop.xlane.xlu0 %310
    %v312 = vsel %vm182, %v308, 0.0
    %313 = vadd.xlane.f32.xlu0 %v312
    %v314 = vpop.xlane.xlu0 %313
    %v315 = vmul.f32 %v311, %v192
    %v316 = vmul.f32 %v314, %v192
    %v317 = vadd.f32 %v315, 1e-05
    %v318 = vadd.f32 %v316, 1e-05
    %v319 = vrsqrt.pop %v317
    %v320 = vmul.f32 %v319, %v317
    %v321 = vmul.f32 %v320, %v319
    %v322 = vmul.f32 0.5, %v321
    %v323 = vsub.f32 1.5, %v322
    %v324 = vmul.f32 %v319, %v323
    %vm325 = vweird.f32 %v317
    %vm326 = vweird.f32 %v319
    %vm327 = vmor %vm325, %vm326
    %v328 = vsel %vm327, %v319, %v324
    %v329 = vrsqrt.pop %v318
    %v330 = vmul.f32 %v329, %v318
    %v331 = vmul.f32 %v330, %v329
    %v332 = vmul.f32 0.5, %v331
    %v333 = vsub.f32 1.5, %v332
    %v334 = vmul.f32 %v329, %v333
    %vm335 = vweird.f32 %v318
    %vm336 = vweird.f32 %v329
    %vm337 = vmor %vm335, %vm336
    %v338 = vsel %vm337, %v329, %v334
    %v339 = vmul.f32 %v305, %v328
    %v340 = vmul.f32 %v306, %v338
    %v341 = vperm.slane %v293, 2
    %v342 = vmul.f32 %v339, %v341
    %v343 = vmul.f32 %v340, %v341
    %v344 = vperm.slane %v293, 3
    %v345 = vadd.f32 %v342, %v344
    %v346 = vadd.f32 %v343, %v344
    %v347 = vperm.slane %v293, 0
    %v349 = vsel %vm178, %v345, 0
    %v352 = vsel %vm178, %v346, 0
    %354 = vmatpush.msra.mxu0 0.0
    %355 = vmatpush.msra.mxu0 0.0
    %356 = vmatpush.msra.mxu0 0.0
    %357 = vmatpush.msra.mxu0 0.0
    %358 = vmatpush.msra.mxu0 0.0
    %359 = vmatpush.msra.mxu0 0.0
    %360 = vmatpush.msra.mxu0 0.0
    %361 = vmatpush.msra.mxu0 0.0
    %362 = vmatpush.msra.mxu0 0.0
    %363 = vmatpush.msra.mxu0 0.0
    %364 = vmatpush.msra.mxu0 0.0
    %365 = vmatpush.msra.mxu0 0.0
    %366 = vmatpush.msra.mxu0 %v240
    %367 = vmatpush.msra.mxu0 %v239
    %368 = vmatpush.msra.mxu0 %v238
    %369 = vmatpush.msra.mxu0 %v237
    %370 = vmatmul.f32.gmra.mxu0 %v349
    %v371 = vpop.f32.mrf.mxu0
    %v372 = vadd.f32 %v347, %v371
    %373 = vmatmul.f32.gmra.mxu0 %v352
    %v374 = vpop.f32.mrf.mxu0
    %v375 = vadd.f32 %v347, %v374
    %376 = vdwg.mxu0
    %379 = vrot.lane.b32.xlu0 %v372, 96
    %v380 = vpop.permute.xlu0 %379
    %381 = vrot.lane.b32.xlu0 %v375, 96
    %v382 = vpop.permute.xlu0 %381
    %vm383 = vcmask 64512
    %v384 = vsel %vm383, %v372, 0
    %v386 = vsel %vm383, %v375, 0
    %v388 = vsel %vm383, %v380, 0
    %v390 = vsel %vm383, %v382, 0
    %392 = vmatpush.xpose.msra.mxu0 0.0
    %393 = vmatpush.xpose.msra.mxu0 0.0
    %394 = vmatpush.xpose.msra.mxu0 0.0
    %395 = vmatpush.xpose.msra.mxu0 0.0
    %396 = vmatpush.xpose.msra.mxu0 0.0
    %397 = vmatpush.xpose.msra.mxu0 0.0
    %398 = vmatpush.xpose.msra.mxu0 0.0
    %399 = vmatpush.xpose.msra.mxu0 0.0
    %400 = vmatpush.xpose.msra.mxu0 0.0
    %401 = vmatpush.xpose.msra.mxu0 0.0
    %402 = vmatpush.xpose.msra.mxu0 0.0
    %403 = vmatpush.xpose.msra.mxu0 0.0
    %404 = vmatpush.xpose.msra.mxu0 0.0
    %405 = vmatpush.xpose.msra.mxu0 0.0
    %406 = vmatpush.xpose.msra.mxu0 %v390
    %407 = vmatpush.xpose.msra.mxu0 %v388
    %408 = vmatmul.f32.gmra.mxu0 %v384
    %v409 = vpop.f32.mrf.mxu0
    %v410 = vadd.f32 0.0, %v409
    %411 = vmatmul.f32.gmra.mxu0 %v386
    %v412 = vpop.f32.mrf.mxu0
    %v413 = vadd.f32 0.0, %v412
    %414 = vdwg.mxu0
    %v415 = vmul.f32 %v410, 0.35355338
    %v416 = vmul.f32 %v413, 0.35355338
    %v417 = vadd.f32 %v415, %v295
    %v418 = vadd.f32 %v416, %v296
    %vm419 = vcmask 80896
    %v420 = vsel %vm419, %v417, -inf
    %421 = vmax.xlane.f32.xlu0 %v420
    %v422 = vpop.xlane.xlu0 %421
    %vm423 = vcmask 74752
    %v424 = vsel %vm423, %v418, -inf
    %425 = vmax.xlane.f32.xlu0 %v424
    %v426 = vpop.xlane.xlu0 %425
    %v427 = vsub.f32 %v417, %v422
    %v428 = vsub.f32 %v418, %v426
    %v429 = vmul.f32 %v427, 1.442695
    %v430 = vpow.pop %v429
    %v431 = vmul.f32 %v428, 1.442695
    %v432 = vpow.pop %v431
    %v433 = vsel %vm419, %v430, 0.0
    %434 = vadd.xlane.f32.xlu0 %v433
    %v435 = vpop.xlane.xlu0 %434
    %v436 = vsel %vm423, %v432, 0.0
    %437 = vadd.xlane.f32.xlu0 %v436
    %v438 = vpop.xlane.xlu0 %437
    %v439 = vrcp.pop %v435
    %v440 = vrcp.pop %v438
    %v441 = vmul.f32 %v430, %v439
    %v442 = vmul.f32 %v432, %v440
    %443 = vrot.lane.b32.xlu0 %v372, 64
    %v444 = vpop.permute.xlu0 %443
    %445 = vrot.lane.b32.xlu0 %v375, 64
    %v446 = vpop.permute.xlu0 %445
    %v449 = vsel %vm419, %v441, 0
    %v452 = vsel %vm419, %v442, 0
    %vm454 = vcmask 1041408
    %v455 = vsel %vm454, %v446, 0
    %457 = vmatpush.msra.mxu0 0.0
    %458 = vmatpush.msra.mxu0 0.0
    %459 = vmatpush.msra.mxu0 0.0
    %460 = vmatpush.msra.mxu0 0.0
    %461 = vmatpush.msra.mxu0 0.0
    %462 = vmatpush.msra.mxu0 0.0
    %463 = vmatpush.msra.mxu0 0.0
    %464 = vmatpush.msra.mxu0 0.0
    %465 = vmatpush.msra.mxu0 0.0
    %466 = vmatpush.msra.mxu0 0.0
    %467 = vmatpush.msra.mxu0 0.0
    %468 = vmatpush.msra.mxu0 0.0
    %469 = vmatpush.msra.mxu0 0.0
    %470 = vmatpush.msra.mxu0 0.0
    %471 = vmatpush.msra.mxu0 %v455
    %472 = vmatpush.msra.mxu0 %v444
    %473 = vmatmul.f32.gmra.mxu0 %v449
    %v474 = vpop.f32.mrf.mxu0
    %v475 = vadd.f32 0.0, %v474
    %476 = vmatmul.f32.gmra.mxu0 %v452
    %v477 = vpop.f32.mrf.mxu0
    %v478 = vadd.f32 0.0, %v477
    %479 = vdwg.mxu0
    %480 = vrot.lane.b32.xlu0 %v372, 120
    %v481 = vpop.permute.xlu0 %480
    %482 = vrot.lane.b32.xlu0 %v375, 120
    %v483 = vpop.permute.xlu0 %482
    %484 = vrot.lane.b32.xlu0 %v372, 88
    %v485 = vpop.permute.xlu0 %484
    %486 = vrot.lane.b32.xlu0 %v375, 88
    %v487 = vpop.permute.xlu0 %486
    %v488 = vsel %vm383, %v481, 0
    %v490 = vsel %vm383, %v483, 0
    %v492 = vsel %vm383, %v485, 0
    %v494 = vsel %vm383, %v487, 0
    %496 = vmatpush.xpose.msra.mxu0 0.0
    %497 = vmatpush.xpose.msra.mxu0 0.0
    %498 = vmatpush.xpose.msra.mxu0 0.0
    %499 = vmatpush.xpose.msra.mxu0 0.0
    %500 = vmatpush.xpose.msra.mxu0 0.0
    %501 = vmatpush.xpose.msra.mxu0 0.0
    %502 = vmatpush.xpose.msra.mxu0 0.0
    %503 = vmatpush.xpose.msra.mxu0 0.0
    %504 = vmatpush.xpose.msra.mxu0 0.0
    %505 = vmatpush.xpose.msra.mxu0 0.0
    %506 = vmatpush.xpose.msra.mxu0 0.0
    %507 = vmatpush.xpose.msra.mxu0 0.0
    %508 = vmatpush.xpose.msra.mxu0 0.0
    %509 = vmatpush.xpose.msra.mxu0 0.0
    %510 = vmatpush.xpose.msra.mxu0 %v494
    %511 = vmatpush.xpose.msra.mxu0 %v492
    %512 = vmatmul.f32.gmra.mxu0 %v488
    %v513 = vpop.f32.mrf.mxu0
    %v514 = vadd.f32 0.0, %v513
    %515 = vmatmul.f32.gmra.mxu0 %v490
    %v516 = vpop.f32.mrf.mxu0
    %v517 = vadd.f32 0.0, %v516
    %518 = vdwg.mxu0
    %v519 = vmul.f32 %v514, 0.35355338
    %v520 = vmul.f32 %v517, 0.35355338
    %v521 = vadd.f32 %v519, %v295
    %v522 = vadd.f32 %v520, %v296
    %v523 = vsel %vm419, %v521, -inf
    %524 = vmax.xlane.f32.xlu0 %v523
    %v525 = vpop.xlane.xlu0 %524
    %v526 = vsel %vm423, %v522, -inf
    %527 = vmax.xlane.f32.xlu0 %v526
    %v528 = vpop.xlane.xlu0 %527
    %v529 = vsub.f32 %v521, %v525
    %v530 = vsub.f32 %v522, %v528
    %v531 = vmul.f32 %v529, 1.442695
    %v532 = vpow.pop %v531
    %v533 = vmul.f32 %v530, 1.442695
    %v534 = vpow.pop %v533
    %v535 = vsel %vm419, %v532, 0.0
    %536 = vadd.xlane.f32.xlu0 %v535
    %v537 = vpop.xlane.xlu0 %536
    %v538 = vsel %vm423, %v534, 0.0
    %539 = vadd.xlane.f32.xlu0 %v538
    %v540 = vpop.xlane.xlu0 %539
    %v541 = vrcp.pop %v537
    %v542 = vrcp.pop %v540
    %v543 = vmul.f32 %v532, %v541
    %v544 = vmul.f32 %v534, %v542
    %545 = vrot.lane.b32.xlu0 %v372, 56
    %v546 = vpop.permute.xlu0 %545
    %547 = vrot.lane.b32.xlu0 %v375, 56
    %v548 = vpop.permute.xlu0 %547
    %v551 = vsel %vm419, %v543, 0
    %v554 = vsel %vm419, %v544, 0
    %v556 = vsel %vm454, %v548, 0
    %558 = vmatpush.msra.mxu0 0.0
    %559 = vmatpush.msra.mxu0 0.0
    %560 = vmatpush.msra.mxu0 0.0
    %561 = vmatpush.msra.mxu0 0.0
    %562 = vmatpush.msra.mxu0 0.0
    %563 = vmatpush.msra.mxu0 0.0
    %564 = vmatpush.msra.mxu0 0.0
    %565 = vmatpush.msra.mxu0 0.0
    %566 = vmatpush.msra.mxu0 0.0
    %567 = vmatpush.msra.mxu0 0.0
    %568 = vmatpush.msra.mxu0 0.0
    %569 = vmatpush.msra.mxu0 0.0
    %570 = vmatpush.msra.mxu0 0.0
    %571 = vmatpush.msra.mxu0 0.0
    %572 = vmatpush.msra.mxu0 %v556
    %573 = vmatpush.msra.mxu0 %v546
    %574 = vmatmul.f32.gmra.mxu0 %v551
    %v575 = vpop.f32.mrf.mxu0
    %v576 = vadd.f32 0.0, %v575
    %577 = vmatmul.f32.gmra.mxu0 %v554
    %v578 = vpop.f32.mrf.mxu0
    %v579 = vadd.f32 0.0, %v578
    %580 = vdwg.mxu0
    %581 = vrot.lane.b32.xlu0 %v372, 112
    %v582 = vpop.permute.xlu0 %581
    %583 = vrot.lane.b32.xlu0 %v375, 112
    %v584 = vpop.permute.xlu0 %583
    %585 = vrot.lane.b32.xlu0 %v372, 80
    %v586 = vpop.permute.xlu0 %585
    %587 = vrot.lane.b32.xlu0 %v375, 80
    %v588 = vpop.permute.xlu0 %587
    %v589 = vsel %vm383, %v582, 0
    %v591 = vsel %vm383, %v584, 0
    %v593 = vsel %vm383, %v586, 0
    %v595 = vsel %vm383, %v588, 0
    %597 = vmatpush.xpose.msra.mxu0 0.0
    %598 = vmatpush.xpose.msra.mxu0 0.0
    %599 = vmatpush.xpose.msra.mxu0 0.0
    %600 = vmatpush.xpose.msra.mxu0 0.0
    %601 = vmatpush.xpose.msra.mxu0 0.0
    %602 = vmatpush.xpose.msra.mxu0 0.0
    %603 = vmatpush.xpose.msra.mxu0 0.0
    %604 = vmatpush.xpose.msra.mxu0 0.0
    %605 = vmatpush.xpose.msra.mxu0 0.0
    %606 = vmatpush.xpose.msra.mxu0 0.0
    %607 = vmatpush.xpose.msra.mxu0 0.0
    %608 = vmatpush.xpose.msra.mxu0 0.0
    %609 = vmatpush.xpose.msra.mxu0 0.0
    %610 = vmatpush.xpose.msra.mxu0 0.0
    %611 = vmatpush.xpose.msra.mxu0 %v595
    %612 = vmatpush.xpose.msra.mxu0 %v593
    %613 = vmatmul.f32.gmra.mxu0 %v589
    %v614 = vpop.f32.mrf.mxu0
    %v615 = vadd.f32 0.0, %v614
    %616 = vmatmul.f32.gmra.mxu0 %v591
    %v617 = vpop.f32.mrf.mxu0
    %v618 = vadd.f32 0.0, %v617
    %619 = vdwg.mxu0
    %v620 = vmul.f32 %v615, 0.35355338
    %v621 = vmul.f32 %v618, 0.35355338
    %v622 = vadd.f32 %v620, %v295
    %v623 = vadd.f32 %v621, %v296
    %v624 = vsel %vm419, %v622, -inf
    %625 = vmax.xlane.f32.xlu0 %v624
    %v626 = vpop.xlane.xlu0 %625
    %v627 = vsel %vm423, %v623, -inf
    %628 = vmax.xlane.f32.xlu0 %v627
    %v629 = vpop.xlane.xlu0 %628
    %v630 = vsub.f32 %v622, %v626
    %v631 = vsub.f32 %v623, %v629
    %v632 = vmul.f32 %v630, 1.442695
    %v633 = vpow.pop %v632
    %v634 = vmul.f32 %v631, 1.442695
    %v635 = vpow.pop %v634
    %v636 = vsel %vm419, %v633, 0.0
    %637 = vadd.xlane.f32.xlu0 %v636
    %v638 = vpop.xlane.xlu0 %637
    %v639 = vsel %vm423, %v635, 0.0
    %640 = vadd.xlane.f32.xlu0 %v639
    %v641 = vpop.xlane.xlu0 %640
    %v642 = vrcp.pop %v638
    %v643 = vrcp.pop %v641
    %v644 = vmul.f32 %v633, %v642
    %v645 = vmul.f32 %v635, %v643
    %646 = vrot.lane.b32.xlu0 %v372, 48
    %v647 = vpop.permute.xlu0 %646
    %648 = vrot.lane.b32.xlu0 %v375, 48
    %v649 = vpop.permute.xlu0 %648
    %v652 = vsel %vm419, %v644, 0
    %v655 = vsel %vm419, %v645, 0
    %v657 = vsel %vm454, %v649, 0
    %659 = vmatpush.msra.mxu0 0.0
    %660 = vmatpush.msra.mxu0 0.0
    %661 = vmatpush.msra.mxu0 0.0
    %662 = vmatpush.msra.mxu0 0.0
    %663 = vmatpush.msra.mxu0 0.0
    %664 = vmatpush.msra.mxu0 0.0
    %665 = vmatpush.msra.mxu0 0.0
    %666 = vmatpush.msra.mxu0 0.0
    %667 = vmatpush.msra.mxu0 0.0
    %668 = vmatpush.msra.mxu0 0.0
    %669 = vmatpush.msra.mxu0 0.0
    %670 = vmatpush.msra.mxu0 0.0
    %671 = vmatpush.msra.mxu0 0.0
    %672 = vmatpush.msra.mxu0 0.0
    %673 = vmatpush.msra.mxu0 %v657
    %674 = vmatpush.msra.mxu0 %v647
    %675 = vmatmul.f32.gmra.mxu0 %v652
    %v676 = vpop.f32.mrf.mxu0
    %v677 = vadd.f32 0.0, %v676
    %678 = vmatmul.f32.gmra.mxu0 %v655
    %v679 = vpop.f32.mrf.mxu0
    %v680 = vadd.f32 0.0, %v679
    %681 = vdwg.mxu0
    %682 = vrot.lane.b32.xlu0 %v372, 104
    %v683 = vpop.permute.xlu0 %682
    %684 = vrot.lane.b32.xlu0 %v375, 104
    %v685 = vpop.permute.xlu0 %684
    %686 = vrot.lane.b32.xlu0 %v372, 72
    %v687 = vpop.permute.xlu0 %686
    %688 = vrot.lane.b32.xlu0 %v375, 72
    %v689 = vpop.permute.xlu0 %688
    %v690 = vsel %vm383, %v683, 0
    %v692 = vsel %vm383, %v685, 0
    %v694 = vsel %vm383, %v687, 0
    %v696 = vsel %vm383, %v689, 0
    %698 = vmatpush.xpose.msra.mxu0 0.0
    %699 = vmatpush.xpose.msra.mxu0 0.0
    %700 = vmatpush.xpose.msra.mxu0 0.0
    %701 = vmatpush.xpose.msra.mxu0 0.0
    %702 = vmatpush.xpose.msra.mxu0 0.0
    %703 = vmatpush.xpose.msra.mxu0 0.0
    %704 = vmatpush.xpose.msra.mxu0 0.0
    %705 = vmatpush.xpose.msra.mxu0 0.0
    %706 = vmatpush.xpose.msra.mxu0 0.0
    %707 = vmatpush.xpose.msra.mxu0 0.0
    %708 = vmatpush.xpose.msra.mxu0 0.0
    %709 = vmatpush.xpose.msra.mxu0 0.0
    %710 = vmatpush.xpose.msra.mxu0 0.0
    %711 = vmatpush.xpose.msra.mxu0 0.0
    %712 = vmatpush.xpose.msra.mxu0 %v696
    %713 = vmatpush.xpose.msra.mxu0 %v694
    %714 = vmatmul.f32.gmra.mxu0 %v690
    %v715 = vpop.f32.mrf.mxu0
    %v716 = vadd.f32 0.0, %v715
    %717 = vmatmul.f32.gmra.mxu0 %v692
    %v718 = vpop.f32.mrf.mxu0
    %v719 = vadd.f32 0.0, %v718
    %720 = vdwg.mxu0
    %v721 = vmul.f32 %v716, 0.35355338
    %v722 = vmul.f32 %v719, 0.35355338
    %v723 = vadd.f32 %v721, %v295
    %v724 = vadd.f32 %v722, %v296
    %v725 = vsel %vm419, %v723, -inf
    %726 = vmax.xlane.f32.xlu0 %v725
    %v727 = vpop.xlane.xlu0 %726
    %v728 = vsel %vm423, %v724, -inf
    %729 = vmax.xlane.f32.xlu0 %v728
    %v730 = vpop.xlane.xlu0 %729
    %v731 = vsub.f32 %v723, %v727
    %v732 = vsub.f32 %v724, %v730
    %v733 = vmul.f32 %v731, 1.442695
    %v734 = vpow.pop %v733
    %v735 = vmul.f32 %v732, 1.442695
    %v736 = vpow.pop %v735
    %v737 = vsel %vm419, %v734, 0.0
    %738 = vadd.xlane.f32.xlu0 %v737
    %v739 = vpop.xlane.xlu0 %738
    %v740 = vsel %vm423, %v736, 0.0
    %741 = vadd.xlane.f32.xlu0 %v740
    %v742 = vpop.xlane.xlu0 %741
    %v743 = vrcp.pop %v739
    %v744 = vrcp.pop %v742
    %v745 = vmul.f32 %v734, %v743
    %v746 = vmul.f32 %v736, %v744
    %747 = vrot.lane.b32.xlu0 %v372, 40
    %v748 = vpop.permute.xlu0 %747
    %749 = vrot.lane.b32.xlu0 %v375, 40
    %v750 = vpop.permute.xlu0 %749
    %v753 = vsel %vm419, %v745, 0
    %v756 = vsel %vm419, %v746, 0
    %v758 = vsel %vm454, %v750, 0
    %760 = vmatpush.msra.mxu0 0.0
    %761 = vmatpush.msra.mxu0 0.0
    %762 = vmatpush.msra.mxu0 0.0
    %763 = vmatpush.msra.mxu0 0.0
    %764 = vmatpush.msra.mxu0 0.0
    %765 = vmatpush.msra.mxu0 0.0
    %766 = vmatpush.msra.mxu0 0.0
    %767 = vmatpush.msra.mxu0 0.0
    %768 = vmatpush.msra.mxu0 0.0
    %769 = vmatpush.msra.mxu0 0.0
    %770 = vmatpush.msra.mxu0 0.0
    %771 = vmatpush.msra.mxu0 0.0
    %772 = vmatpush.msra.mxu0 0.0
    %773 = vmatpush.msra.mxu0 0.0
    %774 = vmatpush.msra.mxu0 %v758
    %775 = vmatpush.msra.mxu0 %v748
    %776 = vmatmul.f32.gmra.mxu0 %v753
    %v777 = vpop.f32.mrf.mxu0
    %v778 = vadd.f32 0.0, %v777
    %779 = vmatmul.f32.gmra.mxu0 %v756
    %v780 = vpop.f32.mrf.mxu0
    %v781 = vadd.f32 0.0, %v780
    %782 = vdwg.mxu0
    %785 = vrot.lane.b32.xlu0 %v576, 8
    %v786 = vpop.permute.xlu0 %785
    %787 = vrot.lane.b32.xlu0 %v579, 8
    %v788 = vpop.permute.xlu0 %787
    %793 = vrot.lane.b32.xlu0 %v677, 16
    %v794 = vpop.permute.xlu0 %793
    %795 = vrot.lane.b32.xlu0 %v680, 16
    %v796 = vpop.permute.xlu0 %795
    %801 = vrot.lane.b32.xlu0 %v778, 24
    %v802 = vpop.permute.xlu0 %801
    %803 = vrot.lane.b32.xlu0 %v781, 24
    %v804 = vpop.permute.xlu0 %803
    %v807 = vsel %vm383, %v475, %v786
    %v808 = vsel %vm383, %v478, %v788
    %vm809 = vcmask 130048
    %v810 = vsel %vm809, %v807, %v794
    %v811 = vsel %vm809, %v808, %v796
    %vm812 = vcmask 195584
    %v813 = vsel %vm812, %v810, %v802
    %v814 = vsel %vm812, %v811, %v804
    %v816 = vsel %vm178, %v813, 0
    %v819 = vsel %vm178, %v814, 0
    %821 = vmatpush.msra.mxu0 0.0
    %822 = vmatpush.msra.mxu0 0.0
    %823 = vmatpush.msra.mxu0 0.0
    %824 = vmatpush.msra.mxu0 0.0
    %825 = vmatpush.msra.mxu0 0.0
    %826 = vmatpush.msra.mxu0 0.0
    %827 = vmatpush.msra.mxu0 0.0
    %828 = vmatpush.msra.mxu0 0.0
    %829 = vmatpush.msra.mxu0 0.0
    %830 = vmatpush.msra.mxu0 0.0
    %831 = vmatpush.msra.mxu0 0.0
    %832 = vmatpush.msra.mxu0 0.0
    %833 = vmatpush.msra.mxu0 %v248
    %834 = vmatpush.msra.mxu0 %v247
    %835 = vmatpush.msra.mxu0 %v246
    %836 = vmatpush.msra.mxu0 %v245
    %837 = vmatmul.f32.gmra.mxu0 %v816
    %v838 = vpop.f32.mrf.mxu0
    %v839 = vadd.f32 0.0, %v838
    %840 = vmatmul.f32.gmra.mxu0 %v819
    %v841 = vpop.f32.mrf.mxu0
    %v842 = vadd.f32 0.0, %v841
    %843 = vdwg.mxu0
    %v844 = vadd.f32 %v235, %v839
    %v845 = vadd.f32 %v236, %v842
    %v846 = vperm.slane %v293, 1
    %v847 = vadd.f32 %v844, %v846
    %v848 = vadd.f32 %v845, %v846
    %v849 = vsel %vm178, %v847, 0.0
    %850 = vadd.xlane.f32.xlu0 %v849
    %v851 = vpop.xlane.xlu0 %850
    %v852 = vsel %vm182, %v848, 0.0
    %853 = vadd.xlane.f32.xlu0 %v852
    %v854 = vpop.xlane.xlu0 %853
    %v855 = vmul.f32 %v851, %v192
    %v856 = vmul.f32 %v854, %v192
    %v857 = vsub.f32 %v847, %v855
    %v858 = vsub.f32 %v848, %v856
    %v859 = vmul.f32 %v857, %v857
    %v860 = vmul.f32 %v858, %v858
    %v861 = vsel %vm178, %v859, 0.0
    %862 = vadd.xlane.f32.xlu0 %v861
    %v863 = vpop.xlane.xlu0 %862
    %v864 = vsel %vm182, %v860, 0.0
    %865 = vadd.xlane.f32.xlu0 %v864
    %v866 = vpop.xlane.xlu0 %865
    %v867 = vmul.f32 %v863, %v192
    %v868 = vmul.f32 %v866, %v192
    %v869 = vadd.f32 %v867, 1e-05
    %v870 = vadd.f32 %v868, 1e-05
    %v871 = vrsqrt.pop %v869
    %v872 = vmul.f32 %v871, %v869
    %v873 = vmul.f32 %v872, %v871
    %v874 = vmul.f32 0.5, %v873
    %v875 = vsub.f32 1.5, %v874
    %v876 = vmul.f32 %v871, %v875
    %vm877 = vweird.f32 %v869
    %vm878 = vweird.f32 %v871
    %vm879 = vmor %vm877, %vm878
    %v880 = vsel %vm879, %v871, %v876
    %v881 = vrsqrt.pop %v870
    %v882 = vmul.f32 %v881, %v870
    %v883 = vmul.f32 %v882, %v881
    %v884 = vmul.f32 0.5, %v883
    %v885 = vsub.f32 1.5, %v884
    %v886 = vmul.f32 %v881, %v885
    %vm887 = vweird.f32 %v870
    %vm888 = vweird.f32 %v881
    %vm889 = vmor %vm887, %vm888
    %v890 = vsel %vm889, %v881, %v886
    %v891 = vmul.f32 %v857, %v880
    %v892 = vmul.f32 %v858, %v890
    %v893 = vperm.slane %v293, 4
    %v894 = vmul.f32 %v891, %v893
    %v895 = vmul.f32 %v892, %v893
    %v896 = vperm.slane %v293, 5
    %v897 = vadd.f32 %v894, %v896
    %v898 = vadd.f32 %v895, %v896
    %v899 = vperm.slane %v293, 6
    %v901 = vsel %vm178, %v897, 0
    %v904 = vsel %vm178, %v898, 0
    %906 = vmatpush.msra.mxu0 0.0
    %907 = vmatpush.msra.mxu0 0.0
    %908 = vmatpush.msra.mxu0 0.0
    %909 = vmatpush.msra.mxu0 0.0
    %910 = vmatpush.msra.mxu0 0.0
    %911 = vmatpush.msra.mxu0 0.0
    %912 = vmatpush.msra.mxu0 0.0
    %913 = vmatpush.msra.mxu0 0.0
    %914 = vmatpush.msra.mxu0 0.0
    %915 = vmatpush.msra.mxu0 0.0
    %916 = vmatpush.msra.mxu0 0.0
    %917 = vmatpush.msra.mxu0 0.0
    %918 = vmatpush.msra.mxu0 %v256
    %919 = vmatpush.msra.mxu0 %v255
    %920 = vmatpush.msra.mxu0 %v254
    %921 = vmatpush.msra.mxu0 %v253
    %922 = vmatmul.f32.gmra.mxu0 %v901
    %v923 = vpop.f32.mrf.mxu0
    %v924 = vadd.f32 %v899, %v923
    %925 = vmatmul.f32.gmra.mxu0 %v904
    %v926 = vpop.f32.mrf.mxu0
    %v927 = vadd.f32 %v899, %v926
    %928 = vdwg.mxu0
    %v929 = vmul.f32 %v924, 1.702
    %v930 = vmul.f32 %v927, 1.702
    %v931 = vxor.u32 %v929, 2147483648
    %v932 = vxor.u32 %v930, 2147483648
    %v933 = vmul.f32 %v931, 1.442695
    %v934 = vpow.pop %v933
    %v935 = vmul.f32 %v932, 1.442695
    %v936 = vpow.pop %v935
    %v937 = vadd.f32 %v934, 1.0
    %v938 = vadd.f32 %v936, 1.0
    %v939 = vrcp.pop %v937
    %v940 = vmul.f32 %v937, %v939
    %v941 = vsub.f32 1.0, %v940
    %v942 = vmul.f32 %v939, %v941
    %v943 = vadd.f32 %v939, %v942
    %vm944 = vweird.f32 %v937
    %vm945 = vweird.f32 %v939
    %vm946 = vmor %vm944, %vm945
    %v947 = vsel %vm946, %v939, %v943
    %v948 = vand.u32 2147483647, %v937
    %vm949 = vcmp.eq.f32.partialorder %v948, 8.507059e+37
    %v950 = vand.u32 %v937, 2147483648
    %v951 = vor.u32 1.1754944e-38, %v950
    %v952 = vsel %vm949, %v951, %v947
    %v953 = vmul.f32 1.0, %v952
    %v954 = vrcp.pop %v938
    %v955 = vmul.f32 %v938, %v954
    %v956 = vsub.f32 1.0, %v955
    %v957 = vmul.f32 %v954, %v956
    %v958 = vadd.f32 %v954, %v957
    %vm959 = vweird.f32 %v938
    %vm960 = vweird.f32 %v954
    %vm961 = vmor %vm959, %vm960
    %v962 = vsel %vm961, %v954, %v958
    %v963 = vand.u32 2147483647, %v938
    %vm964 = vcmp.eq.f32.partialorder %v963, 8.507059e+37
    %v965 = vand.u32 %v938, 2147483648
    %v966 = vor.u32 1.1754944e-38, %v965
    %v967 = vsel %vm964, %v966, %v962
    %v968 = vmul.f32 1.0, %v967
    %v969 = vmul.f32 %v924, %v953
    %v970 = vmul.f32 %v927, %v968
    %971 = vmatpush.msra.mxu0 %v276
    %972 = vmatpush.msra.mxu0 %v275
    %973 = vmatpush.msra.mxu0 %v274
    %974 = vmatpush.msra.mxu0 %v273
    %975 = vmatpush.msra.mxu0 %v272
    %976 = vmatpush.msra.mxu0 %v271
    %977 = vmatpush.msra.mxu0 %v270
    %978 = vmatpush.msra.mxu0 %v269
    %979 = vmatpush.msra.mxu0 %v268
    %980 = vmatpush.msra.mxu0 %v267
    %981 = vmatpush.msra.mxu0 %v266
    %982 = vmatpush.msra.mxu0 %v265
    %983 = vmatpush.msra.mxu0 %v264
    %984 = vmatpush.msra.mxu0 %v263
    %985 = vmatpush.msra.mxu0 %v262
    %986 = vmatpush.msra.mxu0 %v261
    %987 = vmatmul.f32.gmra.mxu0 %v969
    %v988 = vpop.f32.mrf.mxu0
    %v989 = vadd.f32 0.0, %v988
    %990 = vmatmul.f32.gmra.mxu0 %v970
    %v991 = vpop.f32.mrf.mxu0
    %v992 = vadd.f32 0.0, %v991
    %993 = vdwg.mxu0
    %v994 = vadd.f32 %v847, %v989
    %v995 = vadd.f32 %v848, %v992
    %v996 = vperm.slane %v293, 7
    %v997 = vadd.f32 %v994, %v996
    %v998 = vadd.f32 %v995, %v996
    %v999 = vsel %vm178, %v997, 0.0
    %1000 = vadd.xlane.f32.xlu0 %v999
    %v1001 = vpop.xlane.xlu0 %1000
    %v1002 = vsel %vm182, %v998, 0.0
    %1003 = vadd.xlane.f32.xlu0 %v1002
    %v1004 = vpop.xlane.xlu0 %1003
    %v1005 = vmul.f32 %v1001, %v192
    %v1006 = vmul.f32 %v1004, %v192
    %v1007 = vsub.f32 %v997, %v1005
    %v1008 = vsub.f32 %v998, %v1006
    %v1009 = vmul.f32 %v1007, %v1007
    %v1010 = vmul.f32 %v1008, %v1008
    %v1011 = vsel %vm178, %v1009, 0.0
    %1012 = vadd.xlane.f32.xlu0 %v1011
    %v1013 = vpop.xlane.xlu0 %1012
    %v1014 = vsel %vm182, %v1010, 0.0
    %1015 = vadd.xlane.f32.xlu0 %v1014
    %v1016 = vpop.xlane.xlu0 %1015
    %v1017 = vmul.f32 %v1013, %v192
    %v1018 = vmul.f32 %v1016, %v192
    %v1019 = vadd.f32 %v1017, 1e-05
    %v1020 = vadd.f32 %v1018, 1e-05
    %v1021 = vrsqrt.pop %v1019
    %v1022 = vmul.f32 %v1021, %v1019
    %v1023 = vmul.f32 %v1022, %v1021
    %v1024 = vmul.f32 0.5, %v1023
    %v1025 = vsub.f32 1.5, %v1024
    %v1026 = vmul.f32 %v1021, %v1025
    %vm1027 = vweird.f32 %v1019
    %vm1028 = vweird.f32 %v1021
    %vm1029 = vmor %vm1027, %vm1028
    %v1030 = vsel %vm1029, %v1021, %v1026
    %v1031 = vrsqrt.pop %v1020
    %v1032 = vmul.f32 %v1031, %v1020
    %v1033 = vmul.f32 %v1032, %v1031
    %v1034 = vmul.f32 0.5, %v1033
    %v1035 = vsub.f32 1.5, %v1034
    %v1036 = vmul.f32 %v1031, %v1035
    %vm1037 = vweird.f32 %v1020
    %vm1038 = vweird.f32 %v1031
    %vm1039 = vmor %vm1037, %vm1038
    %v1040 = vsel %vm1039, %v1031, %v1036
    %v1041 = vmul.f32 %v1007, %v1030
    %v1042 = vmul.f32 %v1008, %v1040
    %v1043 = vperm.slane %v294, 2
    %v1044 = vmul.f32 %v1041, %v1043
    %v1045 = vmul.f32 %v1042, %v1043
    %v1046 = vperm.slane %v294, 3
    %v1047 = vadd.f32 %v1044, %v1046
    %v1048 = vadd.f32 %v1045, %v1046
    %v1049 = vperm.slane %v294, 0
    %v1051 = vsel %vm178, %v1047, 0
    %v1054 = vsel %vm178, %v1048, 0
    %1056 = vmatpush.msra.mxu0 0.0
    %1057 = vmatpush.msra.mxu0 0.0
    %1058 = vmatpush.msra.mxu0 0.0
    %1059 = vmatpush.msra.mxu0 0.0
    %1060 = vmatpush.msra.mxu0 0.0
    %1061 = vmatpush.msra.mxu0 0.0
    %1062 = vmatpush.msra.mxu0 0.0
    %1063 = vmatpush.msra.mxu0 0.0
    %1064 = vmatpush.msra.mxu0 0.0
    %1065 = vmatpush.msra.mxu0 0.0
    %1066 = vmatpush.msra.mxu0 0.0
    %1067 = vmatpush.msra.mxu0 0.0
    %1068 = vmatpush.msra.mxu0 %v244
    %1069 = vmatpush.msra.mxu0 %v243
    %1070 = vmatpush.msra.mxu0 %v242
    %1071 = vmatpush.msra.mxu0 %v241
    %1072 = vmatmul.f32.gmra.mxu0 %v1051
    %v1073 = vpop.f32.mrf.mxu0
    %v1074 = vadd.f32 %v1049, %v1073
    %1075 = vmatmul.f32.gmra.mxu0 %v1054
    %v1076 = vpop.f32.mrf.mxu0
    %v1077 = vadd.f32 %v1049, %v1076
    %1078 = vdwg.mxu0
    %1081 = vrot.lane.b32.xlu0 %v1074, 96
    %v1082 = vpop.permute.xlu0 %1081
    %1083 = vrot.lane.b32.xlu0 %v1077, 96
    %v1084 = vpop.permute.xlu0 %1083
    %v1085 = vsel %vm383, %v1074, 0
    %v1087 = vsel %vm383, %v1077, 0
    %v1089 = vsel %vm383, %v1082, 0
    %v1091 = vsel %vm383, %v1084, 0
    %1093 = vmatpush.xpose.msra.mxu0 0.0
    %1094 = vmatpush.xpose.msra.mxu0 0.0
    %1095 = vmatpush.xpose.msra.mxu0 0.0
    %1096 = vmatpush.xpose.msra.mxu0 0.0
    %1097 = vmatpush.xpose.msra.mxu0 0.0
    %1098 = vmatpush.xpose.msra.mxu0 0.0
    %1099 = vmatpush.xpose.msra.mxu0 0.0
    %1100 = vmatpush.xpose.msra.mxu0 0.0
    %1101 = vmatpush.xpose.msra.mxu0 0.0
    %1102 = vmatpush.xpose.msra.mxu0 0.0
    %1103 = vmatpush.xpose.msra.mxu0 0.0
    %1104 = vmatpush.xpose.msra.mxu0 0.0
    %1105 = vmatpush.xpose.msra.mxu0 0.0
    %1106 = vmatpush.xpose.msra.mxu0 0.0
    %1107 = vmatpush.xpose.msra.mxu0 %v1091
    %1108 = vmatpush.xpose.msra.mxu0 %v1089
    %1109 = vmatmul.f32.gmra.mxu0 %v1085
    %v1110 = vpop.f32.mrf.mxu0
    %v1111 = vadd.f32 0.0, %v1110
    %1112 = vmatmul.f32.gmra.mxu0 %v1087
    %v1113 = vpop.f32.mrf.mxu0
    %v1114 = vadd.f32 0.0, %v1113
    %1115 = vdwg.mxu0
    %v1116 = vmul.f32 %v1111, 0.35355338
    %v1117 = vmul.f32 %v1114, 0.35355338
    %v1118 = vadd.f32 %v1116, %v295
    %v1119 = vadd.f32 %v1117, %v296
    %v1120 = vsel %vm419, %v1118, -inf
    %1121 = vmax.xlane.f32.xlu0 %v1120
    %v1122 = vpop.xlane.xlu0 %1121
    %v1123 = vsel %vm423, %v1119, -inf
    %1124 = vmax.xlane.f32.xlu0 %v1123
    %v1125 = vpop.xlane.xlu0 %1124
    %v1126 = vsub.f32 %v1118, %v1122
    %v1127 = vsub.f32 %v1119, %v1125
    %v1128 = vmul.f32 %v1126, 1.442695
    %v1129 = vpow.pop %v1128
    %v1130 = vmul.f32 %v1127, 1.442695
    %v1131 = vpow.pop %v1130
    %v1132 = vsel %vm419, %v1129, 0.0
    %1133 = vadd.xlane.f32.xlu0 %v1132
    %v1134 = vpop.xlane.xlu0 %1133
    %v1135 = vsel %vm423, %v1131, 0.0
    %1136 = vadd.xlane.f32.xlu0 %v1135
    %v1137 = vpop.xlane.xlu0 %1136
    %v1138 = vrcp.pop %v1134
    %v1139 = vrcp.pop %v1137
    %v1140 = vmul.f32 %v1129, %v1138
    %v1141 = vmul.f32 %v1131, %v1139
    %1142 = vrot.lane.b32.xlu0 %v1074, 64
    %v1143 = vpop.permute.xlu0 %1142
    %1144 = vrot.lane.b32.xlu0 %v1077, 64
    %v1145 = vpop.permute.xlu0 %1144
    %v1148 = vsel %vm419, %v1140, 0
    %v1151 = vsel %vm419, %v1141, 0
    %v1153 = vsel %vm454, %v1145, 0
    %1155 = vmatpush.msra.mxu0 0.0
    %1156 = vmatpush.msra.mxu0 0.0
    %1157 = vmatpush.msra.mxu0 0.0
    %1158 = vmatpush.msra.mxu0 0.0
    %1159 = vmatpush.msra.mxu0 0.0
    %1160 = vmatpush.msra.mxu0 0.0
    %1161 = vmatpush.msra.mxu0 0.0
    %1162 = vmatpush.msra.mxu0 0.0
    %1163 = vmatpush.msra.mxu0 0.0
    %1164 = vmatpush.msra.mxu0 0.0
    %1165 = vmatpush.msra.mxu0 0.0
    %1166 = vmatpush.msra.mxu0 0.0
    %1167 = vmatpush.msra.mxu0 0.0
    %1168 = vmatpush.msra.mxu0 0.0
    %1169 = vmatpush.msra.mxu0 %v1153
    %1170 = vmatpush.msra.mxu0 %v1143
    %1171 = vmatmul.f32.gmra.mxu0 %v1148
    %v1172 = vpop.f32.mrf.mxu0
    %v1173 = vadd.f32 0.0, %v1172
    %1174 = vmatmul.f32.gmra.mxu0 %v1151
    %v1175 = vpop.f32.mrf.mxu0
    %v1176 = vadd.f32 0.0, %v1175
    %1177 = vdwg.mxu0
    %1178 = vrot.lane.b32.xlu0 %v1074, 120
    %v1179 = vpop.permute.xlu0 %1178
    %1180 = vrot.lane.b32.xlu0 %v1077, 120
    %v1181 = vpop.permute.xlu0 %1180
    %1182 = vrot.lane.b32.xlu0 %v1074, 88
    %v1183 = vpop.permute.xlu0 %1182
    %1184 = vrot.lane.b32.xlu0 %v1077, 88
    %v1185 = vpop.permute.xlu0 %1184
    %v1186 = vsel %vm383, %v1179, 0
    %v1188 = vsel %vm383, %v1181, 0
    %v1190 = vsel %vm383, %v1183, 0
    %v1192 = vsel %vm383, %v1185, 0
    %1194 = vmatpush.xpose.msra.mxu0 0.0
    %1195 = vmatpush.xpose.msra.mxu0 0.0
    %1196 = vmatpush.xpose.msra.mxu0 0.0
    %1197 = vmatpush.xpose.msra.mxu0 0.0
    %1198 = vmatpush.xpose.msra.mxu0 0.0
    %1199 = vmatpush.xpose.msra.mxu0 0.0
    %1200 = vmatpush.xpose.msra.mxu0 0.0
    %1201 = vmatpush.xpose.msra.mxu0 0.0
    %1202 = vmatpush.xpose.msra.mxu0 0.0
    %1203 = vmatpush.xpose.msra.mxu0 0.0
    %1204 = vmatpush.xpose.msra.mxu0 0.0
    %1205 = vmatpush.xpose.msra.mxu0 0.0
    %1206 = vmatpush.xpose.msra.mxu0 0.0
    %1207 = vmatpush.xpose.msra.mxu0 0.0
    %1208 = vmatpush.xpose.msra.mxu0 %v1192
    %1209 = vmatpush.xpose.msra.mxu0 %v1190
    %1210 = vmatmul.f32.gmra.mxu0 %v1186
    %v1211 = vpop.f32.mrf.mxu0
    %v1212 = vadd.f32 0.0, %v1211
    %1213 = vmatmul.f32.gmra.mxu0 %v1188
    %v1214 = vpop.f32.mrf.mxu0
    %v1215 = vadd.f32 0.0, %v1214
    %1216 = vdwg.mxu0
    %v1217 = vmul.f32 %v1212, 0.35355338
    %v1218 = vmul.f32 %v1215, 0.35355338
    %v1219 = vadd.f32 %v1217, %v295
    %v1220 = vadd.f32 %v1218, %v296
    %v1221 = vsel %vm419, %v1219, -inf
    %1222 = vmax.xlane.f32.xlu0 %v1221
    %v1223 = vpop.xlane.xlu0 %1222
    %v1224 = vsel %vm423, %v1220, -inf
    %1225 = vmax.xlane.f32.xlu0 %v1224
    %v1226 = vpop.xlane.xlu0 %1225
    %v1227 = vsub.f32 %v1219, %v1223
    %v1228 = vsub.f32 %v1220, %v1226
    %v1229 = vmul.f32 %v1227, 1.442695
    %v1230 = vpow.pop %v1229
    %v1231 = vmul.f32 %v1228, 1.442695
    %v1232 = vpow.pop %v1231
    %v1233 = vsel %vm419, %v1230, 0.0
    %1234 = vadd.xlane.f32.xlu0 %v1233
    %v1235 = vpop.xlane.xlu0 %1234
    %v1236 = vsel %vm423, %v1232, 0.0
    %1237 = vadd.xlane.f32.xlu0 %v1236
    %v1238 = vpop.xlane.xlu0 %1237
    %v1239 = vrcp.pop %v1235
    %v1240 = vrcp.pop %v1238
    %v1241 = vmul.f32 %v1230, %v1239
    %v1242 = vmul.f32 %v1232, %v1240
    %1243 = vrot.lane.b32.xlu0 %v1074, 56
    %v1244 = vpop.permute.xlu0 %1243
    %1245 = vrot.lane.b32.xlu0 %v1077, 56
    %v1246 = vpop.permute.xlu0 %1245
    %v1249 = vsel %vm419, %v1241, 0
    %v1252 = vsel %vm419, %v1242, 0
    %v1254 = vsel %vm454, %v1246, 0
    %1256 = vmatpush.msra.mxu0 0.0
    %1257 = vmatpush.msra.mxu0 0.0
    %1258 = vmatpush.msra.mxu0 0.0
    %1259 = vmatpush.msra.mxu0 0.0
    %1260 = vmatpush.msra.mxu0 0.0
    %1261 = vmatpush.msra.mxu0 0.0
    %1262 = vmatpush.msra.mxu0 0.0
    %1263 = vmatpush.msra.mxu0 0.0
    %1264 = vmatpush.msra.mxu0 0.0
    %1265 = vmatpush.msra.mxu0 0.0
    %1266 = vmatpush.msra.mxu0 0.0
    %1267 = vmatpush.msra.mxu0 0.0
    %1268 = vmatpush.msra.mxu0 0.0
    %1269 = vmatpush.msra.mxu0 0.0
    %1270 = vmatpush.msra.mxu0 %v1254
    %1271 = vmatpush.msra.mxu0 %v1244
    %1272 = vmatmul.f32.gmra.mxu0 %v1249
    %v1273 = vpop.f32.mrf.mxu0
    %v1274 = vadd.f32 0.0, %v1273
    %1275 = vmatmul.f32.gmra.mxu0 %v1252
    %v1276 = vpop.f32.mrf.mxu0
    %v1277 = vadd.f32 0.0, %v1276
    %1278 = vdwg.mxu0
    %1279 = vrot.lane.b32.xlu0 %v1074, 112
    %v1280 = vpop.permute.xlu0 %1279
    %1281 = vrot.lane.b32.xlu0 %v1077, 112
    %v1282 = vpop.permute.xlu0 %1281
    %1283 = vrot.lane.b32.xlu0 %v1074, 80
    %v1284 = vpop.permute.xlu0 %1283
    %1285 = vrot.lane.b32.xlu0 %v1077, 80
    %v1286 = vpop.permute.xlu0 %1285
    %v1287 = vsel %vm383, %v1280, 0
    %v1289 = vsel %vm383, %v1282, 0
    %v1291 = vsel %vm383, %v1284, 0
    %v1293 = vsel %vm383, %v1286, 0
    %1295 = vmatpush.xpose.msra.mxu0 0.0
    %1296 = vmatpush.xpose.msra.mxu0 0.0
    %1297 = vmatpush.xpose.msra.mxu0 0.0
    %1298 = vmatpush.xpose.msra.mxu0 0.0
    %1299 = vmatpush.xpose.msra.mxu0 0.0
    %1300 = vmatpush.xpose.msra.mxu0 0.0
    %1301 = vmatpush.xpose.msra.mxu0 0.0
    %1302 = vmatpush.xpose.msra.mxu0 0.0
    %1303 = vmatpush.xpose.msra.mxu0 0.0
    %1304 = vmatpush.xpose.msra.mxu0 0.0
    %1305 = vmatpush.xpose.msra.mxu0 0.0
    %1306 = vmatpush.xpose.msra.mxu0 0.0
    %1307 = vmatpush.xpose.msra.mxu0 0.0
    %1308 = vmatpush.xpose.msra.mxu0 0.0
    %1309 = vmatpush.xpose.msra.mxu0 %v1293
    %1310 = vmatpush.xpose.msra.mxu0 %v1291
    %1311 = vmatmul.f32.gmra.mxu0 %v1287
    %v1312 = vpop.f32.mrf.mxu0
    %v1313 = vadd.f32 0.0, %v1312
    %1314 = vmatmul.f32.gmra.mxu0 %v1289
    %v1315 = vpop.f32.mrf.mxu0
    %v1316 = vadd.f32 0.0, %v1315
    %1317 = vdwg.mxu0
    %v1318 = vmul.f32 %v1313, 0.35355338
    %v1319 = vmul.f32 %v1316, 0.35355338
    %v1320 = vadd.f32 %v1318, %v295
    %v1321 = vadd.f32 %v1319, %v296
    %v1322 = vsel %vm419, %v1320, -inf
    %1323 = vmax.xlane.f32.xlu0 %v1322
    %v1324 = vpop.xlane.xlu0 %1323
    %v1325 = vsel %vm423, %v1321, -inf
    %1326 = vmax.xlane.f32.xlu0 %v1325
    %v1327 = vpop.xlane.xlu0 %1326
    %v1328 = vsub.f32 %v1320, %v1324
    %v1329 = vsub.f32 %v1321, %v1327
    %v1330 = vmul.f32 %v1328, 1.442695
    %v1331 = vpow.pop %v1330
    %v1332 = vmul.f32 %v1329, 1.442695
    %v1333 = vpow.pop %v1332
    %v1334 = vsel %vm419, %v1331, 0.0
    %1335 = vadd.xlane.f32.xlu0 %v1334
    %v1336 = vpop.xlane.xlu0 %1335
    %v1337 = vsel %vm423, %v1333, 0.0
    %1338 = vadd.xlane.f32.xlu0 %v1337
    %v1339 = vpop.xlane.xlu0 %1338
    %v1340 = vrcp.pop %v1336
    %v1341 = vrcp.pop %v1339
    %v1342 = vmul.f32 %v1331, %v1340
    %v1343 = vmul.f32 %v1333, %v1341
    %1344 = vrot.lane.b32.xlu0 %v1074, 48
    %v1345 = vpop.permute.xlu0 %1344
    %1346 = vrot.lane.b32.xlu0 %v1077, 48
    %v1347 = vpop.permute.xlu0 %1346
    %v1350 = vsel %vm419, %v1342, 0
    %v1353 = vsel %vm419, %v1343, 0
    %v1355 = vsel %vm454, %v1347, 0
    %1357 = vmatpush.msra.mxu0 0.0
    %1358 = vmatpush.msra.mxu0 0.0
    %1359 = vmatpush.msra.mxu0 0.0
    %1360 = vmatpush.msra.mxu0 0.0
    %1361 = vmatpush.msra.mxu0 0.0
    %1362 = vmatpush.msra.mxu0 0.0
    %1363 = vmatpush.msra.mxu0 0.0
    %1364 = vmatpush.msra.mxu0 0.0
    %1365 = vmatpush.msra.mxu0 0.0
    %1366 = vmatpush.msra.mxu0 0.0
    %1367 = vmatpush.msra.mxu0 0.0
    %1368 = vmatpush.msra.mxu0 0.0
    %1369 = vmatpush.msra.mxu0 0.0
    %1370 = vmatpush.msra.mxu0 0.0
    %1371 = vmatpush.msra.mxu0 %v1355
    %1372 = vmatpush.msra.mxu0 %v1345
    %1373 = vmatmul.f32.gmra.mxu0 %v1350
    %v1374 = vpop.f32.mrf.mxu0
    %v1375 = vadd.f32 0.0, %v1374
    %1376 = vmatmul.f32.gmra.mxu0 %v1353
    %v1377 = vpop.f32.mrf.mxu0
    %v1378 = vadd.f32 0.0, %v1377
    %1379 = vdwg.mxu0
    %1380 = vrot.lane.b32.xlu0 %v1074, 104
    %v1381 = vpop.permute.xlu0 %1380
    %1382 = vrot.lane.b32.xlu0 %v1077, 104
    %v1383 = vpop.permute.xlu0 %1382
    %1384 = vrot.lane.b32.xlu0 %v1074, 72
    %v1385 = vpop.permute.xlu0 %1384
    %1386 = vrot.lane.b32.xlu0 %v1077, 72
    %v1387 = vpop.permute.xlu0 %1386
    %v1388 = vsel %vm383, %v1381, 0
    %v1390 = vsel %vm383, %v1383, 0
    %v1392 = vsel %vm383, %v1385, 0
    %v1394 = vsel %vm383, %v1387, 0
    %1396 = vmatpush.xpose.msra.mxu0 0.0
    %1397 = vmatpush.xpose.msra.mxu0 0.0
    %1398 = vmatpush.xpose.msra.mxu0 0.0
    %1399 = vmatpush.xpose.msra.mxu0 0.0
    %1400 = vmatpush.xpose.msra.mxu0 0.0
    %1401 = vmatpush.xpose.msra.mxu0 0.0
    %1402 = vmatpush.xpose.msra.mxu0 0.0
    %1403 = vmatpush.xpose.msra.mxu0 0.0
    %1404 = vmatpush.xpose.msra.mxu0 0.0
    %1405 = vmatpush.xpose.msra.mxu0 0.0
    %1406 = vmatpush.xpose.msra.mxu0 0.0
    %1407 = vmatpush.xpose.msra.mxu0 0.0
    %1408 = vmatpush.xpose.msra.mxu0 0.0
    %1409 = vmatpush.xpose.msra.mxu0 0.0
    %1410 = vmatpush.xpose.msra.mxu0 %v1394
    %1411 = vmatpush.xpose.msra.mxu0 %v1392
    %1412 = vmatmul.f32.gmra.mxu0 %v1388
    %v1413 = vpop.f32.mrf.mxu0
    %v1414 = vadd.f32 0.0, %v1413
    %1415 = vmatmul.f32.gmra.mxu0 %v1390
    %v1416 = vpop.f32.mrf.mxu0
    %v1417 = vadd.f32 0.0, %v1416
    %1418 = vdwg.mxu0
    %v1419 = vmul.f32 %v1414, 0.35355338
    %v1420 = vmul.f32 %v1417, 0.35355338
    %v1421 = vadd.f32 %v1419, %v295
    %v1422 = vadd.f32 %v1420, %v296
    %v1423 = vsel %vm419, %v1421, -inf
    %1424 = vmax.xlane.f32.xlu0 %v1423
    %v1425 = vpop.xlane.xlu0 %1424
    %v1426 = vsel %vm423, %v1422, -inf
    %1427 = vmax.xlane.f32.xlu0 %v1426
    %v1428 = vpop.xlane.xlu0 %1427
    %v1429 = vsub.f32 %v1421, %v1425
    %v1430 = vsub.f32 %v1422, %v1428
    %v1431 = vmul.f32 %v1429, 1.442695
    %v1432 = vpow.pop %v1431
    %v1433 = vmul.f32 %v1430, 1.442695
    %v1434 = vpow.pop %v1433
    %v1435 = vsel %vm419, %v1432, 0.0
    %1436 = vadd.xlane.f32.xlu0 %v1435
    %v1437 = vpop.xlane.xlu0 %1436
    %v1438 = vsel %vm423, %v1434, 0.0
    %1439 = vadd.xlane.f32.xlu0 %v1438
    %v1440 = vpop.xlane.xlu0 %1439
    %v1441 = vrcp.pop %v1437
    %v1442 = vrcp.pop %v1440
    %v1443 = vmul.f32 %v1432, %v1441
    %v1444 = vmul.f32 %v1434, %v1442
    %1445 = vrot.lane.b32.xlu0 %v1074, 40
    %v1446 = vpop.permute.xlu0 %1445
    %1447 = vrot.lane.b32.xlu0 %v1077, 40
    %v1448 = vpop.permute.xlu0 %1447
    %v1451 = vsel %vm419, %v1443, 0
    %v1454 = vsel %vm419, %v1444, 0
    %v1456 = vsel %vm454, %v1448, 0
    %1458 = vmatpush.msra.mxu0 0.0
    %1459 = vmatpush.msra.mxu0 0.0
    %1460 = vmatpush.msra.mxu0 0.0
    %1461 = vmatpush.msra.mxu0 0.0
    %1462 = vmatpush.msra.mxu0 0.0
    %1463 = vmatpush.msra.mxu0 0.0
    %1464 = vmatpush.msra.mxu0 0.0
    %1465 = vmatpush.msra.mxu0 0.0
    %1466 = vmatpush.msra.mxu0 0.0
    %1467 = vmatpush.msra.mxu0 0.0
    %1468 = vmatpush.msra.mxu0 0.0
    %1469 = vmatpush.msra.mxu0 0.0
    %1470 = vmatpush.msra.mxu0 0.0
    %1471 = vmatpush.msra.mxu0 0.0
    %1472 = vmatpush.msra.mxu0 %v1456
    %1473 = vmatpush.msra.mxu0 %v1446
    %1474 = vmatmul.f32.gmra.mxu0 %v1451
    %v1475 = vpop.f32.mrf.mxu0
    %v1476 = vadd.f32 0.0, %v1475
    %1477 = vmatmul.f32.gmra.mxu0 %v1454
    %v1478 = vpop.f32.mrf.mxu0
    %v1479 = vadd.f32 0.0, %v1478
    %1480 = vdwg.mxu0
    %1483 = vrot.lane.b32.xlu0 %v1274, 8
    %v1484 = vpop.permute.xlu0 %1483
    %1485 = vrot.lane.b32.xlu0 %v1277, 8
    %v1486 = vpop.permute.xlu0 %1485
    %1491 = vrot.lane.b32.xlu0 %v1375, 16
    %v1492 = vpop.permute.xlu0 %1491
    %1493 = vrot.lane.b32.xlu0 %v1378, 16
    %v1494 = vpop.permute.xlu0 %1493
    %1499 = vrot.lane.b32.xlu0 %v1476, 24
    %v1500 = vpop.permute.xlu0 %1499
    %1501 = vrot.lane.b32.xlu0 %v1479, 24
    %v1502 = vpop.permute.xlu0 %1501
    %v1505 = vsel %vm383, %v1173, %v1484
    %v1506 = vsel %vm383, %v1176, %v1486
    %v1507 = vsel %vm809, %v1505, %v1492
    %v1508 = vsel %vm809, %v1506, %v1494
    %v1509 = vsel %vm812, %v1507, %v1500
    %v1510 = vsel %vm812, %v1508, %v1502
    %v1512 = vsel %vm178, %v1509, 0
    %v1515 = vsel %vm178, %v1510, 0
    %1517 = vmatpush.msra.mxu0 0.0
    %1518 = vmatpush.msra.mxu0 0.0
    %1519 = vmatpush.msra.mxu0 0.0
    %1520 = vmatpush.msra.mxu0 0.0
    %1521 = vmatpush.msra.mxu0 0.0
    %1522 = vmatpush.msra.mxu0 0.0
    %1523 = vmatpush.msra.mxu0 0.0
    %1524 = vmatpush.msra.mxu0 0.0
    %1525 = vmatpush.msra.mxu0 0.0
    %1526 = vmatpush.msra.mxu0 0.0
    %1527 = vmatpush.msra.mxu0 0.0
    %1528 = vmatpush.msra.mxu0 0.0
    %1529 = vmatpush.msra.mxu0 %v252
    %1530 = vmatpush.msra.mxu0 %v251
    %1531 = vmatpush.msra.mxu0 %v250
    %1532 = vmatpush.msra.mxu0 %v249
    %1533 = vmatmul.f32.gmra.mxu0 %v1512
    %v1534 = vpop.f32.mrf.mxu0
    %v1535 = vadd.f32 0.0, %v1534
    %1536 = vmatmul.f32.gmra.mxu0 %v1515
    %v1537 = vpop.f32.mrf.mxu0
    %v1538 = vadd.f32 0.0, %v1537
    %1539 = vdwg.mxu0
    %v1540 = vadd.f32 %v997, %v1535
    %v1541 = vadd.f32 %v998, %v1538
    %v1542 = vperm.slane %v294, 1
    %v1543 = vadd.f32 %v1540, %v1542
    %v1544 = vadd.f32 %v1541, %v1542
    %v1545 = vsel %vm178, %v1543, 0.0
    %1546 = vadd.xlane.f32.xlu0 %v1545
    %v1547 = vpop.xlane.xlu0 %1546
    %v1548 = vsel %vm182, %v1544, 0.0
    %1549 = vadd.xlane.f32.xlu0 %v1548
    %v1550 = vpop.xlane.xlu0 %1549
    %v1551 = vmul.f32 %v1547, %v192
    %v1552 = vmul.f32 %v1550, %v192
    %v1553 = vsub.f32 %v1543, %v1551
    %v1554 = vsub.f32 %v1544, %v1552
    %v1555 = vmul.f32 %v1553, %v1553
    %v1556 = vmul.f32 %v1554, %v1554
    %v1557 = vsel %vm178, %v1555, 0.0
    %1558 = vadd.xlane.f32.xlu0 %v1557
    %v1559 = vpop.xlane.xlu0 %1558
    %v1560 = vsel %vm182, %v1556, 0.0
    %1561 = vadd.xlane.f32.xlu0 %v1560
    %v1562 = vpop.xlane.xlu0 %1561
    %v1563 = vmul.f32 %v1559, %v192
    %v1564 = vmul.f32 %v1562, %v192
    %v1565 = vadd.f32 %v1563, 1e-05
    %v1566 = vadd.f32 %v1564, 1e-05
    %v1567 = vrsqrt.pop %v1565
    %v1568 = vmul.f32 %v1567, %v1565
    %v1569 = vmul.f32 %v1568, %v1567
    %v1570 = vmul.f32 0.5, %v1569
    %v1571 = vsub.f32 1.5, %v1570
    %v1572 = vmul.f32 %v1567, %v1571
    %vm1573 = vweird.f32 %v1565
    %vm1574 = vweird.f32 %v1567
    %vm1575 = vmor %vm1573, %vm1574
    %v1576 = vsel %vm1575, %v1567, %v1572
    %v1577 = vrsqrt.pop %v1566
    %v1578 = vmul.f32 %v1577, %v1566
    %v1579 = vmul.f32 %v1578, %v1577
    %v1580 = vmul.f32 0.5, %v1579
    %v1581 = vsub.f32 1.5, %v1580
    %v1582 = vmul.f32 %v1577, %v1581
    %vm1583 = vweird.f32 %v1566
    %vm1584 = vweird.f32 %v1577
    %vm1585 = vmor %vm1583, %vm1584
    %v1586 = vsel %vm1585, %v1577, %v1582
    %v1587 = vmul.f32 %v1553, %v1576
    %v1588 = vmul.f32 %v1554, %v1586
    %v1589 = vperm.slane %v294, 4
    %v1590 = vmul.f32 %v1587, %v1589
    %v1591 = vmul.f32 %v1588, %v1589
    %v1592 = vperm.slane %v294, 5
    %v1593 = vadd.f32 %v1590, %v1592
    %v1594 = vadd.f32 %v1591, %v1592
    %v1595 = vperm.slane %v294, 6
    %v1597 = vsel %vm178, %v1593, 0
    %v1600 = vsel %vm178, %v1594, 0
    %1602 = vmatpush.msra.mxu0 0.0
    %1603 = vmatpush.msra.mxu0 0.0
    %1604 = vmatpush.msra.mxu0 0.0
    %1605 = vmatpush.msra.mxu0 0.0
    %1606 = vmatpush.msra.mxu0 0.0
    %1607 = vmatpush.msra.mxu0 0.0
    %1608 = vmatpush.msra.mxu0 0.0
    %1609 = vmatpush.msra.mxu0 0.0
    %1610 = vmatpush.msra.mxu0 0.0
    %1611 = vmatpush.msra.mxu0 0.0
    %1612 = vmatpush.msra.mxu0 0.0
    %1613 = vmatpush.msra.mxu0 0.0
    %1614 = vmatpush.msra.mxu0 %v260
    %1615 = vmatpush.msra.mxu0 %v259
    %1616 = vmatpush.msra.mxu0 %v258
    %1617 = vmatpush.msra.mxu0 %v257
    %1618 = vmatmul.f32.gmra.mxu0 %v1597
    %v1619 = vpop.f32.mrf.mxu0
    %v1620 = vadd.f32 %v1595, %v1619
    %1621 = vmatmul.f32.gmra.mxu0 %v1600
    %v1622 = vpop.f32.mrf.mxu0
    %v1623 = vadd.f32 %v1595, %v1622
    %1624 = vdwg.mxu0
    %v1625 = vmul.f32 %v1620, 1.702
    %v1626 = vmul.f32 %v1623, 1.702
    %v1627 = vxor.u32 %v1625, 2147483648
    %v1628 = vxor.u32 %v1626, 2147483648
    %v1629 = vmul.f32 %v1627, 1.442695
    %v1630 = vpow.pop %v1629
    %v1631 = vmul.f32 %v1628, 1.442695
    %v1632 = vpow.pop %v1631
    %v1633 = vadd.f32 %v1630, 1.0
    %v1634 = vadd.f32 %v1632, 1.0
    %v1635 = vrcp.pop %v1633
    %v1636 = vmul.f32 %v1633, %v1635
    %v1637 = vsub.f32 1.0, %v1636
    %v1638 = vmul.f32 %v1635, %v1637
    %v1639 = vadd.f32 %v1635, %v1638
    %vm1640 = vweird.f32 %v1633
    %vm1641 = vweird.f32 %v1635
    %vm1642 = vmor %vm1640, %vm1641
    %v1643 = vsel %vm1642, %v1635, %v1639
    %v1644 = vand.u32 2147483647, %v1633
    %vm1645 = vcmp.eq.f32.partialorder %v1644, 8.507059e+37
    %v1646 = vand.u32 %v1633, 2147483648
    %v1647 = vor.u32 1.1754944e-38, %v1646
    %v1648 = vsel %vm1645, %v1647, %v1643
    %v1649 = vmul.f32 1.0, %v1648
    %v1650 = vrcp.pop %v1634
    %v1651 = vmul.f32 %v1634, %v1650
    %v1652 = vsub.f32 1.0, %v1651
    %v1653 = vmul.f32 %v1650, %v1652
    %v1654 = vadd.f32 %v1650, %v1653
    %vm1655 = vweird.f32 %v1634
    %vm1656 = vweird.f32 %v1650
    %vm1657 = vmor %vm1655, %vm1656
    %v1658 = vsel %vm1657, %v1650, %v1654
    %v1659 = vand.u32 2147483647, %v1634
    %vm1660 = vcmp.eq.f32.partialorder %v1659, 8.507059e+37
    %v1661 = vand.u32 %v1634, 2147483648
    %v1662 = vor.u32 1.1754944e-38, %v1661
    %v1663 = vsel %vm1660, %v1662, %v1658
    %v1664 = vmul.f32 1.0, %v1663
    %v1665 = vmul.f32 %v1620, %v1649
    %v1666 = vmul.f32 %v1623, %v1664
    %1667 = vmatpush.msra.mxu0 %v292
    %1668 = vmatpush.msra.mxu0 %v291
    %1669 = vmatpush.msra.mxu0 %v290
    %1670 = vmatpush.msra.mxu0 %v289
    %1671 = vmatpush.msra.mxu0 %v288
    %1672 = vmatpush.msra.mxu0 %v287
    %1673 = vmatpush.msra.mxu0 %v286
    %1674 = vmatpush.msra.mxu0 %v285
    %1675 = vmatpush.msra.mxu0 %v284
    %1676 = vmatpush.msra.mxu0 %v283
    %1677 = vmatpush.msra.mxu0 %v282
    %1678 = vmatpush.msra.mxu0 %v281
    %1679 = vmatpush.msra.mxu0 %v280
    %1680 = vmatpush.msra.mxu0 %v279
    %1681 = vmatpush.msra.mxu0 %v278
    %1682 = vmatpush.msra.mxu0 %v277
    %1683 = vmatmul.f32.gmra.mxu0 %v1665
    %v1684 = vpop.f32.mrf.mxu0
    %v1685 = vadd.f32 0.0, %v1684
    %1686 = vmatmul.f32.gmra.mxu0 %v1666
    %v1687 = vpop.f32.mrf.mxu0
    %v1688 = vadd.f32 0.0, %v1687
    %1689 = vdwg.mxu0
    %v1690 = vadd.f32 %v1543, %v1685
    %v1691 = vadd.f32 %v1544, %v1688
    %v1692 = vperm.slane %v294, 7
    %v1693 = vadd.f32 %v1690, %v1692
    %v1694 = vadd.f32 %v1691, %v1692
    %v1695 = vld [vmem:[%s11] sm:$0x3]
    %v1697 = vsel %vm419, %v1695, 0
    %v1700 = vsel %vm454, %v1694, 0
    %1702 = vmatpush.msra.mxu0 0.0
    %1703 = vmatpush.msra.mxu0 0.0
    %1704 = vmatpush.msra.mxu0 0.0
    %1705 = vmatpush.msra.mxu0 0.0
    %1706 = vmatpush.msra.mxu0 0.0
    %1707 = vmatpush.msra.mxu0 0.0
    %1708 = vmatpush.msra.mxu0 0.0
    %1709 = vmatpush.msra.mxu0 0.0
    %1710 = vmatpush.msra.mxu0 0.0
    %1711 = vmatpush.msra.mxu0 0.0
    %1712 = vmatpush.msra.mxu0 0.0
    %1713 = vmatpush.msra.mxu0 0.0
    %1714 = vmatpush.msra.mxu0 0.0
    %1715 = vmatpush.msra.mxu0 0.0
    %1716 = vmatpush.msra.mxu0 %v1700
    %1717 = vmatpush.msra.mxu0 %v1693
    %1718 = vmatmul.f32.gmra.mxu0 %v1697
    %v1719 = vpop.f32.mrf.mxu0
    %v1720 = vadd.f32 0.0, %v1719
    %1721 = vdwg.mxu0
    %v1722 = vsel %vm182, %v1720, 0.0
    %1723 = vadd.xlane.f32.xlu0 %v1722
    %v1724 = vpop.xlane.xlu0 %1723
    %v1725 = vmul.f32 %v1724, %v192
    %v1726 = vsub.f32 %v1720, %v1725
    %v1727 = vmul.f32 %v1726, %v1726
    %v1728 = vsel %vm182, %v1727, 0.0
    %1729 = vadd.xlane.f32.xlu0 %v1728
    %v1730 = vpop.xlane.xlu0 %1729
    %v1731 = vmul.f32 %v1730, %v192
    %v1732 = vadd.f32 %v1731, 1e-05
    %v1733 = vrsqrt.pop %v1732
    %v1734 = vmul.f32 %v1733, %v1732
    %v1735 = vmul.f32 %v1734, %v1733
    %v1736 = vmul.f32 0.5, %v1735
    %v1737 = vsub.f32 1.5, %v1736
    %v1738 = vmul.f32 %v1733, %v1737
    %vm1739 = vweird.f32 %v1732
    %vm1740 = vweird.f32 %v1733
    %vm1741 = vmor %vm1739, %vm1740
    %v1742 = vsel %vm1741, %v1733, %v1738
    %v1743 = vmul.f32 %v1726, %v1742
    %v1744 = vperm.slane %v177, 2
    %v1745 = vmul.f32 %v1743, %v1744
    %v1746 = vperm.slane %v177, 3
    %v1747 = vadd.f32 %v1745, %v1746
    %v1748 = vld [vmem:[%s12] sm:$0xff]
    %v1749 = vld [vmem:[%s12 + $0x8] sm:$0xff]
    %v1750 = vld [vmem:[%s12 + $0x10] sm:$0xff]
    %v1751 = vld [vmem:[%s12 + $0x18] sm:$0xff]
    %v1753 = vsel %vm178, %v1747, 0
    %1755 = vmatpush.msra.mxu0 0.0
    %1756 = vmatpush.msra.mxu0 0.0
    %1757 = vmatpush.msra.mxu0 0.0
    %1758 = vmatpush.msra.mxu0 0.0
    %1759 = vmatpush.msra.mxu0 0.0
    %1760 = vmatpush.msra.mxu0 0.0
    %1761 = vmatpush.msra.mxu0 0.0
    %1762 = vmatpush.msra.mxu0 0.0
    %1763 = vmatpush.msra.mxu0 0.0
    %1764 = vmatpush.msra.mxu0 0.0
    %1765 = vmatpush.msra.mxu0 0.0
    %1766 = vmatpush.msra.mxu0 0.0
    %1767 = vmatpush.msra.mxu0 %v1751
    %1768 = vmatpush.msra.mxu0 %v1750
    %1769 = vmatpush.msra.mxu0 %v1749
    %1770 = vmatpush.msra.mxu0 %v1748
    %1771 = vmatmul.f32.gmra.mxu0 %v1753
    %v1772 = vpop.f32.mrf.mxu0
    %v1773 = vadd.f32 0.0, %v1772
    %1774 = vdwg.mxu0
    %v1775 = vmul.f32 %v1773, %v1773
    %vm1776 = vcmask 123904
    %v1777 = vsel %vm1776, %v1775, 0.0
    %1778 = vadd.xlane.f32.xlu0 %v1777
    %v1779 = vpop.xlane.xlu0 %1778
    %v1780 = vmax.f32 %v1779, 1e-30
    %v1781 = vrsqrt.pop %v1780
    %v1782 = vmul.f32 %v1781, %v1780
    %v1783 = vmul.f32 %v1782, %v1781
    %v1784 = vmul.f32 0.5, %v1783
    %v1785 = vsub.f32 1.5, %v1784
    %v1786 = vmul.f32 %v1781, %v1785
    %vm1787 = vweird.f32 %v1780
    %vm1788 = vweird.f32 %v1781
    %vm1789 = vmor %vm1787, %vm1788
    %v1790 = vsel %vm1789, %v1781, %v1786
    %v1791 = vmul.f32 %v1773, %v1790
    %1792 = vst.msk [vmem:[#allocation2] sm:$0x3] %vm1776, %v1791
    %v1793 = vld [vmem:[%s13] sm:$0xff]
    %v1794 = vld [vmem:[%s13 + $0x8] sm:$0xff]
    %v1795 = vld [vmem:[%s13 + $0x10] sm:$0xff]
    %v1796 = vld [vmem:[%s13 + $0x18] sm:$0xff]
    %v1797 = vld [vmem:[%s13 + $0x20] sm:$0xff]
    %v1798 = vld [vmem:[%s13 + $0x28] sm:$0xff]
    %v1799 = vld [vmem:[%s19] sm:$0x3]
    %v1800 = vld [vmem:[%s14] sm:$0xff]
    %v1801 = vld [vmem:[%s14 + $0x8] sm:$0xff]
    %v1802 = vld [vmem:[%s14 + $0x10] sm:$0xff]
    %v1803 = vld [vmem:[%s14 + $0x18] sm:$0xff]
    %v1804 = vld [vmem:[%s14 + $0x20] sm:$0xff]
    %v1805 = vld [vmem:[%s14 + $0x28] sm:$0xff]
    %v1806 = vld [vmem:[%s14 + $0x30] sm:$0xff]
    %v1807 = vld [vmem:[%s14 + $0x38] sm:$0xff]
    %v1808 = vld [vmem:[%s15] sm:$0xff]
    %v1809 = vld [vmem:[%s15 + $0x8] sm:$0xff]
    %v1810 = vld [vmem:[%s15 + $0x10] sm:$0xff]
    %v1811 = vld [vmem:[%s15 + $0x18] sm:$0xff]
    %v1812 = vld [vmem:[%s15 + $0x20] sm:$0xff]
    %v1813 = vld [vmem:[%s15 + $0x28] sm:$0xff]
    %v1814 = vld [vmem:[%s15 + $0x30] sm:$0xff]
    %v1815 = vld [vmem:[%s15 + $0x38] sm:$0xff]
    %v1816 = vld [vmem:[%s16] sm:$0xff]
    %v1817 = vld [vmem:[%s16 + $0x8] sm:$0xff]
    %v1818 = vld [vmem:[%s16 + $0x10] sm:$0xff]
    %v1819 = vld [vmem:[%s16 + $0x18] sm:$0xff]
    %v1820 = vld [vmem:[%s16 + $0x20] sm:$0xff]
    %v1821 = vld [vmem:[%s16 + $0x28] sm:$0xff]
    %v1822 = vld [vmem:[%s16 + $0x30] sm:$0xff]
    %v1823 = vld [vmem:[%s16 + $0x38] sm:$0xff]
    %v1824 = vld [vmem:[%s17] sm:$0xff]
    %v1825 = vld [vmem:[%s17 + $0x8] sm:$0xff]
    %v1826 = vld [vmem:[%s17 + $0x10] sm:$0xff]
    %v1827 = vld [vmem:[%s17 + $0x18] sm:$0xff]
    %v1828 = vld [vmem:[%s17 + $0x20] sm:$0xff]
    %v1829 = vld [vmem:[%s17 + $0x28] sm:$0xff]
    %v1830 = vld [vmem:[%s17 + $0x30] sm:$0xff]
    %v1831 = vld [vmem:[%s17 + $0x38] sm:$0xff]
    %v1832 = vld [vmem:[%s17 + $0x40] sm:$0xff]
    %v1833 = vld [vmem:[%s17 + $0x48] sm:$0xff]
    %v1834 = vld [vmem:[%s17 + $0x50] sm:$0xff]
    %v1835 = vld [vmem:[%s17 + $0x58] sm:$0xff]
    %v1836 = vld [vmem:[%s17 + $0x60] sm:$0xff]
    %v1837 = vld [vmem:[%s17 + $0x68] sm:$0xff]
    %v1838 = vld [vmem:[%s17 + $0x70] sm:$0xff]
    %v1839 = vld [vmem:[%s17 + $0x78] sm:$0xff]
    %v1840 = vld [vmem:[%s17 + $0x80] sm:$0xff]
    %v1841 = vld [vmem:[%s17 + $0x88] sm:$0xff]
    %v1842 = vld [vmem:[%s17 + $0x90] sm:$0xff]
    %v1843 = vld [vmem:[%s17 + $0x98] sm:$0xff]
    %v1844 = vld [vmem:[%s17 + $0xa0] sm:$0xff]
    %v1845 = vld [vmem:[%s17 + $0xa8] sm:$0xff]
    %v1846 = vld [vmem:[%s17 + $0xb0] sm:$0xff]
    %v1847 = vld [vmem:[%s17 + $0xb8] sm:$0xff]
    %v1848 = vld [vmem:[%s17 + $0xc0] sm:$0xff]
    %v1849 = vld [vmem:[%s17 + $0xc8] sm:$0xff]
    %v1850 = vld [vmem:[%s17 + $0xd0] sm:$0xff]
    %v1851 = vld [vmem:[%s17 + $0xd8] sm:$0xff]
    %v1852 = vld [vmem:[%s17 + $0xe0] sm:$0xff]
    %v1853 = vld [vmem:[%s17 + $0xe8] sm:$0xff]
    %v1854 = vld [vmem:[%s17 + $0xf0] sm:$0xff]
    %v1855 = vld [vmem:[%s17 + $0xf8] sm:$0xff]
    %v1856 = vld [vmem:[%s18] sm:$0xff]
    %v1857 = vld [vmem:[%s18 + $0x8] sm:$0xff]
    %v1858 = vld [vmem:[%s20] sm:$0xff]
    %v1859 = vld [vmem:[%s20 + $0x8] sm:$0xff]
    %v1860 = vld [vmem:[%s20 + $0x10] sm:$0xff]
    %v1861 = vld [vmem:[%s20 + $0x18] sm:$0xff]
    %v1862 = vld [vmem:[%s20 + $0x20] sm:$0xff]
    %v1863 = vld [vmem:[%s20 + $0x28] sm:$0xff]
    %v1864 = vsel %vm178, %v1793, 0.0
    %1865 = vadd.xlane.f32.xlu0 %v1864
    %v1866 = vpop.xlane.xlu0 %1865
    %v1867 = vsel %vm178, %v1794, 0.0
    %1868 = vadd.xlane.f32.xlu0 %v1867
    %v1869 = vpop.xlane.xlu0 %1868
    %v1870 = vsel %vm178, %v1795, 0.0
    %1871 = vadd.xlane.f32.xlu0 %v1870
    %v1872 = vpop.xlane.xlu0 %1871
    %v1873 = vsel %vm178, %v1796, 0.0
    %1874 = vadd.xlane.f32.xlu0 %v1873
    %v1875 = vpop.xlane.xlu0 %1874
    %v1876 = vsel %vm178, %v1797, 0.0
    %1877 = vadd.xlane.f32.xlu0 %v1876
    %v1878 = vpop.xlane.xlu0 %1877
    %v1879 = vsel %vm178, %v1798, 0.0
    %1880 = vadd.xlane.f32.xlu0 %v1879
    %v1881 = vpop.xlane.xlu0 %1880
    %v1882 = vmul.f32 %v1866, %v192
    %v1883 = vmul.f32 %v1869, %v192
    %v1884 = vmul.f32 %v1872, %v192
    %v1885 = vmul.f32 %v1875, %v192
    %v1886 = vmul.f32 %v1878, %v192
    %v1887 = vmul.f32 %v1881, %v192
    %v1888 = vsub.f32 %v1793, %v1882
    %v1889 = vsub.f32 %v1794, %v1883
    %v1890 = vsub.f32 %v1795, %v1884
    %v1891 = vsub.f32 %v1796, %v1885
    %v1892 = vsub.f32 %v1797, %v1886
    %v1893 = vsub.f32 %v1798, %v1887
    %v1894 = vmul.f32 %v1888, %v1888
    %v1895 = vmul.f32 %v1889, %v1889
    %v1896 = vmul.f32 %v1890, %v1890
    %v1897 = vmul.f32 %v1891, %v1891
    %v1898 = vmul.f32 %v1892, %v1892
    %v1899 = vmul.f32 %v1893, %v1893
    %v1900 = vsel %vm178, %v1894, 0.0
    %1901 = vadd.xlane.f32.xlu0 %v1900
    %v1902 = vpop.xlane.xlu0 %1901
    %v1903 = vsel %vm178, %v1895, 0.0
    %1904 = vadd.xlane.f32.xlu0 %v1903
    %v1905 = vpop.xlane.xlu0 %1904
    %v1906 = vsel %vm178, %v1896, 0.0
    %1907 = vadd.xlane.f32.xlu0 %v1906
    %v1908 = vpop.xlane.xlu0 %1907
    %v1909 = vsel %vm178, %v1897, 0.0
    %1910 = vadd.xlane.f32.xlu0 %v1909
    %v1911 = vpop.xlane.xlu0 %1910
    %v1912 = vsel %vm178, %v1898, 0.0
    %1913 = vadd.xlane.f32.xlu0 %v1912
    %v1914 = vpop.xlane.xlu0 %1913
    %v1915 = vsel %vm178, %v1899, 0.0
    %1916 = vadd.xlane.f32.xlu0 %v1915
    %v1917 = vpop.xlane.xlu0 %1916
    %v1918 = vmul.f32 %v1902, %v192
    %v1919 = vmul.f32 %v1905, %v192
    %v1920 = vmul.f32 %v1908, %v192
    %v1921 = vmul.f32 %v1911, %v192
    %v1922 = vmul.f32 %v1914, %v192
    %v1923 = vmul.f32 %v1917, %v192
    %v1924 = vadd.f32 %v1918, 1e-05
    %v1925 = vadd.f32 %v1919, 1e-05
    %v1926 = vadd.f32 %v1920, 1e-05
    %v1927 = vadd.f32 %v1921, 1e-05
    %v1928 = vadd.f32 %v1922, 1e-05
    %v1929 = vadd.f32 %v1923, 1e-05
    %v1930 = vrsqrt.pop %v1924
    %v1931 = vmul.f32 %v1930, %v1924
    %v1932 = vmul.f32 %v1931, %v1930
    %v1933 = vmul.f32 0.5, %v1932
    %v1934 = vsub.f32 1.5, %v1933
    %v1935 = vmul.f32 %v1930, %v1934
    %vm1936 = vweird.f32 %v1924
    %vm1937 = vweird.f32 %v1930
    %vm1938 = vmor %vm1936, %vm1937
    %v1939 = vsel %vm1938, %v1930, %v1935
    %v1940 = vrsqrt.pop %v1925
    %v1941 = vmul.f32 %v1940, %v1925
    %v1942 = vmul.f32 %v1941, %v1940
    %v1943 = vmul.f32 0.5, %v1942
    %v1944 = vsub.f32 1.5, %v1943
    %v1945 = vmul.f32 %v1940, %v1944
    %vm1946 = vweird.f32 %v1925
    %vm1947 = vweird.f32 %v1940
    %vm1948 = vmor %vm1946, %vm1947
    %v1949 = vsel %vm1948, %v1940, %v1945
    %v1950 = vrsqrt.pop %v1926
    %v1951 = vmul.f32 %v1950, %v1926
    %v1952 = vmul.f32 %v1951, %v1950
    %v1953 = vmul.f32 0.5, %v1952
    %v1954 = vsub.f32 1.5, %v1953
    %v1955 = vmul.f32 %v1950, %v1954
    %vm1956 = vweird.f32 %v1926
    %vm1957 = vweird.f32 %v1950
    %vm1958 = vmor %vm1956, %vm1957
    %v1959 = vsel %vm1958, %v1950, %v1955
    %v1960 = vrsqrt.pop %v1927
    %v1961 = vmul.f32 %v1960, %v1927
    %v1962 = vmul.f32 %v1961, %v1960
    %v1963 = vmul.f32 0.5, %v1962
    %v1964 = vsub.f32 1.5, %v1963
    %v1965 = vmul.f32 %v1960, %v1964
    %vm1966 = vweird.f32 %v1927
    %vm1967 = vweird.f32 %v1960
    %vm1968 = vmor %vm1966, %vm1967
    %v1969 = vsel %vm1968, %v1960, %v1965
    %v1970 = vrsqrt.pop %v1928
    %v1971 = vmul.f32 %v1970, %v1928
    %v1972 = vmul.f32 %v1971, %v1970
    %v1973 = vmul.f32 0.5, %v1972
    %v1974 = vsub.f32 1.5, %v1973
    %v1975 = vmul.f32 %v1970, %v1974
    %vm1976 = vweird.f32 %v1928
    %vm1977 = vweird.f32 %v1970
    %vm1978 = vmor %vm1976, %vm1977
    %v1979 = vsel %vm1978, %v1970, %v1975
    %v1980 = vrsqrt.pop %v1929
    %v1981 = vmul.f32 %v1980, %v1929
    %v1982 = vmul.f32 %v1981, %v1980
    %v1983 = vmul.f32 0.5, %v1982
    %v1984 = vsub.f32 1.5, %v1983
    %v1985 = vmul.f32 %v1980, %v1984
    %vm1986 = vweird.f32 %v1929
    %vm1987 = vweird.f32 %v1980
    %vm1988 = vmor %vm1986, %vm1987
    %v1989 = vsel %vm1988, %v1980, %v1985
    %v1990 = vmul.f32 %v1888, %v1939
    %v1991 = vmul.f32 %v1889, %v1949
    %v1992 = vmul.f32 %v1890, %v1959
    %v1993 = vmul.f32 %v1891, %v1969
    %v1994 = vmul.f32 %v1892, %v1979
    %v1995 = vmul.f32 %v1893, %v1989
    %v1996 = vperm.slane %v1856, 2
    %v1997 = vmul.f32 %v1990, %v1996
    %v1998 = vmul.f32 %v1991, %v1996
    %v1999 = vmul.f32 %v1992, %v1996
    %v2000 = vmul.f32 %v1993, %v1996
    %v2001 = vmul.f32 %v1994, %v1996
    %v2002 = vmul.f32 %v1995, %v1996
    %v2003 = vperm.slane %v1856, 3
    %v2004 = vadd.f32 %v1997, %v2003
    %v2005 = vadd.f32 %v1998, %v2003
    %v2006 = vadd.f32 %v1999, %v2003
    %v2007 = vadd.f32 %v2000, %v2003
    %v2008 = vadd.f32 %v2001, %v2003
    %v2009 = vadd.f32 %v2002, %v2003
    %v2010 = vperm.slane %v1856, 0
    %v2012 = vsel %vm178, %v2004, 0
    %v2015 = vsel %vm178, %v2005, 0
    %v2018 = vsel %vm178, %v2006, 0
    %v2021 = vsel %vm178, %v2007, 0
    %v2024 = vsel %vm178, %v2008, 0
    %v2027 = vsel %vm178, %v2009, 0
    %2029 = vmatpush.msra.mxu0 0.0
    %2030 = vmatpush.msra.mxu0 0.0
    %2031 = vmatpush.msra.mxu0 0.0
    %2032 = vmatpush.msra.mxu0 0.0
    %2033 = vmatpush.msra.mxu0 0.0
    %2034 = vmatpush.msra.mxu0 0.0
    %2035 = vmatpush.msra.mxu0 0.0
    %2036 = vmatpush.msra.mxu0 0.0
    %2037 = vmatpush.msra.mxu0 0.0
    %2038 = vmatpush.msra.mxu0 0.0
    %2039 = vmatpush.msra.mxu0 0.0
    %2040 = vmatpush.msra.mxu0 0.0
    %2041 = vmatpush.msra.mxu0 %v1803
    %2042 = vmatpush.msra.mxu0 %v1802
    %2043 = vmatpush.msra.mxu0 %v1801
    %2044 = vmatpush.msra.mxu0 %v1800
    %2045 = vmatmul.f32.gmra.mxu0 %v2012
    %v2046 = vpop.f32.mrf.mxu0
    %v2047 = vadd.f32 %v2010, %v2046
    %2048 = vmatmul.f32.gmra.mxu0 %v2015
    %v2049 = vpop.f32.mrf.mxu0
    %v2050 = vadd.f32 %v2010, %v2049
    %2051 = vmatmul.f32.gmra.mxu0 %v2018
    %v2052 = vpop.f32.mrf.mxu0
    %v2053 = vadd.f32 %v2010, %v2052
    %2054 = vmatmul.f32.gmra.mxu0 %v2021
    %v2055 = vpop.f32.mrf.mxu0
    %v2056 = vadd.f32 %v2010, %v2055
    %2057 = vmatmul.f32.gmra.mxu0 %v2024
    %v2058 = vpop.f32.mrf.mxu0
    %v2059 = vadd.f32 %v2010, %v2058
    %2060 = vmatmul.f32.gmra.mxu0 %v2027
    %v2061 = vpop.f32.mrf.mxu0
    %v2062 = vadd.f32 %v2010, %v2061
    %2063 = vdwg.mxu0
    %2070 = vrot.lane.b32.xlu0 %v2047, 96
    %v2071 = vpop.permute.xlu0 %2070
    %2072 = vrot.lane.b32.xlu0 %v2050, 96
    %v2073 = vpop.permute.xlu0 %2072
    %2074 = vrot.lane.b32.xlu0 %v2053, 96
    %v2075 = vpop.permute.xlu0 %2074
    %2076 = vrot.lane.b32.xlu0 %v2056, 96
    %v2077 = vpop.permute.xlu0 %2076
    %2078 = vrot.lane.b32.xlu0 %v2059, 96
    %v2079 = vpop.permute.xlu0 %2078
    %2080 = vrot.lane.b32.xlu0 %v2062, 96
    %v2081 = vpop.permute.xlu0 %2080
    %v2082 = vsel %vm383, %v2047, 0
    %v2084 = vsel %vm383, %v2050, 0
    %v2086 = vsel %vm383, %v2053, 0
    %v2088 = vsel %vm383, %v2056, 0
    %v2090 = vsel %vm383, %v2059, 0
    %v2092 = vsel %vm383, %v2062, 0
    %v2094 = vsel %vm383, %v2071, 0
    %v2096 = vsel %vm383, %v2073, 0
    %v2098 = vsel %vm383, %v2075, 0
    %v2100 = vsel %vm383, %v2077, 0
    %v2102 = vsel %vm383, %v2079, 0
    %v2104 = vsel %vm383, %v2081, 0
    %2106 = vmatpush.xpose.msra.mxu0 0.0
    %2107 = vmatpush.xpose.msra.mxu0 0.0
    %2108 = vmatpush.xpose.msra.mxu0 0.0
    %2109 = vmatpush.xpose.msra.mxu0 0.0
    %2110 = vmatpush.xpose.msra.mxu0 0.0
    %2111 = vmatpush.xpose.msra.mxu0 0.0
    %2112 = vmatpush.xpose.msra.mxu0 0.0
    %2113 = vmatpush.xpose.msra.mxu0 0.0
    %2114 = vmatpush.xpose.msra.mxu0 0.0
    %2115 = vmatpush.xpose.msra.mxu0 0.0
    %2116 = vmatpush.xpose.msra.mxu0 %v2104
    %2117 = vmatpush.xpose.msra.mxu0 %v2102
    %2118 = vmatpush.xpose.msra.mxu0 %v2100
    %2119 = vmatpush.xpose.msra.mxu0 %v2098
    %2120 = vmatpush.xpose.msra.mxu0 %v2096
    %2121 = vmatpush.xpose.msra.mxu0 %v2094
    %2122 = vmatmul.f32.gmra.mxu0 %v2082
    %v2123 = vpop.f32.mrf.mxu0
    %v2124 = vadd.f32 0.0, %v2123
    %2125 = vmatmul.f32.gmra.mxu0 %v2084
    %v2126 = vpop.f32.mrf.mxu0
    %v2127 = vadd.f32 0.0, %v2126
    %2128 = vmatmul.f32.gmra.mxu0 %v2086
    %v2129 = vpop.f32.mrf.mxu0
    %v2130 = vadd.f32 0.0, %v2129
    %2131 = vmatmul.f32.gmra.mxu0 %v2088
    %v2132 = vpop.f32.mrf.mxu0
    %v2133 = vadd.f32 0.0, %v2132
    %2134 = vmatmul.f32.gmra.mxu0 %v2090
    %v2135 = vpop.f32.mrf.mxu0
    %v2136 = vadd.f32 0.0, %v2135
    %2137 = vmatmul.f32.gmra.mxu0 %v2092
    %v2138 = vpop.f32.mrf.mxu0
    %v2139 = vadd.f32 0.0, %v2138
    %2140 = vdwg.mxu0
    %v2141 = vmul.f32 %v2124, 0.35355338
    %v2142 = vmul.f32 %v2127, 0.35355338
    %v2143 = vmul.f32 %v2130, 0.35355338
    %v2144 = vmul.f32 %v2133, 0.35355338
    %v2145 = vmul.f32 %v2136, 0.35355338
    %v2146 = vmul.f32 %v2139, 0.35355338
    %v2147 = vadd.f32 %v2141, %v1858
    %v2148 = vadd.f32 %v2142, %v1859
    %v2149 = vadd.f32 %v2143, %v1860
    %v2150 = vadd.f32 %v2144, %v1861
    %v2151 = vadd.f32 %v2145, %v1862
    %v2152 = vadd.f32 %v2146, %v1863
    %vm2153 = vcmask 392192
    %v2154 = vsel %vm2153, %v2147, -inf
    %2155 = vmax.xlane.f32.xlu0 %v2154
    %v2156 = vpop.xlane.xlu0 %2155
    %v2157 = vsel %vm2153, %v2148, -inf
    %2158 = vmax.xlane.f32.xlu0 %v2157
    %v2159 = vpop.xlane.xlu0 %2158
    %v2160 = vsel %vm2153, %v2149, -inf
    %2161 = vmax.xlane.f32.xlu0 %v2160
    %v2162 = vpop.xlane.xlu0 %2161
    %v2163 = vsel %vm2153, %v2150, -inf
    %2164 = vmax.xlane.f32.xlu0 %v2163
    %v2165 = vpop.xlane.xlu0 %2164
    %v2166 = vsel %vm2153, %v2151, -inf
    %2167 = vmax.xlane.f32.xlu0 %v2166
    %v2168 = vpop.xlane.xlu0 %2167
    %v2169 = vsel %vm2153, %v2152, -inf
    %2170 = vmax.xlane.f32.xlu0 %v2169
    %v2171 = vpop.xlane.xlu0 %2170
    %v2172 = vsub.f32 %v2147, %v2156
    %v2173 = vsub.f32 %v2148, %v2159
    %v2174 = vsub.f32 %v2149, %v2162
    %v2175 = vsub.f32 %v2150, %v2165
    %v2176 = vsub.f32 %v2151, %v2168
    %v2177 = vsub.f32 %v2152, %v2171
    %v2178 = vmul.f32 %v2172, 1.442695
    %v2179 = vpow.pop %v2178
    %v2180 = vmul.f32 %v2173, 1.442695
    %v2181 = vpow.pop %v2180
    %v2182 = vmul.f32 %v2174, 1.442695
    %v2183 = vpow.pop %v2182
    %v2184 = vmul.f32 %v2175, 1.442695
    %v2185 = vpow.pop %v2184
    %v2186 = vmul.f32 %v2176, 1.442695
    %v2187 = vpow.pop %v2186
    %v2188 = vmul.f32 %v2177, 1.442695
    %v2189 = vpow.pop %v2188
    %v2190 = vsel %vm2153, %v2179, 0.0
    %2191 = vadd.xlane.f32.xlu0 %v2190
    %v2192 = vpop.xlane.xlu0 %2191
    %v2193 = vsel %vm2153, %v2181, 0.0
    %2194 = vadd.xlane.f32.xlu0 %v2193
    %v2195 = vpop.xlane.xlu0 %2194
    %v2196 = vsel %vm2153, %v2183, 0.0
    %2197 = vadd.xlane.f32.xlu0 %v2196
    %v2198 = vpop.xlane.xlu0 %2197
    %v2199 = vsel %vm2153, %v2185, 0.0
    %2200 = vadd.xlane.f32.xlu0 %v2199
    %v2201 = vpop.xlane.xlu0 %2200
    %v2202 = vsel %vm2153, %v2187, 0.0
    %2203 = vadd.xlane.f32.xlu0 %v2202
    %v2204 = vpop.xlane.xlu0 %2203
    %v2205 = vsel %vm2153, %v2189, 0.0
    %2206 = vadd.xlane.f32.xlu0 %v2205
    %v2207 = vpop.xlane.xlu0 %2206
    %v2208 = vrcp.pop %v2192
    %v2209 = vrcp.pop %v2195
    %v2210 = vrcp.pop %v2198
    %v2211 = vrcp.pop %v2201
    %v2212 = vrcp.pop %v2204
    %v2213 = vrcp.pop %v2207
    %v2214 = vmul.f32 %v2179, %v2208
    %v2215 = vmul.f32 %v2181, %v2209
    %v2216 = vmul.f32 %v2183, %v2210
    %v2217 = vmul.f32 %v2185, %v2211
    %v2218 = vmul.f32 %v2187, %v2212
    %v2219 = vmul.f32 %v2189, %v2213
    %2220 = vrot.lane.b32.xlu0 %v2047, 64
    %v2221 = vpop.permute.xlu0 %2220
    %2222 = vrot.lane.b32.xlu0 %v2050, 64
    %v2223 = vpop.permute.xlu0 %2222
    %2224 = vrot.lane.b32.xlu0 %v2053, 64
    %v2225 = vpop.permute.xlu0 %2224
    %2226 = vrot.lane.b32.xlu0 %v2056, 64
    %v2227 = vpop.permute.xlu0 %2226
    %2228 = vrot.lane.b32.xlu0 %v2059, 64
    %v2229 = vpop.permute.xlu0 %2228
    %2230 = vrot.lane.b32.xlu0 %v2062, 64
    %v2231 = vpop.permute.xlu0 %2230
    %v2239 = vsel %vm2153, %v2214, 0
    %v2242 = vsel %vm2153, %v2215, 0
    %v2245 = vsel %vm2153, %v2216, 0
    %v2248 = vsel %vm2153, %v2217, 0
    %v2251 = vsel %vm2153, %v2218, 0
    %v2254 = vsel %vm2153, %v2219, 0
    %2256 = vmatpush.msra.mxu0 0.0
    %2257 = vmatpush.msra.mxu0 0.0
    %2258 = vmatpush.msra.mxu0 0.0
    %2259 = vmatpush.msra.mxu0 0.0
    %2260 = vmatpush.msra.mxu0 0.0
    %2261 = vmatpush.msra.mxu0 0.0
    %2262 = vmatpush.msra.mxu0 0.0
    %2263 = vmatpush.msra.mxu0 0.0
    %2264 = vmatpush.msra.mxu0 0.0
    %2265 = vmatpush.msra.mxu0 0.0
    %2266 = vmatpush.msra.mxu0 %v2231
    %2267 = vmatpush.msra.mxu0 %v2229
    %2268 = vmatpush.msra.mxu0 %v2227
    %2269 = vmatpush.msra.mxu0 %v2225
    %2270 = vmatpush.msra.mxu0 %v2223
    %2271 = vmatpush.msra.mxu0 %v2221
    %2272 = vmatmul.f32.gmra.mxu0 %v2239
    %v2273 = vpop.f32.mrf.mxu0
    %v2274 = vadd.f32 0.0, %v2273
    %2275 = vmatmul.f32.gmra.mxu0 %v2242
    %v2276 = vpop.f32.mrf.mxu0
    %v2277 = vadd.f32 0.0, %v2276
    %2278 = vmatmul.f32.gmra.mxu0 %v2245
    %v2279 = vpop.f32.mrf.mxu0
    %v2280 = vadd.f32 0.0, %v2279
    %2281 = vmatmul.f32.gmra.mxu0 %v2248
    %v2282 = vpop.f32.mrf.mxu0
    %v2283 = vadd.f32 0.0, %v2282
    %2284 = vmatmul.f32.gmra.mxu0 %v2251
    %v2285 = vpop.f32.mrf.mxu0
    %v2286 = vadd.f32 0.0, %v2285
    %2287 = vmatmul.f32.gmra.mxu0 %v2254
    %v2288 = vpop.f32.mrf.mxu0
    %v2289 = vadd.f32 0.0, %v2288
    %2290 = vdwg.mxu0
    %2291 = vrot.lane.b32.xlu0 %v2047, 120
    %v2292 = vpop.permute.xlu0 %2291
    %2293 = vrot.lane.b32.xlu0 %v2050, 120
    %v2294 = vpop.permute.xlu0 %2293
    %2295 = vrot.lane.b32.xlu0 %v2053, 120
    %v2296 = vpop.permute.xlu0 %2295
    %2297 = vrot.lane.b32.xlu0 %v2056, 120
    %v2298 = vpop.permute.xlu0 %2297
    %2299 = vrot.lane.b32.xlu0 %v2059, 120
    %v2300 = vpop.permute.xlu0 %2299
    %2301 = vrot.lane.b32.xlu0 %v2062, 120
    %v2302 = vpop.permute.xlu0 %2301
    %2303 = vrot.lane.b32.xlu0 %v2047, 88
    %v2304 = vpop.permute.xlu0 %2303
    %2305 = vrot.lane.b32.xlu0 %v2050, 88
    %v2306 = vpop.permute.xlu0 %2305
    %2307 = vrot.lane.b32.xlu0 %v2053, 88
    %v2308 = vpop.permute.xlu0 %2307
    %2309 = vrot.lane.b32.xlu0 %v2056, 88
    %v2310 = vpop.permute.xlu0 %2309
    %2311 = vrot.lane.b32.xlu0 %v2059, 88
    %v2312 = vpop.permute.xlu0 %2311
    %2313 = vrot.lane.b32.xlu0 %v2062, 88
    %v2314 = vpop.permute.xlu0 %2313
    %v2315 = vsel %vm383, %v2292, 0
    %v2317 = vsel %vm383, %v2294, 0
    %v2319 = vsel %vm383, %v2296, 0
    %v2321 = vsel %vm383, %v2298, 0
    %v2323 = vsel %vm383, %v2300, 0
    %v2325 = vsel %vm383, %v2302, 0
    %v2327 = vsel %vm383, %v2304, 0
    %v2329 = vsel %vm383, %v2306, 0
    %v2331 = vsel %vm383, %v2308, 0
    %v2333 = vsel %vm383, %v2310, 0
    %v2335 = vsel %vm383, %v2312, 0
    %v2337 = vsel %vm383, %v2314, 0
    %2339 = vmatpush.xpose.msra.mxu0 0.0
    %2340 = vmatpush.xpose.msra.mxu0 0.0
    %2341 = vmatpush.xpose.msra.mxu0 0.0
    %2342 = vmatpush.xpose.msra.mxu0 0.0
    %2343 = vmatpush.xpose.msra.mxu0 0.0
    %2344 = vmatpush.xpose.msra.mxu0 0.0
    %2345 = vmatpush.xpose.msra.mxu0 0.0
    %2346 = vmatpush.xpose.msra.mxu0 0.0
    %2347 = vmatpush.xpose.msra.mxu0 0.0
    %2348 = vmatpush.xpose.msra.mxu0 0.0
    %2349 = vmatpush.xpose.msra.mxu0 %v2337
    %2350 = vmatpush.xpose.msra.mxu0 %v2335
    %2351 = vmatpush.xpose.msra.mxu0 %v2333
    %2352 = vmatpush.xpose.msra.mxu0 %v2331
    %2353 = vmatpush.xpose.msra.mxu0 %v2329
    %2354 = vmatpush.xpose.msra.mxu0 %v2327
    %2355 = vmatmul.f32.gmra.mxu0 %v2315
    %v2356 = vpop.f32.mrf.mxu0
    %v2357 = vadd.f32 0.0, %v2356
    %2358 = vmatmul.f32.gmra.mxu0 %v2317
    %v2359 = vpop.f32.mrf.mxu0
    %v2360 = vadd.f32 0.0, %v2359
    %2361 = vmatmul.f32.gmra.mxu0 %v2319
    %v2362 = vpop.f32.mrf.mxu0
    %v2363 = vadd.f32 0.0, %v2362
    %2364 = vmatmul.f32.gmra.mxu0 %v2321
    %v2365 = vpop.f32.mrf.mxu0
    %v2366 = vadd.f32 0.0, %v2365
    %2367 = vmatmul.f32.gmra.mxu0 %v2323
    %v2368 = vpop.f32.mrf.mxu0
    %v2369 = vadd.f32 0.0, %v2368
    %2370 = vmatmul.f32.gmra.mxu0 %v2325
    %v2371 = vpop.f32.mrf.mxu0
    %v2372 = vadd.f32 0.0, %v2371
    %2373 = vdwg.mxu0
    %v2374 = vmul.f32 %v2357, 0.35355338
    %v2375 = vmul.f32 %v2360, 0.35355338
    %v2376 = vmul.f32 %v2363, 0.35355338
    %v2377 = vmul.f32 %v2366, 0.35355338
    %v2378 = vmul.f32 %v2369, 0.35355338
    %v2379 = vmul.f32 %v2372, 0.35355338
    %v2380 = vadd.f32 %v2374, %v1858
    %v2381 = vadd.f32 %v2375, %v1859
    %v2382 = vadd.f32 %v2376, %v1860
    %v2383 = vadd.f32 %v2377, %v1861
    %v2384 = vadd.f32 %v2378, %v1862
    %v2385 = vadd.f32 %v2379, %v1863
    %v2386 = vsel %vm2153, %v2380, -inf
    %2387 = vmax.xlane.f32.xlu0 %v2386
    %v2388 = vpop.xlane.xlu0 %2387
    %v2389 = vsel %vm2153, %v2381, -inf
    %2390 = vmax.xlane.f32.xlu0 %v2389
    %v2391 = vpop.xlane.xlu0 %2390
    %v2392 = vsel %vm2153, %v2382, -inf
    %2393 = vmax.xlane.f32.xlu0 %v2392
    %v2394 = vpop.xlane.xlu0 %2393
    %v2395 = vsel %vm2153, %v2383, -inf
    %2396 = vmax.xlane.f32.xlu0 %v2395
    %v2397 = vpop.xlane.xlu0 %2396
    %v2398 = vsel %vm2153, %v2384, -inf
    %2399 = vmax.xlane.f32.xlu0 %v2398
    %v2400 = vpop.xlane.xlu0 %2399
    %v2401 = vsel %vm2153, %v2385, -inf
    %2402 = vmax.xlane.f32.xlu0 %v2401
    %v2403 = vpop.xlane.xlu0 %2402
    %v2404 = vsub.f32 %v2380, %v2388
    %v2405 = vsub.f32 %v2381, %v2391
    %v2406 = vsub.f32 %v2382, %v2394
    %v2407 = vsub.f32 %v2383, %v2397
    %v2408 = vsub.f32 %v2384, %v2400
    %v2409 = vsub.f32 %v2385, %v2403
    %v2410 = vmul.f32 %v2404, 1.442695
    %v2411 = vpow.pop %v2410
    %v2412 = vmul.f32 %v2405, 1.442695
    %v2413 = vpow.pop %v2412
    %v2414 = vmul.f32 %v2406, 1.442695
    %v2415 = vpow.pop %v2414
    %v2416 = vmul.f32 %v2407, 1.442695
    %v2417 = vpow.pop %v2416
    %v2418 = vmul.f32 %v2408, 1.442695
    %v2419 = vpow.pop %v2418
    %v2420 = vmul.f32 %v2409, 1.442695
    %v2421 = vpow.pop %v2420
    %v2422 = vsel %vm2153, %v2411, 0.0
    %2423 = vadd.xlane.f32.xlu0 %v2422
    %v2424 = vpop.xlane.xlu0 %2423
    %v2425 = vsel %vm2153, %v2413, 0.0
    %2426 = vadd.xlane.f32.xlu0 %v2425
    %v2427 = vpop.xlane.xlu0 %2426
    %v2428 = vsel %vm2153, %v2415, 0.0
    %2429 = vadd.xlane.f32.xlu0 %v2428
    %v2430 = vpop.xlane.xlu0 %2429
    %v2431 = vsel %vm2153, %v2417, 0.0
    %2432 = vadd.xlane.f32.xlu0 %v2431
    %v2433 = vpop.xlane.xlu0 %2432
    %v2434 = vsel %vm2153, %v2419, 0.0
    %2435 = vadd.xlane.f32.xlu0 %v2434
    %v2436 = vpop.xlane.xlu0 %2435
    %v2437 = vsel %vm2153, %v2421, 0.0
    %2438 = vadd.xlane.f32.xlu0 %v2437
    %v2439 = vpop.xlane.xlu0 %2438
    %v2440 = vrcp.pop %v2424
    %v2441 = vrcp.pop %v2427
    %v2442 = vrcp.pop %v2430
    %v2443 = vrcp.pop %v2433
    %v2444 = vrcp.pop %v2436
    %v2445 = vrcp.pop %v2439
    %v2446 = vmul.f32 %v2411, %v2440
    %v2447 = vmul.f32 %v2413, %v2441
    %v2448 = vmul.f32 %v2415, %v2442
    %v2449 = vmul.f32 %v2417, %v2443
    %v2450 = vmul.f32 %v2419, %v2444
    %v2451 = vmul.f32 %v2421, %v2445
    %2452 = vrot.lane.b32.xlu0 %v2047, 56
    %v2453 = vpop.permute.xlu0 %2452
    %2454 = vrot.lane.b32.xlu0 %v2050, 56
    %v2455 = vpop.permute.xlu0 %2454
    %2456 = vrot.lane.b32.xlu0 %v2053, 56
    %v2457 = vpop.permute.xlu0 %2456
    %2458 = vrot.lane.b32.xlu0 %v2056, 56
    %v2459 = vpop.permute.xlu0 %2458
    %2460 = vrot.lane.b32.xlu0 %v2059, 56
    %v2461 = vpop.permute.xlu0 %2460
    %2462 = vrot.lane.b32.xlu0 %v2062, 56
    %v2463 = vpop.permute.xlu0 %2462
    %v2471 = vsel %vm2153, %v2446, 0
    %v2474 = vsel %vm2153, %v2447, 0
    %v2477 = vsel %vm2153, %v2448, 0
    %v2480 = vsel %vm2153, %v2449, 0
    %v2483 = vsel %vm2153, %v2450, 0
    %v2486 = vsel %vm2153, %v2451, 0
    %2488 = vmatpush.msra.mxu0 0.0
    %2489 = vmatpush.msra.mxu0 0.0
    %2490 = vmatpush.msra.mxu0 0.0
    %2491 = vmatpush.msra.mxu0 0.0
    %2492 = vmatpush.msra.mxu0 0.0
    %2493 = vmatpush.msra.mxu0 0.0
    %2494 = vmatpush.msra.mxu0 0.0
    %2495 = vmatpush.msra.mxu0 0.0
    %2496 = vmatpush.msra.mxu0 0.0
    %2497 = vmatpush.msra.mxu0 0.0
    %2498 = vmatpush.msra.mxu0 %v2463
    %2499 = vmatpush.msra.mxu0 %v2461
    %2500 = vmatpush.msra.mxu0 %v2459
    %2501 = vmatpush.msra.mxu0 %v2457
    %2502 = vmatpush.msra.mxu0 %v2455
    %2503 = vmatpush.msra.mxu0 %v2453
    %2504 = vmatmul.f32.gmra.mxu0 %v2471
    %v2505 = vpop.f32.mrf.mxu0
    %v2506 = vadd.f32 0.0, %v2505
    %2507 = vmatmul.f32.gmra.mxu0 %v2474
    %v2508 = vpop.f32.mrf.mxu0
    %v2509 = vadd.f32 0.0, %v2508
    %2510 = vmatmul.f32.gmra.mxu0 %v2477
    %v2511 = vpop.f32.mrf.mxu0
    %v2512 = vadd.f32 0.0, %v2511
    %2513 = vmatmul.f32.gmra.mxu0 %v2480
    %v2514 = vpop.f32.mrf.mxu0
    %v2515 = vadd.f32 0.0, %v2514
    %2516 = vmatmul.f32.gmra.mxu0 %v2483
    %v2517 = vpop.f32.mrf.mxu0
    %v2518 = vadd.f32 0.0, %v2517
    %2519 = vmatmul.f32.gmra.mxu0 %v2486
    %v2520 = vpop.f32.mrf.mxu0
    %v2521 = vadd.f32 0.0, %v2520
    %2522 = vdwg.mxu0
    %2523 = vrot.lane.b32.xlu0 %v2047, 112
    %v2524 = vpop.permute.xlu0 %2523
    %2525 = vrot.lane.b32.xlu0 %v2050, 112
    %v2526 = vpop.permute.xlu0 %2525
    %2527 = vrot.lane.b32.xlu0 %v2053, 112
    %v2528 = vpop.permute.xlu0 %2527
    %2529 = vrot.lane.b32.xlu0 %v2056, 112
    %v2530 = vpop.permute.xlu0 %2529
    %2531 = vrot.lane.b32.xlu0 %v2059, 112
    %v2532 = vpop.permute.xlu0 %2531
    %2533 = vrot.lane.b32.xlu0 %v2062, 112
    %v2534 = vpop.permute.xlu0 %2533
    %2535 = vrot.lane.b32.xlu0 %v2047, 80
    %v2536 = vpop.permute.xlu0 %2535
    %2537 = vrot.lane.b32.xlu0 %v2050, 80
    %v2538 = vpop.permute.xlu0 %2537
    %2539 = vrot.lane.b32.xlu0 %v2053, 80
    %v2540 = vpop.permute.xlu0 %2539
    %2541 = vrot.lane.b32.xlu0 %v2056, 80
    %v2542 = vpop.permute.xlu0 %2541
    %2543 = vrot.lane.b32.xlu0 %v2059, 80
    %v2544 = vpop.permute.xlu0 %2543
    %2545 = vrot.lane.b32.xlu0 %v2062, 80
    %v2546 = vpop.permute.xlu0 %2545
    %v2547 = vsel %vm383, %v2524, 0
    %v2549 = vsel %vm383, %v2526, 0
    %v2551 = vsel %vm383, %v2528, 0
    %v2553 = vsel %vm383, %v2530, 0
    %v2555 = vsel %vm383, %v2532, 0
    %v2557 = vsel %vm383, %v2534, 0
    %v2559 = vsel %vm383, %v2536, 0
    %v2561 = vsel %vm383, %v2538, 0
    %v2563 = vsel %vm383, %v2540, 0
    %v2565 = vsel %vm383, %v2542, 0
    %v2567 = vsel %vm383, %v2544, 0
    %v2569 = vsel %vm383, %v2546, 0
    %2571 = vmatpush.xpose.msra.mxu0 0.0
    %2572 = vmatpush.xpose.msra.mxu0 0.0
    %2573 = vmatpush.xpose.msra.mxu0 0.0
    %2574 = vmatpush.xpose.msra.mxu0 0.0
    %2575 = vmatpush.xpose.msra.mxu0 0.0
    %2576 = vmatpush.xpose.msra.mxu0 0.0
    %2577 = vmatpush.xpose.msra.mxu0 0.0
    %2578 = vmatpush.xpose.msra.mxu0 0.0
    %2579 = vmatpush.xpose.msra.mxu0 0.0
    %2580 = vmatpush.xpose.msra.mxu0 0.0
    %2581 = vmatpush.xpose.msra.mxu0 %v2569
    %2582 = vmatpush.xpose.msra.mxu0 %v2567
    %2583 = vmatpush.xpose.msra.mxu0 %v2565
    %2584 = vmatpush.xpose.msra.mxu0 %v2563
    %2585 = vmatpush.xpose.msra.mxu0 %v2561
    %2586 = vmatpush.xpose.msra.mxu0 %v2559
    %2587 = vmatmul.f32.gmra.mxu0 %v2547
    %v2588 = vpop.f32.mrf.mxu0
    %v2589 = vadd.f32 0.0, %v2588
    %2590 = vmatmul.f32.gmra.mxu0 %v2549
    %v2591 = vpop.f32.mrf.mxu0
    %v2592 = vadd.f32 0.0, %v2591
    %2593 = vmatmul.f32.gmra.mxu0 %v2551
    %v2594 = vpop.f32.mrf.mxu0
    %v2595 = vadd.f32 0.0, %v2594
    %2596 = vmatmul.f32.gmra.mxu0 %v2553
    %v2597 = vpop.f32.mrf.mxu0
    %v2598 = vadd.f32 0.0, %v2597
    %2599 = vmatmul.f32.gmra.mxu0 %v2555
    %v2600 = vpop.f32.mrf.mxu0
    %v2601 = vadd.f32 0.0, %v2600
    %2602 = vmatmul.f32.gmra.mxu0 %v2557
    %v2603 = vpop.f32.mrf.mxu0
    %v2604 = vadd.f32 0.0, %v2603
    %2605 = vdwg.mxu0
    %v2606 = vmul.f32 %v2589, 0.35355338
    %v2607 = vmul.f32 %v2592, 0.35355338
    %v2608 = vmul.f32 %v2595, 0.35355338
    %v2609 = vmul.f32 %v2598, 0.35355338
    %v2610 = vmul.f32 %v2601, 0.35355338
    %v2611 = vmul.f32 %v2604, 0.35355338
    %v2612 = vadd.f32 %v2606, %v1858
    %v2613 = vadd.f32 %v2607, %v1859
    %v2614 = vadd.f32 %v2608, %v1860
    %v2615 = vadd.f32 %v2609, %v1861
    %v2616 = vadd.f32 %v2610, %v1862
    %v2617 = vadd.f32 %v2611, %v1863
    %v2618 = vsel %vm2153, %v2612, -inf
    %2619 = vmax.xlane.f32.xlu0 %v2618
    %v2620 = vpop.xlane.xlu0 %2619
    %v2621 = vsel %vm2153, %v2613, -inf
    %2622 = vmax.xlane.f32.xlu0 %v2621
    %v2623 = vpop.xlane.xlu0 %2622
    %v2624 = vsel %vm2153, %v2614, -inf
    %2625 = vmax.xlane.f32.xlu0 %v2624
    %v2626 = vpop.xlane.xlu0 %2625
    %v2627 = vsel %vm2153, %v2615, -inf
    %2628 = vmax.xlane.f32.xlu0 %v2627
    %v2629 = vpop.xlane.xlu0 %2628
    %v2630 = vsel %vm2153, %v2616, -inf
    %2631 = vmax.xlane.f32.xlu0 %v2630
    %v2632 = vpop.xlane.xlu0 %2631
    %v2633 = vsel %vm2153, %v2617, -inf
    %2634 = vmax.xlane.f32.xlu0 %v2633
    %v2635 = vpop.xlane.xlu0 %2634
    %v2636 = vsub.f32 %v2612, %v2620
    %v2637 = vsub.f32 %v2613, %v2623
    %v2638 = vsub.f32 %v2614, %v2626
    %v2639 = vsub.f32 %v2615, %v2629
    %v2640 = vsub.f32 %v2616, %v2632
    %v2641 = vsub.f32 %v2617, %v2635
    %v2642 = vmul.f32 %v2636, 1.442695
    %v2643 = vpow.pop %v2642
    %v2644 = vmul.f32 %v2637, 1.442695
    %v2645 = vpow.pop %v2644
    %v2646 = vmul.f32 %v2638, 1.442695
    %v2647 = vpow.pop %v2646
    %v2648 = vmul.f32 %v2639, 1.442695
    %v2649 = vpow.pop %v2648
    %v2650 = vmul.f32 %v2640, 1.442695
    %v2651 = vpow.pop %v2650
    %v2652 = vmul.f32 %v2641, 1.442695
    %v2653 = vpow.pop %v2652
    %v2654 = vsel %vm2153, %v2643, 0.0
    %2655 = vadd.xlane.f32.xlu0 %v2654
    %v2656 = vpop.xlane.xlu0 %2655
    %v2657 = vsel %vm2153, %v2645, 0.0
    %2658 = vadd.xlane.f32.xlu0 %v2657
    %v2659 = vpop.xlane.xlu0 %2658
    %v2660 = vsel %vm2153, %v2647, 0.0
    %2661 = vadd.xlane.f32.xlu0 %v2660
    %v2662 = vpop.xlane.xlu0 %2661
    %v2663 = vsel %vm2153, %v2649, 0.0
    %2664 = vadd.xlane.f32.xlu0 %v2663
    %v2665 = vpop.xlane.xlu0 %2664
    %v2666 = vsel %vm2153, %v2651, 0.0
    %2667 = vadd.xlane.f32.xlu0 %v2666
    %v2668 = vpop.xlane.xlu0 %2667
    %v2669 = vsel %vm2153, %v2653, 0.0
    %2670 = vadd.xlane.f32.xlu0 %v2669
    %v2671 = vpop.xlane.xlu0 %2670
    %v2672 = vrcp.pop %v2656
    %v2673 = vrcp.pop %v2659
    %v2674 = vrcp.pop %v2662
    %v2675 = vrcp.pop %v2665
    %v2676 = vrcp.pop %v2668
    %v2677 = vrcp.pop %v2671
    %v2678 = vmul.f32 %v2643, %v2672
    %v2679 = vmul.f32 %v2645, %v2673
    %v2680 = vmul.f32 %v2647, %v2674
    %v2681 = vmul.f32 %v2649, %v2675
    %v2682 = vmul.f32 %v2651, %v2676
    %v2683 = vmul.f32 %v2653, %v2677
    %2684 = vrot.lane.b32.xlu0 %v2047, 48
    %v2685 = vpop.permute.xlu0 %2684
    %2686 = vrot.lane.b32.xlu0 %v2050, 48
    %v2687 = vpop.permute.xlu0 %2686
    %2688 = vrot.lane.b32.xlu0 %v2053, 48
    %v2689 = vpop.permute.xlu0 %2688
    %2690 = vrot.lane.b32.xlu0 %v2056, 48
    %v2691 = vpop.permute.xlu0 %2690
    %2692 = vrot.lane.b32.xlu0 %v2059, 48
    %v2693 = vpop.permute.xlu0 %2692
    %2694 = vrot.lane.b32.xlu0 %v2062, 48
    %v2695 = vpop.permute.xlu0 %2694
    %v2703 = vsel %vm2153, %v2678, 0
    %v2706 = vsel %vm2153, %v2679, 0
    %v2709 = vsel %vm2153, %v2680, 0
    %v2712 = vsel %vm2153, %v2681, 0
    %v2715 = vsel %vm2153, %v2682, 0
    %v2718 = vsel %vm2153, %v2683, 0
    %2720 = vmatpush.msra.mxu0 0.0
    %2721 = vmatpush.msra.mxu0 0.0
    %2722 = vmatpush.msra.mxu0 0.0
    %2723 = vmatpush.msra.mxu0 0.0
    %2724 = vmatpush.msra.mxu0 0.0
    %2725 = vmatpush.msra.mxu0 0.0
    %2726 = vmatpush.msra.mxu0 0.0
    %2727 = vmatpush.msra.mxu0 0.0
    %2728 = vmatpush.msra.mxu0 0.0
    %2729 = vmatpush.msra.mxu0 0.0
    %2730 = vmatpush.msra.mxu0 %v2695
    %2731 = vmatpush.msra.mxu0 %v2693
    %2732 = vmatpush.msra.mxu0 %v2691
    %2733 = vmatpush.msra.mxu0 %v2689
    %2734 = vmatpush.msra.mxu0 %v2687
    %2735 = vmatpush.msra.mxu0 %v2685
    %2736 = vmatmul.f32.gmra.mxu0 %v2703
    %v2737 = vpop.f32.mrf.mxu0
    %v2738 = vadd.f32 0.0, %v2737
    %2739 = vmatmul.f32.gmra.mxu0 %v2706
    %v2740 = vpop.f32.mrf.mxu0
    %v2741 = vadd.f32 0.0, %v2740
    %2742 = vmatmul.f32.gmra.mxu0 %v2709
    %v2743 = vpop.f32.mrf.mxu0
    %v2744 = vadd.f32 0.0, %v2743
    %2745 = vmatmul.f32.gmra.mxu0 %v2712
    %v2746 = vpop.f32.mrf.mxu0
    %v2747 = vadd.f32 0.0, %v2746
    %2748 = vmatmul.f32.gmra.mxu0 %v2715
    %v2749 = vpop.f32.mrf.mxu0
    %v2750 = vadd.f32 0.0, %v2749
    %2751 = vmatmul.f32.gmra.mxu0 %v2718
    %v2752 = vpop.f32.mrf.mxu0
    %v2753 = vadd.f32 0.0, %v2752
    %2754 = vdwg.mxu0
    %2755 = vrot.lane.b32.xlu0 %v2047, 104
    %v2756 = vpop.permute.xlu0 %2755
    %2757 = vrot.lane.b32.xlu0 %v2050, 104
    %v2758 = vpop.permute.xlu0 %2757
    %2759 = vrot.lane.b32.xlu0 %v2053, 104
    %v2760 = vpop.permute.xlu0 %2759
    %2761 = vrot.lane.b32.xlu0 %v2056, 104
    %v2762 = vpop.permute.xlu0 %2761
    %2763 = vrot.lane.b32.xlu0 %v2059, 104
    %v2764 = vpop.permute.xlu0 %2763
    %2765 = vrot.lane.b32.xlu0 %v2062, 104
    %v2766 = vpop.permute.xlu0 %2765
    %2767 = vrot.lane.b32.xlu0 %v2047, 72
    %v2768 = vpop.permute.xlu0 %2767
    %2769 = vrot.lane.b32.xlu0 %v2050, 72
    %v2770 = vpop.permute.xlu0 %2769
    %2771 = vrot.lane.b32.xlu0 %v2053, 72
    %v2772 = vpop.permute.xlu0 %2771
    %2773 = vrot.lane.b32.xlu0 %v2056, 72
    %v2774 = vpop.permute.xlu0 %2773
    %2775 = vrot.lane.b32.xlu0 %v2059, 72
    %v2776 = vpop.permute.xlu0 %2775
    %2777 = vrot.lane.b32.xlu0 %v2062, 72
    %v2778 = vpop.permute.xlu0 %2777
    %v2779 = vsel %vm383, %v2756, 0
    %v2781 = vsel %vm383, %v2758, 0
    %v2783 = vsel %vm383, %v2760, 0
    %v2785 = vsel %vm383, %v2762, 0
    %v2787 = vsel %vm383, %v2764, 0
    %v2789 = vsel %vm383, %v2766, 0
    %v2791 = vsel %vm383, %v2768, 0
    %v2793 = vsel %vm383, %v2770, 0
    %v2795 = vsel %vm383, %v2772, 0
    %v2797 = vsel %vm383, %v2774, 0
    %v2799 = vsel %vm383, %v2776, 0
    %v2801 = vsel %vm383, %v2778, 0
    %2803 = vmatpush.xpose.msra.mxu0 0.0
    %2804 = vmatpush.xpose.msra.mxu0 0.0
    %2805 = vmatpush.xpose.msra.mxu0 0.0
    %2806 = vmatpush.xpose.msra.mxu0 0.0
    %2807 = vmatpush.xpose.msra.mxu0 0.0
    %2808 = vmatpush.xpose.msra.mxu0 0.0
    %2809 = vmatpush.xpose.msra.mxu0 0.0
    %2810 = vmatpush.xpose.msra.mxu0 0.0
    %2811 = vmatpush.xpose.msra.mxu0 0.0
    %2812 = vmatpush.xpose.msra.mxu0 0.0
    %2813 = vmatpush.xpose.msra.mxu0 %v2801
    %2814 = vmatpush.xpose.msra.mxu0 %v2799
    %2815 = vmatpush.xpose.msra.mxu0 %v2797
    %2816 = vmatpush.xpose.msra.mxu0 %v2795
    %2817 = vmatpush.xpose.msra.mxu0 %v2793
    %2818 = vmatpush.xpose.msra.mxu0 %v2791
    %2819 = vmatmul.f32.gmra.mxu0 %v2779
    %v2820 = vpop.f32.mrf.mxu0
    %v2821 = vadd.f32 0.0, %v2820
    %2822 = vmatmul.f32.gmra.mxu0 %v2781
    %v2823 = vpop.f32.mrf.mxu0
    %v2824 = vadd.f32 0.0, %v2823
    %2825 = vmatmul.f32.gmra.mxu0 %v2783
    %v2826 = vpop.f32.mrf.mxu0
    %v2827 = vadd.f32 0.0, %v2826
    %2828 = vmatmul.f32.gmra.mxu0 %v2785
    %v2829 = vpop.f32.mrf.mxu0
    %v2830 = vadd.f32 0.0, %v2829
    %2831 = vmatmul.f32.gmra.mxu0 %v2787
    %v2832 = vpop.f32.mrf.mxu0
    %v2833 = vadd.f32 0.0, %v2832
    %2834 = vmatmul.f32.gmra.mxu0 %v2789
    %v2835 = vpop.f32.mrf.mxu0
    %v2836 = vadd.f32 0.0, %v2835
    %2837 = vdwg.mxu0
    %v2838 = vmul.f32 %v2821, 0.35355338
    %v2839 = vmul.f32 %v2824, 0.35355338
    %v2840 = vmul.f32 %v2827, 0.35355338
    %v2841 = vmul.f32 %v2830, 0.35355338
    %v2842 = vmul.f32 %v2833, 0.35355338
    %v2843 = vmul.f32 %v2836, 0.35355338
    %v2844 = vadd.f32 %v2838, %v1858
    %v2845 = vadd.f32 %v2839, %v1859
    %v2846 = vadd.f32 %v2840, %v1860
    %v2847 = vadd.f32 %v2841, %v1861
    %v2848 = vadd.f32 %v2842, %v1862
    %v2849 = vadd.f32 %v2843, %v1863
    %v2850 = vsel %vm2153, %v2844, -inf
    %2851 = vmax.xlane.f32.xlu0 %v2850
    %v2852 = vpop.xlane.xlu0 %2851
    %v2853 = vsel %vm2153, %v2845, -inf
    %2854 = vmax.xlane.f32.xlu0 %v2853
    %v2855 = vpop.xlane.xlu0 %2854
    %v2856 = vsel %vm2153, %v2846, -inf
    %2857 = vmax.xlane.f32.xlu0 %v2856
    %v2858 = vpop.xlane.xlu0 %2857
    %v2859 = vsel %vm2153, %v2847, -inf
    %2860 = vmax.xlane.f32.xlu0 %v2859
    %v2861 = vpop.xlane.xlu0 %2860
    %v2862 = vsel %vm2153, %v2848, -inf
    %2863 = vmax.xlane.f32.xlu0 %v2862
    %v2864 = vpop.xlane.xlu0 %2863
    %v2865 = vsel %vm2153, %v2849, -inf
    %2866 = vmax.xlane.f32.xlu0 %v2865
    %v2867 = vpop.xlane.xlu0 %2866
    %v2868 = vsub.f32 %v2844, %v2852
    %v2869 = vsub.f32 %v2845, %v2855
    %v2870 = vsub.f32 %v2846, %v2858
    %v2871 = vsub.f32 %v2847, %v2861
    %v2872 = vsub.f32 %v2848, %v2864
    %v2873 = vsub.f32 %v2849, %v2867
    %v2874 = vmul.f32 %v2868, 1.442695
    %v2875 = vpow.pop %v2874
    %v2876 = vmul.f32 %v2869, 1.442695
    %v2877 = vpow.pop %v2876
    %v2878 = vmul.f32 %v2870, 1.442695
    %v2879 = vpow.pop %v2878
    %v2880 = vmul.f32 %v2871, 1.442695
    %v2881 = vpow.pop %v2880
    %v2882 = vmul.f32 %v2872, 1.442695
    %v2883 = vpow.pop %v2882
    %v2884 = vmul.f32 %v2873, 1.442695
    %v2885 = vpow.pop %v2884
    %v2886 = vsel %vm2153, %v2875, 0.0
    %2887 = vadd.xlane.f32.xlu0 %v2886
    %v2888 = vpop.xlane.xlu0 %2887
    %v2889 = vsel %vm2153, %v2877, 0.0
    %2890 = vadd.xlane.f32.xlu0 %v2889
    %v2891 = vpop.xlane.xlu0 %2890
    %v2892 = vsel %vm2153, %v2879, 0.0
    %2893 = vadd.xlane.f32.xlu0 %v2892
    %v2894 = vpop.xlane.xlu0 %2893
    %v2895 = vsel %vm2153, %v2881, 0.0
    %2896 = vadd.xlane.f32.xlu0 %v2895
    %v2897 = vpop.xlane.xlu0 %2896
    %v2898 = vsel %vm2153, %v2883, 0.0
    %2899 = vadd.xlane.f32.xlu0 %v2898
    %v2900 = vpop.xlane.xlu0 %2899
    %v2901 = vsel %vm2153, %v2885, 0.0
    %2902 = vadd.xlane.f32.xlu0 %v2901
    %v2903 = vpop.xlane.xlu0 %2902
    %v2904 = vrcp.pop %v2888
    %v2905 = vrcp.pop %v2891
    %v2906 = vrcp.pop %v2894
    %v2907 = vrcp.pop %v2897
    %v2908 = vrcp.pop %v2900
    %v2909 = vrcp.pop %v2903
    %v2910 = vmul.f32 %v2875, %v2904
    %v2911 = vmul.f32 %v2877, %v2905
    %v2912 = vmul.f32 %v2879, %v2906
    %v2913 = vmul.f32 %v2881, %v2907
    %v2914 = vmul.f32 %v2883, %v2908
    %v2915 = vmul.f32 %v2885, %v2909
    %2916 = vrot.lane.b32.xlu0 %v2047, 40
    %v2917 = vpop.permute.xlu0 %2916
    %2918 = vrot.lane.b32.xlu0 %v2050, 40
    %v2919 = vpop.permute.xlu0 %2918
    %2920 = vrot.lane.b32.xlu0 %v2053, 40
    %v2921 = vpop.permute.xlu0 %2920
    %2922 = vrot.lane.b32.xlu0 %v2056, 40
    %v2923 = vpop.permute.xlu0 %2922
    %2924 = vrot.lane.b32.xlu0 %v2059, 40
    %v2925 = vpop.permute.xlu0 %2924
    %2926 = vrot.lane.b32.xlu0 %v2062, 40
    %v2927 = vpop.permute.xlu0 %2926
    %v2935 = vsel %vm2153, %v2910, 0
    %v2938 = vsel %vm2153, %v2911, 0
    %v2941 = vsel %vm2153, %v2912, 0
    %v2944 = vsel %vm2153, %v2913, 0
    %v2947 = vsel %vm2153, %v2914, 0
    %v2950 = vsel %vm2153, %v2915, 0
    %2952 = vmatpush.msra.mxu0 0.0
    %2953 = vmatpush.msra.mxu0 0.0
    %2954 = vmatpush.msra.mxu0 0.0
    %2955 = vmatpush.msra.mxu0 0.0
    %2956 = vmatpush.msra.mxu0 0.0
    %2957 = vmatpush.msra.mxu0 0.0
    %2958 = vmatpush.msra.mxu0 0.0
    %2959 = vmatpush.msra.mxu0 0.0
    %2960 = vmatpush.msra.mxu0 0.0
    %2961 = vmatpush.msra.mxu0 0.0
    %2962 = vmatpush.msra.mxu0 %v2927
    %2963 = vmatpush.msra.mxu0 %v2925
    %2964 = vmatpush.msra.mxu0 %v2923
    %2965 = vmatpush.msra.mxu0 %v2921
    %2966 = vmatpush.msra.mxu0 %v2919
    %2967 = vmatpush.msra.mxu0 %v2917
    %2968 = vmatmul.f32.gmra.mxu0 %v2935
    %v2969 = vpop.f32.mrf.mxu0
    %v2970 = vadd.f32 0.0, %v2969
    %2971 = vmatmul.f32.gmra.mxu0 %v2938
    %v2972 = vpop.f32.mrf.mxu0
    %v2973 = vadd.f32 0.0, %v2972
    %2974 = vmatmul.f32.gmra.mxu0 %v2941
    %v2975 = vpop.f32.mrf.mxu0
    %v2976 = vadd.f32 0.0, %v2975
    %2977 = vmatmul.f32.gmra.mxu0 %v2944
    %v2978 = vpop.f32.mrf.mxu0
    %v2979 = vadd.f32 0.0, %v2978
    %2980 = vmatmul.f32.gmra.mxu0 %v2947
    %v2981 = vpop.f32.mrf.mxu0
    %v2982 = vadd.f32 0.0, %v2981
    %2983 = vmatmul.f32.gmra.mxu0 %v2950
    %v2984 = vpop.f32.mrf.mxu0
    %v2985 = vadd.f32 0.0, %v2984
    %2986 = vdwg.mxu0
    %2993 = vrot.lane.b32.xlu0 %v2506, 8
    %v2994 = vpop.permute.xlu0 %2993
    %2995 = vrot.lane.b32.xlu0 %v2509, 8
    %v2996 = vpop.permute.xlu0 %2995
    %2997 = vrot.lane.b32.xlu0 %v2512, 8
    %v2998 = vpop.permute.xlu0 %2997
    %2999 = vrot.lane.b32.xlu0 %v2515, 8
    %v3000 = vpop.permute.xlu0 %2999
    %3001 = vrot.lane.b32.xlu0 %v2518, 8
    %v3002 = vpop.permute.xlu0 %3001
    %3003 = vrot.lane.b32.xlu0 %v2521, 8
    %v3004 = vpop.permute.xlu0 %3003
    %3017 = vrot.lane.b32.xlu0 %v2738, 16
    %v3018 = vpop.permute.xlu0 %3017
    %3019 = vrot.lane.b32.xlu0 %v2741, 16
    %v3020 = vpop.permute.xlu0 %3019
    %3021 = vrot.lane.b32.xlu0 %v2744, 16
    %v3022 = vpop.permute.xlu0 %3021
    %3023 = vrot.lane.b32.xlu0 %v2747, 16
    %v3024 = vpop.permute.xlu0 %3023
    %3025 = vrot.lane.b32.xlu0 %v2750, 16
    %v3026 = vpop.permute.xlu0 %3025
    %3027 = vrot.lane.b32.xlu0 %v2753, 16
    %v3028 = vpop.permute.xlu0 %3027
    %3041 = vrot.lane.b32.xlu0 %v2970, 24
    %v3042 = vpop.permute.xlu0 %3041
    %3043 = vrot.lane.b32.xlu0 %v2973, 24
    %v3044 = vpop.permute.xlu0 %3043
    %3045 = vrot.lane.b32.xlu0 %v2976, 24
    %v3046 = vpop.permute.xlu0 %3045
    %3047 = vrot.lane.b32.xlu0 %v2979, 24
    %v3048 = vpop.permute.xlu0 %3047
    %3049 = vrot.lane.b32.xlu0 %v2982, 24
    %v3050 = vpop.permute.xlu0 %3049
    %3051 = vrot.lane.b32.xlu0 %v2985, 24
    %v3052 = vpop.permute.xlu0 %3051
    %v3059 = vsel %vm383, %v2274, %v2994
    %v3060 = vsel %vm383, %v2277, %v2996
    %v3061 = vsel %vm383, %v2280, %v2998
    %v3062 = vsel %vm383, %v2283, %v3000
    %v3063 = vsel %vm383, %v2286, %v3002
    %v3064 = vsel %vm383, %v2289, %v3004
    %v3065 = vsel %vm809, %v3059, %v3018
    %v3066 = vsel %vm809, %v3060, %v3020
    %v3067 = vsel %vm809, %v3061, %v3022
    %v3068 = vsel %vm809, %v3062, %v3024
    %v3069 = vsel %vm809, %v3063, %v3026
    %v3070 = vsel %vm809, %v3064, %v3028
    %v3071 = vsel %vm812, %v3065, %v3042
    %v3072 = vsel %vm812, %v3066, %v3044
    %v3073 = vsel %vm812, %v3067, %v3046
    %v3074 = vsel %vm812, %v3068, %v3048
    %v3075 = vsel %vm812, %v3069, %v3050
    %v3076 = vsel %vm812, %v3070, %v3052
    %v3078 = vsel %vm178, %v3071, 0
    %v3081 = vsel %vm178, %v3072, 0
    %v3084 = vsel %vm178, %v3073, 0
    %v3087 = vsel %vm178, %v3074, 0
    %v3090 = vsel %vm178, %v3075, 0
    %v3093 = vsel %vm178, %v3076, 0
    %3095 = vmatpush.msra.mxu0 0.0
    %3096 = vmatpush.msra.mxu0 0.0
    %3097 = vmatpush.msra.mxu0 0.0
    %3098 = vmatpush.msra.mxu0 0.0
    %3099 = vmatpush.msra.mxu0 0.0
    %3100 = vmatpush.msra.mxu0 0.0
    %3101 = vmatpush.msra.mxu0 0.0
    %3102 = vmatpush.msra.mxu0 0.0
    %3103 = vmatpush.msra.mxu0 0.0
    %3104 = vmatpush.msra.mxu0 0.0
    %3105 = vmatpush.msra.mxu0 0.0
    %3106 = vmatpush.msra.mxu0 0.0
    %3107 = vmatpush.msra.mxu0 %v1811
    %3108 = vmatpush.msra.mxu0 %v1810
    %3109 = vmatpush.msra.mxu0 %v1809
    %3110 = vmatpush.msra.mxu0 %v1808
    %3111 = vmatmul.f32.gmra.mxu0 %v3078
    %v3112 = vpop.f32.mrf.mxu0
    %v3113 = vadd.f32 0.0, %v3112
    %3114 = vmatmul.f32.gmra.mxu0 %v3081
    %v3115 = vpop.f32.mrf.mxu0
    %v3116 = vadd.f32 0.0, %v3115
    %3117 = vmatmul.f32.gmra.mxu0 %v3084
    %v3118 = vpop.f32.mrf.mxu0
    %v3119 = vadd.f32 0.0, %v3118
    %3120 = vmatmul.f32.gmra.mxu0 %v3087
    %v3121 = vpop.f32.mrf.mxu0
    %v3122 = vadd.f32 0.0, %v3121
    %3123 = vmatmul.f32.gmra.mxu0 %v3090
    %v3124 = vpop.f32.mrf.mxu0
    %v3125 = vadd.f32 0.0, %v3124
    %3126 = vmatmul.f32.gmra.mxu0 %v3093
    %v3127 = vpop.f32.mrf.mxu0
    %v3128 = vadd.f32 0.0, %v3127
    %3129 = vdwg.mxu0
    %v3130 = vadd.f32 %v1793, %v3113
    %v3131 = vadd.f32 %v1794, %v3116
    %v3132 = vadd.f32 %v1795, %v3119
    %v3133 = vadd.f32 %v1796, %v3122
    %v3134 = vadd.f32 %v1797, %v3125
    %v3135 = vadd.f32 %v1798, %v3128
    %v3136 = vperm.slane %v1856, 1
    %v3137 = vadd.f32 %v3130, %v3136
    %v3138 = vadd.f32 %v3131, %v3136
    %v3139 = vadd.f32 %v3132, %v3136
    %v3140 = vadd.f32 %v3133, %v3136
    %v3141 = vadd.f32 %v3134, %v3136
    %v3142 = vadd.f32 %v3135, %v3136
    %v3143 = vsel %vm178, %v3137, 0.0
    %3144 = vadd.xlane.f32.xlu0 %v3143
    %v3145 = vpop.xlane.xlu0 %3144
    %v3146 = vsel %vm178, %v3138, 0.0
    %3147 = vadd.xlane.f32.xlu0 %v3146
    %v3148 = vpop.xlane.xlu0 %3147
    %v3149 = vsel %vm178, %v3139, 0.0
    %3150 = vadd.xlane.f32.xlu0 %v3149
    %v3151 = vpop.xlane.xlu0 %3150
    %v3152 = vsel %vm178, %v3140, 0.0
    %3153 = vadd.xlane.f32.xlu0 %v3152
    %v3154 = vpop.xlane.xlu0 %3153
    %v3155 = vsel %vm178, %v3141, 0.0
    %3156 = vadd.xlane.f32.xlu0 %v3155
    %v3157 = vpop.xlane.xlu0 %3156
    %v3158 = vsel %vm178, %v3142, 0.0
    %3159 = vadd.xlane.f32.xlu0 %v3158
    %v3160 = vpop.xlane.xlu0 %3159
    %v3161 = vmul.f32 %v3145, %v192
    %v3162 = vmul.f32 %v3148, %v192
    %v3163 = vmul.f32 %v3151, %v192
    %v3164 = vmul.f32 %v3154, %v192
    %v3165 = vmul.f32 %v3157, %v192
    %v3166 = vmul.f32 %v3160, %v192
    %v3167 = vsub.f32 %v3137, %v3161
    %v3168 = vsub.f32 %v3138, %v3162
    %v3169 = vsub.f32 %v3139, %v3163
    %v3170 = vsub.f32 %v3140, %v3164
    %v3171 = vsub.f32 %v3141, %v3165
    %v3172 = vsub.f32 %v3142, %v3166
    %v3173 = vmul.f32 %v3167, %v3167
    %v3174 = vmul.f32 %v3168, %v3168
    %v3175 = vmul.f32 %v3169, %v3169
    %v3176 = vmul.f32 %v3170, %v3170
    %v3177 = vmul.f32 %v3171, %v3171
    %v3178 = vmul.f32 %v3172, %v3172
    %v3179 = vsel %vm178, %v3173, 0.0
    %3180 = vadd.xlane.f32.xlu0 %v3179
    %v3181 = vpop.xlane.xlu0 %3180
    %v3182 = vsel %vm178, %v3174, 0.0
    %3183 = vadd.xlane.f32.xlu0 %v3182
    %v3184 = vpop.xlane.xlu0 %3183
    %v3185 = vsel %vm178, %v3175, 0.0
    %3186 = vadd.xlane.f32.xlu0 %v3185
    %v3187 = vpop.xlane.xlu0 %3186
    %v3188 = vsel %vm178, %v3176, 0.0
    %3189 = vadd.xlane.f32.xlu0 %v3188
    %v3190 = vpop.xlane.xlu0 %3189
    %v3191 = vsel %vm178, %v3177, 0.0
    %3192 = vadd.xlane.f32.xlu0 %v3191
    %v3193 = vpop.xlane.xlu0 %3192
    %v3194 = vsel %vm178, %v3178, 0.0
    %3195 = vadd.xlane.f32.xlu0 %v3194
    %v3196 = vpop.xlane.xlu0 %3195
    %v3197 = vmul.f32 %v3181, %v192
    %v3198 = vmul.f32 %v3184, %v192
    %v3199 = vmul.f32 %v3187, %v192
    %v3200 = vmul.f32 %v3190, %v192
    %v3201 = vmul.f32 %v3193, %v192
    %v3202 = vmul.f32 %v3196, %v192
    %v3203 = vadd.f32 %v3197, 1e-05
    %v3204 = vadd.f32 %v3198, 1e-05
    %v3205 = vadd.f32 %v3199, 1e-05
    %v3206 = vadd.f32 %v3200, 1e-05
    %v3207 = vadd.f32 %v3201, 1e-05
    %v3208 = vadd.f32 %v3202, 1e-05
    %v3209 = vrsqrt.pop %v3203
    %v3210 = vmul.f32 %v3209, %v3203
    %v3211 = vmul.f32 %v3210, %v3209
    %v3212 = vmul.f32 0.5, %v3211
    %v3213 = vsub.f32 1.5, %v3212
    %v3214 = vmul.f32 %v3209, %v3213
    %vm3215 = vweird.f32 %v3203
    %vm3216 = vweird.f32 %v3209
    %vm3217 = vmor %vm3215, %vm3216
    %v3218 = vsel %vm3217, %v3209, %v3214
    %v3219 = vrsqrt.pop %v3204
    %v3220 = vmul.f32 %v3219, %v3204
    %v3221 = vmul.f32 %v3220, %v3219
    %v3222 = vmul.f32 0.5, %v3221
    %v3223 = vsub.f32 1.5, %v3222
    %v3224 = vmul.f32 %v3219, %v3223
    %vm3225 = vweird.f32 %v3204
    %vm3226 = vweird.f32 %v3219
    %vm3227 = vmor %vm3225, %vm3226
    %v3228 = vsel %vm3227, %v3219, %v3224
    %v3229 = vrsqrt.pop %v3205
    %v3230 = vmul.f32 %v3229, %v3205
    %v3231 = vmul.f32 %v3230, %v3229
    %v3232 = vmul.f32 0.5, %v3231
    %v3233 = vsub.f32 1.5, %v3232
    %v3234 = vmul.f32 %v3229, %v3233
    %vm3235 = vweird.f32 %v3205
    %vm3236 = vweird.f32 %v3229
    %vm3237 = vmor %vm3235, %vm3236
    %v3238 = vsel %vm3237, %v3229, %v3234
    %v3239 = vrsqrt.pop %v3206
    %v3240 = vmul.f32 %v3239, %v3206
    %v3241 = vmul.f32 %v3240, %v3239
    %v3242 = vmul.f32 0.5, %v3241
    %v3243 = vsub.f32 1.5, %v3242
    %v3244 = vmul.f32 %v3239, %v3243
    %vm3245 = vweird.f32 %v3206
    %vm3246 = vweird.f32 %v3239
    %vm3247 = vmor %vm3245, %vm3246
    %v3248 = vsel %vm3247, %v3239, %v3244
    %v3249 = vrsqrt.pop %v3207
    %v3250 = vmul.f32 %v3249, %v3207
    %v3251 = vmul.f32 %v3250, %v3249
    %v3252 = vmul.f32 0.5, %v3251
    %v3253 = vsub.f32 1.5, %v3252
    %v3254 = vmul.f32 %v3249, %v3253
    %vm3255 = vweird.f32 %v3207
    %vm3256 = vweird.f32 %v3249
    %vm3257 = vmor %vm3255, %vm3256
    %v3258 = vsel %vm3257, %v3249, %v3254
    %v3259 = vrsqrt.pop %v3208
    %v3260 = vmul.f32 %v3259, %v3208
    %v3261 = vmul.f32 %v3260, %v3259
    %v3262 = vmul.f32 0.5, %v3261
    %v3263 = vsub.f32 1.5, %v3262
    %v3264 = vmul.f32 %v3259, %v3263
    %vm3265 = vweird.f32 %v3208
    %vm3266 = vweird.f32 %v3259
    %vm3267 = vmor %vm3265, %vm3266
    %v3268 = vsel %vm3267, %v3259, %v3264
    %v3269 = vmul.f32 %v3167, %v3218
    %v3270 = vmul.f32 %v3168, %v3228
    %v3271 = vmul.f32 %v3169, %v3238
    %v3272 = vmul.f32 %v3170, %v3248
    %v3273 = vmul.f32 %v3171, %v3258
    %v3274 = vmul.f32 %v3172, %v3268
    %v3275 = vperm.slane %v1856, 4
    %v3276 = vmul.f32 %v3269, %v3275
    %v3277 = vmul.f32 %v3270, %v3275
    %v3278 = vmul.f32 %v3271, %v3275
    %v3279 = vmul.f32 %v3272, %v3275
    %v3280 = vmul.f32 %v3273, %v3275
    %v3281 = vmul.f32 %v3274, %v3275
    %v3282 = vperm.slane %v1856, 5
    %v3283 = vadd.f32 %v3276, %v3282
    %v3284 = vadd.f32 %v3277, %v3282
    %v3285 = vadd.f32 %v3278, %v3282
    %v3286 = vadd.f32 %v3279, %v3282
    %v3287 = vadd.f32 %v3280, %v3282
    %v3288 = vadd.f32 %v3281, %v3282
    %v3289 = vperm.slane %v1856, 6
    %v3291 = vsel %vm178, %v3283, 0
    %v3294 = vsel %vm178, %v3284, 0
    %v3297 = vsel %vm178, %v3285, 0
    %v3300 = vsel %vm178, %v3286, 0
    %v3303 = vsel %vm178, %v3287, 0
    %v3306 = vsel %vm178, %v3288, 0
    %3308 = vmatpush.msra.mxu0 0.0
    %3309 = vmatpush.msra.mxu0 0.0
    %3310 = vmatpush.msra.mxu0 0.0
    %3311 = vmatpush.msra.mxu0 0.0
    %3312 = vmatpush.msra.mxu0 0.0
    %3313 = vmatpush.msra.mxu0 0.0
    %3314 = vmatpush.msra.mxu0 0.0
    %3315 = vmatpush.msra.mxu0 0.0
    %3316 = vmatpush.msra.mxu0 0.0
    %3317 = vmatpush.msra.mxu0 0.0
    %3318 = vmatpush.msra.mxu0 0.0
    %3319 = vmatpush.msra.mxu0 0.0
    %3320 = vmatpush.msra.mxu0 %v1819
    %3321 = vmatpush.msra.mxu0 %v1818
    %3322 = vmatpush.msra.mxu0 %v1817
    %3323 = vmatpush.msra.mxu0 %v1816
    %3324 = vmatmul.f32.gmra.mxu0 %v3291
    %v3325 = vpop.f32.mrf.mxu0
    %v3326 = vadd.f32 %v3289, %v3325
    %3327 = vmatmul.f32.gmra.mxu0 %v3294
    %v3328 = vpop.f32.mrf.mxu0
    %v3329 = vadd.f32 %v3289, %v3328
    %3330 = vmatmul.f32.gmra.mxu0 %v3297
    %v3331 = vpop.f32.mrf.mxu0
    %v3332 = vadd.f32 %v3289, %v3331
    %3333 = vmatmul.f32.gmra.mxu0 %v3300
    %v3334 = vpop.f32.mrf.mxu0
    %v3335 = vadd.f32 %v3289, %v3334
    %3336 = vmatmul.f32.gmra.mxu0 %v3303
    %v3337 = vpop.f32.mrf.mxu0
    %v3338 = vadd.f32 %v3289, %v3337
    %3339 = vmatmul.f32.gmra.mxu0 %v3306
    %v3340 = vpop.f32.mrf.mxu0
    %v3341 = vadd.f32 %v3289, %v3340
    %3342 = vdwg.mxu0
    %v3343 = vmul.f32 %v3326, 1.702
    %v3344 = vmul.f32 %v3329, 1.702
    %v3345 = vmul.f32 %v3332, 1.702
    %v3346 = vmul.f32 %v3335, 1.702
    %v3347 = vmul.f32 %v3338, 1.702
    %v3348 = vmul.f32 %v3341, 1.702
    %v3349 = vxor.u32 %v3343, 2147483648
    %v3350 = vxor.u32 %v3344, 2147483648
    %v3351 = vxor.u32 %v3345, 2147483648
    %v3352 = vxor.u32 %v3346, 2147483648
    %v3353 = vxor.u32 %v3347, 2147483648
    %v3354 = vxor.u32 %v3348, 2147483648
    %v3355 = vmul.f32 %v3349, 1.442695
    %v3356 = vpow.pop %v3355
    %v3357 = vmul.f32 %v3350, 1.442695
    %v3358 = vpow.pop %v3357
    %v3359 = vmul.f32 %v3351, 1.442695
    %v3360 = vpow.pop %v3359
    %v3361 = vmul.f32 %v3352, 1.442695
    %v3362 = vpow.pop %v3361
    %v3363 = vmul.f32 %v3353, 1.442695
    %v3364 = vpow.pop %v3363
    %v3365 = vmul.f32 %v3354, 1.442695
    %v3366 = vpow.pop %v3365
    %v3367 = vadd.f32 %v3356, 1.0
    %v3368 = vadd.f32 %v3358, 1.0
    %v3369 = vadd.f32 %v3360, 1.0
    %v3370 = vadd.f32 %v3362, 1.0
    %v3371 = vadd.f32 %v3364, 1.0
    %v3372 = vadd.f32 %v3366, 1.0
    %v3373 = vrcp.pop %v3367
    %v3374 = vmul.f32 %v3367, %v3373
    %v3375 = vsub.f32 1.0, %v3374
    %v3376 = vmul.f32 %v3373, %v3375
    %v3377 = vadd.f32 %v3373, %v3376
    %vm3378 = vweird.f32 %v3367
    %vm3379 = vweird.f32 %v3373
    %vm3380 = vmor %vm3378, %vm3379
    %v3381 = vsel %vm3380, %v3373, %v3377
    %v3382 = vand.u32 2147483647, %v3367
    %vm3383 = vcmp.eq.f32.partialorder %v3382, 8.507059e+37
    %v3384 = vand.u32 %v3367, 2147483648
    %v3385 = vor.u32 1.1754944e-38, %v3384
    %v3386 = vsel %vm3383, %v3385, %v3381
    %v3387 = vmul.f32 1.0, %v3386
    %v3388 = vrcp.pop %v3368
    %v3389 = vmul.f32 %v3368, %v3388
    %v3390 = vsub.f32 1.0, %v3389
    %v3391 = vmul.f32 %v3388, %v3390
    %v3392 = vadd.f32 %v3388, %v3391
    %vm3393 = vweird.f32 %v3368
    %vm3394 = vweird.f32 %v3388
    %vm3395 = vmor %vm3393, %vm3394
    %v3396 = vsel %vm3395, %v3388, %v3392
    %v3397 = vand.u32 2147483647, %v3368
    %vm3398 = vcmp.eq.f32.partialorder %v3397, 8.507059e+37
    %v3399 = vand.u32 %v3368, 2147483648
    %v3400 = vor.u32 1.1754944e-38, %v3399
    %v3401 = vsel %vm3398, %v3400, %v3396
    %v3402 = vmul.f32 1.0, %v3401
    %v3403 = vrcp.pop %v3369
    %v3404 = vmul.f32 %v3369, %v3403
    %v3405 = vsub.f32 1.0, %v3404
    %v3406 = vmul.f32 %v3403, %v3405
    %v3407 = vadd.f32 %v3403, %v3406
    %vm3408 = vweird.f32 %v3369
    %vm3409 = vweird.f32 %v3403
    %vm3410 = vmor %vm3408, %vm3409
    %v3411 = vsel %vm3410, %v3403, %v3407
    %v3412 = vand.u32 2147483647, %v3369
    %vm3413 = vcmp.eq.f32.partialorder %v3412, 8.507059e+37
    %v3414 = vand.u32 %v3369, 2147483648
    %v3415 = vor.u32 1.1754944e-38, %v3414
    %v3416 = vsel %vm3413, %v3415, %v3411
    %v3417 = vmul.f32 1.0, %v3416
    %v3418 = vrcp.pop %v3370
    %v3419 = vmul.f32 %v3370, %v3418
    %v3420 = vsub.f32 1.0, %v3419
    %v3421 = vmul.f32 %v3418, %v3420
    %v3422 = vadd.f32 %v3418, %v3421
    %vm3423 = vweird.f32 %v3370
    %vm3424 = vweird.f32 %v3418
    %vm3425 = vmor %vm3423, %vm3424
    %v3426 = vsel %vm3425, %v3418, %v3422
    %v3427 = vand.u32 2147483647, %v3370
    %vm3428 = vcmp.eq.f32.partialorder %v3427, 8.507059e+37
    %v3429 = vand.u32 %v3370, 2147483648
    %v3430 = vor.u32 1.1754944e-38, %v3429
    %v3431 = vsel %vm3428, %v3430, %v3426
    %v3432 = vmul.f32 1.0, %v3431
    %v3433 = vrcp.pop %v3371
    %v3434 = vmul.f32 %v3371, %v3433
    %v3435 = vsub.f32 1.0, %v3434
    %v3436 = vmul.f32 %v3433, %v3435
    %v3437 = vadd.f32 %v3433, %v3436
    %vm3438 = vweird.f32 %v3371
    %vm3439 = vweird.f32 %v3433
    %vm3440 = vmor %vm3438, %vm3439
    %v3441 = vsel %vm3440, %v3433, %v3437
    %v3442 = vand.u32 2147483647, %v3371
    %vm3443 = vcmp.eq.f32.partialorder %v3442, 8.507059e+37
    %v3444 = vand.u32 %v3371, 2147483648
    %v3445 = vor.u32 1.1754944e-38, %v3444
    %v3446 = vsel %vm3443, %v3445, %v3441
    %v3447 = vmul.f32 1.0, %v3446
    %v3448 = vrcp.pop %v3372
    %v3449 = vmul.f32 %v3372, %v3448
    %v3450 = vsub.f32 1.0, %v3449
    %v3451 = vmul.f32 %v3448, %v3450
    %v3452 = vadd.f32 %v3448, %v3451
    %vm3453 = vweird.f32 %v3372
    %vm3454 = vweird.f32 %v3448
    %vm3455 = vmor %vm3453, %vm3454
    %v3456 = vsel %vm3455, %v3448, %v3452
    %v3457 = vand.u32 2147483647, %v3372
    %vm3458 = vcmp.eq.f32.partialorder %v3457, 8.507059e+37
    %v3459 = vand.u32 %v3372, 2147483648
    %v3460 = vor.u32 1.1754944e-38, %v3459
    %v3461 = vsel %vm3458, %v3460, %v3456
    %v3462 = vmul.f32 1.0, %v3461
    %v3463 = vmul.f32 %v3326, %v3387
    %v3464 = vmul.f32 %v3329, %v3402
    %v3465 = vmul.f32 %v3332, %v3417
    %v3466 = vmul.f32 %v3335, %v3432
    %v3467 = vmul.f32 %v3338, %v3447
    %v3468 = vmul.f32 %v3341, %v3462
    %3469 = vmatpush.msra.mxu0 %v1839
    %3470 = vmatpush.msra.mxu0 %v1838
    %3471 = vmatpush.msra.mxu0 %v1837
    %3472 = vmatpush.msra.mxu0 %v1836
    %3473 = vmatpush.msra.mxu0 %v1835
    %3474 = vmatpush.msra.mxu0 %v1834
    %3475 = vmatpush.msra.mxu0 %v1833
    %3476 = vmatpush.msra.mxu0 %v1832
    %3477 = vmatpush.msra.mxu0 %v1831
    %3478 = vmatpush.msra.mxu0 %v1830
    %3479 = vmatpush.msra.mxu0 %v1829
    %3480 = vmatpush.msra.mxu0 %v1828
    %3481 = vmatpush.msra.mxu0 %v1827
    %3482 = vmatpush.msra.mxu0 %v1826
    %3483 = vmatpush.msra.mxu0 %v1825
    %3484 = vmatpush.msra.mxu0 %v1824
    %3485 = vmatmul.f32.gmra.mxu0 %v3463
    %v3486 = vpop.f32.mrf.mxu0
    %v3487 = vadd.f32 0.0, %v3486
    %3488 = vmatmul.f32.gmra.mxu0 %v3464
    %v3489 = vpop.f32.mrf.mxu0
    %v3490 = vadd.f32 0.0, %v3489
    %3491 = vmatmul.f32.gmra.mxu0 %v3465
    %v3492 = vpop.f32.mrf.mxu0
    %v3493 = vadd.f32 0.0, %v3492
    %3494 = vmatmul.f32.gmra.mxu0 %v3466
    %v3495 = vpop.f32.mrf.mxu0
    %v3496 = vadd.f32 0.0, %v3495
    %3497 = vmatmul.f32.gmra.mxu0 %v3467
    %v3498 = vpop.f32.mrf.mxu0
    %v3499 = vadd.f32 0.0, %v3498
    %3500 = vmatmul.f32.gmra.mxu0 %v3468
    %v3501 = vpop.f32.mrf.mxu0
    %v3502 = vadd.f32 0.0, %v3501
    %3503 = vdwg.mxu0
    %v3504 = vadd.f32 %v3137, %v3487
    %v3505 = vadd.f32 %v3138, %v3490
    %v3506 = vadd.f32 %v3139, %v3493
    %v3507 = vadd.f32 %v3140, %v3496
    %v3508 = vadd.f32 %v3141, %v3499
    %v3509 = vadd.f32 %v3142, %v3502
    %v3510 = vperm.slane %v1856, 7
    %v3511 = vadd.f32 %v3504, %v3510
    %v3512 = vadd.f32 %v3505, %v3510
    %v3513 = vadd.f32 %v3506, %v3510
    %v3514 = vadd.f32 %v3507, %v3510
    %v3515 = vadd.f32 %v3508, %v3510
    %v3516 = vadd.f32 %v3509, %v3510
    %v3517 = vsel %vm178, %v3511, 0.0
    %3518 = vadd.xlane.f32.xlu0 %v3517
    %v3519 = vpop.xlane.xlu0 %3518
    %v3520 = vsel %vm178, %v3512, 0.0
    %3521 = vadd.xlane.f32.xlu0 %v3520
    %v3522 = vpop.xlane.xlu0 %3521
    %v3523 = vsel %vm178, %v3513, 0.0
    %3524 = vadd.xlane.f32.xlu0 %v3523
    %v3525 = vpop.xlane.xlu0 %3524
    %v3526 = vsel %vm178, %v3514, 0.0
    %3527 = vadd.xlane.f32.xlu0 %v3526
    %v3528 = vpop.xlane.xlu0 %3527
    %v3529 = vsel %vm178, %v3515, 0.0
    %3530 = vadd.xlane.f32.xlu0 %v3529
    %v3531 = vpop.xlane.xlu0 %3530
    %v3532 = vsel %vm178, %v3516, 0.0
    %3533 = vadd.xlane.f32.xlu0 %v3532
    %v3534 = vpop.xlane.xlu0 %3533
    %v3535 = vmul.f32 %v3519, %v192
    %v3536 = vmul.f32 %v3522, %v192
    %v3537 = vmul.f32 %v3525, %v192
    %v3538 = vmul.f32 %v3528, %v192
    %v3539 = vmul.f32 %v3531, %v192
    %v3540 = vmul.f32 %v3534, %v192
    %v3541 = vsub.f32 %v3511, %v3535
    %v3542 = vsub.f32 %v3512, %v3536
    %v3543 = vsub.f32 %v3513, %v3537
    %v3544 = vsub.f32 %v3514, %v3538
    %v3545 = vsub.f32 %v3515, %v3539
    %v3546 = vsub.f32 %v3516, %v3540
    %v3547 = vmul.f32 %v3541, %v3541
    %v3548 = vmul.f32 %v3542, %v3542
    %v3549 = vmul.f32 %v3543, %v3543
    %v3550 = vmul.f32 %v3544, %v3544
    %v3551 = vmul.f32 %v3545, %v3545
    %v3552 = vmul.f32 %v3546, %v3546
    %v3553 = vsel %vm178, %v3547, 0.0
    %3554 = vadd.xlane.f32.xlu0 %v3553
    %v3555 = vpop.xlane.xlu0 %3554
    %v3556 = vsel %vm178, %v3548, 0.0
    %3557 = vadd.xlane.f32.xlu0 %v3556
    %v3558 = vpop.xlane.xlu0 %3557
    %v3559 = vsel %vm178, %v3549, 0.0
    %3560 = vadd.xlane.f32.xlu0 %v3559
    %v3561 = vpop.xlane.xlu0 %3560
    %v3562 = vsel %vm178, %v3550, 0.0
    %3563 = vadd.xlane.f32.xlu0 %v3562
    %v3564 = vpop.xlane.xlu0 %3563
    %v3565 = vsel %vm178, %v3551, 0.0
    %3566 = vadd.xlane.f32.xlu0 %v3565
    %v3567 = vpop.xlane.xlu0 %3566
    %v3568 = vsel %vm178, %v3552, 0.0
    %3569 = vadd.xlane.f32.xlu0 %v3568
    %v3570 = vpop.xlane.xlu0 %3569
    %v3571 = vmul.f32 %v3555, %v192
    %v3572 = vmul.f32 %v3558, %v192
    %v3573 = vmul.f32 %v3561, %v192
    %v3574 = vmul.f32 %v3564, %v192
    %v3575 = vmul.f32 %v3567, %v192
    %v3576 = vmul.f32 %v3570, %v192
    %v3577 = vadd.f32 %v3571, 1e-05
    %v3578 = vadd.f32 %v3572, 1e-05
    %v3579 = vadd.f32 %v3573, 1e-05
    %v3580 = vadd.f32 %v3574, 1e-05
    %v3581 = vadd.f32 %v3575, 1e-05
    %v3582 = vadd.f32 %v3576, 1e-05
    %v3583 = vrsqrt.pop %v3577
    %v3584 = vmul.f32 %v3583, %v3577
    %v3585 = vmul.f32 %v3584, %v3583
    %v3586 = vmul.f32 0.5, %v3585
    %v3587 = vsub.f32 1.5, %v3586
    %v3588 = vmul.f32 %v3583, %v3587
    %vm3589 = vweird.f32 %v3577
    %vm3590 = vweird.f32 %v3583
    %vm3591 = vmor %vm3589, %vm3590
    %v3592 = vsel %vm3591, %v3583, %v3588
    %v3593 = vrsqrt.pop %v3578
    %v3594 = vmul.f32 %v3593, %v3578
    %v3595 = vmul.f32 %v3594, %v3593
    %v3596 = vmul.f32 0.5, %v3595
    %v3597 = vsub.f32 1.5, %v3596
    %v3598 = vmul.f32 %v3593, %v3597
    %vm3599 = vweird.f32 %v3578
    %vm3600 = vweird.f32 %v3593
    %vm3601 = vmor %vm3599, %vm3600
    %v3602 = vsel %vm3601, %v3593, %v3598
    %v3603 = vrsqrt.pop %v3579
    %v3604 = vmul.f32 %v3603, %v3579
    %v3605 = vmul.f32 %v3604, %v3603
    %v3606 = vmul.f32 0.5, %v3605
    %v3607 = vsub.f32 1.5, %v3606
    %v3608 = vmul.f32 %v3603, %v3607
    %vm3609 = vweird.f32 %v3579
    %vm3610 = vweird.f32 %v3603
    %vm3611 = vmor %vm3609, %vm3610
    %v3612 = vsel %vm3611, %v3603, %v3608
    %v3613 = vrsqrt.pop %v3580
    %v3614 = vmul.f32 %v3613, %v3580
    %v3615 = vmul.f32 %v3614, %v3613
    %v3616 = vmul.f32 0.5, %v3615
    %v3617 = vsub.f32 1.5, %v3616
    %v3618 = vmul.f32 %v3613, %v3617
    %vm3619 = vweird.f32 %v3580
    %vm3620 = vweird.f32 %v3613
    %vm3621 = vmor %vm3619, %vm3620
    %v3622 = vsel %vm3621, %v3613, %v3618
    %v3623 = vrsqrt.pop %v3581
    %v3624 = vmul.f32 %v3623, %v3581
    %v3625 = vmul.f32 %v3624, %v3623
    %v3626 = vmul.f32 0.5, %v3625
    %v3627 = vsub.f32 1.5, %v3626
    %v3628 = vmul.f32 %v3623, %v3627
    %vm3629 = vweird.f32 %v3581
    %vm3630 = vweird.f32 %v3623
    %vm3631 = vmor %vm3629, %vm3630
    %v3632 = vsel %vm3631, %v3623, %v3628
    %v3633 = vrsqrt.pop %v3582
    %v3634 = vmul.f32 %v3633, %v3582
    %v3635 = vmul.f32 %v3634, %v3633
    %v3636 = vmul.f32 0.5, %v3635
    %v3637 = vsub.f32 1.5, %v3636
    %v3638 = vmul.f32 %v3633, %v3637
    %vm3639 = vweird.f32 %v3582
    %vm3640 = vweird.f32 %v3633
    %vm3641 = vmor %vm3639, %vm3640
    %v3642 = vsel %vm3641, %v3633, %v3638
    %v3643 = vmul.f32 %v3541, %v3592
    %v3644 = vmul.f32 %v3542, %v3602
    %v3645 = vmul.f32 %v3543, %v3612
    %v3646 = vmul.f32 %v3544, %v3622
    %v3647 = vmul.f32 %v3545, %v3632
    %v3648 = vmul.f32 %v3546, %v3642
    %v3649 = vperm.slane %v1857, 2
    %v3650 = vmul.f32 %v3643, %v3649
    %v3651 = vmul.f32 %v3644, %v3649
    %v3652 = vmul.f32 %v3645, %v3649
    %v3653 = vmul.f32 %v3646, %v3649
    %v3654 = vmul.f32 %v3647, %v3649
    %v3655 = vmul.f32 %v3648, %v3649
    %v3656 = vperm.slane %v1857, 3
    %v3657 = vadd.f32 %v3650, %v3656
    %v3658 = vadd.f32 %v3651, %v3656
    %v3659 = vadd.f32 %v3652, %v3656
    %v3660 = vadd.f32 %v3653, %v3656
    %v3661 = vadd.f32 %v3654, %v3656
    %v3662 = vadd.f32 %v3655, %v3656
    %v3663 = vperm.slane %v1857, 0
    %v3665 = vsel %vm178, %v3657, 0
    %v3668 = vsel %vm178, %v3658, 0
    %v3671 = vsel %vm178, %v3659, 0
    %v3674 = vsel %vm178, %v3660, 0
    %v3677 = vsel %vm178, %v3661, 0
    %v3680 = vsel %vm178, %v3662, 0
    %3682 = vmatpush.msra.mxu0 0.0
    %3683 = vmatpush.msra.mxu0 0.0
    %3684 = vmatpush.msra.mxu0 0.0
    %3685 = vmatpush.msra.mxu0 0.0
    %3686 = vmatpush.msra.mxu0 0.0
    %3687 = vmatpush.msra.mxu0 0.0
    %3688 = vmatpush.msra.mxu0 0.0
    %3689 = vmatpush.msra.mxu0 0.0
    %3690 = vmatpush.msra.mxu0 0.0
    %3691 = vmatpush.msra.mxu0 0.0
    %3692 = vmatpush.msra.mxu0 0.0
    %3693 = vmatpush.msra.mxu0 0.0
    %3694 = vmatpush.msra.mxu0 %v1807
    %3695 = vmatpush.msra.mxu0 %v1806
    %3696 = vmatpush.msra.mxu0 %v1805
    %3697 = vmatpush.msra.mxu0 %v1804
    %3698 = vmatmul.f32.gmra.mxu0 %v3665
    %v3699 = vpop.f32.mrf.mxu0
    %v3700 = vadd.f32 %v3663, %v3699
    %3701 = vmatmul.f32.gmra.mxu0 %v3668
    %v3702 = vpop.f32.mrf.mxu0
    %v3703 = vadd.f32 %v3663, %v3702
    %3704 = vmatmul.f32.gmra.mxu0 %v3671
    %v3705 = vpop.f32.mrf.mxu0
    %v3706 = vadd.f32 %v3663, %v3705
    %3707 = vmatmul.f32.gmra.mxu0 %v3674
    %v3708 = vpop.f32.mrf.mxu0
    %v3709 = vadd.f32 %v3663, %v3708
    %3710 = vmatmul.f32.gmra.mxu0 %v3677
    %v3711 = vpop.f32.mrf.mxu0
    %v3712 = vadd.f32 %v3663, %v3711
    %3713 = vmatmul.f32.gmra.mxu0 %v3680
    %v3714 = vpop.f32.mrf.mxu0
    %v3715 = vadd.f32 %v3663, %v3714
    %3716 = vdwg.mxu0
    %3723 = vrot.lane.b32.xlu0 %v3700, 96
    %v3724 = vpop.permute.xlu0 %3723
    %3725 = vrot.lane.b32.xlu0 %v3703, 96
    %v3726 = vpop.permute.xlu0 %3725
    %3727 = vrot.lane.b32.xlu0 %v3706, 96
    %v3728 = vpop.permute.xlu0 %3727
    %3729 = vrot.lane.b32.xlu0 %v3709, 96
    %v3730 = vpop.permute.xlu0 %3729
    %3731 = vrot.lane.b32.xlu0 %v3712, 96
    %v3732 = vpop.permute.xlu0 %3731
    %3733 = vrot.lane.b32.xlu0 %v3715, 96
    %v3734 = vpop.permute.xlu0 %3733
    %v3735 = vsel %vm383, %v3700, 0
    %v3737 = vsel %vm383, %v3703, 0
    %v3739 = vsel %vm383, %v3706, 0
    %v3741 = vsel %vm383, %v3709, 0
    %v3743 = vsel %vm383, %v3712, 0
    %v3745 = vsel %vm383, %v3715, 0
    %v3747 = vsel %vm383, %v3724, 0
    %v3749 = vsel %vm383, %v3726, 0
    %v3751 = vsel %vm383, %v3728, 0
    %v3753 = vsel %vm383, %v3730, 0
    %v3755 = vsel %vm383, %v3732, 0
    %v3757 = vsel %vm383, %v3734, 0
    %3759 = vmatpush.xpose.msra.mxu0 0.0
    %3760 = vmatpush.xpose.msra.mxu0 0.0
    %3761 = vmatpush.xpose.msra.mxu0 0.0
    %3762 = vmatpush.xpose.msra.mxu0 0.0
    %3763 = vmatpush.xpose.msra.mxu0 0.0
    %3764 = vmatpush.xpose.msra.mxu0 0.0
    %3765 = vmatpush.xpose.msra.mxu0 0.0
    %3766 = vmatpush.xpose.msra.mxu0 0.0
    %3767 = vmatpush.xpose.msra.mxu0 0.0
    %3768 = vmatpush.xpose.msra.mxu0 0.0
    %3769 = vmatpush.xpose.msra.mxu0 %v3757
    %3770 = vmatpush.xpose.msra.mxu0 %v3755
    %3771 = vmatpush.xpose.msra.mxu0 %v3753
    %3772 = vmatpush.xpose.msra.mxu0 %v3751
    %3773 = vmatpush.xpose.msra.mxu0 %v3749
    %3774 = vmatpush.xpose.msra.mxu0 %v3747
    %3775 = vmatmul.f32.gmra.mxu0 %v3735
    %v3776 = vpop.f32.mrf.mxu0
    %v3777 = vadd.f32 0.0, %v3776
    %3778 = vmatmul.f32.gmra.mxu0 %v3737
    %v3779 = vpop.f32.mrf.mxu0
    %v3780 = vadd.f32 0.0, %v3779
    %3781 = vmatmul.f32.gmra.mxu0 %v3739
    %v3782 = vpop.f32.mrf.mxu0
    %v3783 = vadd.f32 0.0, %v3782
    %3784 = vmatmul.f32.gmra.mxu0 %v3741
    %v3785 = vpop.f32.mrf.mxu0
    %v3786 = vadd.f32 0.0, %v3785
    %3787 = vmatmul.f32.gmra.mxu0 %v3743
    %v3788 = vpop.f32.mrf.mxu0
    %v3789 = vadd.f32 0.0, %v3788
    %3790 = vmatmul.f32.gmra.mxu0 %v3745
    %v3791 = vpop.f32.mrf.mxu0
    %v3792 = vadd.f32 0.0, %v3791
    %3793 = vdwg.mxu0
    %v3794 = vmul.f32 %v3777, 0.35355338
    %v3795 = vmul.f32 %v3780, 0.35355338
    %v3796 = vmul.f32 %v3783, 0.35355338
    %v3797 = vmul.f32 %v3786, 0.35355338
    %v3798 = vmul.f32 %v3789, 0.35355338
    %v3799 = vmul.f32 %v3792, 0.35355338
    %v3800 = vadd.f32 %v3794, %v1858
    %v3801 = vadd.f32 %v3795, %v1859
    %v3802 = vadd.f32 %v3796, %v1860
    %v3803 = vadd.f32 %v3797, %v1861
    %v3804 = vadd.f32 %v3798, %v1862
    %v3805 = vadd.f32 %v3799, %v1863
    %v3806 = vsel %vm2153, %v3800, -inf
    %3807 = vmax.xlane.f32.xlu0 %v3806
    %v3808 = vpop.xlane.xlu0 %3807
    %v3809 = vsel %vm2153, %v3801, -inf
    %3810 = vmax.xlane.f32.xlu0 %v3809
    %v3811 = vpop.xlane.xlu0 %3810
    %v3812 = vsel %vm2153, %v3802, -inf
    %3813 = vmax.xlane.f32.xlu0 %v3812
    %v3814 = vpop.xlane.xlu0 %3813
    %v3815 = vsel %vm2153, %v3803, -inf
    %3816 = vmax.xlane.f32.xlu0 %v3815
    %v3817 = vpop.xlane.xlu0 %3816
    %v3818 = vsel %vm2153, %v3804, -inf
    %3819 = vmax.xlane.f32.xlu0 %v3818
    %v3820 = vpop.xlane.xlu0 %3819
    %v3821 = vsel %vm2153, %v3805, -inf
    %3822 = vmax.xlane.f32.xlu0 %v3821
    %v3823 = vpop.xlane.xlu0 %3822
    %v3824 = vsub.f32 %v3800, %v3808
    %v3825 = vsub.f32 %v3801, %v3811
    %v3826 = vsub.f32 %v3802, %v3814
    %v3827 = vsub.f32 %v3803, %v3817
    %v3828 = vsub.f32 %v3804, %v3820
    %v3829 = vsub.f32 %v3805, %v3823
    %v3830 = vmul.f32 %v3824, 1.442695
    %v3831 = vpow.pop %v3830
    %v3832 = vmul.f32 %v3825, 1.442695
    %v3833 = vpow.pop %v3832
    %v3834 = vmul.f32 %v3826, 1.442695
    %v3835 = vpow.pop %v3834
    %v3836 = vmul.f32 %v3827, 1.442695
    %v3837 = vpow.pop %v3836
    %v3838 = vmul.f32 %v3828, 1.442695
    %v3839 = vpow.pop %v3838
    %v3840 = vmul.f32 %v3829, 1.442695
    %v3841 = vpow.pop %v3840
    %v3842 = vsel %vm2153, %v3831, 0.0
    %3843 = vadd.xlane.f32.xlu0 %v3842
    %v3844 = vpop.xlane.xlu0 %3843
    %v3845 = vsel %vm2153, %v3833, 0.0
    %3846 = vadd.xlane.f32.xlu0 %v3845
    %v3847 = vpop.xlane.xlu0 %3846
    %v3848 = vsel %vm2153, %v3835, 0.0
    %3849 = vadd.xlane.f32.xlu0 %v3848
    %v3850 = vpop.xlane.xlu0 %3849
    %v3851 = vsel %vm2153, %v3837, 0.0
    %3852 = vadd.xlane.f32.xlu0 %v3851
    %v3853 = vpop.xlane.xlu0 %3852
    %v3854 = vsel %vm2153, %v3839, 0.0
    %3855 = vadd.xlane.f32.xlu0 %v3854
    %v3856 = vpop.xlane.xlu0 %3855
    %v3857 = vsel %vm2153, %v3841, 0.0
    %3858 = vadd.xlane.f32.xlu0 %v3857
    %v3859 = vpop.xlane.xlu0 %3858
    %v3860 = vrcp.pop %v3844
    %v3861 = vrcp.pop %v3847
    %v3862 = vrcp.pop %v3850
    %v3863 = vrcp.pop %v3853
    %v3864 = vrcp.pop %v3856
    %v3865 = vrcp.pop %v3859
    %v3866 = vmul.f32 %v3831, %v3860
    %v3867 = vmul.f32 %v3833, %v3861
    %v3868 = vmul.f32 %v3835, %v3862
    %v3869 = vmul.f32 %v3837, %v3863
    %v3870 = vmul.f32 %v3839, %v3864
    %v3871 = vmul.f32 %v3841, %v3865
    %3872 = vrot.lane.b32.xlu0 %v3700, 64
    %v3873 = vpop.permute.xlu0 %3872
    %3874 = vrot.lane.b32.xlu0 %v3703, 64
    %v3875 = vpop.permute.xlu0 %3874
    %3876 = vrot.lane.b32.xlu0 %v3706, 64
    %v3877 = vpop.permute.xlu0 %3876
    %3878 = vrot.lane.b32.xlu0 %v3709, 64
    %v3879 = vpop.permute.xlu0 %3878
    %3880 = vrot.lane.b32.xlu0 %v3712, 64
    %v3881 = vpop.permute.xlu0 %3880
    %3882 = vrot.lane.b32.xlu0 %v3715, 64
    %v3883 = vpop.permute.xlu0 %3882
    %v3891 = vsel %vm2153, %v3866, 0
    %v3894 = vsel %vm2153, %v3867, 0
    %v3897 = vsel %vm2153, %v3868, 0
    %v3900 = vsel %vm2153, %v3869, 0
    %v3903 = vsel %vm2153, %v3870, 0
    %v3906 = vsel %vm2153, %v3871, 0
    %3908 = vmatpush.msra.mxu0 0.0
    %3909 = vmatpush.msra.mxu0 0.0
    %3910 = vmatpush.msra.mxu0 0.0
    %3911 = vmatpush.msra.mxu0 0.0
    %3912 = vmatpush.msra.mxu0 0.0
    %3913 = vmatpush.msra.mxu0 0.0
    %3914 = vmatpush.msra.mxu0 0.0
    %3915 = vmatpush.msra.mxu0 0.0
    %3916 = vmatpush.msra.mxu0 0.0
    %3917 = vmatpush.msra.mxu0 0.0
    %3918 = vmatpush.msra.mxu0 %v3883
    %3919 = vmatpush.msra.mxu0 %v3881
    %3920 = vmatpush.msra.mxu0 %v3879
    %3921 = vmatpush.msra.mxu0 %v3877
    %3922 = vmatpush.msra.mxu0 %v3875
    %3923 = vmatpush.msra.mxu0 %v3873
    %3924 = vmatmul.f32.gmra.mxu0 %v3891
    %v3925 = vpop.f32.mrf.mxu0
    %v3926 = vadd.f32 0.0, %v3925
    %3927 = vmatmul.f32.gmra.mxu0 %v3894
    %v3928 = vpop.f32.mrf.mxu0
    %v3929 = vadd.f32 0.0, %v3928
    %3930 = vmatmul.f32.gmra.mxu0 %v3897
    %v3931 = vpop.f32.mrf.mxu0
    %v3932 = vadd.f32 0.0, %v3931
    %3933 = vmatmul.f32.gmra.mxu0 %v3900
    %v3934 = vpop.f32.mrf.mxu0
    %v3935 = vadd.f32 0.0, %v3934
    %3936 = vmatmul.f32.gmra.mxu0 %v3903
    %v3937 = vpop.f32.mrf.mxu0
    %v3938 = vadd.f32 0.0, %v3937
    %3939 = vmatmul.f32.gmra.mxu0 %v3906
    %v3940 = vpop.f32.mrf.mxu0
    %v3941 = vadd.f32 0.0, %v3940
    %3942 = vdwg.mxu0
    %3943 = vrot.lane.b32.xlu0 %v3700, 120
    %v3944 = vpop.permute.xlu0 %3943
    %3945 = vrot.lane.b32.xlu0 %v3703, 120
    %v3946 = vpop.permute.xlu0 %3945
    %3947 = vrot.lane.b32.xlu0 %v3706, 120
    %v3948 = vpop.permute.xlu0 %3947
    %3949 = vrot.lane.b32.xlu0 %v3709, 120
    %v3950 = vpop.permute.xlu0 %3949
    %3951 = vrot.lane.b32.xlu0 %v3712, 120
    %v3952 = vpop.permute.xlu0 %3951
    %3953 = vrot.lane.b32.xlu0 %v3715, 120
    %v3954 = vpop.permute.xlu0 %3953
    %3955 = vrot.lane.b32.xlu0 %v3700, 88
    %v3956 = vpop.permute.xlu0 %3955
    %3957 = vrot.lane.b32.xlu0 %v3703, 88
    %v3958 = vpop.permute.xlu0 %3957
    %3959 = vrot.lane.b32.xlu0 %v3706, 88
    %v3960 = vpop.permute.xlu0 %3959
    %3961 = vrot.lane.b32.xlu0 %v3709, 88
    %v3962 = vpop.permute.xlu0 %3961
    %3963 = vrot.lane.b32.xlu0 %v3712, 88
    %v3964 = vpop.permute.xlu0 %3963
    %3965 = vrot.lane.b32.xlu0 %v3715, 88
    %v3966 = vpop.permute.xlu0 %3965
    %v3967 = vsel %vm383, %v3944, 0
    %v3969 = vsel %vm383, %v3946, 0
    %v3971 = vsel %vm383, %v3948, 0
    %v3973 = vsel %vm383, %v3950, 0
    %v3975 = vsel %vm383, %v3952, 0
    %v3977 = vsel %vm383, %v3954, 0
    %v3979 = vsel %vm383, %v3956, 0
    %v3981 = vsel %vm383, %v3958, 0
    %v3983 = vsel %vm383, %v3960, 0
    %v3985 = vsel %vm383, %v3962, 0
    %v3987 = vsel %vm383, %v3964, 0
    %v3989 = vsel %vm383, %v3966, 0
    %3991 = vmatpush.xpose.msra.mxu0 0.0
    %3992 = vmatpush.xpose.msra.mxu0 0.0
    %3993 = vmatpush.xpose.msra.mxu0 0.0
    %3994 = vmatpush.xpose.msra.mxu0 0.0
    %3995 = vmatpush.xpose.msra.mxu0 0.0
    %3996 = vmatpush.xpose.msra.mxu0 0.0
    %3997 = vmatpush.xpose.msra.mxu0 0.0
    %3998 = vmatpush.xpose.msra.mxu0 0.0
    %3999 = vmatpush.xpose.msra.mxu0 0.0
    %4000 = vmatpush.xpose.msra.mxu0 0.0
    %4001 = vmatpush.xpose.msra.mxu0 %v3989
    %4002 = vmatpush.xpose.msra.mxu0 %v3987
    %4003 = vmatpush.xpose.msra.mxu0 %v3985
    %4004 = vmatpush.xpose.msra.mxu0 %v3983
    %4005 = vmatpush.xpose.msra.mxu0 %v3981
    %4006 = vmatpush.xpose.msra.mxu0 %v3979
    %4007 = vmatmul.f32.gmra.mxu0 %v3967
    %v4008 = vpop.f32.mrf.mxu0
    %v4009 = vadd.f32 0.0, %v4008
    %4010 = vmatmul.f32.gmra.mxu0 %v3969
    %v4011 = vpop.f32.mrf.mxu0
    %v4012 = vadd.f32 0.0, %v4011
    %4013 = vmatmul.f32.gmra.mxu0 %v3971
    %v4014 = vpop.f32.mrf.mxu0
    %v4015 = vadd.f32 0.0, %v4014
    %4016 = vmatmul.f32.gmra.mxu0 %v3973
    %v4017 = vpop.f32.mrf.mxu0
    %v4018 = vadd.f32 0.0, %v4017
    %4019 = vmatmul.f32.gmra.mxu0 %v3975
    %v4020 = vpop.f32.mrf.mxu0
    %v4021 = vadd.f32 0.0, %v4020
    %4022 = vmatmul.f32.gmra.mxu0 %v3977
    %v4023 = vpop.f32.mrf.mxu0
    %v4024 = vadd.f32 0.0, %v4023
    %4025 = vdwg.mxu0
    %v4026 = vmul.f32 %v4009, 0.35355338
    %v4027 = vmul.f32 %v4012, 0.35355338
    %v4028 = vmul.f32 %v4015, 0.35355338
    %v4029 = vmul.f32 %v4018, 0.35355338
    %v4030 = vmul.f32 %v4021, 0.35355338
    %v4031 = vmul.f32 %v4024, 0.35355338
    %v4032 = vadd.f32 %v4026, %v1858
    %v4033 = vadd.f32 %v4027, %v1859
    %v4034 = vadd.f32 %v4028, %v1860
    %v4035 = vadd.f32 %v4029, %v1861
    %v4036 = vadd.f32 %v4030, %v1862
    %v4037 = vadd.f32 %v4031, %v1863
    %v4038 = vsel %vm2153, %v4032, -inf
    %4039 = vmax.xlane.f32.xlu0 %v4038
    %v4040 = vpop.xlane.xlu0 %4039
    %v4041 = vsel %vm2153, %v4033, -inf
    %4042 = vmax.xlane.f32.xlu0 %v4041
    %v4043 = vpop.xlane.xlu0 %4042
    %v4044 = vsel %vm2153, %v4034, -inf
    %4045 = vmax.xlane.f32.xlu0 %v4044
    %v4046 = vpop.xlane.xlu0 %4045
    %v4047 = vsel %vm2153, %v4035, -inf
    %4048 = vmax.xlane.f32.xlu0 %v4047
    %v4049 = vpop.xlane.xlu0 %4048
    %v4050 = vsel %vm2153, %v4036, -inf
    %4051 = vmax.xlane.f32.xlu0 %v4050
    %v4052 = vpop.xlane.xlu0 %4051
    %v4053 = vsel %vm2153, %v4037, -inf
    %4054 = vmax.xlane.f32.xlu0 %v4053
    %v4055 = vpop.xlane.xlu0 %4054
    %v4056 = vsub.f32 %v4032, %v4040
    %v4057 = vsub.f32 %v4033, %v4043
    %v4058 = vsub.f32 %v4034, %v4046
    %v4059 = vsub.f32 %v4035, %v4049
    %v4060 = vsub.f32 %v4036, %v4052
    %v4061 = vsub.f32 %v4037, %v4055
    %v4062 = vmul.f32 %v4056, 1.442695
    %v4063 = vpow.pop %v4062
    %v4064 = vmul.f32 %v4057, 1.442695
    %v4065 = vpow.pop %v4064
    %v4066 = vmul.f32 %v4058, 1.442695
    %v4067 = vpow.pop %v4066
    %v4068 = vmul.f32 %v4059, 1.442695
    %v4069 = vpow.pop %v4068
    %v4070 = vmul.f32 %v4060, 1.442695
    %v4071 = vpow.pop %v4070
    %v4072 = vmul.f32 %v4061, 1.442695
    %v4073 = vpow.pop %v4072
    %v4074 = vsel %vm2153, %v4063, 0.0
    %4075 = vadd.xlane.f32.xlu0 %v4074
    %v4076 = vpop.xlane.xlu0 %4075
    %v4077 = vsel %vm2153, %v4065, 0.0
    %4078 = vadd.xlane.f32.xlu0 %v4077
    %v4079 = vpop.xlane.xlu0 %4078
    %v4080 = vsel %vm2153, %v4067, 0.0
    %4081 = vadd.xlane.f32.xlu0 %v4080
    %v4082 = vpop.xlane.xlu0 %4081
    %v4083 = vsel %vm2153, %v4069, 0.0
    %4084 = vadd.xlane.f32.xlu0 %v4083
    %v4085 = vpop.xlane.xlu0 %4084
    %v4086 = vsel %vm2153, %v4071, 0.0
    %4087 = vadd.xlane.f32.xlu0 %v4086
    %v4088 = vpop.xlane.xlu0 %4087
    %v4089 = vsel %vm2153, %v4073, 0.0
    %4090 = vadd.xlane.f32.xlu0 %v4089
    %v4091 = vpop.xlane.xlu0 %4090
    %v4092 = vrcp.pop %v4076
    %v4093 = vrcp.pop %v4079
    %v4094 = vrcp.pop %v4082
    %v4095 = vrcp.pop %v4085
    %v4096 = vrcp.pop %v4088
    %v4097 = vrcp.pop %v4091
    %v4098 = vmul.f32 %v4063, %v4092
    %v4099 = vmul.f32 %v4065, %v4093
    %v4100 = vmul.f32 %v4067, %v4094
    %v4101 = vmul.f32 %v4069, %v4095
    %v4102 = vmul.f32 %v4071, %v4096
    %v4103 = vmul.f32 %v4073, %v4097
    %4104 = vrot.lane.b32.xlu0 %v3700, 56
    %v4105 = vpop.permute.xlu0 %4104
    %4106 = vrot.lane.b32.xlu0 %v3703, 56
    %v4107 = vpop.permute.xlu0 %4106
    %4108 = vrot.lane.b32.xlu0 %v3706, 56
    %v4109 = vpop.permute.xlu0 %4108
    %4110 = vrot.lane.b32.xlu0 %v3709, 56
    %v4111 = vpop.permute.xlu0 %4110
    %4112 = vrot.lane.b32.xlu0 %v3712, 56
    %v4113 = vpop.permute.xlu0 %4112
    %4114 = vrot.lane.b32.xlu0 %v3715, 56
    %v4115 = vpop.permute.xlu0 %4114
    %v4123 = vsel %vm2153, %v4098, 0
    %v4126 = vsel %vm2153, %v4099, 0
    %v4129 = vsel %vm2153, %v4100, 0
    %v4132 = vsel %vm2153, %v4101, 0
    %v4135 = vsel %vm2153, %v4102, 0
    %v4138 = vsel %vm2153, %v4103, 0
    %4140 = vmatpush.msra.mxu0 0.0
    %4141 = vmatpush.msra.mxu0 0.0
    %4142 = vmatpush.msra.mxu0 0.0
    %4143 = vmatpush.msra.mxu0 0.0
    %4144 = vmatpush.msra.mxu0 0.0
    %4145 = vmatpush.msra.mxu0 0.0
    %4146 = vmatpush.msra.mxu0 0.0
    %4147 = vmatpush.msra.mxu0 0.0
    %4148 = vmatpush.msra.mxu0 0.0
    %4149 = vmatpush.msra.mxu0 0.0
    %4150 = vmatpush.msra.mxu0 %v4115
    %4151 = vmatpush.msra.mxu0 %v4113
    %4152 = vmatpush.msra.mxu0 %v4111
    %4153 = vmatpush.msra.mxu0 %v4109
    %4154 = vmatpush.msra.mxu0 %v4107
    %4155 = vmatpush.msra.mxu0 %v4105
    %4156 = vmatmul.f32.gmra.mxu0 %v4123
    %v4157 = vpop.f32.mrf.mxu0
    %v4158 = vadd.f32 0.0, %v4157
    %4159 = vmatmul.f32.gmra.mxu0 %v4126
    %v4160 = vpop.f32.mrf.mxu0
    %v4161 = vadd.f32 0.0, %v4160
    %4162 = vmatmul.f32.gmra.mxu0 %v4129
    %v4163 = vpop.f32.mrf.mxu0
    %v4164 = vadd.f32 0.0, %v4163
    %4165 = vmatmul.f32.gmra.mxu0 %v4132
    %v4166 = vpop.f32.mrf.mxu0
    %v4167 = vadd.f32 0.0, %v4166
    %4168 = vmatmul.f32.gmra.mxu0 %v4135
    %v4169 = vpop.f32.mrf.mxu0
    %v4170 = vadd.f32 0.0, %v4169
    %4171 = vmatmul.f32.gmra.mxu0 %v4138
    %v4172 = vpop.f32.mrf.mxu0
    %v4173 = vadd.f32 0.0, %v4172
    %4174 = vdwg.mxu0
    %4175 = vrot.lane.b32.xlu0 %v3700, 112
    %v4176 = vpop.permute.xlu0 %4175
    %4177 = vrot.lane.b32.xlu0 %v3703, 112
    %v4178 = vpop.permute.xlu0 %4177
    %4179 = vrot.lane.b32.xlu0 %v3706, 112
    %v4180 = vpop.permute.xlu0 %4179
    %4181 = vrot.lane.b32.xlu0 %v3709, 112
    %v4182 = vpop.permute.xlu0 %4181
    %4183 = vrot.lane.b32.xlu0 %v3712, 112
    %v4184 = vpop.permute.xlu0 %4183
    %4185 = vrot.lane.b32.xlu0 %v3715, 112
    %v4186 = vpop.permute.xlu0 %4185
    %4187 = vrot.lane.b32.xlu0 %v3700, 80
    %v4188 = vpop.permute.xlu0 %4187
    %4189 = vrot.lane.b32.xlu0 %v3703, 80
    %v4190 = vpop.permute.xlu0 %4189
    %4191 = vrot.lane.b32.xlu0 %v3706, 80
    %v4192 = vpop.permute.xlu0 %4191
    %4193 = vrot.lane.b32.xlu0 %v3709, 80
    %v4194 = vpop.permute.xlu0 %4193
    %4195 = vrot.lane.b32.xlu0 %v3712, 80
    %v4196 = vpop.permute.xlu0 %4195
    %4197 = vrot.lane.b32.xlu0 %v3715, 80
    %v4198 = vpop.permute.xlu0 %4197
    %v4199 = vsel %vm383, %v4176, 0
    %v4201 = vsel %vm383, %v4178, 0
    %v4203 = vsel %vm383, %v4180, 0
    %v4205 = vsel %vm383, %v4182, 0
    %v4207 = vsel %vm383, %v4184, 0
    %v4209 = vsel %vm383, %v4186, 0
    %v4211 = vsel %vm383, %v4188, 0
    %v4213 = vsel %vm383, %v4190, 0
    %v4215 = vsel %vm383, %v4192, 0
    %v4217 = vsel %vm383, %v4194, 0
    %v4219 = vsel %vm383, %v4196, 0
    %v4221 = vsel %vm383, %v4198, 0
    %4223 = vmatpush.xpose.msra.mxu0 0.0
    %4224 = vmatpush.xpose.msra.mxu0 0.0
    %4225 = vmatpush.xpose.msra.mxu0 0.0
    %4226 = vmatpush.xpose.msra.mxu0 0.0
    %4227 = vmatpush.xpose.msra.mxu0 0.0
    %4228 = vmatpush.xpose.msra.mxu0 0.0
    %4229 = vmatpush.xpose.msra.mxu0 0.0
    %4230 = vmatpush.xpose.msra.mxu0 0.0
    %4231 = vmatpush.xpose.msra.mxu0 0.0
    %4232 = vmatpush.xpose.msra.mxu0 0.0
    %4233 = vmatpush.xpose.msra.mxu0 %v4221
    %4234 = vmatpush.xpose.msra.mxu0 %v4219
    %4235 = vmatpush.xpose.msra.mxu0 %v4217
    %4236 = vmatpush.xpose.msra.mxu0 %v4215
    %4237 = vmatpush.xpose.msra.mxu0 %v4213
    %4238 = vmatpush.xpose.msra.mxu0 %v4211
    %4239 = vmatmul.f32.gmra.mxu0 %v4199
    %v4240 = vpop.f32.mrf.mxu0
    %v4241 = vadd.f32 0.0, %v4240
    %4242 = vmatmul.f32.gmra.mxu0 %v4201
    %v4243 = vpop.f32.mrf.mxu0
    %v4244 = vadd.f32 0.0, %v4243
    %4245 = vmatmul.f32.gmra.mxu0 %v4203
    %v4246 = vpop.f32.mrf.mxu0
    %v4247 = vadd.f32 0.0, %v4246
    %4248 = vmatmul.f32.gmra.mxu0 %v4205
    %v4249 = vpop.f32.mrf.mxu0
    %v4250 = vadd.f32 0.0, %v4249
    %4251 = vmatmul.f32.gmra.mxu0 %v4207
    %v4252 = vpop.f32.mrf.mxu0
    %v4253 = vadd.f32 0.0, %v4252
    %4254 = vmatmul.f32.gmra.mxu0 %v4209
    %v4255 = vpop.f32.mrf.mxu0
    %v4256 = vadd.f32 0.0, %v4255
    %4257 = vdwg.mxu0
    %v4258 = vmul.f32 %v4241, 0.35355338
    %v4259 = vmul.f32 %v4244, 0.35355338
    %v4260 = vmul.f32 %v4247, 0.35355338
    %v4261 = vmul.f32 %v4250, 0.35355338
    %v4262 = vmul.f32 %v4253, 0.35355338
    %v4263 = vmul.f32 %v4256, 0.35355338
    %v4264 = vadd.f32 %v4258, %v1858
    %v4265 = vadd.f32 %v4259, %v1859
    %v4266 = vadd.f32 %v4260, %v1860
    %v4267 = vadd.f32 %v4261, %v1861
    %v4268 = vadd.f32 %v4262, %v1862
    %v4269 = vadd.f32 %v4263, %v1863
    %v4270 = vsel %vm2153, %v4264, -inf
    %4271 = vmax.xlane.f32.xlu0 %v4270
    %v4272 = vpop.xlane.xlu0 %4271
    %v4273 = vsel %vm2153, %v4265, -inf
    %4274 = vmax.xlane.f32.xlu0 %v4273
    %v4275 = vpop.xlane.xlu0 %4274
    %v4276 = vsel %vm2153, %v4266, -inf
    %4277 = vmax.xlane.f32.xlu0 %v4276
    %v4278 = vpop.xlane.xlu0 %4277
    %v4279 = vsel %vm2153, %v4267, -inf
    %4280 = vmax.xlane.f32.xlu0 %v4279
    %v4281 = vpop.xlane.xlu0 %4280
    %v4282 = vsel %vm2153, %v4268, -inf
    %4283 = vmax.xlane.f32.xlu0 %v4282
    %v4284 = vpop.xlane.xlu0 %4283
    %v4285 = vsel %vm2153, %v4269, -inf
    %4286 = vmax.xlane.f32.xlu0 %v4285
    %v4287 = vpop.xlane.xlu0 %4286
    %v4288 = vsub.f32 %v4264, %v4272
    %v4289 = vsub.f32 %v4265, %v4275
    %v4290 = vsub.f32 %v4266, %v4278
    %v4291 = vsub.f32 %v4267, %v4281
    %v4292 = vsub.f32 %v4268, %v4284
    %v4293 = vsub.f32 %v4269, %v4287
    %v4294 = vmul.f32 %v4288, 1.442695
    %v4295 = vpow.pop %v4294
    %v4296 = vmul.f32 %v4289, 1.442695
    %v4297 = vpow.pop %v4296
    %v4298 = vmul.f32 %v4290, 1.442695
    %v4299 = vpow.pop %v4298
    %v4300 = vmul.f32 %v4291, 1.442695
    %v4301 = vpow.pop %v4300
    %v4302 = vmul.f32 %v4292, 1.442695
    %v4303 = vpow.pop %v4302
    %v4304 = vmul.f32 %v4293, 1.442695
    %v4305 = vpow.pop %v4304
    %v4306 = vsel %vm2153, %v4295, 0.0
    %4307 = vadd.xlane.f32.xlu0 %v4306
    %v4308 = vpop.xlane.xlu0 %4307
    %v4309 = vsel %vm2153, %v4297, 0.0
    %4310 = vadd.xlane.f32.xlu0 %v4309
    %v4311 = vpop.xlane.xlu0 %4310
    %v4312 = vsel %vm2153, %v4299, 0.0
    %4313 = vadd.xlane.f32.xlu0 %v4312
    %v4314 = vpop.xlane.xlu0 %4313
    %v4315 = vsel %vm2153, %v4301, 0.0
    %4316 = vadd.xlane.f32.xlu0 %v4315
    %v4317 = vpop.xlane.xlu0 %4316
    %v4318 = vsel %vm2153, %v4303, 0.0
    %4319 = vadd.xlane.f32.xlu0 %v4318
    %v4320 = vpop.xlane.xlu0 %4319
    %v4321 = vsel %vm2153, %v4305, 0.0
    %4322 = vadd.xlane.f32.xlu0 %v4321
    %v4323 = vpop.xlane.xlu0 %4322
    %v4324 = vrcp.pop %v4308
    %v4325 = vrcp.pop %v4311
    %v4326 = vrcp.pop %v4314
    %v4327 = vrcp.pop %v4317
    %v4328 = vrcp.pop %v4320
    %v4329 = vrcp.pop %v4323
    %v4330 = vmul.f32 %v4295, %v4324
    %v4331 = vmul.f32 %v4297, %v4325
    %v4332 = vmul.f32 %v4299, %v4326
    %v4333 = vmul.f32 %v4301, %v4327
    %v4334 = vmul.f32 %v4303, %v4328
    %v4335 = vmul.f32 %v4305, %v4329
    %4336 = vrot.lane.b32.xlu0 %v3700, 48
    %v4337 = vpop.permute.xlu0 %4336
    %4338 = vrot.lane.b32.xlu0 %v3703, 48
    %v4339 = vpop.permute.xlu0 %4338
    %4340 = vrot.lane.b32.xlu0 %v3706, 48
    %v4341 = vpop.permute.xlu0 %4340
    %4342 = vrot.lane.b32.xlu0 %v3709, 48
    %v4343 = vpop.permute.xlu0 %4342
    %4344 = vrot.lane.b32.xlu0 %v3712, 48
    %v4345 = vpop.permute.xlu0 %4344
    %4346 = vrot.lane.b32.xlu0 %v3715, 48
    %v4347 = vpop.permute.xlu0 %4346
    %v4355 = vsel %vm2153, %v4330, 0
    %v4358 = vsel %vm2153, %v4331, 0
    %v4361 = vsel %vm2153, %v4332, 0
    %v4364 = vsel %vm2153, %v4333, 0
    %v4367 = vsel %vm2153, %v4334, 0
    %v4370 = vsel %vm2153, %v4335, 0
    %4372 = vmatpush.msra.mxu0 0.0
    %4373 = vmatpush.msra.mxu0 0.0
    %4374 = vmatpush.msra.mxu0 0.0
    %4375 = vmatpush.msra.mxu0 0.0
    %4376 = vmatpush.msra.mxu0 0.0
    %4377 = vmatpush.msra.mxu0 0.0
    %4378 = vmatpush.msra.mxu0 0.0
    %4379 = vmatpush.msra.mxu0 0.0
    %4380 = vmatpush.msra.mxu0 0.0
    %4381 = vmatpush.msra.mxu0 0.0
    %4382 = vmatpush.msra.mxu0 %v4347
    %4383 = vmatpush.msra.mxu0 %v4345
    %4384 = vmatpush.msra.mxu0 %v4343
    %4385 = vmatpush.msra.mxu0 %v4341
    %4386 = vmatpush.msra.mxu0 %v4339
    %4387 = vmatpush.msra.mxu0 %v4337
    %4388 = vmatmul.f32.gmra.mxu0 %v4355
    %v4389 = vpop.f32.mrf.mxu0
    %v4390 = vadd.f32 0.0, %v4389
    %4391 = vmatmul.f32.gmra.mxu0 %v4358
    %v4392 = vpop.f32.mrf.mxu0
    %v4393 = vadd.f32 0.0, %v4392
    %4394 = vmatmul.f32.gmra.mxu0 %v4361
    %v4395 = vpop.f32.mrf.mxu0
    %v4396 = vadd.f32 0.0, %v4395
    %4397 = vmatmul.f32.gmra.mxu0 %v4364
    %v4398 = vpop.f32.mrf.mxu0
    %v4399 = vadd.f32 0.0, %v4398
    %4400 = vmatmul.f32.gmra.mxu0 %v4367
    %v4401 = vpop.f32.mrf.mxu0
    %v4402 = vadd.f32 0.0, %v4401
    %4403 = vmatmul.f32.gmra.mxu0 %v4370
    %v4404 = vpop.f32.mrf.mxu0
    %v4405 = vadd.f32 0.0, %v4404
    %4406 = vdwg.mxu0
    %4407 = vrot.lane.b32.xlu0 %v3700, 104
    %v4408 = vpop.permute.xlu0 %4407
    %4409 = vrot.lane.b32.xlu0 %v3703, 104
    %v4410 = vpop.permute.xlu0 %4409
    %4411 = vrot.lane.b32.xlu0 %v3706, 104
    %v4412 = vpop.permute.xlu0 %4411
    %4413 = vrot.lane.b32.xlu0 %v3709, 104
    %v4414 = vpop.permute.xlu0 %4413
    %4415 = vrot.lane.b32.xlu0 %v3712, 104
    %v4416 = vpop.permute.xlu0 %4415
    %4417 = vrot.lane.b32.xlu0 %v3715, 104
    %v4418 = vpop.permute.xlu0 %4417
    %4419 = vrot.lane.b32.xlu0 %v3700, 72
    %v4420 = vpop.permute.xlu0 %4419
    %4421 = vrot.lane.b32.xlu0 %v3703, 72
    %v4422 = vpop.permute.xlu0 %4421
    %4423 = vrot.lane.b32.xlu0 %v3706, 72
    %v4424 = vpop.permute.xlu0 %4423
    %4425 = vrot.lane.b32.xlu0 %v3709, 72
    %v4426 = vpop.permute.xlu0 %4425
    %4427 = vrot.lane.b32.xlu0 %v3712, 72
    %v4428 = vpop.permute.xlu0 %4427
    %4429 = vrot.lane.b32.xlu0 %v3715, 72
    %v4430 = vpop.permute.xlu0 %4429
    %v4431 = vsel %vm383, %v4408, 0
    %v4433 = vsel %vm383, %v4410, 0
    %v4435 = vsel %vm383, %v4412, 0
    %v4437 = vsel %vm383, %v4414, 0
    %v4439 = vsel %vm383, %v4416, 0
    %v4441 = vsel %vm383, %v4418, 0
    %v4443 = vsel %vm383, %v4420, 0
    %v4445 = vsel %vm383, %v4422, 0
    %v4447 = vsel %vm383, %v4424, 0
    %v4449 = vsel %vm383, %v4426, 0
    %v4451 = vsel %vm383, %v4428, 0
    %v4453 = vsel %vm383, %v4430, 0
    %4455 = vmatpush.xpose.msra.mxu0 0.0
    %4456 = vmatpush.xpose.msra.mxu0 0.0
    %4457 = vmatpush.xpose.msra.mxu0 0.0
    %4458 = vmatpush.xpose.msra.mxu0 0.0
    %4459 = vmatpush.xpose.msra.mxu0 0.0
    %4460 = vmatpush.xpose.msra.mxu0 0.0
    %4461 = vmatpush.xpose.msra.mxu0 0.0
    %4462 = vmatpush.xpose.msra.mxu0 0.0
    %4463 = vmatpush.xpose.msra.mxu0 0.0
    %4464 = vmatpush.xpose.msra.mxu0 0.0
    %4465 = vmatpush.xpose.msra.mxu0 %v4453
    %4466 = vmatpush.xpose.msra.mxu0 %v4451
    %4467 = vmatpush.xpose.msra.mxu0 %v4449
    %4468 = vmatpush.xpose.msra.mxu0 %v4447
    %4469 = vmatpush.xpose.msra.mxu0 %v4445
    %4470 = vmatpush.xpose.msra.mxu0 %v4443
    %4471 = vmatmul.f32.gmra.mxu0 %v4431
    %v4472 = vpop.f32.mrf.mxu0
    %v4473 = vadd.f32 0.0, %v4472
    %4474 = vmatmul.f32.gmra.mxu0 %v4433
    %v4475 = vpop.f32.mrf.mxu0
    %v4476 = vadd.f32 0.0, %v4475
    %4477 = vmatmul.f32.gmra.mxu0 %v4435
    %v4478 = vpop.f32.mrf.mxu0
    %v4479 = vadd.f32 0.0, %v4478
    %4480 = vmatmul.f32.gmra.mxu0 %v4437
    %v4481 = vpop.f32.mrf.mxu0
    %v4482 = vadd.f32 0.0, %v4481
    %4483 = vmatmul.f32.gmra.mxu0 %v4439
    %v4484 = vpop.f32.mrf.mxu0
    %v4485 = vadd.f32 0.0, %v4484
    %4486 = vmatmul.f32.gmra.mxu0 %v4441
    %v4487 = vpop.f32.mrf.mxu0
    %v4488 = vadd.f32 0.0, %v4487
    %4489 = vdwg.mxu0
    %v4490 = vmul.f32 %v4473, 0.35355338
    %v4491 = vmul.f32 %v4476, 0.35355338
    %v4492 = vmul.f32 %v4479, 0.35355338
    %v4493 = vmul.f32 %v4482, 0.35355338
    %v4494 = vmul.f32 %v4485, 0.35355338
    %v4495 = vmul.f32 %v4488, 0.35355338
    %v4496 = vadd.f32 %v4490, %v1858
    %v4497 = vadd.f32 %v4491, %v1859
    %v4498 = vadd.f32 %v4492, %v1860
    %v4499 = vadd.f32 %v4493, %v1861
    %v4500 = vadd.f32 %v4494, %v1862
    %v4501 = vadd.f32 %v4495, %v1863
    %v4502 = vsel %vm2153, %v4496, -inf
    %4503 = vmax.xlane.f32.xlu0 %v4502
    %v4504 = vpop.xlane.xlu0 %4503
    %v4505 = vsel %vm2153, %v4497, -inf
    %4506 = vmax.xlane.f32.xlu0 %v4505
    %v4507 = vpop.xlane.xlu0 %4506
    %v4508 = vsel %vm2153, %v4498, -inf
    %4509 = vmax.xlane.f32.xlu0 %v4508
    %v4510 = vpop.xlane.xlu0 %4509
    %v4511 = vsel %vm2153, %v4499, -inf
    %4512 = vmax.xlane.f32.xlu0 %v4511
    %v4513 = vpop.xlane.xlu0 %4512
    %v4514 = vsel %vm2153, %v4500, -inf
    %4515 = vmax.xlane.f32.xlu0 %v4514
    %v4516 = vpop.xlane.xlu0 %4515
    %v4517 = vsel %vm2153, %v4501, -inf
    %4518 = vmax.xlane.f32.xlu0 %v4517
    %v4519 = vpop.xlane.xlu0 %4518
    %v4520 = vsub.f32 %v4496, %v4504
    %v4521 = vsub.f32 %v4497, %v4507
    %v4522 = vsub.f32 %v4498, %v4510
    %v4523 = vsub.f32 %v4499, %v4513
    %v4524 = vsub.f32 %v4500, %v4516
    %v4525 = vsub.f32 %v4501, %v4519
    %v4526 = vmul.f32 %v4520, 1.442695
    %v4527 = vpow.pop %v4526
    %v4528 = vmul.f32 %v4521, 1.442695
    %v4529 = vpow.pop %v4528
    %v4530 = vmul.f32 %v4522, 1.442695
    %v4531 = vpow.pop %v4530
    %v4532 = vmul.f32 %v4523, 1.442695
    %v4533 = vpow.pop %v4532
    %v4534 = vmul.f32 %v4524, 1.442695
    %v4535 = vpow.pop %v4534
    %v4536 = vmul.f32 %v4525, 1.442695
    %v4537 = vpow.pop %v4536
    %v4538 = vsel %vm2153, %v4527, 0.0
    %4539 = vadd.xlane.f32.xlu0 %v4538
    %v4540 = vpop.xlane.xlu0 %4539
    %v4541 = vsel %vm2153, %v4529, 0.0
    %4542 = vadd.xlane.f32.xlu0 %v4541
    %v4543 = vpop.xlane.xlu0 %4542
    %v4544 = vsel %vm2153, %v4531, 0.0
    %4545 = vadd.xlane.f32.xlu0 %v4544
    %v4546 = vpop.xlane.xlu0 %4545
    %v4547 = vsel %vm2153, %v4533, 0.0
    %4548 = vadd.xlane.f32.xlu0 %v4547
    %v4549 = vpop.xlane.xlu0 %4548
    %v4550 = vsel %vm2153, %v4535, 0.0
    %4551 = vadd.xlane.f32.xlu0 %v4550
    %v4552 = vpop.xlane.xlu0 %4551
    %v4553 = vsel %vm2153, %v4537, 0.0
    %4554 = vadd.xlane.f32.xlu0 %v4553
    %v4555 = vpop.xlane.xlu0 %4554
    %v4556 = vrcp.pop %v4540
    %v4557 = vrcp.pop %v4543
    %v4558 = vrcp.pop %v4546
    %v4559 = vrcp.pop %v4549
    %v4560 = vrcp.pop %v4552
    %v4561 = vrcp.pop %v4555
    %v4562 = vmul.f32 %v4527, %v4556
    %v4563 = vmul.f32 %v4529, %v4557
    %v4564 = vmul.f32 %v4531, %v4558
    %v4565 = vmul.f32 %v4533, %v4559
    %v4566 = vmul.f32 %v4535, %v4560
    %v4567 = vmul.f32 %v4537, %v4561
    %4568 = vrot.lane.b32.xlu0 %v3700, 40
    %v4569 = vpop.permute.xlu0 %4568
    %4570 = vrot.lane.b32.xlu0 %v3703, 40
    %v4571 = vpop.permute.xlu0 %4570
    %4572 = vrot.lane.b32.xlu0 %v3706, 40
    %v4573 = vpop.permute.xlu0 %4572
    %4574 = vrot.lane.b32.xlu0 %v3709, 40
    %v4575 = vpop.permute.xlu0 %4574
    %4576 = vrot.lane.b32.xlu0 %v3712, 40
    %v4577 = vpop.permute.xlu0 %4576
    %4578 = vrot.lane.b32.xlu0 %v3715, 40
    %v4579 = vpop.permute.xlu0 %4578
    %v4587 = vsel %vm2153, %v4562, 0
    %v4590 = vsel %vm2153, %v4563, 0
    %v4593 = vsel %vm2153, %v4564, 0
    %v4596 = vsel %vm2153, %v4565, 0
    %v4599 = vsel %vm2153, %v4566, 0
    %v4602 = vsel %vm2153, %v4567, 0
    %4604 = vmatpush.msra.mxu0 0.0
    %4605 = vmatpush.msra.mxu0 0.0
    %4606 = vmatpush.msra.mxu0 0.0
    %4607 = vmatpush.msra.mxu0 0.0
    %4608 = vmatpush.msra.mxu0 0.0
    %4609 = vmatpush.msra.mxu0 0.0
    %4610 = vmatpush.msra.mxu0 0.0
    %4611 = vmatpush.msra.mxu0 0.0
    %4612 = vmatpush.msra.mxu0 0.0
    %4613 = vmatpush.msra.mxu0 0.0
    %4614 = vmatpush.msra.mxu0 %v4579
    %4615 = vmatpush.msra.mxu0 %v4577
    %4616 = vmatpush.msra.mxu0 %v4575
    %4617 = vmatpush.msra.mxu0 %v4573
    %4618 = vmatpush.msra.mxu0 %v4571
    %4619 = vmatpush.msra.mxu0 %v4569
    %4620 = vmatmul.f32.gmra.mxu0 %v4587
    %v4621 = vpop.f32.mrf.mxu0
    %v4622 = vadd.f32 0.0, %v4621
    %4623 = vmatmul.f32.gmra.mxu0 %v4590
    %v4624 = vpop.f32.mrf.mxu0
    %v4625 = vadd.f32 0.0, %v4624
    %4626 = vmatmul.f32.gmra.mxu0 %v4593
    %v4627 = vpop.f32.mrf.mxu0
    %v4628 = vadd.f32 0.0, %v4627
    %4629 = vmatmul.f32.gmra.mxu0 %v4596
    %v4630 = vpop.f32.mrf.mxu0
    %v4631 = vadd.f32 0.0, %v4630
    %4632 = vmatmul.f32.gmra.mxu0 %v4599
    %v4633 = vpop.f32.mrf.mxu0
    %v4634 = vadd.f32 0.0, %v4633
    %4635 = vmatmul.f32.gmra.mxu0 %v4602
    %v4636 = vpop.f32.mrf.mxu0
    %v4637 = vadd.f32 0.0, %v4636
    %4638 = vdwg.mxu0
    %4645 = vrot.lane.b32.xlu0 %v4158, 8
    %v4646 = vpop.permute.xlu0 %4645
    %4647 = vrot.lane.b32.xlu0 %v4161, 8
    %v4648 = vpop.permute.xlu0 %4647
    %4649 = vrot.lane.b32.xlu0 %v4164, 8
    %v4650 = vpop.permute.xlu0 %4649
    %4651 = vrot.lane.b32.xlu0 %v4167, 8
    %v4652 = vpop.permute.xlu0 %4651
    %4653 = vrot.lane.b32.xlu0 %v4170, 8
    %v4654 = vpop.permute.xlu0 %4653
    %4655 = vrot.lane.b32.xlu0 %v4173, 8
    %v4656 = vpop.permute.xlu0 %4655
    %4669 = vrot.lane.b32.xlu0 %v4390, 16
    %v4670 = vpop.permute.xlu0 %4669
    %4671 = vrot.lane.b32.xlu0 %v4393, 16
    %v4672 = vpop.permute.xlu0 %4671
    %4673 = vrot.lane.b32.xlu0 %v4396, 16
    %v4674 = vpop.permute.xlu0 %4673
    %4675 = vrot.lane.b32.xlu0 %v4399, 16
    %v4676 = vpop.permute.xlu0 %4675
    %4677 = vrot.lane.b32.xlu0 %v4402, 16
    %v4678 = vpop.permute.xlu0 %4677
    %4679 = vrot.lane.b32.xlu0 %v4405, 16
    %v4680 = vpop.permute.xlu0 %4679
    %4693 = vrot.lane.b32.xlu0 %v4622, 24
    %v4694 = vpop.permute.xlu0 %4693
    %4695 = vrot.lane.b32.xlu0 %v4625, 24
    %v4696 = vpop.permute.xlu0 %4695
    %4697 = vrot.lane.b32.xlu0 %v4628, 24
    %v4698 = vpop.permute.xlu0 %4697
    %4699 = vrot.lane.b32.xlu0 %v4631, 24
    %v4700 = vpop.permute.xlu0 %4699
    %4701 = vrot.lane.b32.xlu0 %v4634, 24
    %v4702 = vpop.permute.xlu0 %4701
    %4703 = vrot.lane.b32.xlu0 %v4637, 24
    %v4704 = vpop.permute.xlu0 %4703
    %v4711 = vsel %vm383, %v3926, %v4646
    %v4712 = vsel %vm383, %v3929, %v4648
    %v4713 = vsel %vm383, %v3932, %v4650
    %v4714 = vsel %vm383, %v3935, %v4652
    %v4715 = vsel %vm383, %v3938, %v4654
    %v4716 = vsel %vm383, %v3941, %v4656
    %v4717 = vsel %vm809, %v4711, %v4670
    %v4718 = vsel %vm809, %v4712, %v4672
    %v4719 = vsel %vm809, %v4713, %v4674
    %v4720 = vsel %vm809, %v4714, %v4676
    %v4721 = vsel %vm809, %v4715, %v4678
    %v4722 = vsel %vm809, %v4716, %v4680
    %v4723 = vsel %vm812, %v4717, %v4694
    %v4724 = vsel %vm812, %v4718, %v4696
    %v4725 = vsel %vm812, %v4719, %v4698
    %v4726 = vsel %vm812, %v4720, %v4700
    %v4727 = vsel %vm812, %v4721, %v4702
    %v4728 = vsel %vm812, %v4722, %v4704
    %v4730 = vsel %vm178, %v4723, 0
    %v4733 = vsel %vm178, %v4724, 0
    %v4736 = vsel %vm178, %v4725, 0
    %v4739 = vsel %vm178, %v4726, 0
    %v4742 = vsel %vm178, %v4727, 0
    %v4745 = vsel %vm178, %v4728, 0
    %4747 = vmatpush.msra.mxu0 0.0
    %4748 = vmatpush.msra.mxu0 0.0
    %4749 = vmatpush.msra.mxu0 0.0
    %4750 = vmatpush.msra.mxu0 0.0
    %4751 = vmatpush.msra.mxu0 0.0
    %4752 = vmatpush.msra.mxu0 0.0
    %4753 = vmatpush.msra.mxu0 0.0
    %4754 = vmatpush.msra.mxu0 0.0
    %4755 = vmatpush.msra.mxu0 0.0
    %4756 = vmatpush.msra.mxu0 0.0
    %4757 = vmatpush.msra.mxu0 0.0
    %4758 = vmatpush.msra.mxu0 0.0
    %4759 = vmatpush.msra.mxu0 %v1815
    %4760 = vmatpush.msra.mxu0 %v1814
    %4761 = vmatpush.msra.mxu0 %v1813
    %4762 = vmatpush.msra.mxu0 %v1812
    %4763 = vmatmul.f32.gmra.mxu0 %v4730
    %v4764 = vpop.f32.mrf.mxu0
    %v4765 = vadd.f32 0.0, %v4764
    %4766 = vmatmul.f32.gmra.mxu0 %v4733
    %v4767 = vpop.f32.mrf.mxu0
    %v4768 = vadd.f32 0.0, %v4767
    %4769 = vmatmul.f32.gmra.mxu0 %v4736
    %v4770 = vpop.f32.mrf.mxu0
    %v4771 = vadd.f32 0.0, %v4770
    %4772 = vmatmul.f32.gmra.mxu0 %v4739
    %v4773 = vpop.f32.mrf.mxu0
    %v4774 = vadd.f32 0.0, %v4773
    %4775 = vmatmul.f32.gmra.mxu0 %v4742
    %v4776 = vpop.f32.mrf.mxu0
    %v4777 = vadd.f32 0.0, %v4776
    %4778 = vmatmul.f32.gmra.mxu0 %v4745
    %v4779 = vpop.f32.mrf.mxu0
    %v4780 = vadd.f32 0.0, %v4779
    %4781 = vdwg.mxu0
    %v4782 = vadd.f32 %v3511, %v4765
    %v4783 = vadd.f32 %v3512, %v4768
    %v4784 = vadd.f32 %v3513, %v4771
    %v4785 = vadd.f32 %v3514, %v4774
    %v4786 = vadd.f32 %v3515, %v4777
    %v4787 = vadd.f32 %v3516, %v4780
    %v4788 = vperm.slane %v1857, 1
    %v4789 = vadd.f32 %v4782, %v4788
    %v4790 = vadd.f32 %v4783, %v4788
    %v4791 = vadd.f32 %v4784, %v4788
    %v4792 = vadd.f32 %v4785, %v4788
    %v4793 = vadd.f32 %v4786, %v4788
    %v4794 = vadd.f32 %v4787, %v4788
    %v4795 = vsel %vm178, %v4789, 0.0
    %4796 = vadd.xlane.f32.xlu0 %v4795
    %v4797 = vpop.xlane.xlu0 %4796
    %v4798 = vsel %vm178, %v4790, 0.0
    %4799 = vadd.xlane.f32.xlu0 %v4798
    %v4800 = vpop.xlane.xlu0 %4799
    %v4801 = vsel %vm178, %v4791, 0.0
    %4802 = vadd.xlane.f32.xlu0 %v4801
    %v4803 = vpop.xlane.xlu0 %4802
    %v4804 = vsel %vm178, %v4792, 0.0
    %4805 = vadd.xlane.f32.xlu0 %v4804
    %v4806 = vpop.xlane.xlu0 %4805
    %v4807 = vsel %vm178, %v4793, 0.0
    %4808 = vadd.xlane.f32.xlu0 %v4807
    %v4809 = vpop.xlane.xlu0 %4808
    %v4810 = vsel %vm178, %v4794, 0.0
    %4811 = vadd.xlane.f32.xlu0 %v4810
    %v4812 = vpop.xlane.xlu0 %4811
    %v4813 = vmul.f32 %v4797, %v192
    %v4814 = vmul.f32 %v4800, %v192
    %v4815 = vmul.f32 %v4803, %v192
    %v4816 = vmul.f32 %v4806, %v192
    %v4817 = vmul.f32 %v4809, %v192
    %v4818 = vmul.f32 %v4812, %v192
    %v4819 = vsub.f32 %v4789, %v4813
    %v4820 = vsub.f32 %v4790, %v4814
    %v4821 = vsub.f32 %v4791, %v4815
    %v4822 = vsub.f32 %v4792, %v4816
    %v4823 = vsub.f32 %v4793, %v4817
    %v4824 = vsub.f32 %v4794, %v4818
    %v4825 = vmul.f32 %v4819, %v4819
    %v4826 = vmul.f32 %v4820, %v4820
    %v4827 = vmul.f32 %v4821, %v4821
    %v4828 = vmul.f32 %v4822, %v4822
    %v4829 = vmul.f32 %v4823, %v4823
    %v4830 = vmul.f32 %v4824, %v4824
    %v4831 = vsel %vm178, %v4825, 0.0
    %4832 = vadd.xlane.f32.xlu0 %v4831
    %v4833 = vpop.xlane.xlu0 %4832
    %v4834 = vsel %vm178, %v4826, 0.0
    %4835 = vadd.xlane.f32.xlu0 %v4834
    %v4836 = vpop.xlane.xlu0 %4835
    %v4837 = vsel %vm178, %v4827, 0.0
    %4838 = vadd.xlane.f32.xlu0 %v4837
    %v4839 = vpop.xlane.xlu0 %4838
    %v4840 = vsel %vm178, %v4828, 0.0
    %4841 = vadd.xlane.f32.xlu0 %v4840
    %v4842 = vpop.xlane.xlu0 %4841
    %v4843 = vsel %vm178, %v4829, 0.0
    %4844 = vadd.xlane.f32.xlu0 %v4843
    %v4845 = vpop.xlane.xlu0 %4844
    %v4846 = vsel %vm178, %v4830, 0.0
    %4847 = vadd.xlane.f32.xlu0 %v4846
    %v4848 = vpop.xlane.xlu0 %4847
    %v4849 = vmul.f32 %v4833, %v192
    %v4850 = vmul.f32 %v4836, %v192
    %v4851 = vmul.f32 %v4839, %v192
    %v4852 = vmul.f32 %v4842, %v192
    %v4853 = vmul.f32 %v4845, %v192
    %v4854 = vmul.f32 %v4848, %v192
    %v4855 = vadd.f32 %v4849, 1e-05
    %v4856 = vadd.f32 %v4850, 1e-05
    %v4857 = vadd.f32 %v4851, 1e-05
    %v4858 = vadd.f32 %v4852, 1e-05
    %v4859 = vadd.f32 %v4853, 1e-05
    %v4860 = vadd.f32 %v4854, 1e-05
    %v4861 = vrsqrt.pop %v4855
    %v4862 = vmul.f32 %v4861, %v4855
    %v4863 = vmul.f32 %v4862, %v4861
    %v4864 = vmul.f32 0.5, %v4863
    %v4865 = vsub.f32 1.5, %v4864
    %v4866 = vmul.f32 %v4861, %v4865
    %vm4867 = vweird.f32 %v4855
    %vm4868 = vweird.f32 %v4861
    %vm4869 = vmor %vm4867, %vm4868
    %v4870 = vsel %vm4869, %v4861, %v4866
    %v4871 = vrsqrt.pop %v4856
    %v4872 = vmul.f32 %v4871, %v4856
    %v4873 = vmul.f32 %v4872, %v4871
    %v4874 = vmul.f32 0.5, %v4873
    %v4875 = vsub.f32 1.5, %v4874
    %v4876 = vmul.f32 %v4871, %v4875
    %vm4877 = vweird.f32 %v4856
    %vm4878 = vweird.f32 %v4871
    %vm4879 = vmor %vm4877, %vm4878
    %v4880 = vsel %vm4879, %v4871, %v4876
    %v4881 = vrsqrt.pop %v4857
    %v4882 = vmul.f32 %v4881, %v4857
    %v4883 = vmul.f32 %v4882, %v4881
    %v4884 = vmul.f32 0.5, %v4883
    %v4885 = vsub.f32 1.5, %v4884
    %v4886 = vmul.f32 %v4881, %v4885
    %vm4887 = vweird.f32 %v4857
    %vm4888 = vweird.f32 %v4881
    %vm4889 = vmor %vm4887, %vm4888
    %v4890 = vsel %vm4889, %v4881, %v4886
    %v4891 = vrsqrt.pop %v4858
    %v4892 = vmul.f32 %v4891, %v4858
    %v4893 = vmul.f32 %v4892, %v4891
    %v4894 = vmul.f32 0.5, %v4893
    %v4895 = vsub.f32 1.5, %v4894
    %v4896 = vmul.f32 %v4891, %v4895
    %vm4897 = vweird.f32 %v4858
    %vm4898 = vweird.f32 %v4891
    %vm4899 = vmor %vm4897, %vm4898
    %v4900 = vsel %vm4899, %v4891, %v4896
    %v4901 = vrsqrt.pop %v4859
    %v4902 = vmul.f32 %v4901, %v4859
    %v4903 = vmul.f32 %v4902, %v4901
    %v4904 = vmul.f32 0.5, %v4903
    %v4905 = vsub.f32 1.5, %v4904
    %v4906 = vmul.f32 %v4901, %v4905
    %vm4907 = vweird.f32 %v4859
    %vm4908 = vweird.f32 %v4901
    %vm4909 = vmor %vm4907, %vm4908
    %v4910 = vsel %vm4909, %v4901, %v4906
    %v4911 = vrsqrt.pop %v4860
    %v4912 = vmul.f32 %v4911, %v4860
    %v4913 = vmul.f32 %v4912, %v4911
    %v4914 = vmul.f32 0.5, %v4913
    %v4915 = vsub.f32 1.5, %v4914
    %v4916 = vmul.f32 %v4911, %v4915
    %vm4917 = vweird.f32 %v4860
    %vm4918 = vweird.f32 %v4911
    %vm4919 = vmor %vm4917, %vm4918
    %v4920 = vsel %vm4919, %v4911, %v4916
    %v4921 = vmul.f32 %v4819, %v4870
    %v4922 = vmul.f32 %v4820, %v4880
    %v4923 = vmul.f32 %v4821, %v4890
    %v4924 = vmul.f32 %v4822, %v4900
    %v4925 = vmul.f32 %v4823, %v4910
    %v4926 = vmul.f32 %v4824, %v4920
    %v4927 = vperm.slane %v1857, 4
    %v4928 = vmul.f32 %v4921, %v4927
    %v4929 = vmul.f32 %v4922, %v4927
    %v4930 = vmul.f32 %v4923, %v4927
    %v4931 = vmul.f32 %v4924, %v4927
    %v4932 = vmul.f32 %v4925, %v4927
    %v4933 = vmul.f32 %v4926, %v4927
    %v4934 = vperm.slane %v1857, 5
    %v4935 = vadd.f32 %v4928, %v4934
    %v4936 = vadd.f32 %v4929, %v4934
    %v4937 = vadd.f32 %v4930, %v4934
    %v4938 = vadd.f32 %v4931, %v4934
    %v4939 = vadd.f32 %v4932, %v4934
    %v4940 = vadd.f32 %v4933, %v4934
    %v4941 = vperm.slane %v1857, 6
    %v4943 = vsel %vm178, %v4935, 0
    %v4946 = vsel %vm178, %v4936, 0
    %v4949 = vsel %vm178, %v4937, 0
    %v4952 = vsel %vm178, %v4938, 0
    %v4955 = vsel %vm178, %v4939, 0
    %v4958 = vsel %vm178, %v4940, 0
    %4960 = vmatpush.msra.mxu0 0.0
    %4961 = vmatpush.msra.mxu0 0.0
    %4962 = vmatpush.msra.mxu0 0.0
    %4963 = vmatpush.msra.mxu0 0.0
    %4964 = vmatpush.msra.mxu0 0.0
    %4965 = vmatpush.msra.mxu0 0.0
    %4966 = vmatpush.msra.mxu0 0.0
    %4967 = vmatpush.msra.mxu0 0.0
    %4968 = vmatpush.msra.mxu0 0.0
    %4969 = vmatpush.msra.mxu0 0.0
    %4970 = vmatpush.msra.mxu0 0.0
    %4971 = vmatpush.msra.mxu0 0.0
    %4972 = vmatpush.msra.mxu0 %v1823
    %4973 = vmatpush.msra.mxu0 %v1822
    %4974 = vmatpush.msra.mxu0 %v1821
    %4975 = vmatpush.msra.mxu0 %v1820
    %4976 = vmatmul.f32.gmra.mxu0 %v4943
    %v4977 = vpop.f32.mrf.mxu0
    %v4978 = vadd.f32 %v4941, %v4977
    %4979 = vmatmul.f32.gmra.mxu0 %v4946
    %v4980 = vpop.f32.mrf.mxu0
    %v4981 = vadd.f32 %v4941, %v4980
    %4982 = vmatmul.f32.gmra.mxu0 %v4949
    %v4983 = vpop.f32.mrf.mxu0
    %v4984 = vadd.f32 %v4941, %v4983
    %4985 = vmatmul.f32.gmra.mxu0 %v4952
    %v4986 = vpop.f32.mrf.mxu0
    %v4987 = vadd.f32 %v4941, %v4986
    %4988 = vmatmul.f32.gmra.mxu0 %v4955
    %v4989 = vpop.f32.mrf.mxu0
    %v4990 = vadd.f32 %v4941, %v4989
    %4991 = vmatmul.f32.gmra.mxu0 %v4958
    %v4992 = vpop.f32.mrf.mxu0
    %v4993 = vadd.f32 %v4941, %v4992
    %4994 = vdwg.mxu0
    %v4995 = vmul.f32 %v4978, 1.702
    %v4996 = vmul.f32 %v4981, 1.702
    %v4997 = vmul.f32 %v4984, 1.702
    %v4998 = vmul.f32 %v4987, 1.702
    %v4999 = vmul.f32 %v4990, 1.702
    %v5000 = vmul.f32 %v4993, 1.702
    %v5001 = vxor.u32 %v4995, 2147483648
    %v5002 = vxor.u32 %v4996, 2147483648
    %v5003 = vxor.u32 %v4997, 2147483648
    %v5004 = vxor.u32 %v4998, 2147483648
    %v5005 = vxor.u32 %v4999, 2147483648
    %v5006 = vxor.u32 %v5000, 2147483648
    %v5007 = vmul.f32 %v5001, 1.442695
    %v5008 = vpow.pop %v5007
    %v5009 = vmul.f32 %v5002, 1.442695
    %v5010 = vpow.pop %v5009
    %v5011 = vmul.f32 %v5003, 1.442695
    %v5012 = vpow.pop %v5011
    %v5013 = vmul.f32 %v5004, 1.442695
    %v5014 = vpow.pop %v5013
    %v5015 = vmul.f32 %v5005, 1.442695
    %v5016 = vpow.pop %v5015
    %v5017 = vmul.f32 %v5006, 1.442695
    %v5018 = vpow.pop %v5017
    %v5019 = vadd.f32 %v5008, 1.0
    %v5020 = vadd.f32 %v5010, 1.0
    %v5021 = vadd.f32 %v5012, 1.0
    %v5022 = vadd.f32 %v5014, 1.0
    %v5023 = vadd.f32 %v5016, 1.0
    %v5024 = vadd.f32 %v5018, 1.0
    %v5025 = vrcp.pop %v5019
    %v5026 = vmul.f32 %v5019, %v5025
    %v5027 = vsub.f32 1.0, %v5026
    %v5028 = vmul.f32 %v5025, %v5027
    %v5029 = vadd.f32 %v5025, %v5028
    %vm5030 = vweird.f32 %v5019
    %vm5031 = vweird.f32 %v5025
    %vm5032 = vmor %vm5030, %vm5031
    %v5033 = vsel %vm5032, %v5025, %v5029
    %v5034 = vand.u32 2147483647, %v5019
    %vm5035 = vcmp.eq.f32.partialorder %v5034, 8.507059e+37
    %v5036 = vand.u32 %v5019, 2147483648
    %v5037 = vor.u32 1.1754944e-38, %v5036
    %v5038 = vsel %vm5035, %v5037, %v5033
    %v5039 = vmul.f32 1.0, %v5038
    %v5040 = vrcp.pop %v5020
    %v5041 = vmul.f32 %v5020, %v5040
    %v5042 = vsub.f32 1.0, %v5041
    %v5043 = vmul.f32 %v5040, %v5042
    %v5044 = vadd.f32 %v5040, %v5043
    %vm5045 = vweird.f32 %v5020
    %vm5046 = vweird.f32 %v5040
    %vm5047 = vmor %vm5045, %vm5046
    %v5048 = vsel %vm5047, %v5040, %v5044
    %v5049 = vand.u32 2147483647, %v5020
    %vm5050 = vcmp.eq.f32.partialorder %v5049, 8.507059e+37
    %v5051 = vand.u32 %v5020, 2147483648
    %v5052 = vor.u32 1.1754944e-38, %v5051
    %v5053 = vsel %vm5050, %v5052, %v5048
    %v5054 = vmul.f32 1.0, %v5053
    %v5055 = vrcp.pop %v5021
    %v5056 = vmul.f32 %v5021, %v5055
    %v5057 = vsub.f32 1.0, %v5056
    %v5058 = vmul.f32 %v5055, %v5057
    %v5059 = vadd.f32 %v5055, %v5058
    %vm5060 = vweird.f32 %v5021
    %vm5061 = vweird.f32 %v5055
    %vm5062 = vmor %vm5060, %vm5061
    %v5063 = vsel %vm5062, %v5055, %v5059
    %v5064 = vand.u32 2147483647, %v5021
    %vm5065 = vcmp.eq.f32.partialorder %v5064, 8.507059e+37
    %v5066 = vand.u32 %v5021, 2147483648
    %v5067 = vor.u32 1.1754944e-38, %v5066
    %v5068 = vsel %vm5065, %v5067, %v5063
    %v5069 = vmul.f32 1.0, %v5068
    %v5070 = vrcp.pop %v5022
    %v5071 = vmul.f32 %v5022, %v5070
    %v5072 = vsub.f32 1.0, %v5071
    %v5073 = vmul.f32 %v5070, %v5072
    %v5074 = vadd.f32 %v5070, %v5073
    %vm5075 = vweird.f32 %v5022
    %vm5076 = vweird.f32 %v5070
    %vm5077 = vmor %vm5075, %vm5076
    %v5078 = vsel %vm5077, %v5070, %v5074
    %v5079 = vand.u32 2147483647, %v5022
    %vm5080 = vcmp.eq.f32.partialorder %v5079, 8.507059e+37
    %v5081 = vand.u32 %v5022, 2147483648
    %v5082 = vor.u32 1.1754944e-38, %v5081
    %v5083 = vsel %vm5080, %v5082, %v5078
    %v5084 = vmul.f32 1.0, %v5083
    %v5085 = vrcp.pop %v5023
    %v5086 = vmul.f32 %v5023, %v5085
    %v5087 = vsub.f32 1.0, %v5086
    %v5088 = vmul.f32 %v5085, %v5087
    %v5089 = vadd.f32 %v5085, %v5088
    %vm5090 = vweird.f32 %v5023
    %vm5091 = vweird.f32 %v5085
    %vm5092 = vmor %vm5090, %vm5091
    %v5093 = vsel %vm5092, %v5085, %v5089
    %v5094 = vand.u32 2147483647, %v5023
    %vm5095 = vcmp.eq.f32.partialorder %v5094, 8.507059e+37
    %v5096 = vand.u32 %v5023, 2147483648
    %v5097 = vor.u32 1.1754944e-38, %v5096
    %v5098 = vsel %vm5095, %v5097, %v5093
    %v5099 = vmul.f32 1.0, %v5098
    %v5100 = vrcp.pop %v5024
    %v5101 = vmul.f32 %v5024, %v5100
    %v5102 = vsub.f32 1.0, %v5101
    %v5103 = vmul.f32 %v5100, %v5102
    %v5104 = vadd.f32 %v5100, %v5103
    %vm5105 = vweird.f32 %v5024
    %vm5106 = vweird.f32 %v5100
    %vm5107 = vmor %vm5105, %vm5106
    %v5108 = vsel %vm5107, %v5100, %v5104
    %v5109 = vand.u32 2147483647, %v5024
    %vm5110 = vcmp.eq.f32.partialorder %v5109, 8.507059e+37
    %v5111 = vand.u32 %v5024, 2147483648
    %v5112 = vor.u32 1.1754944e-38, %v5111
    %v5113 = vsel %vm5110, %v5112, %v5108
    %v5114 = vmul.f32 1.0, %v5113
    %v5115 = vmul.f32 %v4978, %v5039
    %v5116 = vmul.f32 %v4981, %v5054
    %v5117 = vmul.f32 %v4984, %v5069
    %v5118 = vmul.f32 %v4987, %v5084
    %v5119 = vmul.f32 %v4990, %v5099
    %v5120 = vmul.f32 %v4993, %v5114
    %5121 = vmatpush.msra.mxu0 %v1855
    %5122 = vmatpush.msra.mxu0 %v1854
    %5123 = vmatpush.msra.mxu0 %v1853
    %5124 = vmatpush.msra.mxu0 %v1852
    %5125 = vmatpush.msra.mxu0 %v1851
    %5126 = vmatpush.msra.mxu0 %v1850
    %5127 = vmatpush.msra.mxu0 %v1849
    %5128 = vmatpush.msra.mxu0 %v1848
    %5129 = vmatpush.msra.mxu0 %v1847
    %5130 = vmatpush.msra.mxu0 %v1846
    %5131 = vmatpush.msra.mxu0 %v1845
    %5132 = vmatpush.msra.mxu0 %v1844
    %5133 = vmatpush.msra.mxu0 %v1843
    %5134 = vmatpush.msra.mxu0 %v1842
    %5135 = vmatpush.msra.mxu0 %v1841
    %5136 = vmatpush.msra.mxu0 %v1840
    %5137 = vmatmul.f32.gmra.mxu0 %v5115
    %v5138 = vpop.f32.mrf.mxu0
    %v5139 = vadd.f32 0.0, %v5138
    %5140 = vmatmul.f32.gmra.mxu0 %v5116
    %v5141 = vpop.f32.mrf.mxu0
    %v5142 = vadd.f32 0.0, %v5141
    %5143 = vmatmul.f32.gmra.mxu0 %v5117
    %v5144 = vpop.f32.mrf.mxu0
    %v5145 = vadd.f32 0.0, %v5144
    %5146 = vmatmul.f32.gmra.mxu0 %v5118
    %v5147 = vpop.f32.mrf.mxu0
    %v5148 = vadd.f32 0.0, %v5147
    %5149 = vmatmul.f32.gmra.mxu0 %v5119
    %v5150 = vpop.f32.mrf.mxu0
    %v5151 = vadd.f32 0.0, %v5150
    %5152 = vmatmul.f32.gmra.mxu0 %v5120
    %v5153 = vpop.f32.mrf.mxu0
    %v5154 = vadd.f32 0.0, %v5153
    %5155 = vdwg.mxu0
    %v5156 = vadd.f32 %v4789, %v5139
    %v5157 = vadd.f32 %v4790, %v5142
    %v5158 = vadd.f32 %v4791, %v5145
    %v5159 = vadd.f32 %v4792, %v5148
    %v5160 = vadd.f32 %v4793, %v5151
    %v5161 = vadd.f32 %v4794, %v5154
    %v5162 = vperm.slane %v1857, 7
    %v5163 = vadd.f32 %v5156, %v5162
    %v5164 = vadd.f32 %v5157, %v5162
    %v5165 = vadd.f32 %v5158, %v5162
    %v5166 = vadd.f32 %v5159, %v5162
    %v5167 = vadd.f32 %v5160, %v5162
    %v5168 = vadd.f32 %v5161, %v5162
    %v5169 = vsel %vm178, %v5163, 0.0
    %5170 = vadd.xlane.f32.xlu0 %v5169
    %v5171 = vpop.xlane.xlu0 %5170
    %v5172 = vsel %vm178, %v5164, 0.0
    %5173 = vadd.xlane.f32.xlu0 %v5172
    %v5174 = vpop.xlane.xlu0 %5173
    %v5175 = vsel %vm178, %v5165, 0.0
    %5176 = vadd.xlane.f32.xlu0 %v5175
    %v5177 = vpop.xlane.xlu0 %5176
    %v5178 = vsel %vm178, %v5166, 0.0
    %5179 = vadd.xlane.f32.xlu0 %v5178
    %v5180 = vpop.xlane.xlu0 %5179
    %v5181 = vsel %vm178, %v5167, 0.0
    %5182 = vadd.xlane.f32.xlu0 %v5181
    %v5183 = vpop.xlane.xlu0 %5182
    %v5184 = vsel %vm178, %v5168, 0.0
    %5185 = vadd.xlane.f32.xlu0 %v5184
    %v5186 = vpop.xlane.xlu0 %5185
    %v5187 = vmul.f32 %v5171, %v192
    %v5188 = vmul.f32 %v5174, %v192
    %v5189 = vmul.f32 %v5177, %v192
    %v5190 = vmul.f32 %v5180, %v192
    %v5191 = vmul.f32 %v5183, %v192
    %v5192 = vmul.f32 %v5186, %v192
    %v5193 = vsub.f32 %v5163, %v5187
    %v5194 = vsub.f32 %v5164, %v5188
    %v5195 = vsub.f32 %v5165, %v5189
    %v5196 = vsub.f32 %v5166, %v5190
    %v5197 = vsub.f32 %v5167, %v5191
    %v5198 = vsub.f32 %v5168, %v5192
    %v5199 = vmul.f32 %v5193, %v5193
    %v5200 = vmul.f32 %v5194, %v5194
    %v5201 = vmul.f32 %v5195, %v5195
    %v5202 = vmul.f32 %v5196, %v5196
    %v5203 = vmul.f32 %v5197, %v5197
    %v5204 = vmul.f32 %v5198, %v5198
    %v5205 = vsel %vm178, %v5199, 0.0
    %5206 = vadd.xlane.f32.xlu0 %v5205
    %v5207 = vpop.xlane.xlu0 %5206
    %v5208 = vsel %vm178, %v5200, 0.0
    %5209 = vadd.xlane.f32.xlu0 %v5208
    %v5210 = vpop.xlane.xlu0 %5209
    %v5211 = vsel %vm178, %v5201, 0.0
    %5212 = vadd.xlane.f32.xlu0 %v5211
    %v5213 = vpop.xlane.xlu0 %5212
    %v5214 = vsel %vm178, %v5202, 0.0
    %5215 = vadd.xlane.f32.xlu0 %v5214
    %v5216 = vpop.xlane.xlu0 %5215
    %v5217 = vsel %vm178, %v5203, 0.0
    %5218 = vadd.xlane.f32.xlu0 %v5217
    %v5219 = vpop.xlane.xlu0 %5218
    %v5220 = vsel %vm178, %v5204, 0.0
    %5221 = vadd.xlane.f32.xlu0 %v5220
    %v5222 = vpop.xlane.xlu0 %5221
    %v5223 = vmul.f32 %v5207, %v192
    %v5224 = vmul.f32 %v5210, %v192
    %v5225 = vmul.f32 %v5213, %v192
    %v5226 = vmul.f32 %v5216, %v192
    %v5227 = vmul.f32 %v5219, %v192
    %v5228 = vmul.f32 %v5222, %v192
    %v5229 = vadd.f32 %v5223, 1e-05
    %v5230 = vadd.f32 %v5224, 1e-05
    %v5231 = vadd.f32 %v5225, 1e-05
    %v5232 = vadd.f32 %v5226, 1e-05
    %v5233 = vadd.f32 %v5227, 1e-05
    %v5234 = vadd.f32 %v5228, 1e-05
    %v5235 = vrsqrt.pop %v5229
    %v5236 = vmul.f32 %v5235, %v5229
    %v5237 = vmul.f32 %v5236, %v5235
    %v5238 = vmul.f32 0.5, %v5237
    %v5239 = vsub.f32 1.5, %v5238
    %v5240 = vmul.f32 %v5235, %v5239
    %vm5241 = vweird.f32 %v5229
    %vm5242 = vweird.f32 %v5235
    %vm5243 = vmor %vm5241, %vm5242
    %v5244 = vsel %vm5243, %v5235, %v5240
    %v5245 = vrsqrt.pop %v5230
    %v5246 = vmul.f32 %v5245, %v5230
    %v5247 = vmul.f32 %v5246, %v5245
    %v5248 = vmul.f32 0.5, %v5247
    %v5249 = vsub.f32 1.5, %v5248
    %v5250 = vmul.f32 %v5245, %v5249
    %vm5251 = vweird.f32 %v5230
    %vm5252 = vweird.f32 %v5245
    %vm5253 = vmor %vm5251, %vm5252
    %v5254 = vsel %vm5253, %v5245, %v5250
    %v5255 = vrsqrt.pop %v5231
    %v5256 = vmul.f32 %v5255, %v5231
    %v5257 = vmul.f32 %v5256, %v5255
    %v5258 = vmul.f32 0.5, %v5257
    %v5259 = vsub.f32 1.5, %v5258
    %v5260 = vmul.f32 %v5255, %v5259
    %vm5261 = vweird.f32 %v5231
    %vm5262 = vweird.f32 %v5255
    %vm5263 = vmor %vm5261, %vm5262
    %v5264 = vsel %vm5263, %v5255, %v5260
    %v5265 = vrsqrt.pop %v5232
    %v5266 = vmul.f32 %v5265, %v5232
    %v5267 = vmul.f32 %v5266, %v5265
    %v5268 = vmul.f32 0.5, %v5267
    %v5269 = vsub.f32 1.5, %v5268
    %v5270 = vmul.f32 %v5265, %v5269
    %vm5271 = vweird.f32 %v5232
    %vm5272 = vweird.f32 %v5265
    %vm5273 = vmor %vm5271, %vm5272
    %v5274 = vsel %vm5273, %v5265, %v5270
    %v5275 = vrsqrt.pop %v5233
    %v5276 = vmul.f32 %v5275, %v5233
    %v5277 = vmul.f32 %v5276, %v5275
    %v5278 = vmul.f32 0.5, %v5277
    %v5279 = vsub.f32 1.5, %v5278
    %v5280 = vmul.f32 %v5275, %v5279
    %vm5281 = vweird.f32 %v5233
    %vm5282 = vweird.f32 %v5275
    %vm5283 = vmor %vm5281, %vm5282
    %v5284 = vsel %vm5283, %v5275, %v5280
    %v5285 = vrsqrt.pop %v5234
    %v5286 = vmul.f32 %v5285, %v5234
    %v5287 = vmul.f32 %v5286, %v5285
    %v5288 = vmul.f32 0.5, %v5287
    %v5289 = vsub.f32 1.5, %v5288
    %v5290 = vmul.f32 %v5285, %v5289
    %vm5291 = vweird.f32 %v5234
    %vm5292 = vweird.f32 %v5285
    %vm5293 = vmor %vm5291, %vm5292
    %v5294 = vsel %vm5293, %v5285, %v5290
    %v5295 = vmul.f32 %v5193, %v5244
    %v5296 = vmul.f32 %v5194, %v5254
    %v5297 = vmul.f32 %v5195, %v5264
    %v5298 = vmul.f32 %v5196, %v5274
    %v5299 = vmul.f32 %v5197, %v5284
    %v5300 = vmul.f32 %v5198, %v5294
    %v5301 = vperm.slane %v1799, 0
    %v5302 = vmul.f32 %v5295, %v5301
    %v5303 = vmul.f32 %v5296, %v5301
    %v5304 = vmul.f32 %v5297, %v5301
    %v5305 = vmul.f32 %v5298, %v5301
    %v5306 = vmul.f32 %v5299, %v5301
    %v5307 = vmul.f32 %v5300, %v5301
    %v5308 = vperm.slane %v1799, 1
    %v5309 = vadd.f32 %v5302, %v5308
    %v5310 = vadd.f32 %v5303, %v5308
    %v5311 = vadd.f32 %v5304, %v5308
    %v5312 = vadd.f32 %v5305, %v5308
    %v5313 = vadd.f32 %v5306, %v5308
    %v5314 = vadd.f32 %v5307, %v5308
    %v5315 = vld [vmem:[%s21] sm:$0xf]
    %v5317 = vsel %vm2153, %v5315, 0
    %5319 = vmatpush.msra.mxu0 0.0
    %5320 = vmatpush.msra.mxu0 0.0
    %5321 = vmatpush.msra.mxu0 0.0
    %5322 = vmatpush.msra.mxu0 0.0
    %5323 = vmatpush.msra.mxu0 0.0
    %5324 = vmatpush.msra.mxu0 0.0
    %5325 = vmatpush.msra.mxu0 0.0
    %5326 = vmatpush.msra.mxu0 0.0
    %5327 = vmatpush.msra.mxu0 0.0
    %5328 = vmatpush.msra.mxu0 0.0
    %5329 = vmatpush.msra.mxu0 %v5314
    %5330 = vmatpush.msra.mxu0 %v5313
    %5331 = vmatpush.msra.mxu0 %v5312
    %5332 = vmatpush.msra.mxu0 %v5311
    %5333 = vmatpush.msra.mxu0 %v5310
    %5334 = vmatpush.msra.mxu0 %v5309
    %5335 = vmatmul.f32.gmra.mxu0 %v5317
    %v5336 = vpop.f32.mrf.mxu0
    %v5337 = vadd.f32 0.0, %v5336
    %5338 = vdwg.mxu0
    %v5339 = vld [vmem:[%s22] sm:$0xff]
    %v5340 = vld [vmem:[%s22 + $0x8] sm:$0xff]
    %v5341 = vld [vmem:[%s22 + $0x10] sm:$0xff]
    %v5342 = vld [vmem:[%s22 + $0x18] sm:$0xff]
    %v5344 = vsel %vm178, %v5337, 0
    %5346 = vmatpush.msra.mxu0 0.0
    %5347 = vmatpush.msra.mxu0 0.0
    %5348 = vmatpush.msra.mxu0 0.0
    %5349 = vmatpush.msra.mxu0 0.0
    %5350 = vmatpush.msra.mxu0 0.0
    %5351 = vmatpush.msra.mxu0 0.0
    %5352 = vmatpush.msra.mxu0 0.0
    %5353 = vmatpush.msra.mxu0 0.0
    %5354 = vmatpush.msra.mxu0 0.0
    %5355 = vmatpush.msra.mxu0 0.0
    %5356 = vmatpush.msra.mxu0 0.0
    %5357 = vmatpush.msra.mxu0 0.0
    %5358 = vmatpush.msra.mxu0 %v5342
    %5359 = vmatpush.msra.mxu0 %v5341
    %5360 = vmatpush.msra.mxu0 %v5340
    %5361 = vmatpush.msra.mxu0 %v5339
    %5362 = vmatmul.f32.gmra.mxu0 %v5344
    %v5363 = vpop.f32.mrf.mxu0
    %v5364 = vadd.f32 0.0, %v5363
    %5365 = vdwg.mxu0
    %v5366 = vmul.f32 %v5364, %v5364
    %vm5367 = vcmask 125952
    %v5368 = vsel %vm5367, %v5366, 0.0
    %5369 = vadd.xlane.f32.xlu0 %v5368
    %v5370 = vpop.xlane.xlu0 %5369
    %v5371 = vmax.f32 %v5370, 1e-30
    %v5372 = vrsqrt.pop %v5371
    %v5373 = vmul.f32 %v5372, %v5371
    %v5374 = vmul.f32 %v5373, %v5372
    %v5375 = vmul.f32 0.5, %v5374
    %v5376 = vsub.f32 1.5, %v5375
    %v5377 = vmul.f32 %v5372, %v5376
    %vm5378 = vweird.f32 %v5371
    %vm5379 = vweird.f32 %v5372
    %vm5380 = vmor %vm5378, %vm5379
    %v5381 = vsel %vm5380, %v5372, %v5377
    %v5382 = vmul.f32 %v5364, %v5381
    %5383 = vst.msk [vmem:[#allocation4] sm:$0xf] %vm5367, %v5382
    // Predicated region
    $region94: #{tpu_custom_call.1} parent=1 // pred_check
      _
    $region95: #{tpu_custom_call.1} parent=1 // pred_check_branch
      %5385 = sbr.rel (0) target = $region97
    $region96: #{tpu_custom_call.1} parent=1 // pred_region
      %5387 = vsyncadd [#allocation3], 0
      %s5389 = sshll.u32 [#allocation2], 4
      %s5390 = int_to_ptr.vmem [resolvable:$true] %s5389
      %s5391 = sshll.u32 %s23, 4
      %s5392 = int_to_ptr.hbm [resolvable:$true] %s5391
      %5394 = dma.vmem_to_hbm [thread:$0]  %s5390, 32, %s5392, [#allocation3]
    $region97: #{tpu_custom_call.1} parent=1 // pred_fallthru
      _
    // Predicated region
    $region98: #{tpu_custom_call.1} parent=1 // pred_check
      _
    $region99: #{tpu_custom_call.1} parent=1 // pred_check_branch
      %5396 = sbr.rel (0) target = $region101
    $region100: #{tpu_custom_call.1} parent=1 // pred_region
      %5398 = vsyncadd [#allocation5], 0
      %s5400 = sshll.u32 [#allocation4], 4
      %s5401 = int_to_ptr.vmem [resolvable:$true] %s5400
      %s5402 = sshll.u32 %s24, 4
      %s5403 = int_to_ptr.hbm [resolvable:$true] %s5402
      %5405 = dma.vmem_to_hbm [thread:$0]  %s5401, 64, %s5403, [#allocation5]
    $region101: #{tpu_custom_call.1} parent=1 // pred_fallthru
      _
    // Predicated region
    $region102: #{tpu_custom_call.1} parent=1 // pred_check
      _
    $region103: #{tpu_custom_call.1} parent=1 // pred_check_branch
      %5407 = sbr.rel (0) target = $region105
    $region104: #{tpu_custom_call.1} parent=1 // pred_region
      %5409 = dma.done [#allocation3], 32
    $region105: #{tpu_custom_call.1} parent=1 // pred_fallthru
      _
    // Predicated region
    $region106: #{tpu_custom_call.1} parent=1 // pred_check
      _
    $region107: #{tpu_custom_call.1} parent=1 // pred_check_branch
      %5411 = sbr.rel (0) target = $region109
    $region108: #{tpu_custom_call.1} parent=1 // pred_region
      %5413 = dma.done [#allocation5], 64
    $region109: #{tpu_custom_call.1} parent=1 // pred_fallthru
      _
    %5414 = vsyncpa [#allocation3], 1
    %5415 = vsyncpa [#allocation5], 1

</llo_original>
